<compile_context>
chip_gen: v7x
topology: tpu7x:2x2x1
jax: 0.10.0
libtpu: 0.0.40
codegen_flags: <defaults>
</compile_context>

<pallas_src>
import functools

import jax
import jax.numpy as jnp
from jax.experimental import pallas as pl
from jax.experimental.pallas import tpu as pltpu

EPS = 1e-5  # torch.nn.LayerNorm default


def _layernorm(x, gamma, beta):
    mu = jnp.mean(x, axis=-1, keepdims=True)
    var = jnp.mean((x - mu) ** 2, axis=-1, keepdims=True)
    return (x - mu) * jax.lax.rsqrt(var + EPS) * gamma + beta


# ----------------------------- fused Pallas kernel --------------------------

def gtransformer_kernel(x_ref, pos_ref, mask_ref,
                        wqkv_ref, wu_ref, w1_ref, w2_ref, vecs_ref,
                        wo_ref, bo_ref,
                        out_ref,
                        h_ref,                        # VMEM scratch: residual stream (f32)
                        *, heads):
    layer = pl.program_id(1)
    n_layers = pl.num_programs(1)
    bb, t, e = x_ref.shape
    s = e // heads
    rows = bb * t
    nt = out_ref.shape[2]

    # ---- first layer step: residual stream = token emb + positional emb ----
    @pl.when(layer == 0)
    def _():
        h_ref[...] = (x_ref[...] + pos_ref[...][None]).reshape(rows, e)

    h = h_ref[...]                                   # (rows, e) f32
    hb = h.astype(jnp.bfloat16)

    # ---- per-layer packed vectors: [bu, g1, be1, bf1, bf2, g2, be2] ----
    vecs = vecs_ref[0]                               # (8, 4e) f32
    bu = vecs[0, :e]
    g1 = vecs[1, :e]
    be1 = vecs[2, :e]
    bf1 = vecs[3, :]                                 # (4e,)
    bf2 = vecs[4, :e]
    g2 = vecs[5, :e]
    be2 = vecs[6, :e]

    # ---- fused QKV projection: one full-width bf16 matmul (N = 3e) ----
    # (1/sqrt(e) score scale already folded into the q columns of wqkv)
    qkv = jnp.dot(hb, wqkv_ref[0],
                  preferred_element_type=jnp.float32)          # (rows, 3e) f32

    # ---- multi-head causal self-attention ----
    # s is a multiple of 128 at these shapes, so the per-head column slices are
    # lane-tile aligned; each per-head dot is a full-width batched dot_general
    # with a single leading batch dim.  The unify projection is folded per head
    # (K = s full-width slabs) and accumulated — no concatenation.
    mask = mask_ref[...]                             # (1, t, t) additive, f32
    att = jnp.zeros((rows, e), jnp.float32)
    for hh in range(heads):                          # static unroll (heads is small)
        q = qkv[:, hh * s:(hh + 1) * s].reshape(bb, t, s).astype(jnp.bfloat16)
        k = qkv[:, e + hh * s:e + (hh + 1) * s].reshape(bb, t, s).astype(jnp.bfloat16)
        v = qkv[:, 2 * e + hh * s:2 * e + (hh + 1) * s].reshape(bb, t, s).astype(jnp.bfloat16)
        d = jax.lax.dot_general(q, k, (((2,), (2,)), ((0,), (0,))),
                                preferred_element_type=jnp.float32)         # (bb,t,t)
        d = d + mask
        m = jnp.max(d, axis=-1, keepdims=True)
        p = jnp.exp(d - m)
        attn = p * pl.reciprocal(jnp.sum(p, axis=-1, keepdims=True), approx=True)
        o = jax.lax.dot_general(attn.astype(jnp.bfloat16), v,
                                (((2,), (1,)), ((0,), (0,))),
                                preferred_element_type=jnp.float32)         # (bb,t,s)
        att = att + jnp.dot(o.reshape(rows, s).astype(jnp.bfloat16), wu_ref[0, hh],
                            preferred_element_type=jnp.float32)             # (rows,e)
    att = att + bu

    y = _layernorm(att + h, g1, be1)                 # f32

    # ---- feed-forward (4x expansion + ReLU), full-width bf16 matmuls ----
    hid = jnp.maximum(
        jnp.dot(y.astype(jnp.bfloat16), w1_ref[0],
                preferred_element_type=jnp.float32) + bf1, 0.0)             # (rows,4e)
    ff = jnp.dot(hid.astype(jnp.bfloat16), w2_ref[0],
                 preferred_element_type=jnp.float32) + bf2                  # (rows,e)
    h_new = _layernorm(ff + y, g2, be2)
    h_ref[...] = h_new

    # ---- fused output head + log-softmax on the last layer step ----
    # TODO(synk): for a realistic vocabulary, tile the output head over vocab
    # (extra grid axis + running online LSE) instead of holding full wo in VMEM.
    @pl.when(layer == n_layers - 1)
    def _():
        logits = jnp.dot(h_new.astype(jnp.bfloat16), wo_ref[...],
                         preferred_element_type=jnp.float32) + bo_ref[...]
        mx = jnp.max(logits, axis=-1, keepdims=True)
        lse = mx + jnp.log(jnp.sum(jnp.exp(logits - mx), axis=-1, keepdims=True))
        out_ref[...] = (logits - lse).reshape(bb, t, nt)


# ----------------------------- wrapper --------------------------------------

def gtransformer_forward(tokens, params, heads, batch_block=None):
    # TODO(synk): token-embedding gather stays in XLA glue; it could be fused via
    # scalar-prefetch + pl.Element row indexing.
    tok = params['tok_emb'][tokens].astype(jnp.float32)      # (b, t, e)
    b, t, e = tok.shape
    pos = params['pos_emb'][:t].astype(jnp.float32)          # (t, e)
    s = e // heads
    depth = len(params['blocks'])
    nt = params['wo'].shape[0]

    if batch_block is None:
        batch_block = b      # fold whole batch into one block; do NOT split the
    assert b % batch_block == 0   # tiny problem across TensorCores (per review)
    nb = b // batch_block
    rows = batch_block * t   # aim for >= 128 (v5e) / 256 (v6e, v7x)

    # ---- pre-arrange weights ONCE outside the kernel (no in-kernel .T) ----
    scale = 1.0 / (e ** 0.5)          # former: q, k each / e**0.25 => 1/sqrt(e)

    def per_layer_qkv(blk):           # (e, 3e): columns [q | k | v], scale folded into q
        return jnp.concatenate([blk['wq'].T * scale, blk['wk'].T, blk['wv'].T], axis=-1)

    wqkv = jnp.stack([per_layer_qkv(blk) for blk in params['blocks']]
                     ).astype(jnp.bfloat16)                           # (depth, e, 3e)
    # unify fold: att @ wu.T == sum_h o_h @ wu[:, h*s:(h+1)*s].T -> (depth, heads, s, e)
    wu_h = jnp.transpose(
        jnp.stack([blk['wu'] for blk in params['blocks']]).reshape(depth, e, heads, s),
        (0, 2, 3, 1)).astype(jnp.bfloat16)
    w1t = jnp.stack([blk['w1'].T for blk in params['blocks']]).astype(jnp.bfloat16)  # (depth, e, 4e)
    w2t = jnp.stack([blk['w2'].T for blk in params['blocks']]).astype(jnp.bfloat16)  # (depth, 4e, e)
    # TODO(synk): for large emb on v7x, tile w1t/w2t along the 4e hidden dim
    # (extra "arbitrary" grid axis) so double-buffered slabs stay under 64 MiB.

    # pack the 7 small per-layer vectors into one streamed (depth, 8, 4e) slab
    def pack_vecs(blk):
        def pad_e(v):                 # (1, e) -> (4e,)
            return jnp.pad(v[0], (0, 3 * e))
        return jnp.stack([pad_e(blk['bu']), pad_e(blk['g1']), pad_e(blk['be1']),
                          blk['bf1'][0], pad_e(blk['bf2']), pad_e(blk['g2']),
                          pad_e(blk['be2']), jnp.zeros((4 * e,), jnp.float32)])
    vecs = jnp.stack([pack_vecs(blk) for blk in params['blocks']])    # (depth, 8, 4e) f32

    wot = params['wo'].T.astype(jnp.bfloat16)                         # (e, nt)
    bo = params['bo'].astype(jnp.float32)                             # (1, nt)

    # additive causal mask (strictly-upper triangle masked), built once here
    causal = jnp.arange(t)[None, :] > jnp.arange(t)[:, None]
    mask_add = jnp.where(causal, -1e30, 0.0).astype(jnp.float32)[None]  # (1, t, t)

    in_specs = [
        pl.BlockSpec((batch_block, t, e), lambda i, l: (i, 0, 0)),       # tok (f32)
        pl.BlockSpec((t, e), lambda i, l: (0, 0)),                       # pos (resident)
        pl.BlockSpec((1, t, t), lambda i, l: (0, 0, 0)),                 # causal mask
        pl.BlockSpec((1, e, 3 * e), lambda i, l: (l, 0, 0)),             # wqkv  (streamed)
        pl.BlockSpec((1, heads, s, e), lambda i, l: (l, 0, 0, 0)),       # wu_h  (streamed)
        pl.BlockSpec((1, e, 4 * e), lambda i, l: (l, 0, 0)),             # w1t   (streamed)
        pl.BlockSpec((1, 4 * e, e), lambda i, l: (l, 0, 0)),             # w2t   (streamed)
        pl.BlockSpec((1, 8, 4 * e), lambda i, l: (l, 0, 0)),             # vecs  (streamed)
        pl.BlockSpec((e, nt), lambda i, l: (0, 0)),                      # wot (resident)
        pl.BlockSpec((1, nt), lambda i, l: (0, 0)),                      # bo  (resident)
    ]

    return pl.pallas_call(
        functools.partial(gtransformer_kernel, heads=heads),
        out_shape=jax.ShapeDtypeStruct((b, t, nt), jnp.float32),
        grid=(nb, depth),                       # layer axis LAST + "arbitrary"
        in_specs=in_specs,
        out_specs=pl.BlockSpec((batch_block, t, nt), lambda i, l: (i, 0, 0)),
        scratch_shapes=[pltpu.VMEM((rows, e), jnp.float32)],
        compiler_params=pltpu.CompilerParams(
            dimension_semantics=("parallel", "arbitrary"),
            vmem_limit_bytes=32 * 1024 * 1024),
    )(tok, pos, mask_add, wqkv, wu_h, w1t, w2t, vecs, wot, bo)


# ----------------------------- reference (plain JAX, f32) -------------------

def reference_forward(tokens, params, heads):
    tok = params['tok_emb'][tokens]
    b, t, e = tok.shape
    h = tok + params['pos_emb'][:t][None]
    s = e // heads
    scale = 1.0 / jnp.sqrt(e)
    causal = jnp.arange(t)[None, :] > jnp.arange(t)[:, None]
    for blk in params['blocks']:
        q = (h @ blk['wq'].T).reshape(b, t, heads, s).transpose(0, 2, 1, 3)
        k = (h @ blk['wk'].T).reshape(b, t, heads, s).transpose(0, 2, 1, 3)
        v = (h @ blk['wv'].T).reshape(b, t, heads, s).transpose(0, 2, 1, 3)
        d = jnp.einsum('bhqs,bhks->bhqk', q, k) * scale
        d = jnp.where(causal[None, None], -1e30, d)
        attn = jax.nn.softmax(d, axis=-1)
        o = jnp.einsum('bhqk,bhks->bhqs', attn, v).transpose(0, 2, 1, 3).reshape(b, t, e)
        o = o @ blk['wu'].T + blk['bu']
        y = _layernorm(o + h, blk['g1'], blk['be1'])
        ff = jnp.maximum(y @ blk['w1'].T + blk['bf1'], 0.0) @ blk['w2'].T + blk['bf2']
        h = _layernorm(ff + y, blk['g2'], blk['be2'])
    logits = h @ params['wo'].T + params['bo']
    return jax.nn.log_softmax(logits, axis=-1)


# ----------------------------- params ---------------------------------------

def init_params(key, emb, heads, depth, seq_length, num_tokens):
    ks = jax.random.split(key, 4 + depth)

    def lin(k, out_d, in_d, scale=0.1):
        return scale * jax.random.normal(k, (out_d, in_d), jnp.float32)

    params = dict(
        tok_emb=0.1 * jax.random.normal(ks[0], (num_tokens, emb), jnp.float32),
        pos_emb=0.1 * jax.random.normal(ks[1], (seq_length, emb), jnp.float32),
        wo=0.1 * jax.random.normal(ks[2], (num_tokens, emb), jnp.float32),
        bo=0.1 * jax.random.normal(ks[3], (1, num_tokens), jnp.float32),
        blocks=[],
    )
    for i in range(depth):
        bk = jax.random.split(ks[4 + i], 9)
        params['blocks'].append(dict(
            wq=lin(bk[0], emb, emb), wk=lin(bk[1], emb, emb), wv=lin(bk[2], emb, emb),
            wu=lin(bk[3], emb, emb),
            bu=0.1 * jax.random.normal(bk[4], (1, emb), jnp.float32),
            g1=jnp.ones((1, emb), jnp.float32), be1=jnp.zeros((1, emb), jnp.float32),
            w1=lin(bk[5], 4 * emb, emb),
            bf1=0.1 * jax.random.normal(bk[6], (1, 4 * emb), jnp.float32),
            w2=lin(bk[7], emb, 4 * emb),
            bf2=0.1 * jax.random.normal(bk[8], (1, emb), jnp.float32),
            g2=jnp.ones((1, emb), jnp.float32), be2=jnp.zeros((1, emb), jnp.float32),
        ))
    return params


def _bf16_rounded(params):
    """Round matrix weights to bf16 (and back to f32) for an apples-to-apples
    reference comparison against the bf16-streaming kernel."""
    def rnd(x):
        return x.astype(jnp.bfloat16).astype(jnp.float32)
    out = dict(params)
    out['wo'] = rnd(params['wo'])
    blocks = []
    for blk in params['blocks']:
        nb = dict(blk)
        for k in ('wq', 'wk', 'wv', 'wu', 'w1', 'w2'):
            nb[k] = rnd(blk[k])
        blocks.append(nb)
    out['blocks'] = blocks
    return out


# ----------------------------- main ------------------------------------------

if __name__ == "__main__":
    # lane-dense small shapes: emb, head dim (emb/heads), seq and num_tokens are
    # all multiples of 128, and batch*seq = 256 rows per grid step.
    EMB, HEADS, DEPTH, SEQ, NUM_TOKENS, BATCH = 256, 2, 2, 128, 128, 2

    key = jax.random.PRNGKey(0)
    kp, kx = jax.random.split(key)
    params = init_params(kp, EMB, HEADS, DEPTH, SEQ, NUM_TOKENS)
    tokens = jax.random.randint(kx, (BATCH, SEQ), 0, NUM_TOKENS, dtype=jnp.int32)

    out = gtransformer_forward(tokens, params, HEADS)      # (B, T, NUM_TOKENS)
    out = jax.block_until_ready(out)

    # sanity: log-probs exponentiate to a distribution over the vocab
    probs_sum = jnp.exp(out).sum(axis=-1)
    assert out.shape == (BATCH, SEQ, NUM_TOKENS)
    assert bool(jnp.all(jnp.isfinite(out)))
    assert bool(jnp.allclose(probs_sum, 1.0, atol=1e-3))

    # numerical check against a plain-JAX reference (same bf16-rounded weights)
    with jax.default_matmul_precision('float32'):
        ref = jax.block_until_ready(
            reference_forward(tokens, _bf16_rounded(params), HEADS))
    assert bool(jnp.allclose(out, ref, atol=5e-2, rtol=3e-2))

    print("KERNEL_OK")
</pallas_src>

<mosaic_0001>
module attributes {stable_mosaic.version = 11 : i64} {
  func.func @gtransformer_kernel(%arg0: i32, %arg1: i32, %arg2: memref<2x128x256xf32, #tpu.memory_space<vmem>>, %arg3: memref<128x256xf32, #tpu.memory_space<vmem>>, %arg4: memref<1x128x128xf32, #tpu.memory_space<vmem>>, %arg5: memref<1x256x768xbf16, #tpu.memory_space<vmem>>, %arg6: memref<1x2x128x256xbf16, #tpu.memory_space<vmem>>, %arg7: memref<1x256x1024xbf16, #tpu.memory_space<vmem>>, %arg8: memref<1x1024x256xbf16, #tpu.memory_space<vmem>>, %arg9: memref<1x8x1024xf32, #tpu.memory_space<vmem>>, %arg10: memref<256x128xbf16, #tpu.memory_space<vmem>>, %arg11: memref<1x128xf32, #tpu.memory_space<vmem>>, %arg12: memref<2x128x128xf32, #tpu.memory_space<vmem>>, %arg13: memref<256x256xf32, #tpu.memory_space<vmem>>) attributes {dimension_semantics = [#tpu.dimension_semantics<parallel>, #tpu.dimension_semantics<arbitrary>], iteration_bounds = array<i64: 1, 2>, scalar_prefetch = 0 : i64, scratch_operands = 1 : i64, tpu.core_type = #tpu.core_type<tc>, window_params = [{transform_indices = @transform_0, window_bounds = array<i64: 2, 128, 256>}, {pipeline_mode = #tpu.pipeline_mode<synchronous>, transform_indices = @transform_1, window_bounds = array<i64: 128, 256>}, {pipeline_mode = #tpu.pipeline_mode<synchronous>, transform_indices = @transform_2, window_bounds = array<i64: 1, 128, 128>}, {transform_indices = @transform_3, window_bounds = array<i64: 1, 256, 768>}, {transform_indices = @transform_4, window_bounds = array<i64: 1, 2, 128, 256>}, {transform_indices = @transform_5, window_bounds = array<i64: 1, 256, 1024>}, {transform_indices = @transform_6, window_bounds = array<i64: 1, 1024, 256>}, {transform_indices = @transform_7, window_bounds = array<i64: 1, 8, 1024>}, {pipeline_mode = #tpu.pipeline_mode<synchronous>, transform_indices = @transform_8, window_bounds = array<i64: 256, 128>}, {pipeline_mode = #tpu.pipeline_mode<synchronous>, transform_indices = @transform_9, window_bounds = array<i64: 1, 128>}, {transform_indices = @transform_10, window_bounds = array<i64: 2, 128, 128>}]} {
    %c0_i32 = arith.constant 0 : i32
    %0 = arith.cmpi eq, %arg1, %c0_i32 : i32
    %1 = arith.extui %0 : i1 to i32
    %c0_i32_0 = arith.constant 0 : i32
    %2 = arith.cmpi ne, %1, %c0_i32_0 : i32
    scf.if %2 {
      %c0_51 = arith.constant 0 : index
      %c0_52 = arith.constant 0 : index
      %c0_53 = arith.constant 0 : index
      %159 = vector.load %arg2[%c0_51, %c0_52, %c0_53] : memref<2x128x256xf32, #tpu.memory_space<vmem>>, vector<2x128x256xf32>
      %c0_54 = arith.constant 0 : index
      %c0_55 = arith.constant 0 : index
      %160 = vector.load %arg3[%c0_54, %c0_55] : memref<128x256xf32, #tpu.memory_space<vmem>>, vector<128x256xf32>
      %161 = vector.shape_cast %160 : vector<128x256xf32> to vector<1x128x256xf32>
      %162 = vector.broadcast %161 : vector<1x128x256xf32> to vector<2x128x256xf32>
      %163 = arith.addf %159, %162 : vector<2x128x256xf32>
      %164 = vector.shape_cast %163 : vector<2x128x256xf32> to vector<256x256xf32>
      %c0_56 = arith.constant 0 : index
      %c0_57 = arith.constant 0 : index
      %165 = vector.load %arg13[%c0_56, %c0_57] : memref<256x256xf32, #tpu.memory_space<vmem>>, vector<256x256xf32>
      tpu.vector_store %arg13[%c0_56, %c0_57], %164 {strides = array<i32>} : memref<256x256xf32, #tpu.memory_space<vmem>>, vector<256x256xf32>,
    } else {
    }
    %c0 = arith.constant 0 : index
    %c0_1 = arith.constant 0 : index
    %3 = vector.load %arg13[%c0, %c0_1] : memref<256x256xf32, #tpu.memory_space<vmem>>, vector<256x256xf32>
    %4 = arith.truncf %3 : vector<256x256xf32> to vector<256x256xbf16>
    %c0_2 = arith.constant 0 : index
    %c0_3 = arith.constant 0 : index
    %c0_4 = arith.constant 0 : index
    %5 = vector.load %arg9[%c0_2, %c0_3, %c0_4] : memref<1x8x1024xf32, #tpu.memory_space<vmem>>, vector<1x8x1024xf32>
    %6 = vector.shape_cast %5 : vector<1x8x1024xf32> to vector<8x1024xf32>
    %7 = vector.extract_strided_slice %6 {offsets = [0, 0], sizes = [1, 256], strides = [1, 1]} : vector<8x1024xf32> to vector<1x256xf32>
    %8 = vector.shape_cast %7 : vector<1x256xf32> to vector<256xf32>
    %9 = vector.extract_strided_slice %6 {offsets = [1, 0], sizes = [1, 256], strides = [1, 1]} : vector<8x1024xf32> to vector<1x256xf32>
    %10 = vector.shape_cast %9 : vector<1x256xf32> to vector<256xf32>
    %11 = vector.extract_strided_slice %6 {offsets = [2, 0], sizes = [1, 256], strides = [1, 1]} : vector<8x1024xf32> to vector<1x256xf32>
    %12 = vector.shape_cast %11 : vector<1x256xf32> to vector<256xf32>
    %13 = vector.extract_strided_slice %6 {offsets = [3, 0], sizes = [1, 1024], strides = [1, 1]} : vector<8x1024xf32> to vector<1x1024xf32>
    %14 = vector.shape_cast %13 : vector<1x1024xf32> to vector<1024xf32>
    %15 = vector.extract_strided_slice %6 {offsets = [4, 0], sizes = [1, 256], strides = [1, 1]} : vector<8x1024xf32> to vector<1x256xf32>
    %16 = vector.shape_cast %15 : vector<1x256xf32> to vector<256xf32>
    %17 = vector.extract_strided_slice %6 {offsets = [5, 0], sizes = [1, 256], strides = [1, 1]} : vector<8x1024xf32> to vector<1x256xf32>
    %18 = vector.shape_cast %17 : vector<1x256xf32> to vector<256xf32>
    %19 = vector.extract_strided_slice %6 {offsets = [6, 0], sizes = [1, 256], strides = [1, 1]} : vector<8x1024xf32> to vector<1x256xf32>
    %20 = vector.shape_cast %19 : vector<1x256xf32> to vector<256xf32>
    %c0_5 = arith.constant 0 : index
    %c0_6 = arith.constant 0 : index
    %c0_7 = arith.constant 0 : index
    %21 = vector.load %arg5[%c0_5, %c0_6, %c0_7] : memref<1x256x768xbf16, #tpu.memory_space<vmem>>, vector<1x256x768xbf16>
    %22 = vector.shape_cast %21 : vector<1x256x768xbf16> to vector<256x768xbf16>
    %cst = arith.constant dense<0.000000e+00> : vector<256x768xf32>
    %23 = tpu.matmul %4, %22, %cst {dimension_numbers = #tpu.dot_dimension_numbers<[1], [0], [0], [1], [0, 0, 1, 1], [], []>} : vector<256x256xbf16>, vector<256x768xbf16>, vector<256x768xf32> -> vector<256x768xf32>
    %c0_8 = arith.constant 0 : index
    %c0_9 = arith.constant 0 : index
    %c0_10 = arith.constant 0 : index
    %24 = vector.load %arg4[%c0_8, %c0_9, %c0_10] : memref<1x128x128xf32, #tpu.memory_space<vmem>>, vector<1x128x128xf32>
    %cst_11 = arith.constant 0.000000e+00 : f32
    %25 = vector.broadcast %cst_11 : f32 to vector<256x256xf32>
    %26 = vector.extract_strided_slice %23 {offsets = [0, 0], sizes = [256, 128], strides = [1, 1]} : vector<256x768xf32> to vector<256x128xf32>
    %27 = vector.shape_cast %26 : vector<256x128xf32> to vector<2x128x128xf32>
    %28 = arith.truncf %27 : vector<2x128x128xf32> to vector<2x128x128xbf16>
    %29 = vector.extract_strided_slice %23 {offsets = [0, 256], sizes = [256, 128], strides = [1, 1]} : vector<256x768xf32> to vector<256x128xf32>
    %30 = vector.shape_cast %29 : vector<256x128xf32> to vector<2x128x128xf32>
    %31 = arith.truncf %30 : vector<2x128x128xf32> to vector<2x128x128xbf16>
    %32 = vector.extract_strided_slice %23 {offsets = [0, 512], sizes = [256, 128], strides = [1, 1]} : vector<256x768xf32> to vector<256x128xf32>
    %33 = vector.shape_cast %32 : vector<256x128xf32> to vector<2x128x128xf32>
    %34 = arith.truncf %33 : vector<2x128x128xf32> to vector<2x128x128xbf16>
    %cst_12 = arith.constant dense<0.000000e+00> : vector<2x128x128xf32>
    %35 = tpu.matmul %28, %31, %cst_12 {dimension_numbers = #tpu.dot_dimension_numbers<[2], [2], [1], [1], [0, 0, 0, 1, 1, 1], [0], [0]>} : vector<2x128x128xbf16>, vector<2x128x128xbf16>, vector<2x128x128xf32> -> vector<2x128x128xf32>
    %36 = vector.broadcast %24 : vector<1x128x128xf32> to vector<2x128x128xf32>
    %37 = arith.addf %35, %36 : vector<2x128x128xf32>
    %cst_13 = arith.constant dense<0xFF800000> : vector<2x128xf32>
    %38 = vector.multi_reduction <maximumf>, %37, %cst_13 [2] : vector<2x128x128xf32> to vector<2x128xf32>
    %39 = vector.shape_cast %38 : vector<2x128xf32> to vector<2x128x1xf32>
    %40 = vector.broadcast %39 : vector<2x128x1xf32> to vector<2x128x128xf32>
    %41 = arith.subf %37, %40 : vector<2x128x128xf32>
    %42 = math.exp %41 : vector<2x128x128xf32>
    %cst_14 = arith.constant dense<0.000000e+00> : vector<2x128xf32>
    %43 = vector.multi_reduction <add>, %42, %cst_14 [2] : vector<2x128x128xf32> to vector<2x128xf32>
    %44 = vector.shape_cast %43 : vector<2x128xf32> to vector<2x128x1xf32>
    %45 = tpu.reciprocal %44 {approx = true} : vector<2x128x1xf32> -> vector<2x128x1xf32>
    %46 = vector.broadcast %45 : vector<2x128x1xf32> to vector<2x128x128xf32>
    %47 = arith.mulf %42, %46 : vector<2x128x128xf32>
    %48 = arith.truncf %47 : vector<2x128x128xf32> to vector<2x128x128xbf16>
    %cst_15 = arith.constant dense<0.000000e+00> : vector<2x128x128xf32>
    %49 = tpu.matmul %48, %34, %cst_15 {dimension_numbers = #tpu.dot_dimension_numbers<[2], [1], [1], [2], [0, 0, 0, 1, 1, 2], [0], [0]>} : vector<2x128x128xbf16>, vector<2x128x128xbf16>, vector<2x128x128xf32> -> vector<2x128x128xf32>
    %50 = vector.shape_cast %49 : vector<2x128x128xf32> to vector<256x128xf32>
    %51 = arith.truncf %50 : vector<256x128xf32> to vector<256x128xbf16>
    %c0_16 = arith.constant 0 : index
    %c0_17 = arith.constant 0 : index
    %c0_18 = arith.constant 0 : index
    %c0_19 = arith.constant 0 : index
    %52 = vector.load %arg6[%c0_16, %c0_17, %c0_18, %c0_19] : memref<1x2x128x256xbf16, #tpu.memory_space<vmem>>, vector<1x1x128x256xbf16>
    %53 = vector.shape_cast %52 : vector<1x1x128x256xbf16> to vector<128x256xbf16>
    %cst_20 = arith.constant dense<0.000000e+00> : vector<256x256xf32>
    %54 = tpu.matmul %51, %53, %cst_20 {dimension_numbers = #tpu.dot_dimension_numbers<[1], [0], [0], [1], [0, 0, 1, 1], [], []>} : vector<256x128xbf16>, vector<128x256xbf16>, vector<256x256xf32> -> vector<256x256xf32>
    %55 = arith.addf %25, %54 : vector<256x256xf32>
    %56 = vector.extract_strided_slice %23 {offsets = [0, 128], sizes = [256, 128], strides = [1, 1]} : vector<256x768xf32> to vector<256x128xf32>
    %57 = vector.shape_cast %56 : vector<256x128xf32> to vector<2x128x128xf32>
    %58 = arith.truncf %57 : vector<2x128x128xf32> to vector<2x128x128xbf16>
    %59 = vector.extract_strided_slice %23 {offsets = [0, 384], sizes = [256, 128], strides = [1, 1]} : vector<256x768xf32> to vector<256x128xf32>
    %60 = vector.shape_cast %59 : vector<256x128xf32> to vector<2x128x128xf32>
    %61 = arith.truncf %60 : vector<2x128x128xf32> to vector<2x128x128xbf16>
    %62 = vector.extract_strided_slice %23 {offsets = [0, 640], sizes = [256, 128], strides = [1, 1]} : vector<256x768xf32> to vector<256x128xf32>
    %63 = vector.shape_cast %62 : vector<256x128xf32> to vector<2x128x128xf32>
    %64 = arith.truncf %63 : vector<2x128x128xf32> to vector<2x128x128xbf16>
    %cst_21 = arith.constant dense<0.000000e+00> : vector<2x128x128xf32>
    %65 = tpu.matmul %58, %61, %cst_21 {dimension_numbers = #tpu.dot_dimension_numbers<[2], [2], [1], [1], [0, 0, 0, 1, 1, 1], [0], [0]>} : vector<2x128x128xbf16>, vector<2x128x128xbf16>, vector<2x128x128xf32> -> vector<2x128x128xf32>
    %66 = vector.broadcast %24 : vector<1x128x128xf32> to vector<2x128x128xf32>
    %67 = arith.addf %65, %66 : vector<2x128x128xf32>
    %cst_22 = arith.constant dense<0xFF800000> : vector<2x128xf32>
    %68 = vector.multi_reduction <maximumf>, %67, %cst_22 [2] : vector<2x128x128xf32> to vector<2x128xf32>
    %69 = vector.shape_cast %68 : vector<2x128xf32> to vector<2x128x1xf32>
    %70 = vector.broadcast %69 : vector<2x128x1xf32> to vector<2x128x128xf32>
    %71 = arith.subf %67, %70 : vector<2x128x128xf32>
    %72 = math.exp %71 : vector<2x128x128xf32>
    %cst_23 = arith.constant dense<0.000000e+00> : vector<2x128xf32>
    %73 = vector.multi_reduction <add>, %72, %cst_23 [2] : vector<2x128x128xf32> to vector<2x128xf32>
    %74 = vector.shape_cast %73 : vector<2x128xf32> to vector<2x128x1xf32>
    %75 = tpu.reciprocal %74 {approx = true} : vector<2x128x1xf32> -> vector<2x128x1xf32>
    %76 = vector.broadcast %75 : vector<2x128x1xf32> to vector<2x128x128xf32>
    %77 = arith.mulf %72, %76 : vector<2x128x128xf32>
    %78 = arith.truncf %77 : vector<2x128x128xf32> to vector<2x128x128xbf16>
    %cst_24 = arith.constant dense<0.000000e+00> : vector<2x128x128xf32>
    %79 = tpu.matmul %78, %64, %cst_24 {dimension_numbers = #tpu.dot_dimension_numbers<[2], [1], [1], [2], [0, 0, 0, 1, 1, 2], [0], [0]>} : vector<2x128x128xbf16>, vector<2x128x128xbf16>, vector<2x128x128xf32> -> vector<2x128x128xf32>
    %80 = vector.shape_cast %79 : vector<2x128x128xf32> to vector<256x128xf32>
    %81 = arith.truncf %80 : vector<256x128xf32> to vector<256x128xbf16>
    %c0_25 = arith.constant 0 : index
    %c1 = arith.constant 1 : index
    %c0_26 = arith.constant 0 : index
    %c0_27 = arith.constant 0 : index
    %82 = vector.load %arg6[%c0_25, %c1, %c0_26, %c0_27] : memref<1x2x128x256xbf16, #tpu.memory_space<vmem>>, vector<1x1x128x256xbf16>
    %83 = vector.shape_cast %82 : vector<1x1x128x256xbf16> to vector<128x256xbf16>
    %cst_28 = arith.constant dense<0.000000e+00> : vector<256x256xf32>
    %84 = tpu.matmul %81, %83, %cst_28 {dimension_numbers = #tpu.dot_dimension_numbers<[1], [0], [0], [1], [0, 0, 1, 1], [], []>} : vector<256x128xbf16>, vector<128x256xbf16>, vector<256x256xf32> -> vector<256x256xf32>
    %85 = arith.addf %55, %84 : vector<256x256xf32>
    %86 = vector.shape_cast %8 : vector<256xf32> to vector<1x256xf32>
    %87 = vector.broadcast %86 : vector<1x256xf32> to vector<256x256xf32>
    %88 = arith.addf %85, %87 : vector<256x256xf32>
    %89 = arith.addf %88, %3 : vector<256x256xf32>
    %cst_29 = arith.constant dense<0.000000e+00> : vector<256xf32>
    %90 = vector.multi_reduction <add>, %89, %cst_29 [1] : vector<256x256xf32> to vector<256xf32>
    %91 = vector.shape_cast %90 : vector<256xf32> to vector<256x1xf32>
    %cst_30 = arith.constant 2.560000e+02 : f32
    %92 = vector.broadcast %cst_30 : f32 to vector<256x1xf32>
    %93 = arith.divf %91, %92 : vector<256x1xf32>
    %94 = vector.broadcast %93 : vector<256x1xf32> to vector<256x256xf32>
    %95 = arith.subf %89, %94 : vector<256x256xf32>
    %96 = arith.mulf %95, %95 : vector<256x256xf32>
    %cst_31 = arith.constant dense<0.000000e+00> : vector<256xf32>
    %97 = vector.multi_reduction <add>, %96, %cst_31 [1] : vector<256x256xf32> to vector<256xf32>
    %98 = vector.shape_cast %97 : vector<256xf32> to vector<256x1xf32>
    %cst_32 = arith.constant 2.560000e+02 : f32
    %99 = vector.broadcast %cst_32 : f32 to vector<256x1xf32>
    %100 = arith.divf %98, %99 : vector<256x1xf32>
    %101 = vector.broadcast %93 : vector<256x1xf32> to vector<256x256xf32>
    %102 = arith.subf %89, %101 : vector<256x256xf32>
    %cst_33 = arith.constant 9.99999974E-6 : f32
    %103 = vector.broadcast %cst_33 : f32 to vector<256x1xf32>
    %104 = arith.addf %100, %103 : vector<256x1xf32>
    %105 = math.rsqrt %104 : vector<256x1xf32>
    %106 = vector.broadcast %105 : vector<256x1xf32> to vector<256x256xf32>
    %107 = arith.mulf %102, %106 : vector<256x256xf32>
    %108 = vector.shape_cast %10 : vector<256xf32> to vector<1x256xf32>
    %109 = vector.broadcast %108 : vector<1x256xf32> to vector<256x256xf32>
    %110 = arith.mulf %107, %109 : vector<256x256xf32>
    %111 = vector.shape_cast %12 : vector<256xf32> to vector<1x256xf32>
    %112 = vector.broadcast %111 : vector<1x256xf32> to vector<256x256xf32>
    %113 = arith.addf %110, %112 : vector<256x256xf32>
    %114 = arith.truncf %113 : vector<256x256xf32> to vector<256x256xbf16>
    %c0_34 = arith.constant 0 : index
    %c0_35 = arith.constant 0 : index
    %c0_36 = arith.constant 0 : index
    %115 = vector.load %arg7[%c0_34, %c0_35, %c0_36] : memref<1x256x1024xbf16, #tpu.memory_space<vmem>>, vector<1x256x1024xbf16>
    %116 = vector.shape_cast %115 : vector<1x256x1024xbf16> to vector<256x1024xbf16>
    %cst_37 = arith.constant dense<0.000000e+00> : vector<256x1024xf32>
    %117 = tpu.matmul %114, %116, %cst_37 {dimension_numbers = #tpu.dot_dimension_numbers<[1], [0], [0], [1], [0, 0, 1, 1], [], []>} : vector<256x256xbf16>, vector<256x1024xbf16>, vector<256x1024xf32> -> vector<256x1024xf32>
    %118 = vector.shape_cast %14 : vector<1024xf32> to vector<1x1024xf32>
    %119 = vector.broadcast %118 : vector<1x1024xf32> to vector<256x1024xf32>
    %120 = arith.addf %117, %119 : vector<256x1024xf32>
    %cst_38 = arith.constant 0.000000e+00 : f32
    %121 = vector.broadcast %cst_38 : f32 to vector<256x1024xf32>
    %122 = arith.maximumf %120, %121 : vector<256x1024xf32>
    %123 = arith.truncf %122 : vector<256x1024xf32> to vector<256x1024xbf16>
    %c0_39 = arith.constant 0 : index
    %c0_40 = arith.constant 0 : index
    %c0_41 = arith.constant 0 : index
    %124 = vector.load %arg8[%c0_39, %c0_40, %c0_41] : memref<1x1024x256xbf16, #tpu.memory_space<vmem>>, vector<1x1024x256xbf16>
    %125 = vector.shape_cast %124 : vector<1x1024x256xbf16> to vector<1024x256xbf16>
    %cst_42 = arith.constant dense<0.000000e+00> : vector<256x256xf32>
    %126 = tpu.matmul %123, %125, %cst_42 {dimension_numbers = #tpu.dot_dimension_numbers<[1], [0], [0], [1], [0, 0, 1, 1], [], []>} : vector<256x1024xbf16>, vector<1024x256xbf16>, vector<256x256xf32> -> vector<256x256xf32>
    %127 = vector.shape_cast %16 : vector<256xf32> to vector<1x256xf32>
    %128 = vector.broadcast %127 : vector<1x256xf32> to vector<256x256xf32>
    %129 = arith.addf %126, %128 : vector<256x256xf32>
    %130 = arith.addf %129, %113 : vector<256x256xf32>
    %cst_43 = arith.constant dense<0.000000e+00> : vector<256xf32>
    %131 = vector.multi_reduction <add>, %130, %cst_43 [1] : vector<256x256xf32> to vector<256xf32>
    %132 = vector.shape_cast %131 : vector<256xf32> to vector<256x1xf32>
    %cst_44 = arith.constant 2.560000e+02 : f32
    %133 = vector.broadcast %cst_44 : f32 to vector<256x1xf32>
    %134 = arith.divf %132, %133 : vector<256x1xf32>
    %135 = vector.broadcast %134 : vector<256x1xf32> to vector<256x256xf32>
    %136 = arith.subf %130, %135 : vector<256x256xf32>
    %137 = arith.mulf %136, %136 : vector<256x256xf32>
    %cst_45 = arith.constant dense<0.000000e+00> : vector<256xf32>
    %138 = vector.multi_reduction <add>, %137, %cst_45 [1] : vector<256x256xf32> to vector<256xf32>
    %139 = vector.shape_cast %138 : vector<256xf32> to vector<256x1xf32>
    %cst_46 = arith.constant 2.560000e+02 : f32
    %140 = vector.broadcast %cst_46 : f32 to vector<256x1xf32>
    %141 = arith.divf %139, %140 : vector<256x1xf32>
    %142 = vector.broadcast %134 : vector<256x1xf32> to vector<256x256xf32>
    %143 = arith.subf %130, %142 : vector<256x256xf32>
    %cst_47 = arith.constant 9.99999974E-6 : f32
    %144 = vector.broadcast %cst_47 : f32 to vector<256x1xf32>
    %145 = arith.addf %141, %144 : vector<256x1xf32>
    %146 = math.rsqrt %145 : vector<256x1xf32>
    %147 = vector.broadcast %146 : vector<256x1xf32> to vector<256x256xf32>
    %148 = arith.mulf %143, %147 : vector<256x256xf32>
    %149 = vector.shape_cast %18 : vector<256xf32> to vector<1x256xf32>
    %150 = vector.broadcast %149 : vector<1x256xf32> to vector<256x256xf32>
    %151 = arith.mulf %148, %150 : vector<256x256xf32>
    %152 = vector.shape_cast %20 : vector<256xf32> to vector<1x256xf32>
    %153 = vector.broadcast %152 : vector<1x256xf32> to vector<256x256xf32>
    %154 = arith.addf %151, %153 : vector<256x256xf32>
    %c0_48 = arith.constant 0 : index
    %c0_49 = arith.constant 0 : index
    %155 = vector.load %arg13[%c0_48, %c0_49] : memref<256x256xf32, #tpu.memory_space<vmem>>, vector<256x256xf32>
    tpu.vector_store %arg13[%c0_48, %c0_49], %154 {strides = array<i32>} : memref<256x256xf32, #tpu.memory_space<vmem>>, vector<256x256xf32>,
    %c1_i32 = arith.constant 1 : i32
    %156 = arith.cmpi eq, %arg1, %c1_i32 : i32
    %157 = arith.extui %156 : i1 to i32
    %c0_i32_50 = arith.constant 0 : i32
    %158 = arith.cmpi ne, %157, %c0_i32_50 : i32
    scf.if %158 {
      %159 = arith.truncf %154 : vector<256x256xf32> to vector<256x256xbf16>
      %c0_51 = arith.constant 0 : index
      %c0_52 = arith.constant 0 : index
      %160 = vector.load %arg10[%c0_51, %c0_52] : memref<256x128xbf16, #tpu.memory_space<vmem>>, vector<256x128xbf16>
      %cst_53 = arith.constant dense<0.000000e+00> : vector<256x128xf32>
      %161 = tpu.matmul %159, %160, %cst_53 {dimension_numbers = #tpu.dot_dimension_numbers<[1], [0], [0], [1], [0, 0, 1, 1], [], []>} : vector<256x256xbf16>, vector<256x128xbf16>, vector<256x128xf32> -> vector<256x128xf32>
      %c0_54 = arith.constant 0 : index
      %c0_55 = arith.constant 0 : index
      %162 = vector.load %arg11[%c0_54, %c0_55] : memref<1x128xf32, #tpu.memory_space<vmem>>, vector<1x128xf32>
      %163 = vector.broadcast %162 : vector<1x128xf32> to vector<256x128xf32>
      %164 = arith.addf %161, %163 : vector<256x128xf32>
      %cst_56 = arith.constant dense<0xFF800000> : vector<256xf32>
      %165 = vector.multi_reduction <maximumf>, %164, %cst_56 [1] : vector<256x128xf32> to vector<256xf32>
      %166 = vector.shape_cast %165 : vector<256xf32> to vector<256x1xf32>
      %167 = vector.broadcast %166 : vector<256x1xf32> to vector<256x128xf32>
      %168 = arith.subf %164, %167 : vector<256x128xf32>
      %169 = math.exp %168 : vector<256x128xf32>
      %cst_57 = arith.constant dense<0.000000e+00> : vector<256xf32>
      %170 = vector.multi_reduction <add>, %169, %cst_57 [1] : vector<256x128xf32> to vector<256xf32>
      %171 = vector.shape_cast %170 : vector<256xf32> to vector<256x1xf32>
      %172 = math.log %171 : vector<256x1xf32>
      %173 = arith.addf %166, %172 : vector<256x1xf32>
      %174 = vector.broadcast %173 : vector<256x1xf32> to vector<256x128xf32>
      %175 = arith.subf %164, %174 : vector<256x128xf32>
      %176 = vector.shape_cast %175 : vector<256x128xf32> to vector<2x128x128xf32>
      %c0_58 = arith.constant 0 : index
      %c0_59 = arith.constant 0 : index
      %c0_60 = arith.constant 0 : index
      %177 = vector.load %arg12[%c0_58, %c0_59, %c0_60] : memref<2x128x128xf32, #tpu.memory_space<vmem>>, vector<2x128x128xf32>
      tpu.vector_store %arg12[%c0_58, %c0_59, %c0_60], %176 {strides = array<i32>} : memref<2x128x128xf32, #tpu.memory_space<vmem>>, vector<2x128x128xf32>,
    } else {
    }
    return
  }
  func.func @transform_0(%arg0: i32, %arg1: i32) -> (i32, i32, i32) {
    %c0_i32 = arith.constant 0 : i32
    %c0_i32_0 = arith.constant 0 : i32
    %c0_i32_1 = arith.constant 0 : i32
    return %arg0, %c0_i32, %c0_i32_0 : i32, i32, i32
  }
  func.func @transform_1(%arg0: i32, %arg1: i32) -> (i32, i32) {
    %c0_i32 = arith.constant 0 : i32
    %c0_i32_0 = arith.constant 0 : i32
    %c0_i32_1 = arith.constant 0 : i32
    return %c0_i32, %c0_i32_0 : i32, i32
  }
  func.func @transform_2(%arg0: i32, %arg1: i32) -> (i32, i32, i32) {
    %c0_i32 = arith.constant 0 : i32
    %c0_i32_0 = arith.constant 0 : i32
    %c0_i32_1 = arith.constant 0 : i32
    %c0_i32_2 = arith.constant 0 : i32
    return %c0_i32, %c0_i32_0, %c0_i32_1 : i32, i32, i32
  }
  func.func @transform_3(%arg0: i32, %arg1: i32) -> (i32, i32, i32) {
    %c0_i32 = arith.constant 0 : i32
    %c0_i32_0 = arith.constant 0 : i32
    %c0_i32_1 = arith.constant 0 : i32
    return %arg1, %c0_i32, %c0_i32_0 : i32, i32, i32
  }
  func.func @transform_4(%arg0: i32, %arg1: i32) -> (i32, i32, i32, i32) {
    %c0_i32 = arith.constant 0 : i32
    %c0_i32_0 = arith.constant 0 : i32
    %c0_i32_1 = arith.constant 0 : i32
    %c0_i32_2 = arith.constant 0 : i32
    return %arg1, %c0_i32, %c0_i32_0, %c0_i32_1 : i32, i32, i32, i32
  }
  func.func @transform_5(%arg0: i32, %arg1: i32) -> (i32, i32, i32) {
    %c0_i32 = arith.constant 0 : i32
    %c0_i32_0 = arith.constant 0 : i32
    %c0_i32_1 = arith.constant 0 : i32
    return %arg1, %c0_i32, %c0_i32_0 : i32, i32, i32
  }
  func.func @transform_6(%arg0: i32, %arg1: i32) -> (i32, i32, i32) {
    %c0_i32 = arith.constant 0 : i32
    %c0_i32_0 = arith.constant 0 : i32
    %c0_i32_1 = arith.constant 0 : i32
    return %arg1, %c0_i32, %c0_i32_0 : i32, i32, i32
  }
  func.func @transform_7(%arg0: i32, %arg1: i32) -> (i32, i32, i32) {
    %c0_i32 = arith.constant 0 : i32
    %c0_i32_0 = arith.constant 0 : i32
    %c0_i32_1 = arith.constant 0 : i32
    return %arg1, %c0_i32, %c0_i32_0 : i32, i32, i32
  }
  func.func @transform_8(%arg0: i32, %arg1: i32) -> (i32, i32) {
    %c0_i32 = arith.constant 0 : i32
    %c0_i32_0 = arith.constant 0 : i32
    %c0_i32_1 = arith.constant 0 : i32
    return %c0_i32, %c0_i32_0 : i32, i32
  }
  func.func @transform_9(%arg0: i32, %arg1: i32) -> (i32, i32) {
    %c0_i32 = arith.constant 0 : i32
    %c0_i32_0 = arith.constant 0 : i32
    %c0_i32_1 = arith.constant 0 : i32
    return %c0_i32, %c0_i32_0 : i32, i32
  }
  func.func @transform_10(%arg0: i32, %arg1: i32) -> (i32, i32, i32) {
    %c0_i32 = arith.constant 0 : i32
    %c0_i32_0 = arith.constant 0 : i32
    %c0_i32_1 = arith.constant 0 : i32
    return %arg0, %c0_i32, %c0_i32_0 : i32, i32, i32
  }
}

</mosaic_0001>

<llo_original>
// kernel: tpu_custom_call.1
$region0: #{tpu_custom_call.1}
  #allocation0 [shape = 'u32[]', space=smem, size = 0x4, offset = 0x4, fixed_abs, tag = 'smem constant byte address 0x4 - core index']
  #allocation1 [shape = 'u32[144,128]{1,0:T(1,128)}', space=vmem, size = 0x12000, scoped, tag = 'internal scratch']
  #allocation2 [shape = 'f32[256,256]{1,0:T(8,128)}', space=vmem, size = 0x40000, scoped, tag = 'scratch operand']
  %s0 = inlined_call_operand.hbm [shape: f32[2,128,256], index: 0, kind: input, shape index: {}]
  %s1 = inlined_call_operand.hbm [shape: f32[128,256], index: 1, kind: input, shape index: {}]
  %s2 = inlined_call_operand.hbm [shape: f32[1,128,128], index: 2, kind: input, shape index: {}]
  %s3 = inlined_call_operand.hbm [shape: bf16[2,256,768], index: 3, kind: input, shape index: {}]
  %s4 = inlined_call_operand.hbm [shape: bf16[2,2,128,256], index: 4, kind: input, shape index: {}]
  %s5 = inlined_call_operand.hbm [shape: bf16[2,256,1024], index: 5, kind: input, shape index: {}]
  %s6 = inlined_call_operand.hbm [shape: bf16[2,1024,256], index: 6, kind: input, shape index: {}]
  %s7 = inlined_call_operand.hbm [shape: f32[2,8,1024], index: 7, kind: input, shape index: {}]
  %s8 = inlined_call_operand.hbm [shape: bf16[256,128], index: 8, kind: input, shape index: {}]
  %s9 = inlined_call_operand.vmem [shape: f32[1,128], index: 9, kind: input, shape index: {}]
  %s10 = inlined_call_operand.hbm [shape: f32[2,128,128], index: 10, kind: output, shape index: {}]
  %s11 = sld [smem:[#allocation0]]
  $region117: #{tpu_custom_call.1} parent=0
    _
  %s13 = ssub.s32 1, %s11
  %s14 = scalar_select 0, %s13, %s11
  $region1: #{tpu_custom_call.1} parent=0
    #allocation3 [shape = 'u8[262144]{0}', space=vmem, size = 0x40000, scoped, tag = 'input window, operand 0, single buffered']
    #allocation4 [shape = 's32[2]{0}', space=sflag, size = 0x8, scoped, tag = 'scoped memory for tpu_custom_call.1']
    #allocation5 [shape = 's32[2]{0}', space=sflag, size = 0x8, scoped, tag = 'scoped memory for tpu_custom_call.1']
    #allocation6 [shape = 'u8[131072]{0}', space=vmem, size = 0x20000, scoped, tag = 'input window, operand 1, single buffered']
    #allocation7 [shape = 's32[1]{0}', space=sflag, size = 0x4, scoped, tag = 'scoped memory for tpu_custom_call.1']
    #allocation8 [shape = 'u8[65536]{0}', space=vmem, size = 0x10000, scoped, tag = 'input window, operand 2, single buffered']
    #allocation9 [shape = 'u8[786432]{0}', space=vmem, size = 0xc0000, scoped, tag = 'input window, operand 3']
    #allocation10 [shape = 's32[2]{0}', space=sflag, size = 0x8, scoped, tag = 'scoped memory for tpu_custom_call.1']
    #allocation11 [shape = 'u8[262144]{0}', space=vmem, size = 0x40000, scoped, tag = 'input window, operand 4']
    #allocation12 [shape = 'u8[1048576]{0}', space=vmem, size = 0x100000, scoped, tag = 'input window, operand 5']
    #allocation13 [shape = 's32[2]{0}', space=sflag, size = 0x8, scoped, tag = 'scoped memory for tpu_custom_call.1']
    #allocation14 [shape = 'u8[1048576]{0}', space=vmem, size = 0x100000, scoped, tag = 'input window, operand 6']
    #allocation15 [shape = 'u8[65536]{0}', space=vmem, size = 0x10000, scoped, tag = 'input window, operand 7']
    #allocation16 [shape = 's32[2]{0}', space=sflag, size = 0x8, scoped, tag = 'scoped memory for tpu_custom_call.1']
    #allocation17 [shape = 'u8[65536]{0}', space=vmem, size = 0x10000, scoped, tag = 'input window, operand 8, single buffered']
    #allocation18 [shape = 'u8[131072]{0}', space=vmem, size = 0x20000, scoped, tag = 'output window, operand 0, single buffered']
    %15 = vsyncpa [#allocation4], 0
    %16 = vsyncpa [#allocation7], 0
    %17 = vsyncpa [#allocation10], 0
    %s18 = scalar_lea.sflag [#allocation10], 1
    %19 = vsyncpa %s18, 0
    %20 = vsyncpa [#allocation13], 0
    %s21 = scalar_lea.sflag [#allocation13], 1
    %22 = vsyncpa %s21, 0
    %23 = vsyncpa [#allocation16], 0
    %s24 = scalar_lea.sflag [#allocation16], 1
    %25 = vsyncpa %s24, 0
    %26 = vsyncpa [#allocation5], 0
    loop: start=0, step=1, limit=4
    $region2: #{tpu_custom_call.1} parent=1 // loop_pre_header
      _
    $region3: #{tpu_custom_call.1} parent=1 // loop_header
      %s28 = sphi 0, %s32
      %p29 = scmp.ge.s32.totalorder %s28, 4
      %s35 = sphi 0, %s47
      %s36 = sphi 0, %s43
      %s37 = sphi 0, %s35
      %s38 = sphi 0, %s36
      %s39 = sphi 0, %s37
      %s40 = sphi 0, %s38
      %s50 = sphi 0, %s52
      %s53 = sphi 0, %s50
      %s54 = sphi 0, %s53
      %s70 = sphi 0, %s54
      %s74 = sphi 0, %s74
      %s76 = sphi 0, %s74
      %s77 = sphi 0, %s76
      %s91 = sphi 0, %s77
      %s95 = sphi 0, %s95
      %s97 = sphi 0, %s95
      %s98 = sphi 0, %s97
      %s112 = sphi 0, %s98
      %s118 = sphi 0, %s120
      %s121 = sphi 0, %s118
      %s122 = sphi 0, %s121
      %s138 = sphi 0, %s122
      %s144 = sphi 0, %s146
      %s147 = sphi 0, %s144
      %s148 = sphi 0, %s147
      %s164 = sphi 0, %s148
      %s170 = sphi 0, %s172
      %s173 = sphi 0, %s170
      %s174 = sphi 0, %s173
      %s190 = sphi 0, %s174
      %s196 = sphi 0, %s198
      %s199 = sphi 0, %s196
      %s200 = sphi 0, %s199
      %s216 = sphi 0, %s200
      %s222 = sphi 0, %s224
      %s225 = sphi 0, %s222
      %s226 = sphi 0, %s225
      %s242 = sphi 0, %s226
      %s246 = sphi 0, %s246
      %s248 = sphi 0, %s246
      %s249 = sphi 0, %s248
      %s263 = sphi 0, %s249
      %s267 = sphi 0, %s267
      %s269 = sphi 0, %s267
      %s270 = sphi 0, %s269
      %s284 = sphi 0, %s270
      %s290 = sphi 0, %s292
      %s293 = sphi 0, %s290
      %s294 = sphi 0, %s293
      %s310 = sphi 0, %s294
    $region4: #{tpu_custom_call.1} parent=1 // loop_header_branch
      %31 = sbr.rel (%p29) target = $region8
    $region5: #{tpu_custom_call.1} parent=1 // loop_body
      %s33 = ssub.s32 %s28, 1
      %s34 = ssub.s32 %s28, 2
      %s41 = sadd.s32 1, %s36
      %p42 = scmp.ge.s32.totalorder %s41, 2
      %s43 = scalar_select %p42, 0, %s41
      %s44 = sadd.s32 1, %s35
      %s45 = scalar_select %p42, %s44, %s35
      %p46 = scmp.ge.s32.totalorder %s45, 1
      %s47 = scalar_select %p46, 0, %s45
      %s48 = ssub.s32 %s35, %s47
      %p49 = scmp.eq.s32.totalorder %s48, 0
      %s51 = sadd.s32 %s50, 1
      %s52 = scalar_select %p49, %s50, %s51
      %p55 = pneg %p49
      %p56 = scmp.eq.s32.totalorder %s28, 1
      %p57 = por %p55, %p56
      %p58 = scmp.ne.s32.totalorder %s50, %s53
      %p59 = scmp.eq.s32.totalorder %s28, 0
      %p60 = por %p58, %p59
      %p61 = scmp.ne.s32.totalorder %s50, %s53
      %p62 = scmp.eq.s32.totalorder %s33, 1
      %p63 = por %p61, %p62
      %p64 = scmp.ne.s32.totalorder %s53, %s54
      %p65 = scmp.eq.s32.totalorder %s33, 0
      %p66 = por %p64, %p65
      %p67 = scmp.ne.s32.totalorder %s53, %s54
      %p68 = scmp.eq.s32.totalorder %s34, 1
      %p69 = por %p67, %p68
      %p71 = scmp.ne.s32.totalorder %s54, %s70
      %p72 = scmp.eq.s32.totalorder %s34, 0
      %p73 = por %p71, %p72
      %s75 = sadd.s32 %s74, 1
      %p78 = scmp.eq.s32.totalorder %s28, 1
      %p79 = scmp.ne.s32.totalorder %s74, %s76
      %p80 = scmp.eq.s32.totalorder %s28, 0
      %p81 = por %p79, %p80
      %p82 = scmp.ne.s32.totalorder %s74, %s76
      %p83 = scmp.eq.s32.totalorder %s33, 1
      %p84 = por %p82, %p83
      %p85 = scmp.ne.s32.totalorder %s76, %s77
      %p86 = scmp.eq.s32.totalorder %s33, 0
      %p87 = por %p85, %p86
      %p88 = scmp.ne.s32.totalorder %s76, %s77
      %p89 = scmp.eq.s32.totalorder %s34, 1
      %p90 = por %p88, %p89
      %p92 = scmp.ne.s32.totalorder %s77, %s91
      %p93 = scmp.eq.s32.totalorder %s34, 0
      %p94 = por %p92, %p93
      %s96 = sadd.s32 %s95, 1
      %p99 = scmp.eq.s32.totalorder %s28, 1
      %p100 = scmp.ne.s32.totalorder %s95, %s97
      %p101 = scmp.eq.s32.totalorder %s28, 0
      %p102 = por %p100, %p101
      %p103 = scmp.ne.s32.totalorder %s95, %s97
      %p104 = scmp.eq.s32.totalorder %s33, 1
      %p105 = por %p103, %p104
      %p106 = scmp.ne.s32.totalorder %s97, %s98
      %p107 = scmp.eq.s32.totalorder %s33, 0
      %p108 = por %p106, %p107
      %p109 = scmp.ne.s32.totalorder %s97, %s98
      %p110 = scmp.eq.s32.totalorder %s34, 1
      %p111 = por %p109, %p110
      %p113 = scmp.ne.s32.totalorder %s98, %s112
      %p114 = scmp.eq.s32.totalorder %s34, 0
      %p115 = por %p113, %p114
      %s116 = ssub.s32 %s36, %s43
      %p117 = scmp.eq.s32.totalorder %s116, 0
      %s119 = sadd.s32 %s118, 1
      %s120 = scalar_select %p117, %s118, %s119
      %p123 = pneg %p117
      %p124 = scmp.eq.s32.totalorder %s28, 1
      %p125 = por %p123, %p124
      %p126 = scmp.ne.s32.totalorder %s118, %s121
      %p127 = scmp.eq.s32.totalorder %s28, 0
      %p128 = por %p126, %p127
      %p129 = scmp.ne.s32.totalorder %s118, %s121
      %p130 = scmp.eq.s32.totalorder %s33, 1
      %p131 = por %p129, %p130
      %p132 = scmp.ne.s32.totalorder %s121, %s122
      %p133 = scmp.eq.s32.totalorder %s33, 0
      %p134 = por %p132, %p133
      %p135 = scmp.ne.s32.totalorder %s121, %s122
      %p136 = scmp.eq.s32.totalorder %s34, 1
      %p137 = por %p135, %p136
      %p139 = scmp.ne.s32.totalorder %s122, %s138
      %p140 = scmp.eq.s32.totalorder %s34, 0
      %p141 = por %p139, %p140
      %s142 = ssub.s32 %s36, %s43
      %p143 = scmp.eq.s32.totalorder %s142, 0
      %s145 = sadd.s32 %s144, 1
      %s146 = scalar_select %p143, %s144, %s145
      %p149 = pneg %p143
      %p150 = scmp.eq.s32.totalorder %s28, 1
      %p151 = por %p149, %p150
      %p152 = scmp.ne.s32.totalorder %s144, %s147
      %p153 = scmp.eq.s32.totalorder %s28, 0
      %p154 = por %p152, %p153
      %p155 = scmp.ne.s32.totalorder %s144, %s147
      %p156 = scmp.eq.s32.totalorder %s33, 1
      %p157 = por %p155, %p156
      %p158 = scmp.ne.s32.totalorder %s147, %s148
      %p159 = scmp.eq.s32.totalorder %s33, 0
      %p160 = por %p158, %p159
      %p161 = scmp.ne.s32.totalorder %s147, %s148
      %p162 = scmp.eq.s32.totalorder %s34, 1
      %p163 = por %p161, %p162
      %p165 = scmp.ne.s32.totalorder %s148, %s164
      %p166 = scmp.eq.s32.totalorder %s34, 0
      %p167 = por %p165, %p166
      %s168 = ssub.s32 %s36, %s43
      %p169 = scmp.eq.s32.totalorder %s168, 0
      %s171 = sadd.s32 %s170, 1
      %s172 = scalar_select %p169, %s170, %s171
      %p175 = pneg %p169
      %p176 = scmp.eq.s32.totalorder %s28, 1
      %p177 = por %p175, %p176
      %p178 = scmp.ne.s32.totalorder %s170, %s173
      %p179 = scmp.eq.s32.totalorder %s28, 0
      %p180 = por %p178, %p179
      %p181 = scmp.ne.s32.totalorder %s170, %s173
      %p182 = scmp.eq.s32.totalorder %s33, 1
      %p183 = por %p181, %p182
      %p184 = scmp.ne.s32.totalorder %s173, %s174
      %p185 = scmp.eq.s32.totalorder %s33, 0
      %p186 = por %p184, %p185
      %p187 = scmp.ne.s32.totalorder %s173, %s174
      %p188 = scmp.eq.s32.totalorder %s34, 1
      %p189 = por %p187, %p188
      %p191 = scmp.ne.s32.totalorder %s174, %s190
      %p192 = scmp.eq.s32.totalorder %s34, 0
      %p193 = por %p191, %p192
      %s194 = ssub.s32 %s36, %s43
      %p195 = scmp.eq.s32.totalorder %s194, 0
      %s197 = sadd.s32 %s196, 1
      %s198 = scalar_select %p195, %s196, %s197
      %p201 = pneg %p195
      %p202 = scmp.eq.s32.totalorder %s28, 1
      %p203 = por %p201, %p202
      %p204 = scmp.ne.s32.totalorder %s196, %s199
      %p205 = scmp.eq.s32.totalorder %s28, 0
      %p206 = por %p204, %p205
      %p207 = scmp.ne.s32.totalorder %s196, %s199
      %p208 = scmp.eq.s32.totalorder %s33, 1
      %p209 = por %p207, %p208
      %p210 = scmp.ne.s32.totalorder %s199, %s200
      %p211 = scmp.eq.s32.totalorder %s33, 0
      %p212 = por %p210, %p211
      %p213 = scmp.ne.s32.totalorder %s199, %s200
      %p214 = scmp.eq.s32.totalorder %s34, 1
      %p215 = por %p213, %p214
      %p217 = scmp.ne.s32.totalorder %s200, %s216
      %p218 = scmp.eq.s32.totalorder %s34, 0
      %p219 = por %p217, %p218
      %s220 = ssub.s32 %s36, %s43
      %p221 = scmp.eq.s32.totalorder %s220, 0
      %s223 = sadd.s32 %s222, 1
      %s224 = scalar_select %p221, %s222, %s223
      %p227 = pneg %p221
      %p228 = scmp.eq.s32.totalorder %s28, 1
      %p229 = por %p227, %p228
      %p230 = scmp.ne.s32.totalorder %s222, %s225
      %p231 = scmp.eq.s32.totalorder %s28, 0
      %p232 = por %p230, %p231
      %p233 = scmp.ne.s32.totalorder %s222, %s225
      %p234 = scmp.eq.s32.totalorder %s33, 1
      %p235 = por %p233, %p234
      %p236 = scmp.ne.s32.totalorder %s225, %s226
      %p237 = scmp.eq.s32.totalorder %s33, 0
      %p238 = por %p236, %p237
      %p239 = scmp.ne.s32.totalorder %s225, %s226
      %p240 = scmp.eq.s32.totalorder %s34, 1
      %p241 = por %p239, %p240
      %p243 = scmp.ne.s32.totalorder %s226, %s242
      %p244 = scmp.eq.s32.totalorder %s34, 0
      %p245 = por %p243, %p244
      %s247 = sadd.s32 %s246, 1
      %p250 = scmp.eq.s32.totalorder %s28, 1
      %p251 = scmp.ne.s32.totalorder %s246, %s248
      %p252 = scmp.eq.s32.totalorder %s28, 0
      %p253 = por %p251, %p252
      %p254 = scmp.ne.s32.totalorder %s246, %s248
      %p255 = scmp.eq.s32.totalorder %s33, 1
      %p256 = por %p254, %p255
      %p257 = scmp.ne.s32.totalorder %s248, %s249
      %p258 = scmp.eq.s32.totalorder %s33, 0
      %p259 = por %p257, %p258
      %p260 = scmp.ne.s32.totalorder %s248, %s249
      %p261 = scmp.eq.s32.totalorder %s34, 1
      %p262 = por %p260, %p261
      %p264 = scmp.ne.s32.totalorder %s249, %s263
      %p265 = scmp.eq.s32.totalorder %s34, 0
      %p266 = por %p264, %p265
      %s268 = sadd.s32 %s267, 1
      %p271 = scmp.eq.s32.totalorder %s28, 1
      %p272 = scmp.ne.s32.totalorder %s267, %s269
      %p273 = scmp.eq.s32.totalorder %s28, 0
      %p274 = por %p272, %p273
      %p275 = scmp.ne.s32.totalorder %s267, %s269
      %p276 = scmp.eq.s32.totalorder %s33, 1
      %p277 = por %p275, %p276
      %p278 = scmp.ne.s32.totalorder %s269, %s270
      %p279 = scmp.eq.s32.totalorder %s33, 0
      %p280 = por %p278, %p279
      %p281 = scmp.ne.s32.totalorder %s269, %s270
      %p282 = scmp.eq.s32.totalorder %s34, 1
      %p283 = por %p281, %p282
      %p285 = scmp.ne.s32.totalorder %s270, %s284
      %p286 = scmp.eq.s32.totalorder %s34, 0
      %p287 = por %p285, %p286
      %s288 = ssub.s32 %s35, %s47
      %p289 = scmp.eq.s32.totalorder %s288, 0
      %s291 = sadd.s32 %s290, 1
      %s292 = scalar_select %p289, %s290, %s291
      %p295 = pneg %p289
      %p296 = scmp.eq.s32.totalorder %s28, 1
      %p297 = por %p295, %p296
      %p298 = scmp.ne.s32.totalorder %s290, %s293
      %p299 = scmp.eq.s32.totalorder %s28, 0
      %p300 = por %p298, %p299
      %p301 = scmp.ne.s32.totalorder %s290, %s293
      %p302 = scmp.eq.s32.totalorder %s33, 1
      %p303 = por %p301, %p302
      %p304 = scmp.ne.s32.totalorder %s293, %s294
      %p305 = scmp.eq.s32.totalorder %s33, 0
      %p306 = por %p304, %p305
      %p307 = scmp.ne.s32.totalorder %s293, %s294
      %p308 = scmp.eq.s32.totalorder %s34, 1
      %p309 = por %p307, %p308
      %p311 = scmp.ne.s32.totalorder %s294, %s310
      %p312 = scmp.eq.s32.totalorder %s34, 0
      %p313 = por %p311, %p312
      %p314 = scmp.le.s32.totalorder 1, %s28
      %p315 = scmp.lt.s32.totalorder %s28, 3
      %p316 = pnand %p314, %p315
      %p317 = pneg %p316
      // Predicated region
      $region9: #{tpu_custom_call.1} parent=5 // pred_check
        _
      $region10: #{tpu_custom_call.1} parent=5 // pred_check_branch
        %319 = sbr.rel (%p316) target = $region12
      $region11: #{tpu_custom_call.1} parent=5 // pred_region
        %s320 = ssub.s32 %s28, 1
        // Predicated region
        $region13: #{tpu_custom_call.1} parent=11 // pred_check
          %p321 = pneg %p66
        $region14: #{tpu_custom_call.1} parent=11 // pred_check_branch
          %323 = sbr.rel (%p321) target = $region16
        $region15: #{tpu_custom_call.1} parent=11 // pred_region
          %s324 = smul.u32 2, %s37
          %s326 = ssub.s32 8192, 8192
          %327 = vsyncadd [#allocation4], %s326
          %s328 = smul.addr %s324, 32
          %s329 = smul.addr %s328, 128
          %s330 = scalar_lea.hbm %s0, %s329
          %s331 = sshll.u32 [#allocation3], 4
          %s332 = int_to_ptr.vmem [resolvable:$true] %s331
          %337 = dma.hbm_to_vmem [thread:$0]  %s330, 8192, %s332, [#allocation4], 256, 256, 16
        $region16: #{tpu_custom_call.1} parent=11 // pred_fallthru
          _
        // Predicated region
        $region17: #{tpu_custom_call.1} parent=11 // pred_check
          %p338 = pneg %p87
        $region18: #{tpu_custom_call.1} parent=11 // pred_check_branch
          %340 = sbr.rel (%p338) target = $region20
        $region19: #{tpu_custom_call.1} parent=11 // pred_region
          %s342 = ssub.s32 4096, 4096
          %343 = vsyncadd [#allocation7], %s342
          %s344 = sshll.u32 [#allocation6], 4
          %s345 = int_to_ptr.vmem [resolvable:$true] %s344
          %350 = dma.hbm_to_vmem [thread:$0]  %s1, 4096, %s345, [#allocation7], 256, 256, 16
        $region20: #{tpu_custom_call.1} parent=11 // pred_fallthru
          _
        // Predicated region
        $region21: #{tpu_custom_call.1} parent=11 // pred_check
          %p351 = pneg %p108
        $region22: #{tpu_custom_call.1} parent=11 // pred_check_branch
          %353 = sbr.rel (%p351) target = $region24
        $region23: #{tpu_custom_call.1} parent=11 // pred_region
          %s355 = ssub.s32 2048, 2048
          %356 = vsyncadd [#allocation7], %s355
          %s357 = sshll.u32 [#allocation8], 4
          %s358 = int_to_ptr.vmem [resolvable:$true] %s357
          %363 = dma.hbm_to_vmem [thread:$0]  %s2, 2048, %s358, [#allocation7], 128, 128, 8
        $region24: #{tpu_custom_call.1} parent=11 // pred_fallthru
          _
        // Predicated region
        $region25: #{tpu_custom_call.1} parent=11 // pred_check
          %p364 = pneg %p259
        $region26: #{tpu_custom_call.1} parent=11 // pred_check_branch
          %366 = sbr.rel (%p364) target = $region28
        $region27: #{tpu_custom_call.1} parent=11 // pred_region
          %s368 = ssub.s32 2048, 2048
          %369 = vsyncadd [#allocation16], %s368
          %s370 = sshll.u32 [#allocation17], 4
          %s371 = int_to_ptr.vmem [resolvable:$true] %s370
          %376 = dma.hbm_to_vmem [thread:$0]  %s8, 2048, %s371, [#allocation16], 64, 64, 4
        $region28: #{tpu_custom_call.1} parent=11 // pred_fallthru
          _
        // Predicated region
        $region29: #{tpu_custom_call.1} parent=11 // pred_check
          %p377 = pneg %p280
        $region30: #{tpu_custom_call.1} parent=11 // pred_check_branch
          %379 = sbr.rel (%p377) target = $region32
        $region31: #{tpu_custom_call.1} parent=11 // pred_region
          _
        $region32: #{tpu_custom_call.1} parent=11 // pred_fallthru
          _
      $region12: #{tpu_custom_call.1} parent=5 // pred_fallthru
        _
      %p380 = scmp.lt.s32.totalorder %s28, 2
      // Predicated region
      $region33: #{tpu_custom_call.1} parent=5 // pred_check
        %p381 = pneg %p380
      $region34: #{tpu_custom_call.1} parent=5 // pred_check_branch
        %383 = sbr.rel (%p381) target = $region36
      $region35: #{tpu_custom_call.1} parent=5 // pred_region
        // Predicated region
        $region37: #{tpu_custom_call.1} parent=35 // pred_check
          %p384 = pneg %p128
        $region38: #{tpu_custom_call.1} parent=35 // pred_check_branch
          %386 = sbr.rel (%p384) target = $region40
        $region39: #{tpu_custom_call.1} parent=35 // pred_region
          %s387 = sand.u32 %s28, 1
          %s388 = scalar_lea.sflag [#allocation10], %s387
          %s389 = sand.u32 %s118, 1
          %s390 = smul.addr %s389, 768
          %s391 = scalar_lea.vmem [#allocation9], %s390
          %s393 = ssub.s32 12288, 12288
          %394 = vsyncadd %s388, %s393
          %s395 = smul.addr %s36, 192
          %s396 = smul.addr %s395, 64
          %s397 = scalar_lea.hbm %s3, %s396
          %s398 = sshll.u32 %s391, 4
          %s399 = int_to_ptr.vmem [resolvable:$true] %s398
          %404 = dma.hbm_to_vmem [thread:$0]  %s397, 12288, %s399, %s388, 384, 384, 24
        $region40: #{tpu_custom_call.1} parent=35 // pred_fallthru
          _
        // Predicated region
        $region41: #{tpu_custom_call.1} parent=35 // pred_check
          %p405 = pneg %p154
        $region42: #{tpu_custom_call.1} parent=35 // pred_check_branch
          %407 = sbr.rel (%p405) target = $region44
        $region43: #{tpu_custom_call.1} parent=35 // pred_region
          %s408 = sand.u32 %s28, 1
          %s409 = scalar_lea.sflag [#allocation10], %s408
          %s410 = sand.u32 %s144, 1
          %s411 = smul.addr %s410, 256
          %s412 = scalar_lea.vmem [#allocation11], %s411
          %s414 = ssub.s32 4096, 4096
          %415 = vsyncadd %s409, %s414
          %s416 = smul.addr %s36, 64
          %s417 = smul.addr %s416, 64
          %s418 = scalar_lea.hbm %s4, %s417
          %s419 = sshll.u32 %s412, 4
          %s420 = int_to_ptr.vmem [resolvable:$true] %s419
          %425 = dma.hbm_to_vmem [thread:$0]  %s418, 4096, %s420, %s409, 128, 128, 8
        $region44: #{tpu_custom_call.1} parent=35 // pred_fallthru
          _
        // Predicated region
        $region45: #{tpu_custom_call.1} parent=35 // pred_check
          %p426 = pneg %p180
        $region46: #{tpu_custom_call.1} parent=35 // pred_check_branch
          %428 = sbr.rel (%p426) target = $region48
        $region47: #{tpu_custom_call.1} parent=35 // pred_region
          %s429 = sand.u32 %s28, 1
          %s430 = scalar_lea.sflag [#allocation13], %s429
          %s431 = sand.u32 %s170, 1
          %s432 = smul.addr %s431, 1024
          %s433 = scalar_lea.vmem [#allocation12], %s432
          %s435 = ssub.s32 16384, 16384
          %436 = vsyncadd %s430, %s435
          %s437 = smul.addr %s36, 256
          %s438 = smul.addr %s437, 64
          %s439 = scalar_lea.hbm %s5, %s438
          %s440 = sshll.u32 %s433, 4
          %s441 = int_to_ptr.vmem [resolvable:$true] %s440
          %446 = dma.hbm_to_vmem [thread:$0]  %s439, 16384, %s441, %s430, 512, 512, 32
        $region48: #{tpu_custom_call.1} parent=35 // pred_fallthru
          _
        // Predicated region
        $region49: #{tpu_custom_call.1} parent=35 // pred_check
          %p447 = pneg %p206
        $region50: #{tpu_custom_call.1} parent=35 // pred_check_branch
          %449 = sbr.rel (%p447) target = $region52
        $region51: #{tpu_custom_call.1} parent=35 // pred_region
          %s450 = sand.u32 %s28, 1
          %s451 = scalar_lea.sflag [#allocation13], %s450
          %s452 = sand.u32 %s196, 1
          %s453 = smul.addr %s452, 1024
          %s454 = scalar_lea.vmem [#allocation14], %s453
          %s456 = ssub.s32 16384, 16384
          %457 = vsyncadd %s451, %s456
          %s458 = smul.addr %s36, 256
          %s459 = smul.addr %s458, 64
          %s460 = scalar_lea.hbm %s6, %s459
          %s461 = sshll.u32 %s454, 4
          %s462 = int_to_ptr.vmem [resolvable:$true] %s461
          %467 = dma.hbm_to_vmem [thread:$0]  %s460, 16384, %s462, %s451, 128, 128, 8
        $region52: #{tpu_custom_call.1} parent=35 // pred_fallthru
          _
        // Predicated region
        $region53: #{tpu_custom_call.1} parent=35 // pred_check
          %p468 = pneg %p232
        $region54: #{tpu_custom_call.1} parent=35 // pred_check_branch
          %470 = sbr.rel (%p468) target = $region56
        $region55: #{tpu_custom_call.1} parent=35 // pred_region
          %s471 = sand.u32 %s28, 1
          %s472 = scalar_lea.sflag [#allocation16], %s471
          %s473 = sand.u32 %s222, 1
          %s474 = smul.addr %s473, 64
          %s475 = scalar_lea.vmem [#allocation15], %s474
          %s477 = ssub.s32 1024, 1024
          %478 = vsyncadd %s472, %s477
          %s479 = smul.addr %s36, 8
          %s480 = smul.addr %s479, 128
          %s481 = scalar_lea.hbm %s7, %s480
          %s483 = sshll.u32 %s475, 4
          %s484 = int_to_ptr.vmem [resolvable:$true] %s483
          %486 = dma.hbm_to_vmem [thread:$0]  %s481, 1024, %s484, %s472
        $region56: #{tpu_custom_call.1} parent=35 // pred_fallthru
          _
      $region36: #{tpu_custom_call.1} parent=5 // pred_fallthru
        _
      %p487 = scmp.le.s32.totalorder 1, %s28
      %p488 = scmp.lt.s32.totalorder %s28, 3
      %p489 = pnand %p487, %p488
      %p490 = pneg %p489
      // Predicated region
      $region57: #{tpu_custom_call.1} parent=5 // pred_check
        _
      $region58: #{tpu_custom_call.1} parent=5 // pred_check_branch
        %492 = sbr.rel (%p489) target = $region60
      $region59: #{tpu_custom_call.1} parent=5 // pred_region
        %s493 = ssub.s32 %s28, 1
        // Predicated region
        $region61: #{tpu_custom_call.1} parent=59 // pred_check
          %p494 = pneg %p66
        $region62: #{tpu_custom_call.1} parent=59 // pred_check_branch
          %496 = sbr.rel (%p494) target = $region64
        $region63: #{tpu_custom_call.1} parent=59 // pred_region
          %497 = dma.done [#allocation4], 8192
        $region64: #{tpu_custom_call.1} parent=59 // pred_fallthru
          _
        // Predicated region
        $region65: #{tpu_custom_call.1} parent=59 // pred_check
          %p498 = pneg %p87
        $region66: #{tpu_custom_call.1} parent=59 // pred_check_branch
          %500 = sbr.rel (%p498) target = $region68
        $region67: #{tpu_custom_call.1} parent=59 // pred_region
          %501 = dma.done [#allocation7], 4096
        $region68: #{tpu_custom_call.1} parent=59 // pred_fallthru
          _
        // Predicated region
        $region69: #{tpu_custom_call.1} parent=59 // pred_check
          %p502 = pneg %p108
        $region70: #{tpu_custom_call.1} parent=59 // pred_check_branch
          %504 = sbr.rel (%p502) target = $region72
        $region71: #{tpu_custom_call.1} parent=59 // pred_region
          %505 = dma.done [#allocation7], 2048
        $region72: #{tpu_custom_call.1} parent=59 // pred_fallthru
          _
        %s506 = sand.u32 %s33, 1
        %s507 = scalar_lea.sflag [#allocation10], %s506
        %s508 = sand.u32 %s121, 1
        %s509 = smul.addr %s508, 768
        %s510 = scalar_lea.vmem [#allocation9], %s509
        // Predicated region
        $region73: #{tpu_custom_call.1} parent=59 // pred_check
          %p511 = pneg %p134
        $region74: #{tpu_custom_call.1} parent=59 // pred_check_branch
          %513 = sbr.rel (%p511) target = $region76
        $region75: #{tpu_custom_call.1} parent=59 // pred_region
          %514 = dma.done %s507, 12288
        $region76: #{tpu_custom_call.1} parent=59 // pred_fallthru
          _
        %s515 = sand.u32 %s33, 1
        %s516 = scalar_lea.sflag [#allocation10], %s515
        %s517 = sand.u32 %s147, 1
        %s518 = smul.addr %s517, 256
        %s519 = scalar_lea.vmem [#allocation11], %s518
        // Predicated region
        $region77: #{tpu_custom_call.1} parent=59 // pred_check
          %p520 = pneg %p160
        $region78: #{tpu_custom_call.1} parent=59 // pred_check_branch
          %522 = sbr.rel (%p520) target = $region80
        $region79: #{tpu_custom_call.1} parent=59 // pred_region
          %523 = dma.done %s516, 4096
        $region80: #{tpu_custom_call.1} parent=59 // pred_fallthru
          _
        %s524 = sand.u32 %s33, 1
        %s525 = scalar_lea.sflag [#allocation13], %s524
        %s526 = sand.u32 %s173, 1
        %s527 = smul.addr %s526, 1024
        %s528 = scalar_lea.vmem [#allocation12], %s527
        // Predicated region
        $region81: #{tpu_custom_call.1} parent=59 // pred_check
          %p529 = pneg %p186
        $region82: #{tpu_custom_call.1} parent=59 // pred_check_branch
          %531 = sbr.rel (%p529) target = $region84
        $region83: #{tpu_custom_call.1} parent=59 // pred_region
          %532 = dma.done %s525, 16384
        $region84: #{tpu_custom_call.1} parent=59 // pred_fallthru
          _
        %s533 = sand.u32 %s33, 1
        %s534 = scalar_lea.sflag [#allocation13], %s533
        %s535 = sand.u32 %s199, 1
        %s536 = smul.addr %s535, 1024
        %s537 = scalar_lea.vmem [#allocation14], %s536
        // Predicated region
        $region85: #{tpu_custom_call.1} parent=59 // pred_check
          %p538 = pneg %p212
        $region86: #{tpu_custom_call.1} parent=59 // pred_check_branch
          %540 = sbr.rel (%p538) target = $region88
        $region87: #{tpu_custom_call.1} parent=59 // pred_region
          %541 = dma.done %s534, 16384
        $region88: #{tpu_custom_call.1} parent=59 // pred_fallthru
          _
        %s542 = sand.u32 %s33, 1
        %s543 = scalar_lea.sflag [#allocation16], %s542
        %s544 = sand.u32 %s225, 1
        %s545 = smul.addr %s544, 64
        %s546 = scalar_lea.vmem [#allocation15], %s545
        // Predicated region
        $region89: #{tpu_custom_call.1} parent=59 // pred_check
          %p547 = pneg %p238
        $region90: #{tpu_custom_call.1} parent=59 // pred_check_branch
          %549 = sbr.rel (%p547) target = $region92
        $region91: #{tpu_custom_call.1} parent=59 // pred_region
          %550 = dma.done %s543, 1024
        $region92: #{tpu_custom_call.1} parent=59 // pred_fallthru
          _
        // Predicated region
        $region93: #{tpu_custom_call.1} parent=59 // pred_check
          %p551 = pneg %p259
        $region94: #{tpu_custom_call.1} parent=59 // pred_check_branch
          %553 = sbr.rel (%p551) target = $region96
        $region95: #{tpu_custom_call.1} parent=59 // pred_region
          %554 = dma.done [#allocation16], 2048
        $region96: #{tpu_custom_call.1} parent=59 // pred_fallthru
          _
        %p555 = pneg %p66
        %p556 = pneg %p63
        %p557 = pneg %p87
        %p558 = pneg %p84
        %p559 = pneg %p108
        %p560 = pneg %p105
        %s561 = sand.u32 %s33, 1
        %s562 = scalar_lea.sflag [#allocation10], %s561
        %s563 = sand.u32 %s121, 1
        %s564 = smul.addr %s563, 768
        %s565 = scalar_lea.vmem [#allocation9], %s564
        %p566 = pneg %p134
        %p567 = pneg %p131
        %s568 = sand.u32 %s33, 1
        %s569 = scalar_lea.sflag [#allocation10], %s568
        %s570 = sand.u32 %s147, 1
        %s571 = smul.addr %s570, 256
        %s572 = scalar_lea.vmem [#allocation11], %s571
        %p573 = pneg %p160
        %p574 = pneg %p157
        %s575 = sand.u32 %s33, 1
        %s576 = scalar_lea.sflag [#allocation13], %s575
        %s577 = sand.u32 %s173, 1
        %s578 = smul.addr %s577, 1024
        %s579 = scalar_lea.vmem [#allocation12], %s578
        %p580 = pneg %p186
        %p581 = pneg %p183
        %s582 = sand.u32 %s33, 1
        %s583 = scalar_lea.sflag [#allocation13], %s582
        %s584 = sand.u32 %s199, 1
        %s585 = smul.addr %s584, 1024
        %s586 = scalar_lea.vmem [#allocation14], %s585
        %p587 = pneg %p212
        %p588 = pneg %p209
        %s589 = sand.u32 %s33, 1
        %s590 = scalar_lea.sflag [#allocation16], %s589
        %s591 = sand.u32 %s225, 1
        %s592 = smul.addr %s591, 64
        %s593 = scalar_lea.vmem [#allocation15], %s592
        %p594 = pneg %p238
        %p595 = pneg %p235
        %p596 = pneg %p259
        %p597 = pneg %p256
        %p598 = pneg %p280
        %p599 = pneg %p277
        %p600 = pneg %p306
        %p601 = pneg %p303
        %s602 = smul.u32 2, %s37
        %s603 = smul.u32 2, %s37
        %p605 = scmp.eq.s32.totalorder %s38, 0
        // Predicated region
        $region97: #{tpu_custom_call.1} parent=59 // pred_check
          %p606 = pneg %p605
        $region98: #{tpu_custom_call.1} parent=59 // pred_check_branch
          %608 = sbr.rel (%p606) target = $region100
        $region99: #{tpu_custom_call.1} parent=59 // pred_region
          %v609 = vld [vmem:[#allocation3] sm:$0xff]
          %v610 = vld [vmem:[#allocation3 + $0x8] sm:$0xff]
          %v611 = vld [vmem:[#allocation3 + $0x10] sm:$0xff]
          %v612 = vld [vmem:[#allocation3 + $0x18] sm:$0xff]
          %v613 = vld [vmem:[#allocation3 + $0x20] sm:$0xff]
          %v614 = vld [vmem:[#allocation3 + $0x28] sm:$0xff]
          %v615 = vld [vmem:[#allocation3 + $0x30] sm:$0xff]
          %v616 = vld [vmem:[#allocation3 + $0x38] sm:$0xff]
          %v617 = vld [vmem:[#allocation3 + $0x40] sm:$0xff]
          %v618 = vld [vmem:[#allocation3 + $0x48] sm:$0xff]
          %v619 = vld [vmem:[#allocation3 + $0x50] sm:$0xff]
          %v620 = vld [vmem:[#allocation3 + $0x58] sm:$0xff]
          %v621 = vld [vmem:[#allocation3 + $0x60] sm:$0xff]
          %v622 = vld [vmem:[#allocation3 + $0x68] sm:$0xff]
          %v623 = vld [vmem:[#allocation3 + $0x70] sm:$0xff]
          %v624 = vld [vmem:[#allocation3 + $0x78] sm:$0xff]
          %v625 = vld [vmem:[#allocation3 + $0x80] sm:$0xff]
          %v626 = vld [vmem:[#allocation3 + $0x88] sm:$0xff]
          %v627 = vld [vmem:[#allocation3 + $0x90] sm:$0xff]
          %v628 = vld [vmem:[#allocation3 + $0x98] sm:$0xff]
          %v629 = vld [vmem:[#allocation3 + $0xa0] sm:$0xff]
          %v630 = vld [vmem:[#allocation3 + $0xa8] sm:$0xff]
          %v631 = vld [vmem:[#allocation3 + $0xb0] sm:$0xff]
          %v632 = vld [vmem:[#allocation3 + $0xb8] sm:$0xff]
          %v633 = vld [vmem:[#allocation3 + $0xc0] sm:$0xff]
          %v634 = vld [vmem:[#allocation3 + $0xc8] sm:$0xff]
          %v635 = vld [vmem:[#allocation3 + $0xd0] sm:$0xff]
          %v636 = vld [vmem:[#allocation3 + $0xd8] sm:$0xff]
          %v637 = vld [vmem:[#allocation3 + $0xe0] sm:$0xff]
          %v638 = vld [vmem:[#allocation3 + $0xe8] sm:$0xff]
          %v639 = vld [vmem:[#allocation3 + $0xf0] sm:$0xff]
          %v640 = vld [vmem:[#allocation3 + $0xf8] sm:$0xff]
          %v641 = vld [vmem:[#allocation3 + $0x100] sm:$0xff]
          %v642 = vld [vmem:[#allocation3 + $0x108] sm:$0xff]
          %v643 = vld [vmem:[#allocation3 + $0x110] sm:$0xff]
          %v644 = vld [vmem:[#allocation3 + $0x118] sm:$0xff]
          %v645 = vld [vmem:[#allocation3 + $0x120] sm:$0xff]
          %v646 = vld [vmem:[#allocation3 + $0x128] sm:$0xff]
          %v647 = vld [vmem:[#allocation3 + $0x130] sm:$0xff]
          %v648 = vld [vmem:[#allocation3 + $0x138] sm:$0xff]
          %v649 = vld [vmem:[#allocation3 + $0x140] sm:$0xff]
          %v650 = vld [vmem:[#allocation3 + $0x148] sm:$0xff]
          %v651 = vld [vmem:[#allocation3 + $0x150] sm:$0xff]
          %v652 = vld [vmem:[#allocation3 + $0x158] sm:$0xff]
          %v653 = vld [vmem:[#allocation3 + $0x160] sm:$0xff]
          %v654 = vld [vmem:[#allocation3 + $0x168] sm:$0xff]
          %v655 = vld [vmem:[#allocation3 + $0x170] sm:$0xff]
          %v656 = vld [vmem:[#allocation3 + $0x178] sm:$0xff]
          %v657 = vld [vmem:[#allocation3 + $0x180] sm:$0xff]
          %v658 = vld [vmem:[#allocation3 + $0x188] sm:$0xff]
          %v659 = vld [vmem:[#allocation3 + $0x190] sm:$0xff]
          %v660 = vld [vmem:[#allocation3 + $0x198] sm:$0xff]
          %v661 = vld [vmem:[#allocation3 + $0x1a0] sm:$0xff]
          %v662 = vld [vmem:[#allocation3 + $0x1a8] sm:$0xff]
          %v663 = vld [vmem:[#allocation3 + $0x1b0] sm:$0xff]
          %v664 = vld [vmem:[#allocation3 + $0x1b8] sm:$0xff]
          %v665 = vld [vmem:[#allocation3 + $0x1c0] sm:$0xff]
          %v666 = vld [vmem:[#allocation3 + $0x1c8] sm:$0xff]
          %v667 = vld [vmem:[#allocation3 + $0x1d0] sm:$0xff]
          %v668 = vld [vmem:[#allocation3 + $0x1d8] sm:$0xff]
          %v669 = vld [vmem:[#allocation3 + $0x1e0] sm:$0xff]
          %v670 = vld [vmem:[#allocation3 + $0x1e8] sm:$0xff]
          %v671 = vld [vmem:[#allocation3 + $0x1f0] sm:$0xff]
          %v672 = vld [vmem:[#allocation3 + $0x1f8] sm:$0xff]
          %v673 = vld [vmem:[#allocation6] sm:$0xff]
          %v674 = vld [vmem:[#allocation6 + $0x8] sm:$0xff]
          %v675 = vld [vmem:[#allocation6 + $0x10] sm:$0xff]
          %v676 = vld [vmem:[#allocation6 + $0x18] sm:$0xff]
          %v677 = vld [vmem:[#allocation6 + $0x20] sm:$0xff]
          %v678 = vld [vmem:[#allocation6 + $0x28] sm:$0xff]
          %v679 = vld [vmem:[#allocation6 + $0x30] sm:$0xff]
          %v680 = vld [vmem:[#allocation6 + $0x38] sm:$0xff]
          %v681 = vld [vmem:[#allocation6 + $0x40] sm:$0xff]
          %v682 = vld [vmem:[#allocation6 + $0x48] sm:$0xff]
          %v683 = vld [vmem:[#allocation6 + $0x50] sm:$0xff]
          %v684 = vld [vmem:[#allocation6 + $0x58] sm:$0xff]
          %v685 = vld [vmem:[#allocation6 + $0x60] sm:$0xff]
          %v686 = vld [vmem:[#allocation6 + $0x68] sm:$0xff]
          %v687 = vld [vmem:[#allocation6 + $0x70] sm:$0xff]
          %v688 = vld [vmem:[#allocation6 + $0x78] sm:$0xff]
          %v689 = vld [vmem:[#allocation6 + $0x80] sm:$0xff]
          %v690 = vld [vmem:[#allocation6 + $0x88] sm:$0xff]
          %v691 = vld [vmem:[#allocation6 + $0x90] sm:$0xff]
          %v692 = vld [vmem:[#allocation6 + $0x98] sm:$0xff]
          %v693 = vld [vmem:[#allocation6 + $0xa0] sm:$0xff]
          %v694 = vld [vmem:[#allocation6 + $0xa8] sm:$0xff]
          %v695 = vld [vmem:[#allocation6 + $0xb0] sm:$0xff]
          %v696 = vld [vmem:[#allocation6 + $0xb8] sm:$0xff]
          %v697 = vld [vmem:[#allocation6 + $0xc0] sm:$0xff]
          %v698 = vld [vmem:[#allocation6 + $0xc8] sm:$0xff]
          %v699 = vld [vmem:[#allocation6 + $0xd0] sm:$0xff]
          %v700 = vld [vmem:[#allocation6 + $0xd8] sm:$0xff]
          %v701 = vld [vmem:[#allocation6 + $0xe0] sm:$0xff]
          %v702 = vld [vmem:[#allocation6 + $0xe8] sm:$0xff]
          %v703 = vld [vmem:[#allocation6 + $0xf0] sm:$0xff]
          %v704 = vld [vmem:[#allocation6 + $0xf8] sm:$0xff]
          %v705 = vadd.f32 %v609, %v673
          %v706 = vadd.f32 %v610, %v674
          %v707 = vadd.f32 %v611, %v675
          %v708 = vadd.f32 %v612, %v676
          %v709 = vadd.f32 %v613, %v677
          %v710 = vadd.f32 %v614, %v678
          %v711 = vadd.f32 %v615, %v679
          %v712 = vadd.f32 %v616, %v680
          %v713 = vadd.f32 %v617, %v681
          %v714 = vadd.f32 %v618, %v682
          %v715 = vadd.f32 %v619, %v683
          %v716 = vadd.f32 %v620, %v684
          %v717 = vadd.f32 %v621, %v685
          %v718 = vadd.f32 %v622, %v686
          %v719 = vadd.f32 %v623, %v687
          %v720 = vadd.f32 %v624, %v688
          %v721 = vadd.f32 %v625, %v689
          %v722 = vadd.f32 %v626, %v690
          %v723 = vadd.f32 %v627, %v691
          %v724 = vadd.f32 %v628, %v692
          %v725 = vadd.f32 %v629, %v693
          %v726 = vadd.f32 %v630, %v694
          %v727 = vadd.f32 %v631, %v695
          %v728 = vadd.f32 %v632, %v696
          %v729 = vadd.f32 %v633, %v697
          %v730 = vadd.f32 %v634, %v698
          %v731 = vadd.f32 %v635, %v699
          %v732 = vadd.f32 %v636, %v700
          %v733 = vadd.f32 %v637, %v701
          %v734 = vadd.f32 %v638, %v702
          %v735 = vadd.f32 %v639, %v703
          %v736 = vadd.f32 %v640, %v704
          %v737 = vadd.f32 %v641, %v673
          %v738 = vadd.f32 %v642, %v674
          %v739 = vadd.f32 %v643, %v675
          %v740 = vadd.f32 %v644, %v676
          %v741 = vadd.f32 %v645, %v677
          %v742 = vadd.f32 %v646, %v678
          %v743 = vadd.f32 %v647, %v679
          %v744 = vadd.f32 %v648, %v680
          %v745 = vadd.f32 %v649, %v681
          %v746 = vadd.f32 %v650, %v682
          %v747 = vadd.f32 %v651, %v683
          %v748 = vadd.f32 %v652, %v684
          %v749 = vadd.f32 %v653, %v685
          %v750 = vadd.f32 %v654, %v686
          %v751 = vadd.f32 %v655, %v687
          %v752 = vadd.f32 %v656, %v688
          %v753 = vadd.f32 %v657, %v689
          %v754 = vadd.f32 %v658, %v690
          %v755 = vadd.f32 %v659, %v691
          %v756 = vadd.f32 %v660, %v692
          %v757 = vadd.f32 %v661, %v693
          %v758 = vadd.f32 %v662, %v694
          %v759 = vadd.f32 %v663, %v695
          %v760 = vadd.f32 %v664, %v696
          %v761 = vadd.f32 %v665, %v697
          %v762 = vadd.f32 %v666, %v698
          %v763 = vadd.f32 %v667, %v699
          %v764 = vadd.f32 %v668, %v700
          %v765 = vadd.f32 %v669, %v701
          %v766 = vadd.f32 %v670, %v702
          %v767 = vadd.f32 %v671, %v703
          %v768 = vadd.f32 %v672, %v704
          %769 = vst [vmem:[#allocation2] sm:$0xff] %v705
          %770 = vst [vmem:[#allocation2 + $0x8] sm:$0xff] %v706
          %771 = vst [vmem:[#allocation2 + $0x10] sm:$0xff] %v707
          %772 = vst [vmem:[#allocation2 + $0x18] sm:$0xff] %v708
          %773 = vst [vmem:[#allocation2 + $0x20] sm:$0xff] %v709
          %774 = vst [vmem:[#allocation2 + $0x28] sm:$0xff] %v710
          %775 = vst [vmem:[#allocation2 + $0x30] sm:$0xff] %v711
          %776 = vst [vmem:[#allocation2 + $0x38] sm:$0xff] %v712
          %777 = vst [vmem:[#allocation2 + $0x40] sm:$0xff] %v713
          %778 = vst [vmem:[#allocation2 + $0x48] sm:$0xff] %v714
          %779 = vst [vmem:[#allocation2 + $0x50] sm:$0xff] %v715
          %780 = vst [vmem:[#allocation2 + $0x58] sm:$0xff] %v716
          %781 = vst [vmem:[#allocation2 + $0x60] sm:$0xff] %v717
          %782 = vst [vmem:[#allocation2 + $0x68] sm:$0xff] %v718
          %783 = vst [vmem:[#allocation2 + $0x70] sm:$0xff] %v719
          %784 = vst [vmem:[#allocation2 + $0x78] sm:$0xff] %v720
          %785 = vst [vmem:[#allocation2 + $0x80] sm:$0xff] %v721
          %786 = vst [vmem:[#allocation2 + $0x88] sm:$0xff] %v722
          %787 = vst [vmem:[#allocation2 + $0x90] sm:$0xff] %v723
          %788 = vst [vmem:[#allocation2 + $0x98] sm:$0xff] %v724
          %789 = vst [vmem:[#allocation2 + $0xa0] sm:$0xff] %v725
          %790 = vst [vmem:[#allocation2 + $0xa8] sm:$0xff] %v726
          %791 = vst [vmem:[#allocation2 + $0xb0] sm:$0xff] %v727
          %792 = vst [vmem:[#allocation2 + $0xb8] sm:$0xff] %v728
          %793 = vst [vmem:[#allocation2 + $0xc0] sm:$0xff] %v729
          %794 = vst [vmem:[#allocation2 + $0xc8] sm:$0xff] %v730
          %795 = vst [vmem:[#allocation2 + $0xd0] sm:$0xff] %v731
          %796 = vst [vmem:[#allocation2 + $0xd8] sm:$0xff] %v732
          %797 = vst [vmem:[#allocation2 + $0xe0] sm:$0xff] %v733
          %798 = vst [vmem:[#allocation2 + $0xe8] sm:$0xff] %v734
          %799 = vst [vmem:[#allocation2 + $0xf0] sm:$0xff] %v735
          %800 = vst [vmem:[#allocation2 + $0xf8] sm:$0xff] %v736
          %801 = vst [vmem:[#allocation2 + $0x100] sm:$0xff] %v737
          %802 = vst [vmem:[#allocation2 + $0x108] sm:$0xff] %v738
          %803 = vst [vmem:[#allocation2 + $0x110] sm:$0xff] %v739
          %804 = vst [vmem:[#allocation2 + $0x118] sm:$0xff] %v740
          %805 = vst [vmem:[#allocation2 + $0x120] sm:$0xff] %v741
          %806 = vst [vmem:[#allocation2 + $0x128] sm:$0xff] %v742
          %807 = vst [vmem:[#allocation2 + $0x130] sm:$0xff] %v743
          %808 = vst [vmem:[#allocation2 + $0x138] sm:$0xff] %v744
          %809 = vst [vmem:[#allocation2 + $0x140] sm:$0xff] %v745
          %810 = vst [vmem:[#allocation2 + $0x148] sm:$0xff] %v746
          %811 = vst [vmem:[#allocation2 + $0x150] sm:$0xff] %v747
          %812 = vst [vmem:[#allocation2 + $0x158] sm:$0xff] %v748
          %813 = vst [vmem:[#allocation2 + $0x160] sm:$0xff] %v749
          %814 = vst [vmem:[#allocation2 + $0x168] sm:$0xff] %v750
          %815 = vst [vmem:[#allocation2 + $0x170] sm:$0xff] %v751
          %816 = vst [vmem:[#allocation2 + $0x178] sm:$0xff] %v752
          %817 = vst [vmem:[#allocation2 + $0x180] sm:$0xff] %v753
          %818 = vst [vmem:[#allocation2 + $0x188] sm:$0xff] %v754
          %819 = vst [vmem:[#allocation2 + $0x190] sm:$0xff] %v755
          %820 = vst [vmem:[#allocation2 + $0x198] sm:$0xff] %v756
          %821 = vst [vmem:[#allocation2 + $0x1a0] sm:$0xff] %v757
          %822 = vst [vmem:[#allocation2 + $0x1a8] sm:$0xff] %v758
          %823 = vst [vmem:[#allocation2 + $0x1b0] sm:$0xff] %v759
          %824 = vst [vmem:[#allocation2 + $0x1b8] sm:$0xff] %v760
          %825 = vst [vmem:[#allocation2 + $0x1c0] sm:$0xff] %v761
          %826 = vst [vmem:[#allocation2 + $0x1c8] sm:$0xff] %v762
          %827 = vst [vmem:[#allocation2 + $0x1d0] sm:$0xff] %v763
          %828 = vst [vmem:[#allocation2 + $0x1d8] sm:$0xff] %v764
          %829 = vst [vmem:[#allocation2 + $0x1e0] sm:$0xff] %v765
          %830 = vst [vmem:[#allocation2 + $0x1e8] sm:$0xff] %v766
          %831 = vst [vmem:[#allocation2 + $0x1f0] sm:$0xff] %v767
          %832 = vst [vmem:[#allocation2 + $0x1f8] sm:$0xff] %v768
        $region100: #{tpu_custom_call.1} parent=59 // pred_fallthru
          _
        %v833 = vld [vmem:[#allocation2] sm:$0xff]
        %v834 = vld [vmem:[#allocation2 + $0x8] sm:$0xff]
        %v835 = vld [vmem:[#allocation2 + $0x10] sm:$0xff]
        %v836 = vld [vmem:[#allocation2 + $0x18] sm:$0xff]
        %v837 = vld [vmem:[#allocation2 + $0x20] sm:$0xff]
        %v838 = vld [vmem:[#allocation2 + $0x28] sm:$0xff]
        %v839 = vld [vmem:[#allocation2 + $0x30] sm:$0xff]
        %v840 = vld [vmem:[#allocation2 + $0x38] sm:$0xff]
        %v841 = vld [vmem:[#allocation2 + $0x40] sm:$0xff]
        %v842 = vld [vmem:[#allocation2 + $0x48] sm:$0xff]
        %v843 = vld [vmem:[#allocation2 + $0x50] sm:$0xff]
        %v844 = vld [vmem:[#allocation2 + $0x58] sm:$0xff]
        %v845 = vld [vmem:[#allocation2 + $0x60] sm:$0xff]
        %v846 = vld [vmem:[#allocation2 + $0x68] sm:$0xff]
        %v847 = vld [vmem:[#allocation2 + $0x70] sm:$0xff]
        %v848 = vld [vmem:[#allocation2 + $0x78] sm:$0xff]
        %v849 = vld [vmem:[#allocation2 + $0x80] sm:$0xff]
        %v850 = vld [vmem:[#allocation2 + $0x88] sm:$0xff]
        %v851 = vld [vmem:[#allocation2 + $0x90] sm:$0xff]
        %v852 = vld [vmem:[#allocation2 + $0x98] sm:$0xff]
        %v853 = vld [vmem:[#allocation2 + $0xa0] sm:$0xff]
        %v854 = vld [vmem:[#allocation2 + $0xa8] sm:$0xff]
        %v855 = vld [vmem:[#allocation2 + $0xb0] sm:$0xff]
        %v856 = vld [vmem:[#allocation2 + $0xb8] sm:$0xff]
        %v857 = vld [vmem:[#allocation2 + $0xc0] sm:$0xff]
        %v858 = vld [vmem:[#allocation2 + $0xc8] sm:$0xff]
        %v859 = vld [vmem:[#allocation2 + $0xd0] sm:$0xff]
        %v860 = vld [vmem:[#allocation2 + $0xd8] sm:$0xff]
        %v861 = vld [vmem:[#allocation2 + $0xe0] sm:$0xff]
        %v862 = vld [vmem:[#allocation2 + $0xe8] sm:$0xff]
        %v863 = vld [vmem:[#allocation2 + $0xf0] sm:$0xff]
        %v864 = vld [vmem:[#allocation2 + $0xf8] sm:$0xff]
        %v865 = vld [vmem:[#allocation2 + $0x100] sm:$0xff]
        %v866 = vld [vmem:[#allocation2 + $0x108] sm:$0xff]
        %v867 = vld [vmem:[#allocation2 + $0x110] sm:$0xff]
        %v868 = vld [vmem:[#allocation2 + $0x118] sm:$0xff]
        %v869 = vld [vmem:[#allocation2 + $0x120] sm:$0xff]
        %v870 = vld [vmem:[#allocation2 + $0x128] sm:$0xff]
        %v871 = vld [vmem:[#allocation2 + $0x130] sm:$0xff]
        %v872 = vld [vmem:[#allocation2 + $0x138] sm:$0xff]
        %v873 = vld [vmem:[#allocation2 + $0x140] sm:$0xff]
        %v874 = vld [vmem:[#allocation2 + $0x148] sm:$0xff]
        %v875 = vld [vmem:[#allocation2 + $0x150] sm:$0xff]
        %v876 = vld [vmem:[#allocation2 + $0x158] sm:$0xff]
        %v877 = vld [vmem:[#allocation2 + $0x160] sm:$0xff]
        %v878 = vld [vmem:[#allocation2 + $0x168] sm:$0xff]
        %v879 = vld [vmem:[#allocation2 + $0x170] sm:$0xff]
        %v880 = vld [vmem:[#allocation2 + $0x178] sm:$0xff]
        %v881 = vld [vmem:[#allocation2 + $0x180] sm:$0xff]
        %v882 = vld [vmem:[#allocation2 + $0x188] sm:$0xff]
        %v883 = vld [vmem:[#allocation2 + $0x190] sm:$0xff]
        %v884 = vld [vmem:[#allocation2 + $0x198] sm:$0xff]
        %v885 = vld [vmem:[#allocation2 + $0x1a0] sm:$0xff]
        %v886 = vld [vmem:[#allocation2 + $0x1a8] sm:$0xff]
        %v887 = vld [vmem:[#allocation2 + $0x1b0] sm:$0xff]
        %v888 = vld [vmem:[#allocation2 + $0x1b8] sm:$0xff]
        %v889 = vld [vmem:[#allocation2 + $0x1c0] sm:$0xff]
        %v890 = vld [vmem:[#allocation2 + $0x1c8] sm:$0xff]
        %v891 = vld [vmem:[#allocation2 + $0x1d0] sm:$0xff]
        %v892 = vld [vmem:[#allocation2 + $0x1d8] sm:$0xff]
        %v893 = vld [vmem:[#allocation2 + $0x1e0] sm:$0xff]
        %v894 = vld [vmem:[#allocation2 + $0x1e8] sm:$0xff]
        %v895 = vld [vmem:[#allocation2 + $0x1f0] sm:$0xff]
        %v896 = vld [vmem:[#allocation2 + $0x1f8] sm:$0xff]
        %v897 = vpack.c.bf16 %v835, %v833
        %v898 = vpack.c.bf16 %v836, %v834
        %v899 = vpack.c.bf16 %v839, %v837
        %v900 = vpack.c.bf16 %v840, %v838
        %v901 = vpack.c.bf16 %v843, %v841
        %v902 = vpack.c.bf16 %v844, %v842
        %v903 = vpack.c.bf16 %v847, %v845
        %v904 = vpack.c.bf16 %v848, %v846
        %v905 = vpack.c.bf16 %v851, %v849
        %v906 = vpack.c.bf16 %v852, %v850
        %v907 = vpack.c.bf16 %v855, %v853
        %v908 = vpack.c.bf16 %v856, %v854
        %v909 = vpack.c.bf16 %v859, %v857
        %v910 = vpack.c.bf16 %v860, %v858
        %v911 = vpack.c.bf16 %v863, %v861
        %v912 = vpack.c.bf16 %v864, %v862
        %v913 = vpack.c.bf16 %v867, %v865
        %v914 = vpack.c.bf16 %v868, %v866
        %v915 = vpack.c.bf16 %v871, %v869
        %v916 = vpack.c.bf16 %v872, %v870
        %v917 = vpack.c.bf16 %v875, %v873
        %v918 = vpack.c.bf16 %v876, %v874
        %v919 = vpack.c.bf16 %v879, %v877
        %v920 = vpack.c.bf16 %v880, %v878
        %v921 = vpack.c.bf16 %v883, %v881
        %v922 = vpack.c.bf16 %v884, %v882
        %v923 = vpack.c.bf16 %v887, %v885
        %v924 = vpack.c.bf16 %v888, %v886
        %v925 = vpack.c.bf16 %v891, %v889
        %v926 = vpack.c.bf16 %v892, %v890
        %v927 = vpack.c.bf16 %v895, %v893
        %v928 = vpack.c.bf16 %v896, %v894
        %v929 = vld [vmem:[%s546] sm:$0xff]
        %v930 = vld [vmem:[%s546 + $0x8] sm:$0xff]
        %v931 = vld [vmem:[%s546 + $0x10] sm:$0xff]
        %v932 = vld [vmem:[%s546 + $0x18] sm:$0xff]
        %v933 = vld [vmem:[%s546 + $0x20] sm:$0xff]
        %v934 = vld [vmem:[%s546 + $0x28] sm:$0xff]
        %v935 = vld [vmem:[%s546 + $0x30] sm:$0xff]
        %v936 = vld [vmem:[%s546 + $0x38] sm:$0xff]
        %v937 = vld [vmem:[%s510] sm:$0xff]
        %v938 = vld [vmem:[%s510 + $0x8] sm:$0xff]
        %v939 = vld [vmem:[%s510 + $0x10] sm:$0xff]
        %v940 = vld [vmem:[%s510 + $0x18] sm:$0xff]
        %v941 = vld [vmem:[%s510 + $0x20] sm:$0xff]
        %v942 = vld [vmem:[%s510 + $0x28] sm:$0xff]
        %v943 = vld [vmem:[%s510 + $0x30] sm:$0xff]
        %v944 = vld [vmem:[%s510 + $0x38] sm:$0xff]
        %v945 = vld [vmem:[%s510 + $0x40] sm:$0xff]
        %v946 = vld [vmem:[%s510 + $0x48] sm:$0xff]
        %v947 = vld [vmem:[%s510 + $0x50] sm:$0xff]
        %v948 = vld [vmem:[%s510 + $0x58] sm:$0xff]
        %v949 = vld [vmem:[%s510 + $0x60] sm:$0xff]
        %v950 = vld [vmem:[%s510 + $0x68] sm:$0xff]
        %v951 = vld [vmem:[%s510 + $0x70] sm:$0xff]
        %v952 = vld [vmem:[%s510 + $0x78] sm:$0xff]
        %v953 = vld [vmem:[%s510 + $0x80] sm:$0xff]
        %v954 = vld [vmem:[%s510 + $0x88] sm:$0xff]
        %v955 = vld [vmem:[%s510 + $0x90] sm:$0xff]
        %v956 = vld [vmem:[%s510 + $0x98] sm:$0xff]
        %v957 = vld [vmem:[%s510 + $0xa0] sm:$0xff]
        %v958 = vld [vmem:[%s510 + $0xa8] sm:$0xff]
        %v959 = vld [vmem:[%s510 + $0xb0] sm:$0xff]
        %v960 = vld [vmem:[%s510 + $0xb8] sm:$0xff]
        %v961 = vld [vmem:[%s510 + $0xc0] sm:$0xff]
        %v962 = vld [vmem:[%s510 + $0xc8] sm:$0xff]
        %v963 = vld [vmem:[%s510 + $0xd0] sm:$0xff]
        %v964 = vld [vmem:[%s510 + $0xd8] sm:$0xff]
        %v965 = vld [vmem:[%s510 + $0xe0] sm:$0xff]
        %v966 = vld [vmem:[%s510 + $0xe8] sm:$0xff]
        %v967 = vld [vmem:[%s510 + $0xf0] sm:$0xff]
        %v968 = vld [vmem:[%s510 + $0xf8] sm:$0xff]
        %v969 = vld [vmem:[%s510 + $0x100] sm:$0xff]
        %v970 = vld [vmem:[%s510 + $0x108] sm:$0xff]
        %v971 = vld [vmem:[%s510 + $0x110] sm:$0xff]
        %v972 = vld [vmem:[%s510 + $0x118] sm:$0xff]
        %v973 = vld [vmem:[%s510 + $0x120] sm:$0xff]
        %v974 = vld [vmem:[%s510 + $0x128] sm:$0xff]
        %v975 = vld [vmem:[%s510 + $0x130] sm:$0xff]
        %v976 = vld [vmem:[%s510 + $0x138] sm:$0xff]
        %v977 = vld [vmem:[%s510 + $0x140] sm:$0xff]
        %v978 = vld [vmem:[%s510 + $0x148] sm:$0xff]
        %v979 = vld [vmem:[%s510 + $0x150] sm:$0xff]
        %v980 = vld [vmem:[%s510 + $0x158] sm:$0xff]
        %v981 = vld [vmem:[%s510 + $0x160] sm:$0xff]
        %v982 = vld [vmem:[%s510 + $0x168] sm:$0xff]
        %v983 = vld [vmem:[%s510 + $0x170] sm:$0xff]
        %v984 = vld [vmem:[%s510 + $0x178] sm:$0xff]
        %v985 = vld [vmem:[%s510 + $0x180] sm:$0xff]
        %v986 = vld [vmem:[%s510 + $0x188] sm:$0xff]
        %v987 = vld [vmem:[%s510 + $0x190] sm:$0xff]
        %v988 = vld [vmem:[%s510 + $0x198] sm:$0xff]
        %v989 = vld [vmem:[%s510 + $0x1a0] sm:$0xff]
        %v990 = vld [vmem:[%s510 + $0x1a8] sm:$0xff]
        %v991 = vld [vmem:[%s510 + $0x1b0] sm:$0xff]
        %v992 = vld [vmem:[%s510 + $0x1b8] sm:$0xff]
        %v993 = vld [vmem:[%s510 + $0x1c0] sm:$0xff]
        %v994 = vld [vmem:[%s510 + $0x1c8] sm:$0xff]
        %v995 = vld [vmem:[%s510 + $0x1d0] sm:$0xff]
        %v996 = vld [vmem:[%s510 + $0x1d8] sm:$0xff]
        %v997 = vld [vmem:[%s510 + $0x1e0] sm:$0xff]
        %v998 = vld [vmem:[%s510 + $0x1e8] sm:$0xff]
        %v999 = vld [vmem:[%s510 + $0x1f0] sm:$0xff]
        %v1000 = vld [vmem:[%s510 + $0x1f8] sm:$0xff]
        %v1001 = vld [vmem:[%s510 + $0x200] sm:$0xff]
        %v1002 = vld [vmem:[%s510 + $0x208] sm:$0xff]
        %v1003 = vld [vmem:[%s510 + $0x210] sm:$0xff]
        %v1004 = vld [vmem:[%s510 + $0x218] sm:$0xff]
        %v1005 = vld [vmem:[%s510 + $0x220] sm:$0xff]
        %v1006 = vld [vmem:[%s510 + $0x228] sm:$0xff]
        %v1007 = vld [vmem:[%s510 + $0x230] sm:$0xff]
        %v1008 = vld [vmem:[%s510 + $0x238] sm:$0xff]
        %v1009 = vld [vmem:[%s510 + $0x240] sm:$0xff]
        %v1010 = vld [vmem:[%s510 + $0x248] sm:$0xff]
        %v1011 = vld [vmem:[%s510 + $0x250] sm:$0xff]
        %v1012 = vld [vmem:[%s510 + $0x258] sm:$0xff]
        %v1013 = vld [vmem:[%s510 + $0x260] sm:$0xff]
        %v1014 = vld [vmem:[%s510 + $0x268] sm:$0xff]
        %v1015 = vld [vmem:[%s510 + $0x270] sm:$0xff]
        %v1016 = vld [vmem:[%s510 + $0x278] sm:$0xff]
        %v1017 = vld [vmem:[%s510 + $0x280] sm:$0xff]
        %v1018 = vld [vmem:[%s510 + $0x288] sm:$0xff]
        %v1019 = vld [vmem:[%s510 + $0x290] sm:$0xff]
        %v1020 = vld [vmem:[%s510 + $0x298] sm:$0xff]
        %v1021 = vld [vmem:[%s510 + $0x2a0] sm:$0xff]
        %v1022 = vld [vmem:[%s510 + $0x2a8] sm:$0xff]
        %v1023 = vld [vmem:[%s510 + $0x2b0] sm:$0xff]
        %v1024 = vld [vmem:[%s510 + $0x2b8] sm:$0xff]
        %v1025 = vld [vmem:[%s510 + $0x2c0] sm:$0xff]
        %v1026 = vld [vmem:[%s510 + $0x2c8] sm:$0xff]
        %v1027 = vld [vmem:[%s510 + $0x2d0] sm:$0xff]
        %v1028 = vld [vmem:[%s510 + $0x2d8] sm:$0xff]
        %v1029 = vld [vmem:[%s510 + $0x2e0] sm:$0xff]
        %v1030 = vld [vmem:[%s510 + $0x2e8] sm:$0xff]
        %v1031 = vld [vmem:[%s510 + $0x2f0] sm:$0xff]
        %v1032 = vld [vmem:[%s510 + $0x2f8] sm:$0xff]
        %v1129 = vunpack.c.l.b16 %v937
        %v1130 = vunpack.c.h.b16 %v937
        %v1131 = vunpack.c.l.b16 %v938
        %v1132 = vunpack.c.h.b16 %v938
        %v1133 = vunpack.c.l.b16 %v939
        %v1134 = vunpack.c.h.b16 %v939
        %v1135 = vunpack.c.l.b16 %v940
        %v1136 = vunpack.c.h.b16 %v940
        %v1137 = vunpack.c.l.b16 %v941
        %v1138 = vunpack.c.h.b16 %v941
        %v1139 = vunpack.c.l.b16 %v942
        %v1140 = vunpack.c.h.b16 %v942
        %v1141 = vunpack.c.l.b16 %v943
        %v1142 = vunpack.c.h.b16 %v943
        %v1143 = vunpack.c.l.b16 %v944
        %v1144 = vunpack.c.h.b16 %v944
        %v1145 = vunpack.c.l.b16 %v945
        %v1146 = vunpack.c.h.b16 %v945
        %v1147 = vunpack.c.l.b16 %v946
        %v1148 = vunpack.c.h.b16 %v946
        %v1149 = vunpack.c.l.b16 %v947
        %v1150 = vunpack.c.h.b16 %v947
        %v1151 = vunpack.c.l.b16 %v948
        %v1152 = vunpack.c.h.b16 %v948
        %v1153 = vunpack.c.l.b16 %v949
        %v1154 = vunpack.c.h.b16 %v949
        %v1155 = vunpack.c.l.b16 %v950
        %v1156 = vunpack.c.h.b16 %v950
        %v1157 = vunpack.c.l.b16 %v951
        %v1158 = vunpack.c.h.b16 %v951
        %v1159 = vunpack.c.l.b16 %v952
        %v1160 = vunpack.c.h.b16 %v952
        %v1161 = vunpack.c.l.b16 %v953
        %v1162 = vunpack.c.h.b16 %v953
        %v1163 = vunpack.c.l.b16 %v954
        %v1164 = vunpack.c.h.b16 %v954
        %v1165 = vunpack.c.l.b16 %v955
        %v1166 = vunpack.c.h.b16 %v955
        %v1167 = vunpack.c.l.b16 %v956
        %v1168 = vunpack.c.h.b16 %v956
        %v1169 = vunpack.c.l.b16 %v957
        %v1170 = vunpack.c.h.b16 %v957
        %v1171 = vunpack.c.l.b16 %v958
        %v1172 = vunpack.c.h.b16 %v958
        %v1173 = vunpack.c.l.b16 %v959
        %v1174 = vunpack.c.h.b16 %v959
        %v1175 = vunpack.c.l.b16 %v960
        %v1176 = vunpack.c.h.b16 %v960
        %v1177 = vunpack.c.l.b16 %v961
        %v1178 = vunpack.c.h.b16 %v961
        %v1179 = vunpack.c.l.b16 %v962
        %v1180 = vunpack.c.h.b16 %v962
        %v1181 = vunpack.c.l.b16 %v963
        %v1182 = vunpack.c.h.b16 %v963
        %v1183 = vunpack.c.l.b16 %v964
        %v1184 = vunpack.c.h.b16 %v964
        %v1185 = vunpack.c.l.b16 %v965
        %v1186 = vunpack.c.h.b16 %v965
        %v1187 = vunpack.c.l.b16 %v966
        %v1188 = vunpack.c.h.b16 %v966
        %v1189 = vunpack.c.l.b16 %v967
        %v1190 = vunpack.c.h.b16 %v967
        %v1191 = vunpack.c.l.b16 %v968
        %v1192 = vunpack.c.h.b16 %v968
        %v1193 = vunpack.c.l.b16 %v969
        %v1194 = vunpack.c.h.b16 %v969
        %v1195 = vunpack.c.l.b16 %v970
        %v1196 = vunpack.c.h.b16 %v970
        %v1197 = vunpack.c.l.b16 %v971
        %v1198 = vunpack.c.h.b16 %v971
        %v1199 = vunpack.c.l.b16 %v972
        %v1200 = vunpack.c.h.b16 %v972
        %v1201 = vunpack.c.l.b16 %v973
        %v1202 = vunpack.c.h.b16 %v973
        %v1203 = vunpack.c.l.b16 %v974
        %v1204 = vunpack.c.h.b16 %v974
        %v1205 = vunpack.c.l.b16 %v975
        %v1206 = vunpack.c.h.b16 %v975
        %v1207 = vunpack.c.l.b16 %v976
        %v1208 = vunpack.c.h.b16 %v976
        %v1209 = vunpack.c.l.b16 %v977
        %v1210 = vunpack.c.h.b16 %v977
        %v1211 = vunpack.c.l.b16 %v978
        %v1212 = vunpack.c.h.b16 %v978
        %v1213 = vunpack.c.l.b16 %v979
        %v1214 = vunpack.c.h.b16 %v979
        %v1215 = vunpack.c.l.b16 %v980
        %v1216 = vunpack.c.h.b16 %v980
        %v1217 = vunpack.c.l.b16 %v981
        %v1218 = vunpack.c.h.b16 %v981
        %v1219 = vunpack.c.l.b16 %v982
        %v1220 = vunpack.c.h.b16 %v982
        %v1221 = vunpack.c.l.b16 %v983
        %v1222 = vunpack.c.h.b16 %v983
        %v1223 = vunpack.c.l.b16 %v984
        %v1224 = vunpack.c.h.b16 %v984
        %v1225 = vunpack.c.l.b16 %v985
        %v1226 = vunpack.c.h.b16 %v985
        %v1227 = vunpack.c.l.b16 %v986
        %v1228 = vunpack.c.h.b16 %v986
        %v1229 = vunpack.c.l.b16 %v987
        %v1230 = vunpack.c.h.b16 %v987
        %v1231 = vunpack.c.l.b16 %v988
        %v1232 = vunpack.c.h.b16 %v988
        %v1233 = vunpack.c.l.b16 %v989
        %v1234 = vunpack.c.h.b16 %v989
        %v1235 = vunpack.c.l.b16 %v990
        %v1236 = vunpack.c.h.b16 %v990
        %v1237 = vunpack.c.l.b16 %v991
        %v1238 = vunpack.c.h.b16 %v991
        %v1239 = vunpack.c.l.b16 %v992
        %v1240 = vunpack.c.h.b16 %v992
        %v1241 = vunpack.c.l.b16 %v993
        %v1242 = vunpack.c.h.b16 %v993
        %v1243 = vunpack.c.l.b16 %v994
        %v1244 = vunpack.c.h.b16 %v994
        %v1245 = vunpack.c.l.b16 %v995
        %v1246 = vunpack.c.h.b16 %v995
        %v1247 = vunpack.c.l.b16 %v996
        %v1248 = vunpack.c.h.b16 %v996
        %v1249 = vunpack.c.l.b16 %v997
        %v1250 = vunpack.c.h.b16 %v997
        %v1251 = vunpack.c.l.b16 %v998
        %v1252 = vunpack.c.h.b16 %v998
        %v1253 = vunpack.c.l.b16 %v999
        %v1254 = vunpack.c.h.b16 %v999
        %v1255 = vunpack.c.l.b16 %v1000
        %v1256 = vunpack.c.h.b16 %v1000
        %v1257 = vunpack.c.l.b16 %v1001
        %v1258 = vunpack.c.h.b16 %v1001
        %v1259 = vunpack.c.l.b16 %v1002
        %v1260 = vunpack.c.h.b16 %v1002
        %v1261 = vunpack.c.l.b16 %v1003
        %v1262 = vunpack.c.h.b16 %v1003
        %v1263 = vunpack.c.l.b16 %v1004
        %v1264 = vunpack.c.h.b16 %v1004
        %v1265 = vunpack.c.l.b16 %v1005
        %v1266 = vunpack.c.h.b16 %v1005
        %v1267 = vunpack.c.l.b16 %v1006
        %v1268 = vunpack.c.h.b16 %v1006
        %v1269 = vunpack.c.l.b16 %v1007
        %v1270 = vunpack.c.h.b16 %v1007
        %v1271 = vunpack.c.l.b16 %v1008
        %v1272 = vunpack.c.h.b16 %v1008
        %v1273 = vunpack.c.l.b16 %v1009
        %v1274 = vunpack.c.h.b16 %v1009
        %v1275 = vunpack.c.l.b16 %v1010
        %v1276 = vunpack.c.h.b16 %v1010
        %v1277 = vunpack.c.l.b16 %v1011
        %v1278 = vunpack.c.h.b16 %v1011
        %v1279 = vunpack.c.l.b16 %v1012
        %v1280 = vunpack.c.h.b16 %v1012
        %v1281 = vunpack.c.l.b16 %v1013
        %v1282 = vunpack.c.h.b16 %v1013
        %v1283 = vunpack.c.l.b16 %v1014
        %v1284 = vunpack.c.h.b16 %v1014
        %v1285 = vunpack.c.l.b16 %v1015
        %v1286 = vunpack.c.h.b16 %v1015
        %v1287 = vunpack.c.l.b16 %v1016
        %v1288 = vunpack.c.h.b16 %v1016
        %v1289 = vunpack.c.l.b16 %v1017
        %v1290 = vunpack.c.h.b16 %v1017
        %v1291 = vunpack.c.l.b16 %v1018
        %v1292 = vunpack.c.h.b16 %v1018
        %v1293 = vunpack.c.l.b16 %v1019
        %v1294 = vunpack.c.h.b16 %v1019
        %v1295 = vunpack.c.l.b16 %v1020
        %v1296 = vunpack.c.h.b16 %v1020
        %v1297 = vunpack.c.l.b16 %v1021
        %v1298 = vunpack.c.h.b16 %v1021
        %v1299 = vunpack.c.l.b16 %v1022
        %v1300 = vunpack.c.h.b16 %v1022
        %v1301 = vunpack.c.l.b16 %v1023
        %v1302 = vunpack.c.h.b16 %v1023
        %v1303 = vunpack.c.l.b16 %v1024
        %v1304 = vunpack.c.h.b16 %v1024
        %v1305 = vunpack.c.l.b16 %v1025
        %v1306 = vunpack.c.h.b16 %v1025
        %v1307 = vunpack.c.l.b16 %v1026
        %v1308 = vunpack.c.h.b16 %v1026
        %v1309 = vunpack.c.l.b16 %v1027
        %v1310 = vunpack.c.h.b16 %v1027
        %v1311 = vunpack.c.l.b16 %v1028
        %v1312 = vunpack.c.h.b16 %v1028
        %v1313 = vunpack.c.l.b16 %v1029
        %v1314 = vunpack.c.h.b16 %v1029
        %v1315 = vunpack.c.l.b16 %v1030
        %v1316 = vunpack.c.h.b16 %v1030
        %v1317 = vunpack.c.l.b16 %v1031
        %v1318 = vunpack.c.h.b16 %v1031
        %v1319 = vunpack.c.l.b16 %v1032
        %v1320 = vunpack.c.h.b16 %v1032
        %v1321 = vpack.c.b16 %v1135, %v1129
        %v1322 = vpack.c.b16 %v1136, %v1130
        %v1323 = vpack.c.b16 %v1137, %v1131
        %v1324 = vpack.c.b16 %v1138, %v1132
        %v1325 = vpack.c.b16 %v1139, %v1133
        %v1326 = vpack.c.b16 %v1140, %v1134
        %v1327 = vpack.c.b16 %v1147, %v1141
        %v1328 = vpack.c.b16 %v1148, %v1142
        %v1329 = vpack.c.b16 %v1149, %v1143
        %v1330 = vpack.c.b16 %v1150, %v1144
        %v1331 = vpack.c.b16 %v1151, %v1145
        %v1332 = vpack.c.b16 %v1152, %v1146
        %v1333 = vpack.c.b16 %v1159, %v1153
        %v1334 = vpack.c.b16 %v1160, %v1154
        %v1335 = vpack.c.b16 %v1161, %v1155
        %v1336 = vpack.c.b16 %v1162, %v1156
        %v1337 = vpack.c.b16 %v1163, %v1157
        %v1338 = vpack.c.b16 %v1164, %v1158
        %v1339 = vpack.c.b16 %v1171, %v1165
        %v1340 = vpack.c.b16 %v1172, %v1166
        %v1341 = vpack.c.b16 %v1173, %v1167
        %v1342 = vpack.c.b16 %v1174, %v1168
        %v1343 = vpack.c.b16 %v1175, %v1169
        %v1344 = vpack.c.b16 %v1176, %v1170
        %v1345 = vpack.c.b16 %v1183, %v1177
        %v1346 = vpack.c.b16 %v1184, %v1178
        %v1347 = vpack.c.b16 %v1185, %v1179
        %v1348 = vpack.c.b16 %v1186, %v1180
        %v1349 = vpack.c.b16 %v1187, %v1181
        %v1350 = vpack.c.b16 %v1188, %v1182
        %v1351 = vpack.c.b16 %v1195, %v1189
        %v1352 = vpack.c.b16 %v1196, %v1190
        %v1353 = vpack.c.b16 %v1197, %v1191
        %v1354 = vpack.c.b16 %v1198, %v1192
        %v1355 = vpack.c.b16 %v1199, %v1193
        %v1356 = vpack.c.b16 %v1200, %v1194
        %v1357 = vpack.c.b16 %v1207, %v1201
        %v1358 = vpack.c.b16 %v1208, %v1202
        %v1359 = vpack.c.b16 %v1209, %v1203
        %v1360 = vpack.c.b16 %v1210, %v1204
        %v1361 = vpack.c.b16 %v1211, %v1205
        %v1362 = vpack.c.b16 %v1212, %v1206
        %v1363 = vpack.c.b16 %v1219, %v1213
        %v1364 = vpack.c.b16 %v1220, %v1214
        %v1365 = vpack.c.b16 %v1221, %v1215
        %v1366 = vpack.c.b16 %v1222, %v1216
        %v1367 = vpack.c.b16 %v1223, %v1217
        %v1368 = vpack.c.b16 %v1224, %v1218
        %v1369 = vpack.c.b16 %v1231, %v1225
        %v1370 = vpack.c.b16 %v1232, %v1226
        %v1371 = vpack.c.b16 %v1233, %v1227
        %v1372 = vpack.c.b16 %v1234, %v1228
        %v1373 = vpack.c.b16 %v1235, %v1229
        %v1374 = vpack.c.b16 %v1236, %v1230
        %v1375 = vpack.c.b16 %v1243, %v1237
        %v1376 = vpack.c.b16 %v1244, %v1238
        %v1377 = vpack.c.b16 %v1245, %v1239
        %v1378 = vpack.c.b16 %v1246, %v1240
        %v1379 = vpack.c.b16 %v1247, %v1241
        %v1380 = vpack.c.b16 %v1248, %v1242
        %v1381 = vpack.c.b16 %v1255, %v1249
        %v1382 = vpack.c.b16 %v1256, %v1250
        %v1383 = vpack.c.b16 %v1257, %v1251
        %v1384 = vpack.c.b16 %v1258, %v1252
        %v1385 = vpack.c.b16 %v1259, %v1253
        %v1386 = vpack.c.b16 %v1260, %v1254
        %v1387 = vpack.c.b16 %v1267, %v1261
        %v1388 = vpack.c.b16 %v1268, %v1262
        %v1389 = vpack.c.b16 %v1269, %v1263
        %v1390 = vpack.c.b16 %v1270, %v1264
        %v1391 = vpack.c.b16 %v1271, %v1265
        %v1392 = vpack.c.b16 %v1272, %v1266
        %v1393 = vpack.c.b16 %v1279, %v1273
        %v1394 = vpack.c.b16 %v1280, %v1274
        %v1395 = vpack.c.b16 %v1281, %v1275
        %v1396 = vpack.c.b16 %v1282, %v1276
        %v1397 = vpack.c.b16 %v1283, %v1277
        %v1398 = vpack.c.b16 %v1284, %v1278
        %v1399 = vpack.c.b16 %v1291, %v1285
        %v1400 = vpack.c.b16 %v1292, %v1286
        %v1401 = vpack.c.b16 %v1293, %v1287
        %v1402 = vpack.c.b16 %v1294, %v1288
        %v1403 = vpack.c.b16 %v1295, %v1289
        %v1404 = vpack.c.b16 %v1296, %v1290
        %v1405 = vpack.c.b16 %v1303, %v1297
        %v1406 = vpack.c.b16 %v1304, %v1298
        %v1407 = vpack.c.b16 %v1305, %v1299
        %v1408 = vpack.c.b16 %v1306, %v1300
        %v1409 = vpack.c.b16 %v1307, %v1301
        %v1410 = vpack.c.b16 %v1308, %v1302
        %v1411 = vpack.c.b16 %v1315, %v1309
        %v1412 = vpack.c.b16 %v1316, %v1310
        %v1413 = vpack.c.b16 %v1317, %v1311
        %v1414 = vpack.c.b16 %v1318, %v1312
        %v1415 = vpack.c.b16 %v1319, %v1313
        %v1416 = vpack.c.b16 %v1320, %v1314
        %1513 = vmatprep.subr.bf16.mxu0 %v1322
        %1514 = vmatpush1.bf16.msra.mxu0 %v1321
        %1515 = vmatprep.subr.bf16.mxu0 %v1328
        %1516 = vmatpush1.bf16.msra.mxu0 %v1327
        %1517 = vmatprep.subr.bf16.mxu0 %v1334
        %1518 = vmatpush1.bf16.msra.mxu0 %v1333
        %1519 = vmatprep.subr.bf16.mxu0 %v1340
        %1520 = vmatpush1.bf16.msra.mxu0 %v1339
        %1521 = vmatprep.subr.bf16.mxu0 %v1346
        %1522 = vmatpush1.bf16.msra.mxu0 %v1345
        %1523 = vmatprep.subr.bf16.mxu0 %v1352
        %1524 = vmatpush1.bf16.msra.mxu0 %v1351
        %1525 = vmatprep.subr.bf16.mxu0 %v1358
        %1526 = vmatpush1.bf16.msra.mxu0 %v1357
        %1527 = vmatprep.subr.bf16.mxu0 %v1364
        %1528 = vmatpush1.bf16.msra.mxu0 %v1363
        %1529 = vmatprep.subr.bf16.mxu0 %v1370
        %1530 = vmatpush1.bf16.msra.mxu0 %v1369
        %1531 = vmatprep.subr.bf16.mxu0 %v1376
        %1532 = vmatpush1.bf16.msra.mxu0 %v1375
        %1533 = vmatprep.subr.bf16.mxu0 %v1382
        %1534 = vmatpush1.bf16.msra.mxu0 %v1381
        %1535 = vmatprep.subr.bf16.mxu0 %v1388
        %1536 = vmatpush1.bf16.msra.mxu0 %v1387
        %1537 = vmatprep.subr.bf16.mxu0 %v1394
        %1538 = vmatpush1.bf16.msra.mxu0 %v1393
        %1539 = vmatprep.subr.bf16.mxu0 %v1400
        %1540 = vmatpush1.bf16.msra.mxu0 %v1399
        %1541 = vmatprep.subr.bf16.mxu0 %v1406
        %1542 = vmatpush1.bf16.msra.mxu0 %v1405
        %1543 = vmatprep.subr.bf16.mxu0 %v1412
        %1544 = vmatpush1.bf16.msra.mxu0 %v1411
        %1545 = vmatprep.mubr.bf16.mxu0 %v898
        %1546 = vmatmul.mubr.bf16.gmra.mrb[0].mxu0 %v897
        %v1547 = vpop.f32.mrb[0].mxu0
        %v1548 = vadd.f32 0.0, %v1547
        %v1549 = vpop.f32.mrb[0].mxu0
        %v1550 = vadd.f32 0.0, %v1549
        %v1551 = vpop.f32.mrb[0].mxu0
        %v1552 = vadd.f32 0.0, %v1551
        %v1553 = vpop.f32.mrb[0].mxu0
        %v1554 = vadd.f32 0.0, %v1553
        %1555 = vmatprep.mubr.bf16.mxu0 %v900
        %1556 = vmatmul.mubr.bf16.gmra.mrb[0].mxu0 %v899
        %v1557 = vpop.f32.mrb[0].mxu0
        %v1558 = vadd.f32 0.0, %v1557
        %v1559 = vpop.f32.mrb[0].mxu0
        %v1560 = vadd.f32 0.0, %v1559
        %v1561 = vpop.f32.mrb[0].mxu0
        %v1562 = vadd.f32 0.0, %v1561
        %v1563 = vpop.f32.mrb[0].mxu0
        %v1564 = vadd.f32 0.0, %v1563
        %1565 = vmatprep.mubr.bf16.mxu0 %v902
        %1566 = vmatmul.mubr.bf16.gmra.mrb[0].mxu0 %v901
        %v1567 = vpop.f32.mrb[0].mxu0
        %v1568 = vadd.f32 0.0, %v1567
        %v1569 = vpop.f32.mrb[0].mxu0
        %v1570 = vadd.f32 0.0, %v1569
        %v1571 = vpop.f32.mrb[0].mxu0
        %v1572 = vadd.f32 0.0, %v1571
        %v1573 = vpop.f32.mrb[0].mxu0
        %v1574 = vadd.f32 0.0, %v1573
        %1575 = vmatprep.mubr.bf16.mxu0 %v904
        %1576 = vmatmul.mubr.bf16.gmra.mrb[0].mxu0 %v903
        %v1577 = vpop.f32.mrb[0].mxu0
        %v1578 = vadd.f32 0.0, %v1577
        %v1579 = vpop.f32.mrb[0].mxu0
        %v1580 = vadd.f32 0.0, %v1579
        %v1581 = vpop.f32.mrb[0].mxu0
        %v1582 = vadd.f32 0.0, %v1581
        %v1583 = vpop.f32.mrb[0].mxu0
        %v1584 = vadd.f32 0.0, %v1583
        %1585 = vmatprep.mubr.bf16.mxu0 %v906
        %1586 = vmatmul.mubr.bf16.gmra.mrb[0].mxu0 %v905
        %v1587 = vpop.f32.mrb[0].mxu0
        %v1588 = vadd.f32 0.0, %v1587
        %v1589 = vpop.f32.mrb[0].mxu0
        %v1590 = vadd.f32 0.0, %v1589
        %v1591 = vpop.f32.mrb[0].mxu0
        %v1592 = vadd.f32 0.0, %v1591
        %v1593 = vpop.f32.mrb[0].mxu0
        %v1594 = vadd.f32 0.0, %v1593
        %1595 = vmatprep.mubr.bf16.mxu0 %v908
        %1596 = vmatmul.mubr.bf16.gmra.mrb[0].mxu0 %v907
        %v1597 = vpop.f32.mrb[0].mxu0
        %v1598 = vadd.f32 0.0, %v1597
        %v1599 = vpop.f32.mrb[0].mxu0
        %v1600 = vadd.f32 0.0, %v1599
        %v1601 = vpop.f32.mrb[0].mxu0
        %v1602 = vadd.f32 0.0, %v1601
        %v1603 = vpop.f32.mrb[0].mxu0
        %v1604 = vadd.f32 0.0, %v1603
        %1605 = vmatprep.mubr.bf16.mxu0 %v910
        %1606 = vmatmul.mubr.bf16.gmra.mrb[0].mxu0 %v909
        %v1607 = vpop.f32.mrb[0].mxu0
        %v1608 = vadd.f32 0.0, %v1607
        %v1609 = vpop.f32.mrb[0].mxu0
        %v1610 = vadd.f32 0.0, %v1609
        %v1611 = vpop.f32.mrb[0].mxu0
        %v1612 = vadd.f32 0.0, %v1611
        %v1613 = vpop.f32.mrb[0].mxu0
        %v1614 = vadd.f32 0.0, %v1613
        %1615 = vmatprep.mubr.bf16.mxu0 %v912
        %1616 = vmatmul.mubr.bf16.gmra.mrb[0].mxu0 %v911
        %v1617 = vpop.f32.mrb[0].mxu0
        %v1618 = vadd.f32 0.0, %v1617
        %v1619 = vpop.f32.mrb[0].mxu0
        %v1620 = vadd.f32 0.0, %v1619
        %v1621 = vpop.f32.mrb[0].mxu0
        %v1622 = vadd.f32 0.0, %v1621
        %v1623 = vpop.f32.mrb[0].mxu0
        %v1624 = vadd.f32 0.0, %v1623
        %1625 = vmatprep.mubr.bf16.mxu0 %v914
        %1626 = vmatmul.mubr.bf16.gmra.mrb[0].mxu0 %v913
        %v1627 = vpop.f32.mrb[0].mxu0
        %v1628 = vadd.f32 0.0, %v1627
        %v1629 = vpop.f32.mrb[0].mxu0
        %v1630 = vadd.f32 0.0, %v1629
        %v1631 = vpop.f32.mrb[0].mxu0
        %v1632 = vadd.f32 0.0, %v1631
        %v1633 = vpop.f32.mrb[0].mxu0
        %v1634 = vadd.f32 0.0, %v1633
        %1635 = vmatprep.mubr.bf16.mxu0 %v916
        %1636 = vmatmul.mubr.bf16.gmra.mrb[0].mxu0 %v915
        %v1637 = vpop.f32.mrb[0].mxu0
        %v1638 = vadd.f32 0.0, %v1637
        %v1639 = vpop.f32.mrb[0].mxu0
        %v1640 = vadd.f32 0.0, %v1639
        %v1641 = vpop.f32.mrb[0].mxu0
        %v1642 = vadd.f32 0.0, %v1641
        %v1643 = vpop.f32.mrb[0].mxu0
        %v1644 = vadd.f32 0.0, %v1643
        %1645 = vmatprep.mubr.bf16.mxu0 %v918
        %1646 = vmatmul.mubr.bf16.gmra.mrb[0].mxu0 %v917
        %v1647 = vpop.f32.mrb[0].mxu0
        %v1648 = vadd.f32 0.0, %v1647
        %v1649 = vpop.f32.mrb[0].mxu0
        %v1650 = vadd.f32 0.0, %v1649
        %v1651 = vpop.f32.mrb[0].mxu0
        %v1652 = vadd.f32 0.0, %v1651
        %v1653 = vpop.f32.mrb[0].mxu0
        %v1654 = vadd.f32 0.0, %v1653
        %1655 = vmatprep.mubr.bf16.mxu0 %v920
        %1656 = vmatmul.mubr.bf16.gmra.mrb[0].mxu0 %v919
        %v1657 = vpop.f32.mrb[0].mxu0
        %v1658 = vadd.f32 0.0, %v1657
        %v1659 = vpop.f32.mrb[0].mxu0
        %v1660 = vadd.f32 0.0, %v1659
        %v1661 = vpop.f32.mrb[0].mxu0
        %v1662 = vadd.f32 0.0, %v1661
        %v1663 = vpop.f32.mrb[0].mxu0
        %v1664 = vadd.f32 0.0, %v1663
        %1665 = vmatprep.mubr.bf16.mxu0 %v922
        %1666 = vmatmul.mubr.bf16.gmra.mrb[0].mxu0 %v921
        %v1667 = vpop.f32.mrb[0].mxu0
        %v1668 = vadd.f32 0.0, %v1667
        %v1669 = vpop.f32.mrb[0].mxu0
        %v1670 = vadd.f32 0.0, %v1669
        %v1671 = vpop.f32.mrb[0].mxu0
        %v1672 = vadd.f32 0.0, %v1671
        %v1673 = vpop.f32.mrb[0].mxu0
        %v1674 = vadd.f32 0.0, %v1673
        %1675 = vmatprep.mubr.bf16.mxu0 %v924
        %1676 = vmatmul.mubr.bf16.gmra.mrb[0].mxu0 %v923
        %v1677 = vpop.f32.mrb[0].mxu0
        %v1678 = vadd.f32 0.0, %v1677
        %v1679 = vpop.f32.mrb[0].mxu0
        %v1680 = vadd.f32 0.0, %v1679
        %v1681 = vpop.f32.mrb[0].mxu0
        %v1682 = vadd.f32 0.0, %v1681
        %v1683 = vpop.f32.mrb[0].mxu0
        %v1684 = vadd.f32 0.0, %v1683
        %1685 = vmatprep.mubr.bf16.mxu0 %v926
        %1686 = vmatmul.mubr.bf16.gmra.mrb[0].mxu0 %v925
        %v1687 = vpop.f32.mrb[0].mxu0
        %v1688 = vadd.f32 0.0, %v1687
        %v1689 = vpop.f32.mrb[0].mxu0
        %v1690 = vadd.f32 0.0, %v1689
        %v1691 = vpop.f32.mrb[0].mxu0
        %v1692 = vadd.f32 0.0, %v1691
        %v1693 = vpop.f32.mrb[0].mxu0
        %v1694 = vadd.f32 0.0, %v1693
        %1695 = vmatprep.mubr.bf16.mxu0 %v928
        %1696 = vmatmul.mubr.bf16.gmra.mrb[0].mxu0 %v927
        %v1697 = vpop.f32.mrb[0].mxu0
        %v1698 = vadd.f32 0.0, %v1697
        %v1699 = vpop.f32.mrb[0].mxu0
        %v1700 = vadd.f32 0.0, %v1699
        %v1701 = vpop.f32.mrb[0].mxu0
        %v1702 = vadd.f32 0.0, %v1701
        %v1703 = vpop.f32.mrb[0].mxu0
        %v1704 = vadd.f32 0.0, %v1703
        %1705 = vdwg.mxu0
        %1706 = vmatprep.subr.bf16.mxu0 %v1324
        %1707 = vmatpush1.bf16.msra.mxu0 %v1323
        %1708 = vmatprep.subr.bf16.mxu0 %v1330
        %1709 = vmatpush1.bf16.msra.mxu0 %v1329
        %1710 = vmatprep.subr.bf16.mxu0 %v1336
        %1711 = vmatpush1.bf16.msra.mxu0 %v1335
        %1712 = vmatprep.subr.bf16.mxu0 %v1342
        %1713 = vmatpush1.bf16.msra.mxu0 %v1341
        %1714 = vmatprep.subr.bf16.mxu0 %v1348
        %1715 = vmatpush1.bf16.msra.mxu0 %v1347
        %1716 = vmatprep.subr.bf16.mxu0 %v1354
        %1717 = vmatpush1.bf16.msra.mxu0 %v1353
        %1718 = vmatprep.subr.bf16.mxu0 %v1360
        %1719 = vmatpush1.bf16.msra.mxu0 %v1359
        %1720 = vmatprep.subr.bf16.mxu0 %v1366
        %1721 = vmatpush1.bf16.msra.mxu0 %v1365
        %1722 = vmatprep.subr.bf16.mxu0 %v1372
        %1723 = vmatpush1.bf16.msra.mxu0 %v1371
        %1724 = vmatprep.subr.bf16.mxu0 %v1378
        %1725 = vmatpush1.bf16.msra.mxu0 %v1377
        %1726 = vmatprep.subr.bf16.mxu0 %v1384
        %1727 = vmatpush1.bf16.msra.mxu0 %v1383
        %1728 = vmatprep.subr.bf16.mxu0 %v1390
        %1729 = vmatpush1.bf16.msra.mxu0 %v1389
        %1730 = vmatprep.subr.bf16.mxu0 %v1396
        %1731 = vmatpush1.bf16.msra.mxu0 %v1395
        %1732 = vmatprep.subr.bf16.mxu0 %v1402
        %1733 = vmatpush1.bf16.msra.mxu0 %v1401
        %1734 = vmatprep.subr.bf16.mxu0 %v1408
        %1735 = vmatpush1.bf16.msra.mxu0 %v1407
        %1736 = vmatprep.subr.bf16.mxu0 %v1414
        %1737 = vmatpush1.bf16.msra.mxu0 %v1413
        %1738 = vmatprep.mubr.bf16.mxu0 %v898
        %1739 = vmatmul.mubr.bf16.gmra.mrb[0].mxu0 %v897
        %v1740 = vpop.f32.mrb[0].mxu0
        %v1741 = vadd.f32 0.0, %v1740
        %v1742 = vpop.f32.mrb[0].mxu0
        %v1743 = vadd.f32 0.0, %v1742
        %v1744 = vpop.f32.mrb[0].mxu0
        %v1745 = vadd.f32 0.0, %v1744
        %v1746 = vpop.f32.mrb[0].mxu0
        %v1747 = vadd.f32 0.0, %v1746
        %1748 = vmatprep.mubr.bf16.mxu0 %v900
        %1749 = vmatmul.mubr.bf16.gmra.mrb[0].mxu0 %v899
        %v1750 = vpop.f32.mrb[0].mxu0
        %v1751 = vadd.f32 0.0, %v1750
        %v1752 = vpop.f32.mrb[0].mxu0
        %v1753 = vadd.f32 0.0, %v1752
        %v1754 = vpop.f32.mrb[0].mxu0
        %v1755 = vadd.f32 0.0, %v1754
        %v1756 = vpop.f32.mrb[0].mxu0
        %v1757 = vadd.f32 0.0, %v1756
        %1758 = vmatprep.mubr.bf16.mxu0 %v902
        %1759 = vmatmul.mubr.bf16.gmra.mrb[0].mxu0 %v901
        %v1760 = vpop.f32.mrb[0].mxu0
        %v1761 = vadd.f32 0.0, %v1760
        %v1762 = vpop.f32.mrb[0].mxu0
        %v1763 = vadd.f32 0.0, %v1762
        %v1764 = vpop.f32.mrb[0].mxu0
        %v1765 = vadd.f32 0.0, %v1764
        %v1766 = vpop.f32.mrb[0].mxu0
        %v1767 = vadd.f32 0.0, %v1766
        %1768 = vmatprep.mubr.bf16.mxu0 %v904
        %1769 = vmatmul.mubr.bf16.gmra.mrb[0].mxu0 %v903
        %v1770 = vpop.f32.mrb[0].mxu0
        %v1771 = vadd.f32 0.0, %v1770
        %v1772 = vpop.f32.mrb[0].mxu0
        %v1773 = vadd.f32 0.0, %v1772
        %v1774 = vpop.f32.mrb[0].mxu0
        %v1775 = vadd.f32 0.0, %v1774
        %v1776 = vpop.f32.mrb[0].mxu0
        %v1777 = vadd.f32 0.0, %v1776
        %1778 = vmatprep.mubr.bf16.mxu0 %v906
        %1779 = vmatmul.mubr.bf16.gmra.mrb[0].mxu0 %v905
        %v1780 = vpop.f32.mrb[0].mxu0
        %v1781 = vadd.f32 0.0, %v1780
        %v1782 = vpop.f32.mrb[0].mxu0
        %v1783 = vadd.f32 0.0, %v1782
        %v1784 = vpop.f32.mrb[0].mxu0
        %v1785 = vadd.f32 0.0, %v1784
        %v1786 = vpop.f32.mrb[0].mxu0
        %v1787 = vadd.f32 0.0, %v1786
        %1788 = vmatprep.mubr.bf16.mxu0 %v908
        %1789 = vmatmul.mubr.bf16.gmra.mrb[0].mxu0 %v907
        %v1790 = vpop.f32.mrb[0].mxu0
        %v1791 = vadd.f32 0.0, %v1790
        %v1792 = vpop.f32.mrb[0].mxu0
        %v1793 = vadd.f32 0.0, %v1792
        %v1794 = vpop.f32.mrb[0].mxu0
        %v1795 = vadd.f32 0.0, %v1794
        %v1796 = vpop.f32.mrb[0].mxu0
        %v1797 = vadd.f32 0.0, %v1796
        %1798 = vmatprep.mubr.bf16.mxu0 %v910
        %1799 = vmatmul.mubr.bf16.gmra.mrb[0].mxu0 %v909
        %v1800 = vpop.f32.mrb[0].mxu0
        %v1801 = vadd.f32 0.0, %v1800
        %v1802 = vpop.f32.mrb[0].mxu0
        %v1803 = vadd.f32 0.0, %v1802
        %v1804 = vpop.f32.mrb[0].mxu0
        %v1805 = vadd.f32 0.0, %v1804
        %v1806 = vpop.f32.mrb[0].mxu0
        %v1807 = vadd.f32 0.0, %v1806
        %1808 = vmatprep.mubr.bf16.mxu0 %v912
        %1809 = vmatmul.mubr.bf16.gmra.mrb[0].mxu0 %v911
        %v1810 = vpop.f32.mrb[0].mxu0
        %v1811 = vadd.f32 0.0, %v1810
        %v1812 = vpop.f32.mrb[0].mxu0
        %v1813 = vadd.f32 0.0, %v1812
        %v1814 = vpop.f32.mrb[0].mxu0
        %v1815 = vadd.f32 0.0, %v1814
        %v1816 = vpop.f32.mrb[0].mxu0
        %v1817 = vadd.f32 0.0, %v1816
        %1818 = vmatprep.mubr.bf16.mxu0 %v914
        %1819 = vmatmul.mubr.bf16.gmra.mrb[0].mxu0 %v913
        %v1820 = vpop.f32.mrb[0].mxu0
        %v1821 = vadd.f32 0.0, %v1820
        %v1822 = vpop.f32.mrb[0].mxu0
        %v1823 = vadd.f32 0.0, %v1822
        %v1824 = vpop.f32.mrb[0].mxu0
        %v1825 = vadd.f32 0.0, %v1824
        %v1826 = vpop.f32.mrb[0].mxu0
        %v1827 = vadd.f32 0.0, %v1826
        %1828 = vmatprep.mubr.bf16.mxu0 %v916
        %1829 = vmatmul.mubr.bf16.gmra.mrb[0].mxu0 %v915
        %v1830 = vpop.f32.mrb[0].mxu0
        %v1831 = vadd.f32 0.0, %v1830
        %v1832 = vpop.f32.mrb[0].mxu0
        %v1833 = vadd.f32 0.0, %v1832
        %v1834 = vpop.f32.mrb[0].mxu0
        %v1835 = vadd.f32 0.0, %v1834
        %v1836 = vpop.f32.mrb[0].mxu0
        %v1837 = vadd.f32 0.0, %v1836
        %1838 = vmatprep.mubr.bf16.mxu0 %v918
        %1839 = vmatmul.mubr.bf16.gmra.mrb[0].mxu0 %v917
        %v1840 = vpop.f32.mrb[0].mxu0
        %v1841 = vadd.f32 0.0, %v1840
        %v1842 = vpop.f32.mrb[0].mxu0
        %v1843 = vadd.f32 0.0, %v1842
        %v1844 = vpop.f32.mrb[0].mxu0
        %v1845 = vadd.f32 0.0, %v1844
        %v1846 = vpop.f32.mrb[0].mxu0
        %v1847 = vadd.f32 0.0, %v1846
        %1848 = vmatprep.mubr.bf16.mxu0 %v920
        %1849 = vmatmul.mubr.bf16.gmra.mrb[0].mxu0 %v919
        %v1850 = vpop.f32.mrb[0].mxu0
        %v1851 = vadd.f32 0.0, %v1850
        %v1852 = vpop.f32.mrb[0].mxu0
        %v1853 = vadd.f32 0.0, %v1852
        %v1854 = vpop.f32.mrb[0].mxu0
        %v1855 = vadd.f32 0.0, %v1854
        %v1856 = vpop.f32.mrb[0].mxu0
        %v1857 = vadd.f32 0.0, %v1856
        %1858 = vmatprep.mubr.bf16.mxu0 %v922
        %1859 = vmatmul.mubr.bf16.gmra.mrb[0].mxu0 %v921
        %v1860 = vpop.f32.mrb[0].mxu0
        %v1861 = vadd.f32 0.0, %v1860
        %v1862 = vpop.f32.mrb[0].mxu0
        %v1863 = vadd.f32 0.0, %v1862
        %v1864 = vpop.f32.mrb[0].mxu0
        %v1865 = vadd.f32 0.0, %v1864
        %v1866 = vpop.f32.mrb[0].mxu0
        %v1867 = vadd.f32 0.0, %v1866
        %1868 = vmatprep.mubr.bf16.mxu0 %v924
        %1869 = vmatmul.mubr.bf16.gmra.mrb[0].mxu0 %v923
        %v1870 = vpop.f32.mrb[0].mxu0
        %v1871 = vadd.f32 0.0, %v1870
        %v1872 = vpop.f32.mrb[0].mxu0
        %v1873 = vadd.f32 0.0, %v1872
        %v1874 = vpop.f32.mrb[0].mxu0
        %v1875 = vadd.f32 0.0, %v1874
        %v1876 = vpop.f32.mrb[0].mxu0
        %v1877 = vadd.f32 0.0, %v1876
        %1878 = vmatprep.mubr.bf16.mxu0 %v926
        %1879 = vmatmul.mubr.bf16.gmra.mrb[0].mxu0 %v925
        %v1880 = vpop.f32.mrb[0].mxu0
        %v1881 = vadd.f32 0.0, %v1880
        %v1882 = vpop.f32.mrb[0].mxu0
        %v1883 = vadd.f32 0.0, %v1882
        %v1884 = vpop.f32.mrb[0].mxu0
        %v1885 = vadd.f32 0.0, %v1884
        %v1886 = vpop.f32.mrb[0].mxu0
        %v1887 = vadd.f32 0.0, %v1886
        %1888 = vmatprep.mubr.bf16.mxu0 %v928
        %1889 = vmatmul.mubr.bf16.gmra.mrb[0].mxu0 %v927
        %v1890 = vpop.f32.mrb[0].mxu0
        %v1891 = vadd.f32 0.0, %v1890
        %v1892 = vpop.f32.mrb[0].mxu0
        %v1893 = vadd.f32 0.0, %v1892
        %v1894 = vpop.f32.mrb[0].mxu0
        %v1895 = vadd.f32 0.0, %v1894
        %v1896 = vpop.f32.mrb[0].mxu0
        %v1897 = vadd.f32 0.0, %v1896
        %1898 = vdwg.mxu0
        %1899 = vmatprep.subr.bf16.mxu0 %v1326
        %1900 = vmatpush1.bf16.msra.mxu0 %v1325
        %1901 = vmatprep.subr.bf16.mxu0 %v1332
        %1902 = vmatpush1.bf16.msra.mxu0 %v1331
        %1903 = vmatprep.subr.bf16.mxu0 %v1338
        %1904 = vmatpush1.bf16.msra.mxu0 %v1337
        %1905 = vmatprep.subr.bf16.mxu0 %v1344
        %1906 = vmatpush1.bf16.msra.mxu0 %v1343
        %1907 = vmatprep.subr.bf16.mxu0 %v1350
        %1908 = vmatpush1.bf16.msra.mxu0 %v1349
        %1909 = vmatprep.subr.bf16.mxu0 %v1356
        %1910 = vmatpush1.bf16.msra.mxu0 %v1355
        %1911 = vmatprep.subr.bf16.mxu0 %v1362
        %1912 = vmatpush1.bf16.msra.mxu0 %v1361
        %1913 = vmatprep.subr.bf16.mxu0 %v1368
        %1914 = vmatpush1.bf16.msra.mxu0 %v1367
        %1915 = vmatprep.subr.bf16.mxu0 %v1374
        %1916 = vmatpush1.bf16.msra.mxu0 %v1373
        %1917 = vmatprep.subr.bf16.mxu0 %v1380
        %1918 = vmatpush1.bf16.msra.mxu0 %v1379
        %1919 = vmatprep.subr.bf16.mxu0 %v1386
        %1920 = vmatpush1.bf16.msra.mxu0 %v1385
        %1921 = vmatprep.subr.bf16.mxu0 %v1392
        %1922 = vmatpush1.bf16.msra.mxu0 %v1391
        %1923 = vmatprep.subr.bf16.mxu0 %v1398
        %1924 = vmatpush1.bf16.msra.mxu0 %v1397
        %1925 = vmatprep.subr.bf16.mxu0 %v1404
        %1926 = vmatpush1.bf16.msra.mxu0 %v1403
        %1927 = vmatprep.subr.bf16.mxu0 %v1410
        %1928 = vmatpush1.bf16.msra.mxu0 %v1409
        %1929 = vmatprep.subr.bf16.mxu0 %v1416
        %1930 = vmatpush1.bf16.msra.mxu0 %v1415
        %1931 = vmatprep.mubr.bf16.mxu0 %v898
        %1932 = vmatmul.mubr.bf16.gmra.mrb[0].mxu0 %v897
        %v1933 = vpop.f32.mrb[0].mxu0
        %v1934 = vadd.f32 0.0, %v1933
        %v1935 = vpop.f32.mrb[0].mxu0
        %v1936 = vadd.f32 0.0, %v1935
        %v1937 = vpop.f32.mrb[0].mxu0
        %v1938 = vadd.f32 0.0, %v1937
        %v1939 = vpop.f32.mrb[0].mxu0
        %v1940 = vadd.f32 0.0, %v1939
        %1941 = vmatprep.mubr.bf16.mxu0 %v900
        %1942 = vmatmul.mubr.bf16.gmra.mrb[0].mxu0 %v899
        %v1943 = vpop.f32.mrb[0].mxu0
        %v1944 = vadd.f32 0.0, %v1943
        %v1945 = vpop.f32.mrb[0].mxu0
        %v1946 = vadd.f32 0.0, %v1945
        %v1947 = vpop.f32.mrb[0].mxu0
        %v1948 = vadd.f32 0.0, %v1947
        %v1949 = vpop.f32.mrb[0].mxu0
        %v1950 = vadd.f32 0.0, %v1949
        %1951 = vmatprep.mubr.bf16.mxu0 %v902
        %1952 = vmatmul.mubr.bf16.gmra.mrb[0].mxu0 %v901
        %v1953 = vpop.f32.mrb[0].mxu0
        %v1954 = vadd.f32 0.0, %v1953
        %v1955 = vpop.f32.mrb[0].mxu0
        %v1956 = vadd.f32 0.0, %v1955
        %v1957 = vpop.f32.mrb[0].mxu0
        %v1958 = vadd.f32 0.0, %v1957
        %v1959 = vpop.f32.mrb[0].mxu0
        %v1960 = vadd.f32 0.0, %v1959
        %1961 = vmatprep.mubr.bf16.mxu0 %v904
        %1962 = vmatmul.mubr.bf16.gmra.mrb[0].mxu0 %v903
        %v1963 = vpop.f32.mrb[0].mxu0
        %v1964 = vadd.f32 0.0, %v1963
        %v1965 = vpop.f32.mrb[0].mxu0
        %v1966 = vadd.f32 0.0, %v1965
        %v1967 = vpop.f32.mrb[0].mxu0
        %v1968 = vadd.f32 0.0, %v1967
        %v1969 = vpop.f32.mrb[0].mxu0
        %v1970 = vadd.f32 0.0, %v1969
        %1971 = vmatprep.mubr.bf16.mxu0 %v906
        %1972 = vmatmul.mubr.bf16.gmra.mrb[0].mxu0 %v905
        %v1973 = vpop.f32.mrb[0].mxu0
        %v1974 = vadd.f32 0.0, %v1973
        %v1975 = vpop.f32.mrb[0].mxu0
        %v1976 = vadd.f32 0.0, %v1975
        %v1977 = vpop.f32.mrb[0].mxu0
        %v1978 = vadd.f32 0.0, %v1977
        %v1979 = vpop.f32.mrb[0].mxu0
        %v1980 = vadd.f32 0.0, %v1979
        %1981 = vmatprep.mubr.bf16.mxu0 %v908
        %1982 = vmatmul.mubr.bf16.gmra.mrb[0].mxu0 %v907
        %v1983 = vpop.f32.mrb[0].mxu0
        %v1984 = vadd.f32 0.0, %v1983
        %v1985 = vpop.f32.mrb[0].mxu0
        %v1986 = vadd.f32 0.0, %v1985
        %v1987 = vpop.f32.mrb[0].mxu0
        %v1988 = vadd.f32 0.0, %v1987
        %v1989 = vpop.f32.mrb[0].mxu0
        %v1990 = vadd.f32 0.0, %v1989
        %1991 = vmatprep.mubr.bf16.mxu0 %v910
        %1992 = vmatmul.mubr.bf16.gmra.mrb[0].mxu0 %v909
        %v1993 = vpop.f32.mrb[0].mxu0
        %v1994 = vadd.f32 0.0, %v1993
        %v1995 = vpop.f32.mrb[0].mxu0
        %v1996 = vadd.f32 0.0, %v1995
        %v1997 = vpop.f32.mrb[0].mxu0
        %v1998 = vadd.f32 0.0, %v1997
        %v1999 = vpop.f32.mrb[0].mxu0
        %v2000 = vadd.f32 0.0, %v1999
        %2001 = vmatprep.mubr.bf16.mxu0 %v912
        %2002 = vmatmul.mubr.bf16.gmra.mrb[0].mxu0 %v911
        %v2003 = vpop.f32.mrb[0].mxu0
        %v2004 = vadd.f32 0.0, %v2003
        %v2005 = vpop.f32.mrb[0].mxu0
        %v2006 = vadd.f32 0.0, %v2005
        %v2007 = vpop.f32.mrb[0].mxu0
        %v2008 = vadd.f32 0.0, %v2007
        %v2009 = vpop.f32.mrb[0].mxu0
        %v2010 = vadd.f32 0.0, %v2009
        %2011 = vmatprep.mubr.bf16.mxu0 %v914
        %2012 = vmatmul.mubr.bf16.gmra.mrb[0].mxu0 %v913
        %v2013 = vpop.f32.mrb[0].mxu0
        %v2014 = vadd.f32 0.0, %v2013
        %v2015 = vpop.f32.mrb[0].mxu0
        %v2016 = vadd.f32 0.0, %v2015
        %v2017 = vpop.f32.mrb[0].mxu0
        %v2018 = vadd.f32 0.0, %v2017
        %v2019 = vpop.f32.mrb[0].mxu0
        %v2020 = vadd.f32 0.0, %v2019
        %2021 = vmatprep.mubr.bf16.mxu0 %v916
        %2022 = vmatmul.mubr.bf16.gmra.mrb[0].mxu0 %v915
        %v2023 = vpop.f32.mrb[0].mxu0
        %v2024 = vadd.f32 0.0, %v2023
        %v2025 = vpop.f32.mrb[0].mxu0
        %v2026 = vadd.f32 0.0, %v2025
        %v2027 = vpop.f32.mrb[0].mxu0
        %v2028 = vadd.f32 0.0, %v2027
        %v2029 = vpop.f32.mrb[0].mxu0
        %v2030 = vadd.f32 0.0, %v2029
        %2031 = vmatprep.mubr.bf16.mxu0 %v918
        %2032 = vmatmul.mubr.bf16.gmra.mrb[0].mxu0 %v917
        %v2033 = vpop.f32.mrb[0].mxu0
        %v2034 = vadd.f32 0.0, %v2033
        %v2035 = vpop.f32.mrb[0].mxu0
        %v2036 = vadd.f32 0.0, %v2035
        %v2037 = vpop.f32.mrb[0].mxu0
        %v2038 = vadd.f32 0.0, %v2037
        %v2039 = vpop.f32.mrb[0].mxu0
        %v2040 = vadd.f32 0.0, %v2039
        %2041 = vmatprep.mubr.bf16.mxu0 %v920
        %2042 = vmatmul.mubr.bf16.gmra.mrb[0].mxu0 %v919
        %v2043 = vpop.f32.mrb[0].mxu0
        %v2044 = vadd.f32 0.0, %v2043
        %v2045 = vpop.f32.mrb[0].mxu0
        %v2046 = vadd.f32 0.0, %v2045
        %v2047 = vpop.f32.mrb[0].mxu0
        %v2048 = vadd.f32 0.0, %v2047
        %v2049 = vpop.f32.mrb[0].mxu0
        %v2050 = vadd.f32 0.0, %v2049
        %2051 = vmatprep.mubr.bf16.mxu0 %v922
        %2052 = vmatmul.mubr.bf16.gmra.mrb[0].mxu0 %v921
        %v2053 = vpop.f32.mrb[0].mxu0
        %v2054 = vadd.f32 0.0, %v2053
        %v2055 = vpop.f32.mrb[0].mxu0
        %v2056 = vadd.f32 0.0, %v2055
        %v2057 = vpop.f32.mrb[0].mxu0
        %v2058 = vadd.f32 0.0, %v2057
        %v2059 = vpop.f32.mrb[0].mxu0
        %v2060 = vadd.f32 0.0, %v2059
        %2061 = vmatprep.mubr.bf16.mxu0 %v924
        %2062 = vmatmul.mubr.bf16.gmra.mrb[0].mxu0 %v923
        %v2063 = vpop.f32.mrb[0].mxu0
        %v2064 = vadd.f32 0.0, %v2063
        %v2065 = vpop.f32.mrb[0].mxu0
        %v2066 = vadd.f32 0.0, %v2065
        %v2067 = vpop.f32.mrb[0].mxu0
        %v2068 = vadd.f32 0.0, %v2067
        %v2069 = vpop.f32.mrb[0].mxu0
        %v2070 = vadd.f32 0.0, %v2069
        %2071 = vmatprep.mubr.bf16.mxu0 %v926
        %2072 = vmatmul.mubr.bf16.gmra.mrb[0].mxu0 %v925
        %v2073 = vpop.f32.mrb[0].mxu0
        %v2074 = vadd.f32 0.0, %v2073
        %v2075 = vpop.f32.mrb[0].mxu0
        %v2076 = vadd.f32 0.0, %v2075
        %v2077 = vpop.f32.mrb[0].mxu0
        %v2078 = vadd.f32 0.0, %v2077
        %v2079 = vpop.f32.mrb[0].mxu0
        %v2080 = vadd.f32 0.0, %v2079
        %2081 = vmatprep.mubr.bf16.mxu0 %v928
        %2082 = vmatmul.mubr.bf16.gmra.mrb[0].mxu0 %v927
        %v2083 = vpop.f32.mrb[0].mxu0
        %v2084 = vadd.f32 0.0, %v2083
        %v2085 = vpop.f32.mrb[0].mxu0
        %v2086 = vadd.f32 0.0, %v2085
        %v2087 = vpop.f32.mrb[0].mxu0
        %v2088 = vadd.f32 0.0, %v2087
        %v2089 = vpop.f32.mrb[0].mxu0
        %v2090 = vadd.f32 0.0, %v2089
        %2091 = vdwg.mxu0
        %v2092 = vld [vmem:[#allocation8] sm:$0xff]
        %v2093 = vld [vmem:[#allocation8 + $0x8] sm:$0xff]
        %v2094 = vld [vmem:[#allocation8 + $0x10] sm:$0xff]
        %v2095 = vld [vmem:[#allocation8 + $0x18] sm:$0xff]
        %v2096 = vld [vmem:[#allocation8 + $0x20] sm:$0xff]
        %v2097 = vld [vmem:[#allocation8 + $0x28] sm:$0xff]
        %v2098 = vld [vmem:[#allocation8 + $0x30] sm:$0xff]
        %v2099 = vld [vmem:[#allocation8 + $0x38] sm:$0xff]
        %v2100 = vld [vmem:[#allocation8 + $0x40] sm:$0xff]
        %v2101 = vld [vmem:[#allocation8 + $0x48] sm:$0xff]
        %v2102 = vld [vmem:[#allocation8 + $0x50] sm:$0xff]
        %v2103 = vld [vmem:[#allocation8 + $0x58] sm:$0xff]
        %v2104 = vld [vmem:[#allocation8 + $0x60] sm:$0xff]
        %v2105 = vld [vmem:[#allocation8 + $0x68] sm:$0xff]
        %v2106 = vld [vmem:[#allocation8 + $0x70] sm:$0xff]
        %v2107 = vld [vmem:[#allocation8 + $0x78] sm:$0xff]
        %v2108 = vpack.c.bf16 %v1552, %v1548
        %v2109 = vpack.c.bf16 %v1562, %v1558
        %v2110 = vpack.c.bf16 %v1572, %v1568
        %v2111 = vpack.c.bf16 %v1582, %v1578
        %v2112 = vpack.c.bf16 %v1592, %v1588
        %v2113 = vpack.c.bf16 %v1602, %v1598
        %v2114 = vpack.c.bf16 %v1612, %v1608
        %v2115 = vpack.c.bf16 %v1622, %v1618
        %v2116 = vpack.c.bf16 %v1632, %v1628
        %v2117 = vpack.c.bf16 %v1642, %v1638
        %v2118 = vpack.c.bf16 %v1652, %v1648
        %v2119 = vpack.c.bf16 %v1662, %v1658
        %v2120 = vpack.c.bf16 %v1672, %v1668
        %v2121 = vpack.c.bf16 %v1682, %v1678
        %v2122 = vpack.c.bf16 %v1692, %v1688
        %v2123 = vpack.c.bf16 %v1702, %v1698
        %v2124 = vpack.c.bf16 %v1745, %v1741
        %v2125 = vpack.c.bf16 %v1755, %v1751
        %v2126 = vpack.c.bf16 %v1765, %v1761
        %v2127 = vpack.c.bf16 %v1775, %v1771
        %v2128 = vpack.c.bf16 %v1785, %v1781
        %v2129 = vpack.c.bf16 %v1795, %v1791
        %v2130 = vpack.c.bf16 %v1805, %v1801
        %v2131 = vpack.c.bf16 %v1815, %v1811
        %v2132 = vpack.c.bf16 %v1825, %v1821
        %v2133 = vpack.c.bf16 %v1835, %v1831
        %v2134 = vpack.c.bf16 %v1845, %v1841
        %v2135 = vpack.c.bf16 %v1855, %v1851
        %v2136 = vpack.c.bf16 %v1865, %v1861
        %v2137 = vpack.c.bf16 %v1875, %v1871
        %v2138 = vpack.c.bf16 %v1885, %v1881
        %v2139 = vpack.c.bf16 %v1895, %v1891
        %v2140 = vpack.c.bf16 %v1938, %v1934
        %v2141 = vpack.c.bf16 %v1948, %v1944
        %v2142 = vpack.c.bf16 %v1958, %v1954
        %v2143 = vpack.c.bf16 %v1968, %v1964
        %v2144 = vpack.c.bf16 %v1978, %v1974
        %v2145 = vpack.c.bf16 %v1988, %v1984
        %v2146 = vpack.c.bf16 %v1998, %v1994
        %v2147 = vpack.c.bf16 %v2008, %v2004
        %v2148 = vpack.c.bf16 %v2018, %v2014
        %v2149 = vpack.c.bf16 %v2028, %v2024
        %v2150 = vpack.c.bf16 %v2038, %v2034
        %v2151 = vpack.c.bf16 %v2048, %v2044
        %v2152 = vpack.c.bf16 %v2058, %v2054
        %v2153 = vpack.c.bf16 %v2068, %v2064
        %v2154 = vpack.c.bf16 %v2078, %v2074
        %v2155 = vpack.c.bf16 %v2088, %v2084
        %2156 = vmatprep.subr.bf16.mxu0 0
        %2157 = vmatpush1.bf16.xpose.msra.mxu0 %v2124
        %2158 = vmatprep.subr.bf16.mxu0 0
        %2159 = vmatpush1.bf16.xpose.msra.mxu0 %v2125
        %2160 = vmatprep.subr.bf16.mxu0 0
        %2161 = vmatpush1.bf16.xpose.msra.mxu0 %v2126
        %2162 = vmatprep.subr.bf16.mxu0 0
        %2163 = vmatpush1.bf16.xpose.msra.mxu0 %v2127
        %2164 = vmatprep.subr.bf16.mxu0 0
        %2165 = vmatpush1.bf16.xpose.msra.mxu0 %v2128
        %2166 = vmatprep.subr.bf16.mxu0 0
        %2167 = vmatpush1.bf16.xpose.msra.mxu0 %v2129
        %2168 = vmatprep.subr.bf16.mxu0 0
        %2169 = vmatpush1.bf16.xpose.msra.mxu0 %v2130
        %2170 = vmatprep.subr.bf16.mxu0 0
        %2171 = vmatpush1.bf16.xpose.msra.mxu0 %v2131
        %2172 = vmatprep.subr.bf16.mxu0 0
        %2173 = vmatpush1.bf16.xpose.msra.mxu0 0
        %2174 = vmatprep.subr.bf16.mxu0 0
        %2175 = vmatpush1.bf16.xpose.msra.mxu0 0
        %2176 = vmatprep.subr.bf16.mxu0 0
        %2177 = vmatpush1.bf16.xpose.msra.mxu0 0
        %2178 = vmatprep.subr.bf16.mxu0 0
        %2179 = vmatpush1.bf16.xpose.msra.mxu0 0
        %2180 = vmatprep.subr.bf16.mxu0 0
        %2181 = vmatpush1.bf16.xpose.msra.mxu0 0
        %2182 = vmatprep.subr.bf16.mxu0 0
        %2183 = vmatpush1.bf16.xpose.msra.mxu0 0
        %2184 = vmatprep.subr.bf16.mxu0 0
        %2185 = vmatpush1.bf16.xpose.msra.mxu0 0
        %2186 = vmatprep.subr.bf16.mxu0 0
        %2187 = vmatpush1.bf16.xpose.msra.mxu0 0
        %2188 = vmatprep.mubr.bf16.mxu0 0
        %2189 = vmatmul.mubr.bf16.gmra.mrb[0].mxu0 %v2108
        %v2190 = vpop.f32.mrb[0].mxu0
        %v2191 = vadd.f32 %v2092, %v2190
        %v2192 = vpop.f32.mrb[0].mxu0
        %v2193 = vpop.f32.mrb[0].mxu0
        %v2194 = vadd.f32 %v2093, %v2193
        %v2195 = vpop.f32.mrb[0].mxu0
        %2196 = vmatprep.mubr.bf16.mxu0 0
        %2197 = vmatmul.mubr.bf16.gmra.mrb[0].mxu0 %v2109
        %v2198 = vpop.f32.mrb[0].mxu0
        %v2199 = vadd.f32 %v2094, %v2198
        %v2200 = vpop.f32.mrb[0].mxu0
        %v2201 = vpop.f32.mrb[0].mxu0
        %v2202 = vadd.f32 %v2095, %v2201
        %v2203 = vpop.f32.mrb[0].mxu0
        %2204 = vmatprep.mubr.bf16.mxu0 0
        %2205 = vmatmul.mubr.bf16.gmra.mrb[0].mxu0 %v2110
        %v2206 = vpop.f32.mrb[0].mxu0
        %v2207 = vadd.f32 %v2096, %v2206
        %v2208 = vpop.f32.mrb[0].mxu0
        %v2209 = vpop.f32.mrb[0].mxu0
        %v2210 = vadd.f32 %v2097, %v2209
        %v2211 = vpop.f32.mrb[0].mxu0
        %2212 = vmatprep.mubr.bf16.mxu0 0
        %2213 = vmatmul.mubr.bf16.gmra.mrb[0].mxu0 %v2111
        %v2214 = vpop.f32.mrb[0].mxu0
        %v2215 = vadd.f32 %v2098, %v2214
        %v2216 = vpop.f32.mrb[0].mxu0
        %v2217 = vpop.f32.mrb[0].mxu0
        %v2218 = vadd.f32 %v2099, %v2217
        %v2219 = vpop.f32.mrb[0].mxu0
        %2220 = vmatprep.mubr.bf16.mxu0 0
        %2221 = vmatmul.mubr.bf16.gmra.mrb[0].mxu0 %v2112
        %v2222 = vpop.f32.mrb[0].mxu0
        %v2223 = vadd.f32 %v2100, %v2222
        %v2224 = vpop.f32.mrb[0].mxu0
        %v2225 = vpop.f32.mrb[0].mxu0
        %v2226 = vadd.f32 %v2101, %v2225
        %v2227 = vpop.f32.mrb[0].mxu0
        %2228 = vmatprep.mubr.bf16.mxu0 0
        %2229 = vmatmul.mubr.bf16.gmra.mrb[0].mxu0 %v2113
        %v2230 = vpop.f32.mrb[0].mxu0
        %v2231 = vadd.f32 %v2102, %v2230
        %v2232 = vpop.f32.mrb[0].mxu0
        %v2233 = vpop.f32.mrb[0].mxu0
        %v2234 = vadd.f32 %v2103, %v2233
        %v2235 = vpop.f32.mrb[0].mxu0
        %2236 = vmatprep.mubr.bf16.mxu0 0
        %2237 = vmatmul.mubr.bf16.gmra.mrb[0].mxu0 %v2114
        %v2238 = vpop.f32.mrb[0].mxu0
        %v2239 = vadd.f32 %v2104, %v2238
        %v2240 = vpop.f32.mrb[0].mxu0
        %v2241 = vpop.f32.mrb[0].mxu0
        %v2242 = vadd.f32 %v2105, %v2241
        %v2243 = vpop.f32.mrb[0].mxu0
        %2244 = vmatprep.mubr.bf16.mxu0 0
        %2245 = vmatmul.mubr.bf16.gmra.mrb[0].mxu0 %v2115
        %v2246 = vpop.f32.mrb[0].mxu0
        %v2247 = vadd.f32 %v2106, %v2246
        %v2248 = vpop.f32.mrb[0].mxu0
        %v2249 = vpop.f32.mrb[0].mxu0
        %v2250 = vadd.f32 %v2107, %v2249
        %v2251 = vpop.f32.mrb[0].mxu0
        %2252 = vdwg.mxu0
        %2253 = vmatprep.subr.bf16.mxu0 0
        %2254 = vmatpush1.bf16.xpose.msra.mxu0 %v2132
        %2255 = vmatprep.subr.bf16.mxu0 0
        %2256 = vmatpush1.bf16.xpose.msra.mxu0 %v2133
        %2257 = vmatprep.subr.bf16.mxu0 0
        %2258 = vmatpush1.bf16.xpose.msra.mxu0 %v2134
        %2259 = vmatprep.subr.bf16.mxu0 0
        %2260 = vmatpush1.bf16.xpose.msra.mxu0 %v2135
        %2261 = vmatprep.subr.bf16.mxu0 0
        %2262 = vmatpush1.bf16.xpose.msra.mxu0 %v2136
        %2263 = vmatprep.subr.bf16.mxu0 0
        %2264 = vmatpush1.bf16.xpose.msra.mxu0 %v2137
        %2265 = vmatprep.subr.bf16.mxu0 0
        %2266 = vmatpush1.bf16.xpose.msra.mxu0 %v2138
        %2267 = vmatprep.subr.bf16.mxu0 0
        %2268 = vmatpush1.bf16.xpose.msra.mxu0 %v2139
        %2269 = vmatprep.subr.bf16.mxu0 0
        %2270 = vmatpush1.bf16.xpose.msra.mxu0 0
        %2271 = vmatprep.subr.bf16.mxu0 0
        %2272 = vmatpush1.bf16.xpose.msra.mxu0 0
        %2273 = vmatprep.subr.bf16.mxu0 0
        %2274 = vmatpush1.bf16.xpose.msra.mxu0 0
        %2275 = vmatprep.subr.bf16.mxu0 0
        %2276 = vmatpush1.bf16.xpose.msra.mxu0 0
        %2277 = vmatprep.subr.bf16.mxu0 0
        %2278 = vmatpush1.bf16.xpose.msra.mxu0 0
        %2279 = vmatprep.subr.bf16.mxu0 0
        %2280 = vmatpush1.bf16.xpose.msra.mxu0 0
        %2281 = vmatprep.subr.bf16.mxu0 0
        %2282 = vmatpush1.bf16.xpose.msra.mxu0 0
        %2283 = vmatprep.subr.bf16.mxu0 0
        %2284 = vmatpush1.bf16.xpose.msra.mxu0 0
        %2285 = vmatprep.mubr.bf16.mxu0 0
        %2286 = vmatmul.mubr.bf16.gmra.mrb[0].mxu0 %v2116
        %v2287 = vpop.f32.mrb[0].mxu0
        %v2288 = vadd.f32 %v2092, %v2287
        %v2289 = vpop.f32.mrb[0].mxu0
        %v2290 = vpop.f32.mrb[0].mxu0
        %v2291 = vadd.f32 %v2093, %v2290
        %v2292 = vpop.f32.mrb[0].mxu0
        %2293 = vmatprep.mubr.bf16.mxu0 0
        %2294 = vmatmul.mubr.bf16.gmra.mrb[0].mxu0 %v2117
        %v2295 = vpop.f32.mrb[0].mxu0
        %v2296 = vadd.f32 %v2094, %v2295
        %v2297 = vpop.f32.mrb[0].mxu0
        %v2298 = vpop.f32.mrb[0].mxu0
        %v2299 = vadd.f32 %v2095, %v2298
        %v2300 = vpop.f32.mrb[0].mxu0
        %2301 = vmatprep.mubr.bf16.mxu0 0
        %2302 = vmatmul.mubr.bf16.gmra.mrb[0].mxu0 %v2118
        %v2303 = vpop.f32.mrb[0].mxu0
        %v2304 = vadd.f32 %v2096, %v2303
        %v2305 = vpop.f32.mrb[0].mxu0
        %v2306 = vpop.f32.mrb[0].mxu0
        %v2307 = vadd.f32 %v2097, %v2306
        %v2308 = vpop.f32.mrb[0].mxu0
        %2309 = vmatprep.mubr.bf16.mxu0 0
        %2310 = vmatmul.mubr.bf16.gmra.mrb[0].mxu0 %v2119
        %v2311 = vpop.f32.mrb[0].mxu0
        %v2312 = vadd.f32 %v2098, %v2311
        %v2313 = vpop.f32.mrb[0].mxu0
        %v2314 = vpop.f32.mrb[0].mxu0
        %v2315 = vadd.f32 %v2099, %v2314
        %v2316 = vpop.f32.mrb[0].mxu0
        %2317 = vmatprep.mubr.bf16.mxu0 0
        %2318 = vmatmul.mubr.bf16.gmra.mrb[0].mxu0 %v2120
        %v2319 = vpop.f32.mrb[0].mxu0
        %v2320 = vadd.f32 %v2100, %v2319
        %v2321 = vpop.f32.mrb[0].mxu0
        %v2322 = vpop.f32.mrb[0].mxu0
        %v2323 = vadd.f32 %v2101, %v2322
        %v2324 = vpop.f32.mrb[0].mxu0
        %2325 = vmatprep.mubr.bf16.mxu0 0
        %2326 = vmatmul.mubr.bf16.gmra.mrb[0].mxu0 %v2121
        %v2327 = vpop.f32.mrb[0].mxu0
        %v2328 = vadd.f32 %v2102, %v2327
        %v2329 = vpop.f32.mrb[0].mxu0
        %v2330 = vpop.f32.mrb[0].mxu0
        %v2331 = vadd.f32 %v2103, %v2330
        %v2332 = vpop.f32.mrb[0].mxu0
        %2333 = vmatprep.mubr.bf16.mxu0 0
        %2334 = vmatmul.mubr.bf16.gmra.mrb[0].mxu0 %v2122
        %v2335 = vpop.f32.mrb[0].mxu0
        %v2336 = vadd.f32 %v2104, %v2335
        %v2337 = vpop.f32.mrb[0].mxu0
        %v2338 = vpop.f32.mrb[0].mxu0
        %v2339 = vadd.f32 %v2105, %v2338
        %v2340 = vpop.f32.mrb[0].mxu0
        %2341 = vmatprep.mubr.bf16.mxu0 0
        %2342 = vmatmul.mubr.bf16.gmra.mrb[0].mxu0 %v2123
        %v2343 = vpop.f32.mrb[0].mxu0
        %v2344 = vadd.f32 %v2106, %v2343
        %v2345 = vpop.f32.mrb[0].mxu0
        %v2346 = vpop.f32.mrb[0].mxu0
        %v2347 = vadd.f32 %v2107, %v2346
        %v2348 = vpop.f32.mrb[0].mxu0
        %2349 = vdwg.mxu0
        %2350 = vmax.xlane.f32.xlu0 %v2191
        %v2351 = vpop.xlane.xlu0 %2350
        %2352 = vmax.xlane.f32.xlu0 %v2194
        %v2353 = vpop.xlane.xlu0 %2352
        %2354 = vmax.xlane.f32.xlu0 %v2199
        %v2355 = vpop.xlane.xlu0 %2354
        %2356 = vmax.xlane.f32.xlu0 %v2202
        %v2357 = vpop.xlane.xlu0 %2356
        %2358 = vmax.xlane.f32.xlu0 %v2207
        %v2359 = vpop.xlane.xlu0 %2358
        %2360 = vmax.xlane.f32.xlu0 %v2210
        %v2361 = vpop.xlane.xlu0 %2360
        %2362 = vmax.xlane.f32.xlu0 %v2215
        %v2363 = vpop.xlane.xlu0 %2362
        %2364 = vmax.xlane.f32.xlu0 %v2218
        %v2365 = vpop.xlane.xlu0 %2364
        %2366 = vmax.xlane.f32.xlu0 %v2223
        %v2367 = vpop.xlane.xlu0 %2366
        %2368 = vmax.xlane.f32.xlu0 %v2226
        %v2369 = vpop.xlane.xlu0 %2368
        %2370 = vmax.xlane.f32.xlu0 %v2231
        %v2371 = vpop.xlane.xlu0 %2370
        %2372 = vmax.xlane.f32.xlu0 %v2234
        %v2373 = vpop.xlane.xlu0 %2372
        %2374 = vmax.xlane.f32.xlu0 %v2239
        %v2375 = vpop.xlane.xlu0 %2374
        %2376 = vmax.xlane.f32.xlu0 %v2242
        %v2377 = vpop.xlane.xlu0 %2376
        %2378 = vmax.xlane.f32.xlu0 %v2247
        %v2379 = vpop.xlane.xlu0 %2378
        %2380 = vmax.xlane.f32.xlu0 %v2250
        %v2381 = vpop.xlane.xlu0 %2380
        %2382 = vmax.xlane.f32.xlu0 %v2288
        %v2383 = vpop.xlane.xlu0 %2382
        %2384 = vmax.xlane.f32.xlu0 %v2291
        %v2385 = vpop.xlane.xlu0 %2384
        %2386 = vmax.xlane.f32.xlu0 %v2296
        %v2387 = vpop.xlane.xlu0 %2386
        %2388 = vmax.xlane.f32.xlu0 %v2299
        %v2389 = vpop.xlane.xlu0 %2388
        %2390 = vmax.xlane.f32.xlu0 %v2304
        %v2391 = vpop.xlane.xlu0 %2390
        %2392 = vmax.xlane.f32.xlu0 %v2307
        %v2393 = vpop.xlane.xlu0 %2392
        %2394 = vmax.xlane.f32.xlu0 %v2312
        %v2395 = vpop.xlane.xlu0 %2394
        %2396 = vmax.xlane.f32.xlu0 %v2315
        %v2397 = vpop.xlane.xlu0 %2396
        %2398 = vmax.xlane.f32.xlu0 %v2320
        %v2399 = vpop.xlane.xlu0 %2398
        %2400 = vmax.xlane.f32.xlu0 %v2323
        %v2401 = vpop.xlane.xlu0 %2400
        %2402 = vmax.xlane.f32.xlu0 %v2328
        %v2403 = vpop.xlane.xlu0 %2402
        %2404 = vmax.xlane.f32.xlu0 %v2331
        %v2405 = vpop.xlane.xlu0 %2404
        %2406 = vmax.xlane.f32.xlu0 %v2336
        %v2407 = vpop.xlane.xlu0 %2406
        %2408 = vmax.xlane.f32.xlu0 %v2339
        %v2409 = vpop.xlane.xlu0 %2408
        %2410 = vmax.xlane.f32.xlu0 %v2344
        %v2411 = vpop.xlane.xlu0 %2410
        %2412 = vmax.xlane.f32.xlu0 %v2347
        %v2413 = vpop.xlane.xlu0 %2412
        %v2414 = vsub.f32 %v2191, %v2351
        %v2415 = vsub.f32 %v2194, %v2353
        %v2416 = vsub.f32 %v2199, %v2355
        %v2417 = vsub.f32 %v2202, %v2357
        %v2418 = vsub.f32 %v2207, %v2359
        %v2419 = vsub.f32 %v2210, %v2361
        %v2420 = vsub.f32 %v2215, %v2363
        %v2421 = vsub.f32 %v2218, %v2365
        %v2422 = vsub.f32 %v2223, %v2367
        %v2423 = vsub.f32 %v2226, %v2369
        %v2424 = vsub.f32 %v2231, %v2371
        %v2425 = vsub.f32 %v2234, %v2373
        %v2426 = vsub.f32 %v2239, %v2375
        %v2427 = vsub.f32 %v2242, %v2377
        %v2428 = vsub.f32 %v2247, %v2379
        %v2429 = vsub.f32 %v2250, %v2381
        %v2430 = vsub.f32 %v2288, %v2383
        %v2431 = vsub.f32 %v2291, %v2385
        %v2432 = vsub.f32 %v2296, %v2387
        %v2433 = vsub.f32 %v2299, %v2389
        %v2434 = vsub.f32 %v2304, %v2391
        %v2435 = vsub.f32 %v2307, %v2393
        %v2436 = vsub.f32 %v2312, %v2395
        %v2437 = vsub.f32 %v2315, %v2397
        %v2438 = vsub.f32 %v2320, %v2399
        %v2439 = vsub.f32 %v2323, %v2401
        %v2440 = vsub.f32 %v2328, %v2403
        %v2441 = vsub.f32 %v2331, %v2405
        %v2442 = vsub.f32 %v2336, %v2407
        %v2443 = vsub.f32 %v2339, %v2409
        %v2444 = vsub.f32 %v2344, %v2411
        %v2445 = vsub.f32 %v2347, %v2413
        %v2446 = vmul.f32 %v2414, 1.442695
        %v2447 = vpow.pop %v2446
        %v2448 = vmul.f32 %v2415, 1.442695
        %v2449 = vpow.pop %v2448
        %v2450 = vmul.f32 %v2416, 1.442695
        %v2451 = vpow.pop %v2450
        %v2452 = vmul.f32 %v2417, 1.442695
        %v2453 = vpow.pop %v2452
        %v2454 = vmul.f32 %v2418, 1.442695
        %v2455 = vpow.pop %v2454
        %v2456 = vmul.f32 %v2419, 1.442695
        %v2457 = vpow.pop %v2456
        %v2458 = vmul.f32 %v2420, 1.442695
        %v2459 = vpow.pop %v2458
        %v2460 = vmul.f32 %v2421, 1.442695
        %v2461 = vpow.pop %v2460
        %v2462 = vmul.f32 %v2422, 1.442695
        %v2463 = vpow.pop %v2462
        %v2464 = vmul.f32 %v2423, 1.442695
        %v2465 = vpow.pop %v2464
        %v2466 = vmul.f32 %v2424, 1.442695
        %v2467 = vpow.pop %v2466
        %v2468 = vmul.f32 %v2425, 1.442695
        %v2469 = vpow.pop %v2468
        %v2470 = vmul.f32 %v2426, 1.442695
        %v2471 = vpow.pop %v2470
        %v2472 = vmul.f32 %v2427, 1.442695
        %v2473 = vpow.pop %v2472
        %v2474 = vmul.f32 %v2428, 1.442695
        %v2475 = vpow.pop %v2474
        %v2476 = vmul.f32 %v2429, 1.442695
        %v2477 = vpow.pop %v2476
        %v2478 = vmul.f32 %v2430, 1.442695
        %v2479 = vpow.pop %v2478
        %v2480 = vmul.f32 %v2431, 1.442695
        %v2481 = vpow.pop %v2480
        %v2482 = vmul.f32 %v2432, 1.442695
        %v2483 = vpow.pop %v2482
        %v2484 = vmul.f32 %v2433, 1.442695
        %v2485 = vpow.pop %v2484
        %v2486 = vmul.f32 %v2434, 1.442695
        %v2487 = vpow.pop %v2486
        %v2488 = vmul.f32 %v2435, 1.442695
        %v2489 = vpow.pop %v2488
        %v2490 = vmul.f32 %v2436, 1.442695
        %v2491 = vpow.pop %v2490
        %v2492 = vmul.f32 %v2437, 1.442695
        %v2493 = vpow.pop %v2492
        %v2494 = vmul.f32 %v2438, 1.442695
        %v2495 = vpow.pop %v2494
        %v2496 = vmul.f32 %v2439, 1.442695
        %v2497 = vpow.pop %v2496
        %v2498 = vmul.f32 %v2440, 1.442695
        %v2499 = vpow.pop %v2498
        %v2500 = vmul.f32 %v2441, 1.442695
        %v2501 = vpow.pop %v2500
        %v2502 = vmul.f32 %v2442, 1.442695
        %v2503 = vpow.pop %v2502
        %v2504 = vmul.f32 %v2443, 1.442695
        %v2505 = vpow.pop %v2504
        %v2506 = vmul.f32 %v2444, 1.442695
        %v2507 = vpow.pop %v2506
        %v2508 = vmul.f32 %v2445, 1.442695
        %v2509 = vpow.pop %v2508
        %2510 = vadd.xlane.f32.xlu0 %v2447
        %v2511 = vpop.xlane.xlu0 %2510
        %2512 = vadd.xlane.f32.xlu0 %v2449
        %v2513 = vpop.xlane.xlu0 %2512
        %2514 = vadd.xlane.f32.xlu0 %v2451
        %v2515 = vpop.xlane.xlu0 %2514
        %2516 = vadd.xlane.f32.xlu0 %v2453
        %v2517 = vpop.xlane.xlu0 %2516
        %2518 = vadd.xlane.f32.xlu0 %v2455
        %v2519 = vpop.xlane.xlu0 %2518
        %2520 = vadd.xlane.f32.xlu0 %v2457
        %v2521 = vpop.xlane.xlu0 %2520
        %2522 = vadd.xlane.f32.xlu0 %v2459
        %v2523 = vpop.xlane.xlu0 %2522
        %2524 = vadd.xlane.f32.xlu0 %v2461
        %v2525 = vpop.xlane.xlu0 %2524
        %2526 = vadd.xlane.f32.xlu0 %v2463
        %v2527 = vpop.xlane.xlu0 %2526
        %2528 = vadd.xlane.f32.xlu0 %v2465
        %v2529 = vpop.xlane.xlu0 %2528
        %2530 = vadd.xlane.f32.xlu0 %v2467
        %v2531 = vpop.xlane.xlu0 %2530
        %2532 = vadd.xlane.f32.xlu0 %v2469
        %v2533 = vpop.xlane.xlu0 %2532
        %2534 = vadd.xlane.f32.xlu0 %v2471
        %v2535 = vpop.xlane.xlu0 %2534
        %2536 = vadd.xlane.f32.xlu0 %v2473
        %v2537 = vpop.xlane.xlu0 %2536
        %2538 = vadd.xlane.f32.xlu0 %v2475
        %v2539 = vpop.xlane.xlu0 %2538
        %2540 = vadd.xlane.f32.xlu0 %v2477
        %v2541 = vpop.xlane.xlu0 %2540
        %2542 = vadd.xlane.f32.xlu0 %v2479
        %v2543 = vpop.xlane.xlu0 %2542
        %2544 = vadd.xlane.f32.xlu0 %v2481
        %v2545 = vpop.xlane.xlu0 %2544
        %2546 = vadd.xlane.f32.xlu0 %v2483
        %v2547 = vpop.xlane.xlu0 %2546
        %2548 = vadd.xlane.f32.xlu0 %v2485
        %v2549 = vpop.xlane.xlu0 %2548
        %2550 = vadd.xlane.f32.xlu0 %v2487
        %v2551 = vpop.xlane.xlu0 %2550
        %2552 = vadd.xlane.f32.xlu0 %v2489
        %v2553 = vpop.xlane.xlu0 %2552
        %2554 = vadd.xlane.f32.xlu0 %v2491
        %v2555 = vpop.xlane.xlu0 %2554
        %2556 = vadd.xlane.f32.xlu0 %v2493
        %v2557 = vpop.xlane.xlu0 %2556
        %2558 = vadd.xlane.f32.xlu0 %v2495
        %v2559 = vpop.xlane.xlu0 %2558
        %2560 = vadd.xlane.f32.xlu0 %v2497
        %v2561 = vpop.xlane.xlu0 %2560
        %2562 = vadd.xlane.f32.xlu0 %v2499
        %v2563 = vpop.xlane.xlu0 %2562
        %2564 = vadd.xlane.f32.xlu0 %v2501
        %v2565 = vpop.xlane.xlu0 %2564
        %2566 = vadd.xlane.f32.xlu0 %v2503
        %v2567 = vpop.xlane.xlu0 %2566
        %2568 = vadd.xlane.f32.xlu0 %v2505
        %v2569 = vpop.xlane.xlu0 %2568
        %2570 = vadd.xlane.f32.xlu0 %v2507
        %v2571 = vpop.xlane.xlu0 %2570
        %2572 = vadd.xlane.f32.xlu0 %v2509
        %v2573 = vpop.xlane.xlu0 %2572
        %v2574 = vrcp.pop %v2511
        %v2575 = vrcp.pop %v2513
        %v2576 = vrcp.pop %v2515
        %v2577 = vrcp.pop %v2517
        %v2578 = vrcp.pop %v2519
        %v2579 = vrcp.pop %v2521
        %v2580 = vrcp.pop %v2523
        %v2581 = vrcp.pop %v2525
        %v2582 = vrcp.pop %v2527
        %v2583 = vrcp.pop %v2529
        %v2584 = vrcp.pop %v2531
        %v2585 = vrcp.pop %v2533
        %v2586 = vrcp.pop %v2535
        %v2587 = vrcp.pop %v2537
        %v2588 = vrcp.pop %v2539
        %v2589 = vrcp.pop %v2541
        %v2590 = vrcp.pop %v2543
        %v2591 = vrcp.pop %v2545
        %v2592 = vrcp.pop %v2547
        %v2593 = vrcp.pop %v2549
        %v2594 = vrcp.pop %v2551
        %v2595 = vrcp.pop %v2553
        %v2596 = vrcp.pop %v2555
        %v2597 = vrcp.pop %v2557
        %v2598 = vrcp.pop %v2559
        %v2599 = vrcp.pop %v2561
        %v2600 = vrcp.pop %v2563
        %v2601 = vrcp.pop %v2565
        %v2602 = vrcp.pop %v2567
        %v2603 = vrcp.pop %v2569
        %v2604 = vrcp.pop %v2571
        %v2605 = vrcp.pop %v2573
        %v2606 = vmul.f32 %v2447, %v2574
        %v2607 = vmul.f32 %v2449, %v2575
        %v2608 = vmul.f32 %v2451, %v2576
        %v2609 = vmul.f32 %v2453, %v2577
        %v2610 = vmul.f32 %v2455, %v2578
        %v2611 = vmul.f32 %v2457, %v2579
        %v2612 = vmul.f32 %v2459, %v2580
        %v2613 = vmul.f32 %v2461, %v2581
        %v2614 = vmul.f32 %v2463, %v2582
        %v2615 = vmul.f32 %v2465, %v2583
        %v2616 = vmul.f32 %v2467, %v2584
        %v2617 = vmul.f32 %v2469, %v2585
        %v2618 = vmul.f32 %v2471, %v2586
        %v2619 = vmul.f32 %v2473, %v2587
        %v2620 = vmul.f32 %v2475, %v2588
        %v2621 = vmul.f32 %v2477, %v2589
        %v2622 = vmul.f32 %v2479, %v2590
        %v2623 = vmul.f32 %v2481, %v2591
        %v2624 = vmul.f32 %v2483, %v2592
        %v2625 = vmul.f32 %v2485, %v2593
        %v2626 = vmul.f32 %v2487, %v2594
        %v2627 = vmul.f32 %v2489, %v2595
        %v2628 = vmul.f32 %v2491, %v2596
        %v2629 = vmul.f32 %v2493, %v2597
        %v2630 = vmul.f32 %v2495, %v2598
        %v2631 = vmul.f32 %v2497, %v2599
        %v2632 = vmul.f32 %v2499, %v2600
        %v2633 = vmul.f32 %v2501, %v2601
        %v2634 = vmul.f32 %v2503, %v2602
        %v2635 = vmul.f32 %v2505, %v2603
        %v2636 = vmul.f32 %v2507, %v2604
        %v2637 = vmul.f32 %v2509, %v2605
        %v2638 = vpack.c.bf16 %v2607, %v2606
        %v2639 = vpack.c.bf16 %v2609, %v2608
        %v2640 = vpack.c.bf16 %v2611, %v2610
        %v2641 = vpack.c.bf16 %v2613, %v2612
        %v2642 = vpack.c.bf16 %v2615, %v2614
        %v2643 = vpack.c.bf16 %v2617, %v2616
        %v2644 = vpack.c.bf16 %v2619, %v2618
        %v2645 = vpack.c.bf16 %v2621, %v2620
        %v2646 = vpack.c.bf16 %v2623, %v2622
        %v2647 = vpack.c.bf16 %v2625, %v2624
        %v2648 = vpack.c.bf16 %v2627, %v2626
        %v2649 = vpack.c.bf16 %v2629, %v2628
        %v2650 = vpack.c.bf16 %v2631, %v2630
        %v2651 = vpack.c.bf16 %v2633, %v2632
        %v2652 = vpack.c.bf16 %v2635, %v2634
        %v2653 = vpack.c.bf16 %v2637, %v2636
        %2654 = vmatprep.subr.bf16.mxu0 0
        %2655 = vmatpush1.bf16.msra.mxu0 %v2140
        %2656 = vmatprep.subr.bf16.mxu0 0
        %2657 = vmatpush1.bf16.msra.mxu0 %v2141
        %2658 = vmatprep.subr.bf16.mxu0 0
        %2659 = vmatpush1.bf16.msra.mxu0 %v2142
        %2660 = vmatprep.subr.bf16.mxu0 0
        %2661 = vmatpush1.bf16.msra.mxu0 %v2143
        %2662 = vmatprep.subr.bf16.mxu0 0
        %2663 = vmatpush1.bf16.msra.mxu0 %v2144
        %2664 = vmatprep.subr.bf16.mxu0 0
        %2665 = vmatpush1.bf16.msra.mxu0 %v2145
        %2666 = vmatprep.subr.bf16.mxu0 0
        %2667 = vmatpush1.bf16.msra.mxu0 %v2146
        %2668 = vmatprep.subr.bf16.mxu0 0
        %2669 = vmatpush1.bf16.msra.mxu0 %v2147
        %2670 = vmatprep.subr.bf16.mxu0 0
        %2671 = vmatpush1.bf16.msra.mxu0 0
        %2672 = vmatprep.subr.bf16.mxu0 0
        %2673 = vmatpush1.bf16.msra.mxu0 0
        %2674 = vmatprep.subr.bf16.mxu0 0
        %2675 = vmatpush1.bf16.msra.mxu0 0
        %2676 = vmatprep.subr.bf16.mxu0 0
        %2677 = vmatpush1.bf16.msra.mxu0 0
        %2678 = vmatprep.subr.bf16.mxu0 0
        %2679 = vmatpush1.bf16.msra.mxu0 0
        %2680 = vmatprep.subr.bf16.mxu0 0
        %2681 = vmatpush1.bf16.msra.mxu0 0
        %2682 = vmatprep.subr.bf16.mxu0 0
        %2683 = vmatpush1.bf16.msra.mxu0 0
        %2684 = vmatprep.subr.bf16.mxu0 0
        %2685 = vmatpush1.bf16.msra.mxu0 0
        %2686 = vmatprep.mubr.bf16.mxu0 0
        %2687 = vmatmul.mubr.bf16.gmra.mrb[0].mxu0 %v2638
        %v2688 = vpop.f32.mrb[0].mxu0
        %v2689 = vadd.f32 0.0, %v2688
        %v2690 = vpop.f32.mrb[0].mxu0
        %v2691 = vpop.f32.mrb[0].mxu0
        %v2692 = vadd.f32 0.0, %v2691
        %v2693 = vpop.f32.mrb[0].mxu0
        %2694 = vmatprep.mubr.bf16.mxu0 0
        %2695 = vmatmul.mubr.bf16.gmra.mrb[0].mxu0 %v2639
        %v2696 = vpop.f32.mrb[0].mxu0
        %v2697 = vadd.f32 0.0, %v2696
        %v2698 = vpop.f32.mrb[0].mxu0
        %v2699 = vpop.f32.mrb[0].mxu0
        %v2700 = vadd.f32 0.0, %v2699
        %v2701 = vpop.f32.mrb[0].mxu0
        %2702 = vmatprep.mubr.bf16.mxu0 0
        %2703 = vmatmul.mubr.bf16.gmra.mrb[0].mxu0 %v2640
        %v2704 = vpop.f32.mrb[0].mxu0
        %v2705 = vadd.f32 0.0, %v2704
        %v2706 = vpop.f32.mrb[0].mxu0
        %v2707 = vpop.f32.mrb[0].mxu0
        %v2708 = vadd.f32 0.0, %v2707
        %v2709 = vpop.f32.mrb[0].mxu0
        %2710 = vmatprep.mubr.bf16.mxu0 0
        %2711 = vmatmul.mubr.bf16.gmra.mrb[0].mxu0 %v2641
        %v2712 = vpop.f32.mrb[0].mxu0
        %v2713 = vadd.f32 0.0, %v2712
        %v2714 = vpop.f32.mrb[0].mxu0
        %v2715 = vpop.f32.mrb[0].mxu0
        %v2716 = vadd.f32 0.0, %v2715
        %v2717 = vpop.f32.mrb[0].mxu0
        %2718 = vmatprep.mubr.bf16.mxu0 0
        %2719 = vmatmul.mubr.bf16.gmra.mrb[0].mxu0 %v2642
        %v2720 = vpop.f32.mrb[0].mxu0
        %v2721 = vadd.f32 0.0, %v2720
        %v2722 = vpop.f32.mrb[0].mxu0
        %v2723 = vpop.f32.mrb[0].mxu0
        %v2724 = vadd.f32 0.0, %v2723
        %v2725 = vpop.f32.mrb[0].mxu0
        %2726 = vmatprep.mubr.bf16.mxu0 0
        %2727 = vmatmul.mubr.bf16.gmra.mrb[0].mxu0 %v2643
        %v2728 = vpop.f32.mrb[0].mxu0
        %v2729 = vadd.f32 0.0, %v2728
        %v2730 = vpop.f32.mrb[0].mxu0
        %v2731 = vpop.f32.mrb[0].mxu0
        %v2732 = vadd.f32 0.0, %v2731
        %v2733 = vpop.f32.mrb[0].mxu0
        %2734 = vmatprep.mubr.bf16.mxu0 0
        %2735 = vmatmul.mubr.bf16.gmra.mrb[0].mxu0 %v2644
        %v2736 = vpop.f32.mrb[0].mxu0
        %v2737 = vadd.f32 0.0, %v2736
        %v2738 = vpop.f32.mrb[0].mxu0
        %v2739 = vpop.f32.mrb[0].mxu0
        %v2740 = vadd.f32 0.0, %v2739
        %v2741 = vpop.f32.mrb[0].mxu0
        %2742 = vmatprep.mubr.bf16.mxu0 0
        %2743 = vmatmul.mubr.bf16.gmra.mrb[0].mxu0 %v2645
        %v2744 = vpop.f32.mrb[0].mxu0
        %v2745 = vadd.f32 0.0, %v2744
        %v2746 = vpop.f32.mrb[0].mxu0
        %v2747 = vpop.f32.mrb[0].mxu0
        %v2748 = vadd.f32 0.0, %v2747
        %v2749 = vpop.f32.mrb[0].mxu0
        %2750 = vdwg.mxu0
        %2751 = vmatprep.subr.bf16.mxu0 0
        %2752 = vmatpush1.bf16.msra.mxu0 %v2148
        %2753 = vmatprep.subr.bf16.mxu0 0
        %2754 = vmatpush1.bf16.msra.mxu0 %v2149
        %2755 = vmatprep.subr.bf16.mxu0 0
        %2756 = vmatpush1.bf16.msra.mxu0 %v2150
        %2757 = vmatprep.subr.bf16.mxu0 0
        %2758 = vmatpush1.bf16.msra.mxu0 %v2151
        %2759 = vmatprep.subr.bf16.mxu0 0
        %2760 = vmatpush1.bf16.msra.mxu0 %v2152
        %2761 = vmatprep.subr.bf16.mxu0 0
        %2762 = vmatpush1.bf16.msra.mxu0 %v2153
        %2763 = vmatprep.subr.bf16.mxu0 0
        %2764 = vmatpush1.bf16.msra.mxu0 %v2154
        %2765 = vmatprep.subr.bf16.mxu0 0
        %2766 = vmatpush1.bf16.msra.mxu0 %v2155
        %2767 = vmatprep.subr.bf16.mxu0 0
        %2768 = vmatpush1.bf16.msra.mxu0 0
        %2769 = vmatprep.subr.bf16.mxu0 0
        %2770 = vmatpush1.bf16.msra.mxu0 0
        %2771 = vmatprep.subr.bf16.mxu0 0
        %2772 = vmatpush1.bf16.msra.mxu0 0
        %2773 = vmatprep.subr.bf16.mxu0 0
        %2774 = vmatpush1.bf16.msra.mxu0 0
        %2775 = vmatprep.subr.bf16.mxu0 0
        %2776 = vmatpush1.bf16.msra.mxu0 0
        %2777 = vmatprep.subr.bf16.mxu0 0
        %2778 = vmatpush1.bf16.msra.mxu0 0
        %2779 = vmatprep.subr.bf16.mxu0 0
        %2780 = vmatpush1.bf16.msra.mxu0 0
        %2781 = vmatprep.subr.bf16.mxu0 0
        %2782 = vmatpush1.bf16.msra.mxu0 0
        %2783 = vmatprep.mubr.bf16.mxu0 0
        %2784 = vmatmul.mubr.bf16.gmra.mrb[0].mxu0 %v2646
        %v2785 = vpop.f32.mrb[0].mxu0
        %v2786 = vadd.f32 0.0, %v2785
        %v2787 = vpop.f32.mrb[0].mxu0
        %v2788 = vpop.f32.mrb[0].mxu0
        %v2789 = vadd.f32 0.0, %v2788
        %v2790 = vpop.f32.mrb[0].mxu0
        %2791 = vmatprep.mubr.bf16.mxu0 0
        %2792 = vmatmul.mubr.bf16.gmra.mrb[0].mxu0 %v2647
        %v2793 = vpop.f32.mrb[0].mxu0
        %v2794 = vadd.f32 0.0, %v2793
        %v2795 = vpop.f32.mrb[0].mxu0
        %v2796 = vpop.f32.mrb[0].mxu0
        %v2797 = vadd.f32 0.0, %v2796
        %v2798 = vpop.f32.mrb[0].mxu0
        %2799 = vmatprep.mubr.bf16.mxu0 0
        %2800 = vmatmul.mubr.bf16.gmra.mrb[0].mxu0 %v2648
        %v2801 = vpop.f32.mrb[0].mxu0
        %v2802 = vadd.f32 0.0, %v2801
        %v2803 = vpop.f32.mrb[0].mxu0
        %v2804 = vpop.f32.mrb[0].mxu0
        %v2805 = vadd.f32 0.0, %v2804
        %v2806 = vpop.f32.mrb[0].mxu0
        %2807 = vmatprep.mubr.bf16.mxu0 0
        %2808 = vmatmul.mubr.bf16.gmra.mrb[0].mxu0 %v2649
        %v2809 = vpop.f32.mrb[0].mxu0
        %v2810 = vadd.f32 0.0, %v2809
        %v2811 = vpop.f32.mrb[0].mxu0
        %v2812 = vpop.f32.mrb[0].mxu0
        %v2813 = vadd.f32 0.0, %v2812
        %v2814 = vpop.f32.mrb[0].mxu0
        %2815 = vmatprep.mubr.bf16.mxu0 0
        %2816 = vmatmul.mubr.bf16.gmra.mrb[0].mxu0 %v2650
        %v2817 = vpop.f32.mrb[0].mxu0
        %v2818 = vadd.f32 0.0, %v2817
        %v2819 = vpop.f32.mrb[0].mxu0
        %v2820 = vpop.f32.mrb[0].mxu0
        %v2821 = vadd.f32 0.0, %v2820
        %v2822 = vpop.f32.mrb[0].mxu0
        %2823 = vmatprep.mubr.bf16.mxu0 0
        %2824 = vmatmul.mubr.bf16.gmra.mrb[0].mxu0 %v2651
        %v2825 = vpop.f32.mrb[0].mxu0
        %v2826 = vadd.f32 0.0, %v2825
        %v2827 = vpop.f32.mrb[0].mxu0
        %v2828 = vpop.f32.mrb[0].mxu0
        %v2829 = vadd.f32 0.0, %v2828
        %v2830 = vpop.f32.mrb[0].mxu0
        %2831 = vmatprep.mubr.bf16.mxu0 0
        %2832 = vmatmul.mubr.bf16.gmra.mrb[0].mxu0 %v2652
        %v2833 = vpop.f32.mrb[0].mxu0
        %v2834 = vadd.f32 0.0, %v2833
        %v2835 = vpop.f32.mrb[0].mxu0
        %v2836 = vpop.f32.mrb[0].mxu0
        %v2837 = vadd.f32 0.0, %v2836
        %v2838 = vpop.f32.mrb[0].mxu0
        %2839 = vmatprep.mubr.bf16.mxu0 0
        %2840 = vmatmul.mubr.bf16.gmra.mrb[0].mxu0 %v2653
        %v2841 = vpop.f32.mrb[0].mxu0
        %v2842 = vadd.f32 0.0, %v2841
        %v2843 = vpop.f32.mrb[0].mxu0
        %v2844 = vpop.f32.mrb[0].mxu0
        %v2845 = vadd.f32 0.0, %v2844
        %v2846 = vpop.f32.mrb[0].mxu0
        %2847 = vdwg.mxu0
        %v2848 = vpack.c.bf16 %v2692, %v2689
        %v2849 = vpack.c.bf16 %v2700, %v2697
        %v2850 = vpack.c.bf16 %v2708, %v2705
        %v2851 = vpack.c.bf16 %v2716, %v2713
        %v2852 = vpack.c.bf16 %v2724, %v2721
        %v2853 = vpack.c.bf16 %v2732, %v2729
        %v2854 = vpack.c.bf16 %v2740, %v2737
        %v2855 = vpack.c.bf16 %v2748, %v2745
        %v2856 = vpack.c.bf16 %v2789, %v2786
        %v2857 = vpack.c.bf16 %v2797, %v2794
        %v2858 = vpack.c.bf16 %v2805, %v2802
        %v2859 = vpack.c.bf16 %v2813, %v2810
        %v2860 = vpack.c.bf16 %v2821, %v2818
        %v2861 = vpack.c.bf16 %v2829, %v2826
        %v2862 = vpack.c.bf16 %v2837, %v2834
        %v2863 = vpack.c.bf16 %v2845, %v2842
        %v2864 = vld [vmem:[%s519] sm:$0xff]
        %v2865 = vld [vmem:[%s519 + $0x8] sm:$0xff]
        %v2866 = vld [vmem:[%s519 + $0x10] sm:$0xff]
        %v2867 = vld [vmem:[%s519 + $0x18] sm:$0xff]
        %v2868 = vld [vmem:[%s519 + $0x20] sm:$0xff]
        %v2869 = vld [vmem:[%s519 + $0x28] sm:$0xff]
        %v2870 = vld [vmem:[%s519 + $0x30] sm:$0xff]
        %v2871 = vld [vmem:[%s519 + $0x38] sm:$0xff]
        %v2872 = vld [vmem:[%s519 + $0x40] sm:$0xff]
        %v2873 = vld [vmem:[%s519 + $0x48] sm:$0xff]
        %v2874 = vld [vmem:[%s519 + $0x50] sm:$0xff]
        %v2875 = vld [vmem:[%s519 + $0x58] sm:$0xff]
        %v2876 = vld [vmem:[%s519 + $0x60] sm:$0xff]
        %v2877 = vld [vmem:[%s519 + $0x68] sm:$0xff]
        %v2878 = vld [vmem:[%s519 + $0x70] sm:$0xff]
        %v2879 = vld [vmem:[%s519 + $0x78] sm:$0xff]
        %v2880 = vpack.c.bf16 %v1554, %v1550
        %v2881 = vpack.c.bf16 %v1564, %v1560
        %v2882 = vpack.c.bf16 %v1574, %v1570
        %v2883 = vpack.c.bf16 %v1584, %v1580
        %v2884 = vpack.c.bf16 %v1594, %v1590
        %v2885 = vpack.c.bf16 %v1604, %v1600
        %v2886 = vpack.c.bf16 %v1614, %v1610
        %v2887 = vpack.c.bf16 %v1624, %v1620
        %v2888 = vpack.c.bf16 %v1634, %v1630
        %v2889 = vpack.c.bf16 %v1644, %v1640
        %v2890 = vpack.c.bf16 %v1654, %v1650
        %v2891 = vpack.c.bf16 %v1664, %v1660
        %v2892 = vpack.c.bf16 %v1674, %v1670
        %v2893 = vpack.c.bf16 %v1684, %v1680
        %v2894 = vpack.c.bf16 %v1694, %v1690
        %v2895 = vpack.c.bf16 %v1704, %v1700
        %v2896 = vpack.c.bf16 %v1747, %v1743
        %v2897 = vpack.c.bf16 %v1757, %v1753
        %v2898 = vpack.c.bf16 %v1767, %v1763
        %v2899 = vpack.c.bf16 %v1777, %v1773
        %v2900 = vpack.c.bf16 %v1787, %v1783
        %v2901 = vpack.c.bf16 %v1797, %v1793
        %v2902 = vpack.c.bf16 %v1807, %v1803
        %v2903 = vpack.c.bf16 %v1817, %v1813
        %v2904 = vpack.c.bf16 %v1827, %v1823
        %v2905 = vpack.c.bf16 %v1837, %v1833
        %v2906 = vpack.c.bf16 %v1847, %v1843
        %v2907 = vpack.c.bf16 %v1857, %v1853
        %v2908 = vpack.c.bf16 %v1867, %v1863
        %v2909 = vpack.c.bf16 %v1877, %v1873
        %v2910 = vpack.c.bf16 %v1887, %v1883
        %v2911 = vpack.c.bf16 %v1897, %v1893
        %v2912 = vpack.c.bf16 %v1940, %v1936
        %v2913 = vpack.c.bf16 %v1950, %v1946
        %v2914 = vpack.c.bf16 %v1960, %v1956
        %v2915 = vpack.c.bf16 %v1970, %v1966
        %v2916 = vpack.c.bf16 %v1980, %v1976
        %v2917 = vpack.c.bf16 %v1990, %v1986
        %v2918 = vpack.c.bf16 %v2000, %v1996
        %v2919 = vpack.c.bf16 %v2010, %v2006
        %v2920 = vpack.c.bf16 %v2020, %v2016
        %v2921 = vpack.c.bf16 %v2030, %v2026
        %v2922 = vpack.c.bf16 %v2040, %v2036
        %v2923 = vpack.c.bf16 %v2050, %v2046
        %v2924 = vpack.c.bf16 %v2060, %v2056
        %v2925 = vpack.c.bf16 %v2070, %v2066
        %v2926 = vpack.c.bf16 %v2080, %v2076
        %v2927 = vpack.c.bf16 %v2090, %v2086
        %2928 = vmatprep.subr.bf16.mxu0 0
        %2929 = vmatpush1.bf16.xpose.msra.mxu0 %v2896
        %2930 = vmatprep.subr.bf16.mxu0 0
        %2931 = vmatpush1.bf16.xpose.msra.mxu0 %v2897
        %2932 = vmatprep.subr.bf16.mxu0 0
        %2933 = vmatpush1.bf16.xpose.msra.mxu0 %v2898
        %2934 = vmatprep.subr.bf16.mxu0 0
        %2935 = vmatpush1.bf16.xpose.msra.mxu0 %v2899
        %2936 = vmatprep.subr.bf16.mxu0 0
        %2937 = vmatpush1.bf16.xpose.msra.mxu0 %v2900
        %2938 = vmatprep.subr.bf16.mxu0 0
        %2939 = vmatpush1.bf16.xpose.msra.mxu0 %v2901
        %2940 = vmatprep.subr.bf16.mxu0 0
        %2941 = vmatpush1.bf16.xpose.msra.mxu0 %v2902
        %2942 = vmatprep.subr.bf16.mxu0 0
        %2943 = vmatpush1.bf16.xpose.msra.mxu0 %v2903
        %2944 = vmatprep.subr.bf16.mxu0 0
        %2945 = vmatpush1.bf16.xpose.msra.mxu0 0
        %2946 = vmatprep.subr.bf16.mxu0 0
        %2947 = vmatpush1.bf16.xpose.msra.mxu0 0
        %2948 = vmatprep.subr.bf16.mxu0 0
        %2949 = vmatpush1.bf16.xpose.msra.mxu0 0
        %2950 = vmatprep.subr.bf16.mxu0 0
        %2951 = vmatpush1.bf16.xpose.msra.mxu0 0
        %2952 = vmatprep.subr.bf16.mxu0 0
        %2953 = vmatpush1.bf16.xpose.msra.mxu0 0
        %2954 = vmatprep.subr.bf16.mxu0 0
        %2955 = vmatpush1.bf16.xpose.msra.mxu0 0
        %2956 = vmatprep.subr.bf16.mxu0 0
        %2957 = vmatpush1.bf16.xpose.msra.mxu0 0
        %2958 = vmatprep.subr.bf16.mxu0 0
        %2959 = vmatpush1.bf16.xpose.msra.mxu0 0
        %2960 = vmatprep.mubr.bf16.mxu0 0
        %2961 = vmatmul.mubr.bf16.gmra.mrb[0].mxu0 %v2880
        %v2962 = vpop.f32.mrb[0].mxu0
        %v2963 = vadd.f32 %v2092, %v2962
        %v2964 = vpop.f32.mrb[0].mxu0
        %v2965 = vpop.f32.mrb[0].mxu0
        %v2966 = vadd.f32 %v2093, %v2965
        %v2967 = vpop.f32.mrb[0].mxu0
        %2968 = vmatprep.mubr.bf16.mxu0 0
        %2969 = vmatmul.mubr.bf16.gmra.mrb[0].mxu0 %v2881
        %v2970 = vpop.f32.mrb[0].mxu0
        %v2971 = vadd.f32 %v2094, %v2970
        %v2972 = vpop.f32.mrb[0].mxu0
        %v2973 = vpop.f32.mrb[0].mxu0
        %v2974 = vadd.f32 %v2095, %v2973
        %v2975 = vpop.f32.mrb[0].mxu0
        %2976 = vmatprep.mubr.bf16.mxu0 0
        %2977 = vmatmul.mubr.bf16.gmra.mrb[0].mxu0 %v2882
        %v2978 = vpop.f32.mrb[0].mxu0
        %v2979 = vadd.f32 %v2096, %v2978
        %v2980 = vpop.f32.mrb[0].mxu0
        %v2981 = vpop.f32.mrb[0].mxu0
        %v2982 = vadd.f32 %v2097, %v2981
        %v2983 = vpop.f32.mrb[0].mxu0
        %2984 = vmatprep.mubr.bf16.mxu0 0
        %2985 = vmatmul.mubr.bf16.gmra.mrb[0].mxu0 %v2883
        %v2986 = vpop.f32.mrb[0].mxu0
        %v2987 = vadd.f32 %v2098, %v2986
        %v2988 = vpop.f32.mrb[0].mxu0
        %v2989 = vpop.f32.mrb[0].mxu0
        %v2990 = vadd.f32 %v2099, %v2989
        %v2991 = vpop.f32.mrb[0].mxu0
        %2992 = vmatprep.mubr.bf16.mxu0 0
        %2993 = vmatmul.mubr.bf16.gmra.mrb[0].mxu0 %v2884
        %v2994 = vpop.f32.mrb[0].mxu0
        %v2995 = vadd.f32 %v2100, %v2994
        %v2996 = vpop.f32.mrb[0].mxu0
        %v2997 = vpop.f32.mrb[0].mxu0
        %v2998 = vadd.f32 %v2101, %v2997
        %v2999 = vpop.f32.mrb[0].mxu0
        %3000 = vmatprep.mubr.bf16.mxu0 0
        %3001 = vmatmul.mubr.bf16.gmra.mrb[0].mxu0 %v2885
        %v3002 = vpop.f32.mrb[0].mxu0
        %v3003 = vadd.f32 %v2102, %v3002
        %v3004 = vpop.f32.mrb[0].mxu0
        %v3005 = vpop.f32.mrb[0].mxu0
        %v3006 = vadd.f32 %v2103, %v3005
        %v3007 = vpop.f32.mrb[0].mxu0
        %3008 = vmatprep.mubr.bf16.mxu0 0
        %3009 = vmatmul.mubr.bf16.gmra.mrb[0].mxu0 %v2886
        %v3010 = vpop.f32.mrb[0].mxu0
        %v3011 = vadd.f32 %v2104, %v3010
        %v3012 = vpop.f32.mrb[0].mxu0
        %v3013 = vpop.f32.mrb[0].mxu0
        %v3014 = vadd.f32 %v2105, %v3013
        %v3015 = vpop.f32.mrb[0].mxu0
        %3016 = vmatprep.mubr.bf16.mxu0 0
        %3017 = vmatmul.mubr.bf16.gmra.mrb[0].mxu0 %v2887
        %v3018 = vpop.f32.mrb[0].mxu0
        %v3019 = vadd.f32 %v2106, %v3018
        %v3020 = vpop.f32.mrb[0].mxu0
        %v3021 = vpop.f32.mrb[0].mxu0
        %v3022 = vadd.f32 %v2107, %v3021
        %v3023 = vpop.f32.mrb[0].mxu0
        %3024 = vdwg.mxu0
        %3025 = vmatprep.subr.bf16.mxu0 0
        %3026 = vmatpush1.bf16.xpose.msra.mxu0 %v2904
        %3027 = vmatprep.subr.bf16.mxu0 0
        %3028 = vmatpush1.bf16.xpose.msra.mxu0 %v2905
        %3029 = vmatprep.subr.bf16.mxu0 0
        %3030 = vmatpush1.bf16.xpose.msra.mxu0 %v2906
        %3031 = vmatprep.subr.bf16.mxu0 0
        %3032 = vmatpush1.bf16.xpose.msra.mxu0 %v2907
        %3033 = vmatprep.subr.bf16.mxu0 0
        %3034 = vmatpush1.bf16.xpose.msra.mxu0 %v2908
        %3035 = vmatprep.subr.bf16.mxu0 0
        %3036 = vmatpush1.bf16.xpose.msra.mxu0 %v2909
        %3037 = vmatprep.subr.bf16.mxu0 0
        %3038 = vmatpush1.bf16.xpose.msra.mxu0 %v2910
        %3039 = vmatprep.subr.bf16.mxu0 0
        %3040 = vmatpush1.bf16.xpose.msra.mxu0 %v2911
        %3041 = vmatprep.subr.bf16.mxu0 0
        %3042 = vmatpush1.bf16.xpose.msra.mxu0 0
        %3043 = vmatprep.subr.bf16.mxu0 0
        %3044 = vmatpush1.bf16.xpose.msra.mxu0 0
        %3045 = vmatprep.subr.bf16.mxu0 0
        %3046 = vmatpush1.bf16.xpose.msra.mxu0 0
        %3047 = vmatprep.subr.bf16.mxu0 0
        %3048 = vmatpush1.bf16.xpose.msra.mxu0 0
        %3049 = vmatprep.subr.bf16.mxu0 0
        %3050 = vmatpush1.bf16.xpose.msra.mxu0 0
        %3051 = vmatprep.subr.bf16.mxu0 0
        %3052 = vmatpush1.bf16.xpose.msra.mxu0 0
        %3053 = vmatprep.subr.bf16.mxu0 0
        %3054 = vmatpush1.bf16.xpose.msra.mxu0 0
        %3055 = vmatprep.subr.bf16.mxu0 0
        %3056 = vmatpush1.bf16.xpose.msra.mxu0 0
        %3057 = vmatprep.mubr.bf16.mxu0 0
        %3058 = vmatmul.mubr.bf16.gmra.mrb[0].mxu0 %v2888
        %v3059 = vpop.f32.mrb[0].mxu0
        %v3060 = vadd.f32 %v2092, %v3059
        %v3061 = vpop.f32.mrb[0].mxu0
        %v3062 = vpop.f32.mrb[0].mxu0
        %v3063 = vadd.f32 %v2093, %v3062
        %v3064 = vpop.f32.mrb[0].mxu0
        %3065 = vmatprep.mubr.bf16.mxu0 0
        %3066 = vmatmul.mubr.bf16.gmra.mrb[0].mxu0 %v2889
        %v3067 = vpop.f32.mrb[0].mxu0
        %v3068 = vadd.f32 %v2094, %v3067
        %v3069 = vpop.f32.mrb[0].mxu0
        %v3070 = vpop.f32.mrb[0].mxu0
        %v3071 = vadd.f32 %v2095, %v3070
        %v3072 = vpop.f32.mrb[0].mxu0
        %3073 = vmatprep.mubr.bf16.mxu0 0
        %3074 = vmatmul.mubr.bf16.gmra.mrb[0].mxu0 %v2890
        %v3075 = vpop.f32.mrb[0].mxu0
        %v3076 = vadd.f32 %v2096, %v3075
        %v3077 = vpop.f32.mrb[0].mxu0
        %v3078 = vpop.f32.mrb[0].mxu0
        %v3079 = vadd.f32 %v2097, %v3078
        %v3080 = vpop.f32.mrb[0].mxu0
        %3081 = vmatprep.mubr.bf16.mxu0 0
        %3082 = vmatmul.mubr.bf16.gmra.mrb[0].mxu0 %v2891
        %v3083 = vpop.f32.mrb[0].mxu0
        %v3084 = vadd.f32 %v2098, %v3083
        %v3085 = vpop.f32.mrb[0].mxu0
        %v3086 = vpop.f32.mrb[0].mxu0
        %v3087 = vadd.f32 %v2099, %v3086
        %v3088 = vpop.f32.mrb[0].mxu0
        %3089 = vmatprep.mubr.bf16.mxu0 0
        %3090 = vmatmul.mubr.bf16.gmra.mrb[0].mxu0 %v2892
        %v3091 = vpop.f32.mrb[0].mxu0
        %v3092 = vadd.f32 %v2100, %v3091
        %v3093 = vpop.f32.mrb[0].mxu0
        %v3094 = vpop.f32.mrb[0].mxu0
        %v3095 = vadd.f32 %v2101, %v3094
        %v3096 = vpop.f32.mrb[0].mxu0
        %3097 = vmatprep.mubr.bf16.mxu0 0
        %3098 = vmatmul.mubr.bf16.gmra.mrb[0].mxu0 %v2893
        %v3099 = vpop.f32.mrb[0].mxu0
        %v3100 = vadd.f32 %v2102, %v3099
        %v3101 = vpop.f32.mrb[0].mxu0
        %v3102 = vpop.f32.mrb[0].mxu0
        %v3103 = vadd.f32 %v2103, %v3102
        %v3104 = vpop.f32.mrb[0].mxu0
        %3105 = vmatprep.mubr.bf16.mxu0 0
        %3106 = vmatmul.mubr.bf16.gmra.mrb[0].mxu0 %v2894
        %v3107 = vpop.f32.mrb[0].mxu0
        %v3108 = vadd.f32 %v2104, %v3107
        %v3109 = vpop.f32.mrb[0].mxu0
        %v3110 = vpop.f32.mrb[0].mxu0
        %v3111 = vadd.f32 %v2105, %v3110
        %v3112 = vpop.f32.mrb[0].mxu0
        %3113 = vmatprep.mubr.bf16.mxu0 0
        %3114 = vmatmul.mubr.bf16.gmra.mrb[0].mxu0 %v2895
        %v3115 = vpop.f32.mrb[0].mxu0
        %v3116 = vadd.f32 %v2106, %v3115
        %v3117 = vpop.f32.mrb[0].mxu0
        %v3118 = vpop.f32.mrb[0].mxu0
        %v3119 = vadd.f32 %v2107, %v3118
        %v3120 = vpop.f32.mrb[0].mxu0
        %3121 = vdwg.mxu0
        %3122 = vmax.xlane.f32.xlu0 %v2963
        %v3123 = vpop.xlane.xlu0 %3122
        %3124 = vmax.xlane.f32.xlu0 %v2966
        %v3125 = vpop.xlane.xlu0 %3124
        %3126 = vmax.xlane.f32.xlu0 %v2971
        %v3127 = vpop.xlane.xlu0 %3126
        %3128 = vmax.xlane.f32.xlu0 %v2974
        %v3129 = vpop.xlane.xlu0 %3128
        %3130 = vmax.xlane.f32.xlu0 %v2979
        %v3131 = vpop.xlane.xlu0 %3130
        %3132 = vmax.xlane.f32.xlu0 %v2982
        %v3133 = vpop.xlane.xlu0 %3132
        %3134 = vmax.xlane.f32.xlu0 %v2987
        %v3135 = vpop.xlane.xlu0 %3134
        %3136 = vmax.xlane.f32.xlu0 %v2990
        %v3137 = vpop.xlane.xlu0 %3136
        %3138 = vmax.xlane.f32.xlu0 %v2995
        %v3139 = vpop.xlane.xlu0 %3138
        %3140 = vmax.xlane.f32.xlu0 %v2998
        %v3141 = vpop.xlane.xlu0 %3140
        %3142 = vmax.xlane.f32.xlu0 %v3003
        %v3143 = vpop.xlane.xlu0 %3142
        %3144 = vmax.xlane.f32.xlu0 %v3006
        %v3145 = vpop.xlane.xlu0 %3144
        %3146 = vmax.xlane.f32.xlu0 %v3011
        %v3147 = vpop.xlane.xlu0 %3146
        %3148 = vmax.xlane.f32.xlu0 %v3014
        %v3149 = vpop.xlane.xlu0 %3148
        %3150 = vmax.xlane.f32.xlu0 %v3019
        %v3151 = vpop.xlane.xlu0 %3150
        %3152 = vmax.xlane.f32.xlu0 %v3022
        %v3153 = vpop.xlane.xlu0 %3152
        %3154 = vmax.xlane.f32.xlu0 %v3060
        %v3155 = vpop.xlane.xlu0 %3154
        %3156 = vmax.xlane.f32.xlu0 %v3063
        %v3157 = vpop.xlane.xlu0 %3156
        %3158 = vmax.xlane.f32.xlu0 %v3068
        %v3159 = vpop.xlane.xlu0 %3158
        %3160 = vmax.xlane.f32.xlu0 %v3071
        %v3161 = vpop.xlane.xlu0 %3160
        %3162 = vmax.xlane.f32.xlu0 %v3076
        %v3163 = vpop.xlane.xlu0 %3162
        %3164 = vmax.xlane.f32.xlu0 %v3079
        %v3165 = vpop.xlane.xlu0 %3164
        %3166 = vmax.xlane.f32.xlu0 %v3084
        %v3167 = vpop.xlane.xlu0 %3166
        %3168 = vmax.xlane.f32.xlu0 %v3087
        %v3169 = vpop.xlane.xlu0 %3168
        %3170 = vmax.xlane.f32.xlu0 %v3092
        %v3171 = vpop.xlane.xlu0 %3170
        %3172 = vmax.xlane.f32.xlu0 %v3095
        %v3173 = vpop.xlane.xlu0 %3172
        %3174 = vmax.xlane.f32.xlu0 %v3100
        %v3175 = vpop.xlane.xlu0 %3174
        %3176 = vmax.xlane.f32.xlu0 %v3103
        %v3177 = vpop.xlane.xlu0 %3176
        %3178 = vmax.xlane.f32.xlu0 %v3108
        %v3179 = vpop.xlane.xlu0 %3178
        %3180 = vmax.xlane.f32.xlu0 %v3111
        %v3181 = vpop.xlane.xlu0 %3180
        %3182 = vmax.xlane.f32.xlu0 %v3116
        %v3183 = vpop.xlane.xlu0 %3182
        %3184 = vmax.xlane.f32.xlu0 %v3119
        %v3185 = vpop.xlane.xlu0 %3184
        %v3186 = vsub.f32 %v2963, %v3123
        %v3187 = vsub.f32 %v2966, %v3125
        %v3188 = vsub.f32 %v2971, %v3127
        %v3189 = vsub.f32 %v2974, %v3129
        %v3190 = vsub.f32 %v2979, %v3131
        %v3191 = vsub.f32 %v2982, %v3133
        %v3192 = vsub.f32 %v2987, %v3135
        %v3193 = vsub.f32 %v2990, %v3137
        %v3194 = vsub.f32 %v2995, %v3139
        %v3195 = vsub.f32 %v2998, %v3141
        %v3196 = vsub.f32 %v3003, %v3143
        %v3197 = vsub.f32 %v3006, %v3145
        %v3198 = vsub.f32 %v3011, %v3147
        %v3199 = vsub.f32 %v3014, %v3149
        %v3200 = vsub.f32 %v3019, %v3151
        %v3201 = vsub.f32 %v3022, %v3153
        %v3202 = vsub.f32 %v3060, %v3155
        %v3203 = vsub.f32 %v3063, %v3157
        %v3204 = vsub.f32 %v3068, %v3159
        %v3205 = vsub.f32 %v3071, %v3161
        %v3206 = vsub.f32 %v3076, %v3163
        %v3207 = vsub.f32 %v3079, %v3165
        %v3208 = vsub.f32 %v3084, %v3167
        %v3209 = vsub.f32 %v3087, %v3169
        %v3210 = vsub.f32 %v3092, %v3171
        %v3211 = vsub.f32 %v3095, %v3173
        %v3212 = vsub.f32 %v3100, %v3175
        %v3213 = vsub.f32 %v3103, %v3177
        %v3214 = vsub.f32 %v3108, %v3179
        %v3215 = vsub.f32 %v3111, %v3181
        %v3216 = vsub.f32 %v3116, %v3183
        %v3217 = vsub.f32 %v3119, %v3185
        %v3218 = vmul.f32 %v3186, 1.442695
        %v3219 = vpow.pop %v3218
        %v3220 = vmul.f32 %v3187, 1.442695
        %v3221 = vpow.pop %v3220
        %v3222 = vmul.f32 %v3188, 1.442695
        %v3223 = vpow.pop %v3222
        %v3224 = vmul.f32 %v3189, 1.442695
        %v3225 = vpow.pop %v3224
        %v3226 = vmul.f32 %v3190, 1.442695
        %v3227 = vpow.pop %v3226
        %v3228 = vmul.f32 %v3191, 1.442695
        %v3229 = vpow.pop %v3228
        %v3230 = vmul.f32 %v3192, 1.442695
        %v3231 = vpow.pop %v3230
        %v3232 = vmul.f32 %v3193, 1.442695
        %v3233 = vpow.pop %v3232
        %v3234 = vmul.f32 %v3194, 1.442695
        %v3235 = vpow.pop %v3234
        %v3236 = vmul.f32 %v3195, 1.442695
        %v3237 = vpow.pop %v3236
        %v3238 = vmul.f32 %v3196, 1.442695
        %v3239 = vpow.pop %v3238
        %v3240 = vmul.f32 %v3197, 1.442695
        %v3241 = vpow.pop %v3240
        %v3242 = vmul.f32 %v3198, 1.442695
        %v3243 = vpow.pop %v3242
        %v3244 = vmul.f32 %v3199, 1.442695
        %v3245 = vpow.pop %v3244
        %v3246 = vmul.f32 %v3200, 1.442695
        %v3247 = vpow.pop %v3246
        %v3248 = vmul.f32 %v3201, 1.442695
        %v3249 = vpow.pop %v3248
        %v3250 = vmul.f32 %v3202, 1.442695
        %v3251 = vpow.pop %v3250
        %v3252 = vmul.f32 %v3203, 1.442695
        %v3253 = vpow.pop %v3252
        %v3254 = vmul.f32 %v3204, 1.442695
        %v3255 = vpow.pop %v3254
        %v3256 = vmul.f32 %v3205, 1.442695
        %v3257 = vpow.pop %v3256
        %v3258 = vmul.f32 %v3206, 1.442695
        %v3259 = vpow.pop %v3258
        %v3260 = vmul.f32 %v3207, 1.442695
        %v3261 = vpow.pop %v3260
        %v3262 = vmul.f32 %v3208, 1.442695
        %v3263 = vpow.pop %v3262
        %v3264 = vmul.f32 %v3209, 1.442695
        %v3265 = vpow.pop %v3264
        %v3266 = vmul.f32 %v3210, 1.442695
        %v3267 = vpow.pop %v3266
        %v3268 = vmul.f32 %v3211, 1.442695
        %v3269 = vpow.pop %v3268
        %v3270 = vmul.f32 %v3212, 1.442695
        %v3271 = vpow.pop %v3270
        %v3272 = vmul.f32 %v3213, 1.442695
        %v3273 = vpow.pop %v3272
        %v3274 = vmul.f32 %v3214, 1.442695
        %v3275 = vpow.pop %v3274
        %v3276 = vmul.f32 %v3215, 1.442695
        %v3277 = vpow.pop %v3276
        %v3278 = vmul.f32 %v3216, 1.442695
        %v3279 = vpow.pop %v3278
        %v3280 = vmul.f32 %v3217, 1.442695
        %v3281 = vpow.pop %v3280
        %3282 = vadd.xlane.f32.xlu0 %v3219
        %v3283 = vpop.xlane.xlu0 %3282
        %3284 = vadd.xlane.f32.xlu0 %v3221
        %v3285 = vpop.xlane.xlu0 %3284
        %3286 = vadd.xlane.f32.xlu0 %v3223
        %v3287 = vpop.xlane.xlu0 %3286
        %3288 = vadd.xlane.f32.xlu0 %v3225
        %v3289 = vpop.xlane.xlu0 %3288
        %3290 = vadd.xlane.f32.xlu0 %v3227
        %v3291 = vpop.xlane.xlu0 %3290
        %3292 = vadd.xlane.f32.xlu0 %v3229
        %v3293 = vpop.xlane.xlu0 %3292
        %3294 = vadd.xlane.f32.xlu0 %v3231
        %v3295 = vpop.xlane.xlu0 %3294
        %3296 = vadd.xlane.f32.xlu0 %v3233
        %v3297 = vpop.xlane.xlu0 %3296
        %3298 = vadd.xlane.f32.xlu0 %v3235
        %v3299 = vpop.xlane.xlu0 %3298
        %3300 = vadd.xlane.f32.xlu0 %v3237
        %v3301 = vpop.xlane.xlu0 %3300
        %3302 = vadd.xlane.f32.xlu0 %v3239
        %v3303 = vpop.xlane.xlu0 %3302
        %3304 = vadd.xlane.f32.xlu0 %v3241
        %v3305 = vpop.xlane.xlu0 %3304
        %3306 = vadd.xlane.f32.xlu0 %v3243
        %v3307 = vpop.xlane.xlu0 %3306
        %3308 = vadd.xlane.f32.xlu0 %v3245
        %v3309 = vpop.xlane.xlu0 %3308
        %3310 = vadd.xlane.f32.xlu0 %v3247
        %v3311 = vpop.xlane.xlu0 %3310
        %3312 = vadd.xlane.f32.xlu0 %v3249
        %v3313 = vpop.xlane.xlu0 %3312
        %3314 = vadd.xlane.f32.xlu0 %v3251
        %v3315 = vpop.xlane.xlu0 %3314
        %3316 = vadd.xlane.f32.xlu0 %v3253
        %v3317 = vpop.xlane.xlu0 %3316
        %3318 = vadd.xlane.f32.xlu0 %v3255
        %v3319 = vpop.xlane.xlu0 %3318
        %3320 = vadd.xlane.f32.xlu0 %v3257
        %v3321 = vpop.xlane.xlu0 %3320
        %3322 = vadd.xlane.f32.xlu0 %v3259
        %v3323 = vpop.xlane.xlu0 %3322
        %3324 = vadd.xlane.f32.xlu0 %v3261
        %v3325 = vpop.xlane.xlu0 %3324
        %3326 = vadd.xlane.f32.xlu0 %v3263
        %v3327 = vpop.xlane.xlu0 %3326
        %3328 = vadd.xlane.f32.xlu0 %v3265
        %v3329 = vpop.xlane.xlu0 %3328
        %3330 = vadd.xlane.f32.xlu0 %v3267
        %v3331 = vpop.xlane.xlu0 %3330
        %3332 = vadd.xlane.f32.xlu0 %v3269
        %v3333 = vpop.xlane.xlu0 %3332
        %3334 = vadd.xlane.f32.xlu0 %v3271
        %v3335 = vpop.xlane.xlu0 %3334
        %3336 = vadd.xlane.f32.xlu0 %v3273
        %v3337 = vpop.xlane.xlu0 %3336
        %3338 = vadd.xlane.f32.xlu0 %v3275
        %v3339 = vpop.xlane.xlu0 %3338
        %3340 = vadd.xlane.f32.xlu0 %v3277
        %v3341 = vpop.xlane.xlu0 %3340
        %3342 = vadd.xlane.f32.xlu0 %v3279
        %v3343 = vpop.xlane.xlu0 %3342
        %3344 = vadd.xlane.f32.xlu0 %v3281
        %v3345 = vpop.xlane.xlu0 %3344
        %v3346 = vrcp.pop %v3283
        %v3347 = vrcp.pop %v3285
        %v3348 = vrcp.pop %v3287
        %v3349 = vrcp.pop %v3289
        %v3350 = vrcp.pop %v3291
        %v3351 = vrcp.pop %v3293
        %v3352 = vrcp.pop %v3295
        %v3353 = vrcp.pop %v3297
        %v3354 = vrcp.pop %v3299
        %v3355 = vrcp.pop %v3301
        %v3356 = vrcp.pop %v3303
        %v3357 = vrcp.pop %v3305
        %v3358 = vrcp.pop %v3307
        %v3359 = vrcp.pop %v3309
        %v3360 = vrcp.pop %v3311
        %v3361 = vrcp.pop %v3313
        %v3362 = vrcp.pop %v3315
        %v3363 = vrcp.pop %v3317
        %v3364 = vrcp.pop %v3319
        %v3365 = vrcp.pop %v3321
        %v3366 = vrcp.pop %v3323
        %v3367 = vrcp.pop %v3325
        %v3368 = vrcp.pop %v3327
        %v3369 = vrcp.pop %v3329
        %v3370 = vrcp.pop %v3331
        %v3371 = vrcp.pop %v3333
        %v3372 = vrcp.pop %v3335
        %v3373 = vrcp.pop %v3337
        %v3374 = vrcp.pop %v3339
        %v3375 = vrcp.pop %v3341
        %v3376 = vrcp.pop %v3343
        %v3377 = vrcp.pop %v3345
        %v3378 = vmul.f32 %v3219, %v3346
        %v3379 = vmul.f32 %v3221, %v3347
        %v3380 = vmul.f32 %v3223, %v3348
        %v3381 = vmul.f32 %v3225, %v3349
        %v3382 = vmul.f32 %v3227, %v3350
        %v3383 = vmul.f32 %v3229, %v3351
        %v3384 = vmul.f32 %v3231, %v3352
        %v3385 = vmul.f32 %v3233, %v3353
        %v3386 = vmul.f32 %v3235, %v3354
        %v3387 = vmul.f32 %v3237, %v3355
        %v3388 = vmul.f32 %v3239, %v3356
        %v3389 = vmul.f32 %v3241, %v3357
        %v3390 = vmul.f32 %v3243, %v3358
        %v3391 = vmul.f32 %v3245, %v3359
        %v3392 = vmul.f32 %v3247, %v3360
        %v3393 = vmul.f32 %v3249, %v3361
        %v3394 = vmul.f32 %v3251, %v3362
        %v3395 = vmul.f32 %v3253, %v3363
        %v3396 = vmul.f32 %v3255, %v3364
        %v3397 = vmul.f32 %v3257, %v3365
        %v3398 = vmul.f32 %v3259, %v3366
        %v3399 = vmul.f32 %v3261, %v3367
        %v3400 = vmul.f32 %v3263, %v3368
        %v3401 = vmul.f32 %v3265, %v3369
        %v3402 = vmul.f32 %v3267, %v3370
        %v3403 = vmul.f32 %v3269, %v3371
        %v3404 = vmul.f32 %v3271, %v3372
        %v3405 = vmul.f32 %v3273, %v3373
        %v3406 = vmul.f32 %v3275, %v3374
        %v3407 = vmul.f32 %v3277, %v3375
        %v3408 = vmul.f32 %v3279, %v3376
        %v3409 = vmul.f32 %v3281, %v3377
        %v3410 = vpack.c.bf16 %v3379, %v3378
        %v3411 = vpack.c.bf16 %v3381, %v3380
        %v3412 = vpack.c.bf16 %v3383, %v3382
        %v3413 = vpack.c.bf16 %v3385, %v3384
        %v3414 = vpack.c.bf16 %v3387, %v3386
        %v3415 = vpack.c.bf16 %v3389, %v3388
        %v3416 = vpack.c.bf16 %v3391, %v3390
        %v3417 = vpack.c.bf16 %v3393, %v3392
        %v3418 = vpack.c.bf16 %v3395, %v3394
        %v3419 = vpack.c.bf16 %v3397, %v3396
        %v3420 = vpack.c.bf16 %v3399, %v3398
        %v3421 = vpack.c.bf16 %v3401, %v3400
        %v3422 = vpack.c.bf16 %v3403, %v3402
        %v3423 = vpack.c.bf16 %v3405, %v3404
        %v3424 = vpack.c.bf16 %v3407, %v3406
        %v3425 = vpack.c.bf16 %v3409, %v3408
        %3426 = vmatprep.subr.bf16.mxu0 0
        %3427 = vmatpush1.bf16.msra.mxu0 %v2912
        %3428 = vmatprep.subr.bf16.mxu0 0
        %3429 = vmatpush1.bf16.msra.mxu0 %v2913
        %3430 = vmatprep.subr.bf16.mxu0 0
        %3431 = vmatpush1.bf16.msra.mxu0 %v2914
        %3432 = vmatprep.subr.bf16.mxu0 0
        %3433 = vmatpush1.bf16.msra.mxu0 %v2915
        %3434 = vmatprep.subr.bf16.mxu0 0
        %3435 = vmatpush1.bf16.msra.mxu0 %v2916
        %3436 = vmatprep.subr.bf16.mxu0 0
        %3437 = vmatpush1.bf16.msra.mxu0 %v2917
        %3438 = vmatprep.subr.bf16.mxu0 0
        %3439 = vmatpush1.bf16.msra.mxu0 %v2918
        %3440 = vmatprep.subr.bf16.mxu0 0
        %3441 = vmatpush1.bf16.msra.mxu0 %v2919
        %3442 = vmatprep.subr.bf16.mxu0 0
        %3443 = vmatpush1.bf16.msra.mxu0 0
        %3444 = vmatprep.subr.bf16.mxu0 0
        %3445 = vmatpush1.bf16.msra.mxu0 0
        %3446 = vmatprep.subr.bf16.mxu0 0
        %3447 = vmatpush1.bf16.msra.mxu0 0
        %3448 = vmatprep.subr.bf16.mxu0 0
        %3449 = vmatpush1.bf16.msra.mxu0 0
        %3450 = vmatprep.subr.bf16.mxu0 0
        %3451 = vmatpush1.bf16.msra.mxu0 0
        %3452 = vmatprep.subr.bf16.mxu0 0
        %3453 = vmatpush1.bf16.msra.mxu0 0
        %3454 = vmatprep.subr.bf16.mxu0 0
        %3455 = vmatpush1.bf16.msra.mxu0 0
        %3456 = vmatprep.subr.bf16.mxu0 0
        %3457 = vmatpush1.bf16.msra.mxu0 0
        %3458 = vmatprep.mubr.bf16.mxu0 0
        %3459 = vmatmul.mubr.bf16.gmra.mrb[0].mxu0 %v3410
        %v3460 = vpop.f32.mrb[0].mxu0
        %v3461 = vadd.f32 0.0, %v3460
        %v3462 = vpop.f32.mrb[0].mxu0
        %v3463 = vpop.f32.mrb[0].mxu0
        %v3464 = vadd.f32 0.0, %v3463
        %v3465 = vpop.f32.mrb[0].mxu0
        %3466 = vmatprep.mubr.bf16.mxu0 0
        %3467 = vmatmul.mubr.bf16.gmra.mrb[0].mxu0 %v3411
        %v3468 = vpop.f32.mrb[0].mxu0
        %v3469 = vadd.f32 0.0, %v3468
        %v3470 = vpop.f32.mrb[0].mxu0
        %v3471 = vpop.f32.mrb[0].mxu0
        %v3472 = vadd.f32 0.0, %v3471
        %v3473 = vpop.f32.mrb[0].mxu0
        %3474 = vmatprep.mubr.bf16.mxu0 0
        %3475 = vmatmul.mubr.bf16.gmra.mrb[0].mxu0 %v3412
        %v3476 = vpop.f32.mrb[0].mxu0
        %v3477 = vadd.f32 0.0, %v3476
        %v3478 = vpop.f32.mrb[0].mxu0
        %v3479 = vpop.f32.mrb[0].mxu0
        %v3480 = vadd.f32 0.0, %v3479
        %v3481 = vpop.f32.mrb[0].mxu0
        %3482 = vmatprep.mubr.bf16.mxu0 0
        %3483 = vmatmul.mubr.bf16.gmra.mrb[0].mxu0 %v3413
        %v3484 = vpop.f32.mrb[0].mxu0
        %v3485 = vadd.f32 0.0, %v3484
        %v3486 = vpop.f32.mrb[0].mxu0
        %v3487 = vpop.f32.mrb[0].mxu0
        %v3488 = vadd.f32 0.0, %v3487
        %v3489 = vpop.f32.mrb[0].mxu0
        %3490 = vmatprep.mubr.bf16.mxu0 0
        %3491 = vmatmul.mubr.bf16.gmra.mrb[0].mxu0 %v3414
        %v3492 = vpop.f32.mrb[0].mxu0
        %v3493 = vadd.f32 0.0, %v3492
        %v3494 = vpop.f32.mrb[0].mxu0
        %v3495 = vpop.f32.mrb[0].mxu0
        %v3496 = vadd.f32 0.0, %v3495
        %v3497 = vpop.f32.mrb[0].mxu0
        %3498 = vmatprep.mubr.bf16.mxu0 0
        %3499 = vmatmul.mubr.bf16.gmra.mrb[0].mxu0 %v3415
        %v3500 = vpop.f32.mrb[0].mxu0
        %v3501 = vadd.f32 0.0, %v3500
        %v3502 = vpop.f32.mrb[0].mxu0
        %v3503 = vpop.f32.mrb[0].mxu0
        %v3504 = vadd.f32 0.0, %v3503
        %v3505 = vpop.f32.mrb[0].mxu0
        %3506 = vmatprep.mubr.bf16.mxu0 0
        %3507 = vmatmul.mubr.bf16.gmra.mrb[0].mxu0 %v3416
        %v3508 = vpop.f32.mrb[0].mxu0
        %v3509 = vadd.f32 0.0, %v3508
        %v3510 = vpop.f32.mrb[0].mxu0
        %v3511 = vpop.f32.mrb[0].mxu0
        %v3512 = vadd.f32 0.0, %v3511
        %v3513 = vpop.f32.mrb[0].mxu0
        %3514 = vmatprep.mubr.bf16.mxu0 0
        %3515 = vmatmul.mubr.bf16.gmra.mrb[0].mxu0 %v3417
        %v3516 = vpop.f32.mrb[0].mxu0
        %v3517 = vadd.f32 0.0, %v3516
        %v3518 = vpop.f32.mrb[0].mxu0
        %v3519 = vpop.f32.mrb[0].mxu0
        %v3520 = vadd.f32 0.0, %v3519
        %v3521 = vpop.f32.mrb[0].mxu0
        %3522 = vdwg.mxu0
        %3523 = vmatprep.subr.bf16.mxu0 0
        %3524 = vmatpush1.bf16.msra.mxu0 %v2920
        %3525 = vmatprep.subr.bf16.mxu0 0
        %3526 = vmatpush1.bf16.msra.mxu0 %v2921
        %3527 = vmatprep.subr.bf16.mxu0 0
        %3528 = vmatpush1.bf16.msra.mxu0 %v2922
        %3529 = vmatprep.subr.bf16.mxu0 0
        %3530 = vmatpush1.bf16.msra.mxu0 %v2923
        %3531 = vmatprep.subr.bf16.mxu0 0
        %3532 = vmatpush1.bf16.msra.mxu0 %v2924
        %3533 = vmatprep.subr.bf16.mxu0 0
        %3534 = vmatpush1.bf16.msra.mxu0 %v2925
        %3535 = vmatprep.subr.bf16.mxu0 0
        %3536 = vmatpush1.bf16.msra.mxu0 %v2926
        %3537 = vmatprep.subr.bf16.mxu0 0
        %3538 = vmatpush1.bf16.msra.mxu0 %v2927
        %3539 = vmatprep.subr.bf16.mxu0 0
        %3540 = vmatpush1.bf16.msra.mxu0 0
        %3541 = vmatprep.subr.bf16.mxu0 0
        %3542 = vmatpush1.bf16.msra.mxu0 0
        %3543 = vmatprep.subr.bf16.mxu0 0
        %3544 = vmatpush1.bf16.msra.mxu0 0
        %3545 = vmatprep.subr.bf16.mxu0 0
        %3546 = vmatpush1.bf16.msra.mxu0 0
        %3547 = vmatprep.subr.bf16.mxu0 0
        %3548 = vmatpush1.bf16.msra.mxu0 0
        %3549 = vmatprep.subr.bf16.mxu0 0
        %3550 = vmatpush1.bf16.msra.mxu0 0
        %3551 = vmatprep.subr.bf16.mxu0 0
        %3552 = vmatpush1.bf16.msra.mxu0 0
        %3553 = vmatprep.subr.bf16.mxu0 0
        %3554 = vmatpush1.bf16.msra.mxu0 0
        %3555 = vmatprep.mubr.bf16.mxu0 0
        %3556 = vmatmul.mubr.bf16.gmra.mrb[0].mxu0 %v3418
        %v3557 = vpop.f32.mrb[0].mxu0
        %v3558 = vadd.f32 0.0, %v3557
        %v3559 = vpop.f32.mrb[0].mxu0
        %v3560 = vpop.f32.mrb[0].mxu0
        %v3561 = vadd.f32 0.0, %v3560
        %v3562 = vpop.f32.mrb[0].mxu0
        %3563 = vmatprep.mubr.bf16.mxu0 0
        %3564 = vmatmul.mubr.bf16.gmra.mrb[0].mxu0 %v3419
        %v3565 = vpop.f32.mrb[0].mxu0
        %v3566 = vadd.f32 0.0, %v3565
        %v3567 = vpop.f32.mrb[0].mxu0
        %v3568 = vpop.f32.mrb[0].mxu0
        %v3569 = vadd.f32 0.0, %v3568
        %v3570 = vpop.f32.mrb[0].mxu0
        %3571 = vmatprep.mubr.bf16.mxu0 0
        %3572 = vmatmul.mubr.bf16.gmra.mrb[0].mxu0 %v3420
        %v3573 = vpop.f32.mrb[0].mxu0
        %v3574 = vadd.f32 0.0, %v3573
        %v3575 = vpop.f32.mrb[0].mxu0
        %v3576 = vpop.f32.mrb[0].mxu0
        %v3577 = vadd.f32 0.0, %v3576
        %v3578 = vpop.f32.mrb[0].mxu0
        %3579 = vmatprep.mubr.bf16.mxu0 0
        %3580 = vmatmul.mubr.bf16.gmra.mrb[0].mxu0 %v3421
        %v3581 = vpop.f32.mrb[0].mxu0
        %v3582 = vadd.f32 0.0, %v3581
        %v3583 = vpop.f32.mrb[0].mxu0
        %v3584 = vpop.f32.mrb[0].mxu0
        %v3585 = vadd.f32 0.0, %v3584
        %v3586 = vpop.f32.mrb[0].mxu0
        %3587 = vmatprep.mubr.bf16.mxu0 0
        %3588 = vmatmul.mubr.bf16.gmra.mrb[0].mxu0 %v3422
        %v3589 = vpop.f32.mrb[0].mxu0
        %v3590 = vadd.f32 0.0, %v3589
        %v3591 = vpop.f32.mrb[0].mxu0
        %v3592 = vpop.f32.mrb[0].mxu0
        %v3593 = vadd.f32 0.0, %v3592
        %v3594 = vpop.f32.mrb[0].mxu0
        %3595 = vmatprep.mubr.bf16.mxu0 0
        %3596 = vmatmul.mubr.bf16.gmra.mrb[0].mxu0 %v3423
        %v3597 = vpop.f32.mrb[0].mxu0
        %v3598 = vadd.f32 0.0, %v3597
        %v3599 = vpop.f32.mrb[0].mxu0
        %v3600 = vpop.f32.mrb[0].mxu0
        %v3601 = vadd.f32 0.0, %v3600
        %v3602 = vpop.f32.mrb[0].mxu0
        %3603 = vmatprep.mubr.bf16.mxu0 0
        %3604 = vmatmul.mubr.bf16.gmra.mrb[0].mxu0 %v3424
        %v3605 = vpop.f32.mrb[0].mxu0
        %v3606 = vadd.f32 0.0, %v3605
        %v3607 = vpop.f32.mrb[0].mxu0
        %v3608 = vpop.f32.mrb[0].mxu0
        %v3609 = vadd.f32 0.0, %v3608
        %v3610 = vpop.f32.mrb[0].mxu0
        %3611 = vmatprep.mubr.bf16.mxu0 0
        %3612 = vmatmul.mubr.bf16.gmra.mrb[0].mxu0 %v3425
        %v3613 = vpop.f32.mrb[0].mxu0
        %v3614 = vadd.f32 0.0, %v3613
        %v3615 = vpop.f32.mrb[0].mxu0
        %v3616 = vpop.f32.mrb[0].mxu0
        %v3617 = vadd.f32 0.0, %v3616
        %v3618 = vpop.f32.mrb[0].mxu0
        %3619 = vdwg.mxu0
        %v3620 = vpack.c.bf16 %v3464, %v3461
        %v3621 = vpack.c.bf16 %v3472, %v3469
        %v3622 = vpack.c.bf16 %v3480, %v3477
        %v3623 = vpack.c.bf16 %v3488, %v3485
        %v3624 = vpack.c.bf16 %v3496, %v3493
        %v3625 = vpack.c.bf16 %v3504, %v3501
        %v3626 = vpack.c.bf16 %v3512, %v3509
        %v3627 = vpack.c.bf16 %v3520, %v3517
        %v3628 = vpack.c.bf16 %v3561, %v3558
        %v3629 = vpack.c.bf16 %v3569, %v3566
        %v3630 = vpack.c.bf16 %v3577, %v3574
        %v3631 = vpack.c.bf16 %v3585, %v3582
        %v3632 = vpack.c.bf16 %v3593, %v3590
        %v3633 = vpack.c.bf16 %v3601, %v3598
        %v3634 = vpack.c.bf16 %v3609, %v3606
        %v3635 = vpack.c.bf16 %v3617, %v3614
        %s3636 = scalar_lea.vmem %s519, 128 [#allocation11]
        %v3637 = vld [vmem:[%s3636] sm:$0xff]
        %v3638 = vld [vmem:[%s3636 + $0x8] sm:$0xff]
        %v3639 = vld [vmem:[%s3636 + $0x10] sm:$0xff]
        %v3640 = vld [vmem:[%s3636 + $0x18] sm:$0xff]
        %v3641 = vld [vmem:[%s3636 + $0x20] sm:$0xff]
        %v3642 = vld [vmem:[%s3636 + $0x28] sm:$0xff]
        %v3643 = vld [vmem:[%s3636 + $0x30] sm:$0xff]
        %v3644 = vld [vmem:[%s3636 + $0x38] sm:$0xff]
        %v3645 = vld [vmem:[%s3636 + $0x40] sm:$0xff]
        %v3646 = vld [vmem:[%s3636 + $0x48] sm:$0xff]
        %v3647 = vld [vmem:[%s3636 + $0x50] sm:$0xff]
        %v3648 = vld [vmem:[%s3636 + $0x58] sm:$0xff]
        %v3649 = vld [vmem:[%s3636 + $0x60] sm:$0xff]
        %v3650 = vld [vmem:[%s3636 + $0x68] sm:$0xff]
        %v3651 = vld [vmem:[%s3636 + $0x70] sm:$0xff]
        %v3652 = vld [vmem:[%s3636 + $0x78] sm:$0xff]
        %v3669 = vunpack.c.l.b16 %v3637
        %v3670 = vunpack.c.h.b16 %v3637
        %v3671 = vunpack.c.l.b16 %v3638
        %v3672 = vunpack.c.h.b16 %v3638
        %v3673 = vunpack.c.l.b16 %v3639
        %v3674 = vunpack.c.h.b16 %v3639
        %v3675 = vunpack.c.l.b16 %v3640
        %v3676 = vunpack.c.h.b16 %v3640
        %v3677 = vunpack.c.l.b16 %v3641
        %v3678 = vunpack.c.h.b16 %v3641
        %v3679 = vunpack.c.l.b16 %v3642
        %v3680 = vunpack.c.h.b16 %v3642
        %v3681 = vunpack.c.l.b16 %v3643
        %v3682 = vunpack.c.h.b16 %v3643
        %v3683 = vunpack.c.l.b16 %v3644
        %v3684 = vunpack.c.h.b16 %v3644
        %v3685 = vunpack.c.l.b16 %v3645
        %v3686 = vunpack.c.h.b16 %v3645
        %v3687 = vunpack.c.l.b16 %v3646
        %v3688 = vunpack.c.h.b16 %v3646
        %v3689 = vunpack.c.l.b16 %v3647
        %v3690 = vunpack.c.h.b16 %v3647
        %v3691 = vunpack.c.l.b16 %v3648
        %v3692 = vunpack.c.h.b16 %v3648
        %v3693 = vunpack.c.l.b16 %v3649
        %v3694 = vunpack.c.h.b16 %v3649
        %v3695 = vunpack.c.l.b16 %v3650
        %v3696 = vunpack.c.h.b16 %v3650
        %v3697 = vunpack.c.l.b16 %v3651
        %v3698 = vunpack.c.h.b16 %v3651
        %v3699 = vunpack.c.l.b16 %v3652
        %v3700 = vunpack.c.h.b16 %v3652
        %v3701 = vpack.c.b16 %v3671, %v3669
        %v3702 = vpack.c.b16 %v3672, %v3670
        %v3703 = vpack.c.b16 %v3675, %v3673
        %v3704 = vpack.c.b16 %v3676, %v3674
        %v3705 = vpack.c.b16 %v3679, %v3677
        %v3706 = vpack.c.b16 %v3680, %v3678
        %v3707 = vpack.c.b16 %v3683, %v3681
        %v3708 = vpack.c.b16 %v3684, %v3682
        %v3709 = vpack.c.b16 %v3687, %v3685
        %v3710 = vpack.c.b16 %v3688, %v3686
        %v3711 = vpack.c.b16 %v3691, %v3689
        %v3712 = vpack.c.b16 %v3692, %v3690
        %v3713 = vpack.c.b16 %v3695, %v3693
        %v3714 = vpack.c.b16 %v3696, %v3694
        %v3715 = vpack.c.b16 %v3699, %v3697
        %v3716 = vpack.c.b16 %v3700, %v3698
        %3733 = vmatprep.subr.bf16.mxu0 %v3702
        %3734 = vmatpush1.bf16.msra.mxu0 %v3701
        %3735 = vmatprep.subr.bf16.mxu0 %v3704
        %3736 = vmatpush1.bf16.msra.mxu0 %v3703
        %3737 = vmatprep.subr.bf16.mxu0 %v3706
        %3738 = vmatpush1.bf16.msra.mxu0 %v3705
        %3739 = vmatprep.subr.bf16.mxu0 %v3708
        %3740 = vmatpush1.bf16.msra.mxu0 %v3707
        %3741 = vmatprep.subr.bf16.mxu0 %v3710
        %3742 = vmatpush1.bf16.msra.mxu0 %v3709
        %3743 = vmatprep.subr.bf16.mxu0 %v3712
        %3744 = vmatpush1.bf16.msra.mxu0 %v3711
        %3745 = vmatprep.subr.bf16.mxu0 %v3714
        %3746 = vmatpush1.bf16.msra.mxu0 %v3713
        %3747 = vmatprep.subr.bf16.mxu0 %v3716
        %3748 = vmatpush1.bf16.msra.mxu0 %v3715
        %3749 = vmatprep.subr.bf16.mxu0 0
        %3750 = vmatpush1.bf16.msra.mxu0 0
        %3751 = vmatprep.subr.bf16.mxu0 0
        %3752 = vmatpush1.bf16.msra.mxu0 0
        %3753 = vmatprep.subr.bf16.mxu0 0
        %3754 = vmatpush1.bf16.msra.mxu0 0
        %3755 = vmatprep.subr.bf16.mxu0 0
        %3756 = vmatpush1.bf16.msra.mxu0 0
        %3757 = vmatprep.subr.bf16.mxu0 0
        %3758 = vmatpush1.bf16.msra.mxu0 0
        %3759 = vmatprep.subr.bf16.mxu0 0
        %3760 = vmatpush1.bf16.msra.mxu0 0
        %3761 = vmatprep.subr.bf16.mxu0 0
        %3762 = vmatpush1.bf16.msra.mxu0 0
        %3763 = vmatprep.subr.bf16.mxu0 0
        %3764 = vmatpush1.bf16.msra.mxu0 0
        %3765 = vmatprep.mubr.bf16.mxu0 0
        %3766 = vmatmul.mubr.bf16.gmra.mrb[0].mxu0 %v3620
        %v3767 = vpop.f32.mrb[0].mxu0
        %v3768 = vadd.f32 0.0, %v3767
        %v3769 = vpop.f32.mrb[0].mxu0
        %v3770 = vadd.f32 0.0, %v3769
        %v3771 = vpop.f32.mrb[0].mxu0
        %v3772 = vadd.f32 0.0, %v3771
        %v3773 = vpop.f32.mrb[0].mxu0
        %v3774 = vadd.f32 0.0, %v3773
        %3775 = vmatprep.mubr.bf16.mxu0 0
        %3776 = vmatmul.mubr.bf16.gmra.mrb[0].mxu0 %v3621
        %v3777 = vpop.f32.mrb[0].mxu0
        %v3778 = vadd.f32 0.0, %v3777
        %v3779 = vpop.f32.mrb[0].mxu0
        %v3780 = vadd.f32 0.0, %v3779
        %v3781 = vpop.f32.mrb[0].mxu0
        %v3782 = vadd.f32 0.0, %v3781
        %v3783 = vpop.f32.mrb[0].mxu0
        %v3784 = vadd.f32 0.0, %v3783
        %3785 = vmatprep.mubr.bf16.mxu0 0
        %3786 = vmatmul.mubr.bf16.gmra.mrb[0].mxu0 %v3622
        %v3787 = vpop.f32.mrb[0].mxu0
        %v3788 = vadd.f32 0.0, %v3787
        %v3789 = vpop.f32.mrb[0].mxu0
        %v3790 = vadd.f32 0.0, %v3789
        %v3791 = vpop.f32.mrb[0].mxu0
        %v3792 = vadd.f32 0.0, %v3791
        %v3793 = vpop.f32.mrb[0].mxu0
        %v3794 = vadd.f32 0.0, %v3793
        %3795 = vmatprep.mubr.bf16.mxu0 0
        %3796 = vmatmul.mubr.bf16.gmra.mrb[0].mxu0 %v3623
        %v3797 = vpop.f32.mrb[0].mxu0
        %v3798 = vadd.f32 0.0, %v3797
        %v3799 = vpop.f32.mrb[0].mxu0
        %v3800 = vadd.f32 0.0, %v3799
        %v3801 = vpop.f32.mrb[0].mxu0
        %v3802 = vadd.f32 0.0, %v3801
        %v3803 = vpop.f32.mrb[0].mxu0
        %v3804 = vadd.f32 0.0, %v3803
        %3805 = vmatprep.mubr.bf16.mxu0 0
        %3806 = vmatmul.mubr.bf16.gmra.mrb[0].mxu0 %v3624
        %v3807 = vpop.f32.mrb[0].mxu0
        %v3808 = vadd.f32 0.0, %v3807
        %v3809 = vpop.f32.mrb[0].mxu0
        %v3810 = vadd.f32 0.0, %v3809
        %v3811 = vpop.f32.mrb[0].mxu0
        %v3812 = vadd.f32 0.0, %v3811
        %v3813 = vpop.f32.mrb[0].mxu0
        %v3814 = vadd.f32 0.0, %v3813
        %3815 = vmatprep.mubr.bf16.mxu0 0
        %3816 = vmatmul.mubr.bf16.gmra.mrb[0].mxu0 %v3625
        %v3817 = vpop.f32.mrb[0].mxu0
        %v3818 = vadd.f32 0.0, %v3817
        %v3819 = vpop.f32.mrb[0].mxu0
        %v3820 = vadd.f32 0.0, %v3819
        %v3821 = vpop.f32.mrb[0].mxu0
        %v3822 = vadd.f32 0.0, %v3821
        %v3823 = vpop.f32.mrb[0].mxu0
        %v3824 = vadd.f32 0.0, %v3823
        %3825 = vmatprep.mubr.bf16.mxu0 0
        %3826 = vmatmul.mubr.bf16.gmra.mrb[0].mxu0 %v3626
        %v3827 = vpop.f32.mrb[0].mxu0
        %v3828 = vadd.f32 0.0, %v3827
        %v3829 = vpop.f32.mrb[0].mxu0
        %v3830 = vadd.f32 0.0, %v3829
        %v3831 = vpop.f32.mrb[0].mxu0
        %v3832 = vadd.f32 0.0, %v3831
        %v3833 = vpop.f32.mrb[0].mxu0
        %v3834 = vadd.f32 0.0, %v3833
        %3835 = vmatprep.mubr.bf16.mxu0 0
        %3836 = vmatmul.mubr.bf16.gmra.mrb[0].mxu0 %v3627
        %v3837 = vpop.f32.mrb[0].mxu0
        %v3838 = vadd.f32 0.0, %v3837
        %v3839 = vpop.f32.mrb[0].mxu0
        %v3840 = vadd.f32 0.0, %v3839
        %v3841 = vpop.f32.mrb[0].mxu0
        %v3842 = vadd.f32 0.0, %v3841
        %v3843 = vpop.f32.mrb[0].mxu0
        %v3844 = vadd.f32 0.0, %v3843
        %3845 = vmatprep.mubr.bf16.mxu0 0
        %3846 = vmatmul.mubr.bf16.gmra.mrb[0].mxu0 %v3628
        %v3847 = vpop.f32.mrb[0].mxu0
        %v3848 = vadd.f32 0.0, %v3847
        %v3849 = vpop.f32.mrb[0].mxu0
        %v3850 = vadd.f32 0.0, %v3849
        %v3851 = vpop.f32.mrb[0].mxu0
        %v3852 = vadd.f32 0.0, %v3851
        %v3853 = vpop.f32.mrb[0].mxu0
        %v3854 = vadd.f32 0.0, %v3853
        %3855 = vmatprep.mubr.bf16.mxu0 0
        %3856 = vmatmul.mubr.bf16.gmra.mrb[0].mxu0 %v3629
        %v3857 = vpop.f32.mrb[0].mxu0
        %v3858 = vadd.f32 0.0, %v3857
        %v3859 = vpop.f32.mrb[0].mxu0
        %v3860 = vadd.f32 0.0, %v3859
        %v3861 = vpop.f32.mrb[0].mxu0
        %v3862 = vadd.f32 0.0, %v3861
        %v3863 = vpop.f32.mrb[0].mxu0
        %v3864 = vadd.f32 0.0, %v3863
        %3865 = vmatprep.mubr.bf16.mxu0 0
        %3866 = vmatmul.mubr.bf16.gmra.mrb[0].mxu0 %v3630
        %v3867 = vpop.f32.mrb[0].mxu0
        %v3868 = vadd.f32 0.0, %v3867
        %v3869 = vpop.f32.mrb[0].mxu0
        %v3870 = vadd.f32 0.0, %v3869
        %v3871 = vpop.f32.mrb[0].mxu0
        %v3872 = vadd.f32 0.0, %v3871
        %v3873 = vpop.f32.mrb[0].mxu0
        %v3874 = vadd.f32 0.0, %v3873
        %3875 = vmatprep.mubr.bf16.mxu0 0
        %3876 = vmatmul.mubr.bf16.gmra.mrb[0].mxu0 %v3631
        %v3877 = vpop.f32.mrb[0].mxu0
        %v3878 = vadd.f32 0.0, %v3877
        %v3879 = vpop.f32.mrb[0].mxu0
        %v3880 = vadd.f32 0.0, %v3879
        %v3881 = vpop.f32.mrb[0].mxu0
        %v3882 = vadd.f32 0.0, %v3881
        %v3883 = vpop.f32.mrb[0].mxu0
        %v3884 = vadd.f32 0.0, %v3883
        %3885 = vmatprep.mubr.bf16.mxu0 0
        %3886 = vmatmul.mubr.bf16.gmra.mrb[0].mxu0 %v3632
        %v3887 = vpop.f32.mrb[0].mxu0
        %v3888 = vadd.f32 0.0, %v3887
        %v3889 = vpop.f32.mrb[0].mxu0
        %v3890 = vadd.f32 0.0, %v3889
        %v3891 = vpop.f32.mrb[0].mxu0
        %v3892 = vadd.f32 0.0, %v3891
        %v3893 = vpop.f32.mrb[0].mxu0
        %v3894 = vadd.f32 0.0, %v3893
        %3895 = vmatprep.mubr.bf16.mxu0 0
        %3896 = vmatmul.mubr.bf16.gmra.mrb[0].mxu0 %v3633
        %v3897 = vpop.f32.mrb[0].mxu0
        %v3898 = vadd.f32 0.0, %v3897
        %v3899 = vpop.f32.mrb[0].mxu0
        %v3900 = vadd.f32 0.0, %v3899
        %v3901 = vpop.f32.mrb[0].mxu0
        %v3902 = vadd.f32 0.0, %v3901
        %v3903 = vpop.f32.mrb[0].mxu0
        %v3904 = vadd.f32 0.0, %v3903
        %3905 = vmatprep.mubr.bf16.mxu0 0
        %3906 = vmatmul.mubr.bf16.gmra.mrb[0].mxu0 %v3634
        %v3907 = vpop.f32.mrb[0].mxu0
        %v3908 = vadd.f32 0.0, %v3907
        %v3909 = vpop.f32.mrb[0].mxu0
        %v3910 = vadd.f32 0.0, %v3909
        %v3911 = vpop.f32.mrb[0].mxu0
        %v3912 = vadd.f32 0.0, %v3911
        %v3913 = vpop.f32.mrb[0].mxu0
        %v3914 = vadd.f32 0.0, %v3913
        %3915 = vmatprep.mubr.bf16.mxu0 0
        %3916 = vmatmul.mubr.bf16.gmra.mrb[0].mxu0 %v3635
        %v3917 = vpop.f32.mrb[0].mxu0
        %v3918 = vadd.f32 0.0, %v3917
        %v3919 = vpop.f32.mrb[0].mxu0
        %v3920 = vadd.f32 0.0, %v3919
        %v3921 = vpop.f32.mrb[0].mxu0
        %v3922 = vadd.f32 0.0, %v3921
        %v3923 = vpop.f32.mrb[0].mxu0
        %v3924 = vadd.f32 0.0, %v3923
        %3925 = vdwg.mxu0
        %v3942 = vunpack.c.l.b16 %v2864
        %v3943 = vunpack.c.h.b16 %v2864
        %v3944 = vunpack.c.l.b16 %v2865
        %v3945 = vunpack.c.h.b16 %v2865
        %v3946 = vunpack.c.l.b16 %v2866
        %v3947 = vunpack.c.h.b16 %v2866
        %v3948 = vunpack.c.l.b16 %v2867
        %v3949 = vunpack.c.h.b16 %v2867
        %v3950 = vunpack.c.l.b16 %v2868
        %v3951 = vunpack.c.h.b16 %v2868
        %v3952 = vunpack.c.l.b16 %v2869
        %v3953 = vunpack.c.h.b16 %v2869
        %v3954 = vunpack.c.l.b16 %v2870
        %v3955 = vunpack.c.h.b16 %v2870
        %v3956 = vunpack.c.l.b16 %v2871
        %v3957 = vunpack.c.h.b16 %v2871
        %v3958 = vunpack.c.l.b16 %v2872
        %v3959 = vunpack.c.h.b16 %v2872
        %v3960 = vunpack.c.l.b16 %v2873
        %v3961 = vunpack.c.h.b16 %v2873
        %v3962 = vunpack.c.l.b16 %v2874
        %v3963 = vunpack.c.h.b16 %v2874
        %v3964 = vunpack.c.l.b16 %v2875
        %v3965 = vunpack.c.h.b16 %v2875
        %v3966 = vunpack.c.l.b16 %v2876
        %v3967 = vunpack.c.h.b16 %v2876
        %v3968 = vunpack.c.l.b16 %v2877
        %v3969 = vunpack.c.h.b16 %v2877
        %v3970 = vunpack.c.l.b16 %v2878
        %v3971 = vunpack.c.h.b16 %v2878
        %v3972 = vunpack.c.l.b16 %v2879
        %v3973 = vunpack.c.h.b16 %v2879
        %v3974 = vpack.c.b16 %v3944, %v3942
        %v3975 = vpack.c.b16 %v3945, %v3943
        %v3976 = vpack.c.b16 %v3948, %v3946
        %v3977 = vpack.c.b16 %v3949, %v3947
        %v3978 = vpack.c.b16 %v3952, %v3950
        %v3979 = vpack.c.b16 %v3953, %v3951
        %v3980 = vpack.c.b16 %v3956, %v3954
        %v3981 = vpack.c.b16 %v3957, %v3955
        %v3982 = vpack.c.b16 %v3960, %v3958
        %v3983 = vpack.c.b16 %v3961, %v3959
        %v3984 = vpack.c.b16 %v3964, %v3962
        %v3985 = vpack.c.b16 %v3965, %v3963
        %v3986 = vpack.c.b16 %v3968, %v3966
        %v3987 = vpack.c.b16 %v3969, %v3967
        %v3988 = vpack.c.b16 %v3972, %v3970
        %v3989 = vpack.c.b16 %v3973, %v3971
        %4006 = vmatprep.subr.bf16.mxu0 %v3975
        %4007 = vmatpush1.bf16.msra.mxu0 %v3974
        %4008 = vmatprep.subr.bf16.mxu0 %v3977
        %4009 = vmatpush1.bf16.msra.mxu0 %v3976
        %4010 = vmatprep.subr.bf16.mxu0 %v3979
        %4011 = vmatpush1.bf16.msra.mxu0 %v3978
        %4012 = vmatprep.subr.bf16.mxu0 %v3981
        %4013 = vmatpush1.bf16.msra.mxu0 %v3980
        %4014 = vmatprep.subr.bf16.mxu0 %v3983
        %4015 = vmatpush1.bf16.msra.mxu0 %v3982
        %4016 = vmatprep.subr.bf16.mxu0 %v3985
        %4017 = vmatpush1.bf16.msra.mxu0 %v3984
        %4018 = vmatprep.subr.bf16.mxu0 %v3987
        %4019 = vmatpush1.bf16.msra.mxu0 %v3986
        %4020 = vmatprep.subr.bf16.mxu0 %v3989
        %4021 = vmatpush1.bf16.msra.mxu0 %v3988
        %4022 = vmatprep.subr.bf16.mxu0 0
        %4023 = vmatpush1.bf16.msra.mxu0 0
        %4024 = vmatprep.subr.bf16.mxu0 0
        %4025 = vmatpush1.bf16.msra.mxu0 0
        %4026 = vmatprep.subr.bf16.mxu0 0
        %4027 = vmatpush1.bf16.msra.mxu0 0
        %4028 = vmatprep.subr.bf16.mxu0 0
        %4029 = vmatpush1.bf16.msra.mxu0 0
        %4030 = vmatprep.subr.bf16.mxu0 0
        %4031 = vmatpush1.bf16.msra.mxu0 0
        %4032 = vmatprep.subr.bf16.mxu0 0
        %4033 = vmatpush1.bf16.msra.mxu0 0
        %4034 = vmatprep.subr.bf16.mxu0 0
        %4035 = vmatpush1.bf16.msra.mxu0 0
        %4036 = vmatprep.subr.bf16.mxu0 0
        %4037 = vmatpush1.bf16.msra.mxu0 0
        %4038 = vmatprep.mubr.bf16.mxu0 0
        %4039 = vmatmul.mubr.bf16.gmra.mrb[0].mxu0 %v2848
        %v4040 = vpop.f32.mrb[0].mxu0
        %v4041 = vadd.f32 %v3768, %v4040
        %v4042 = vpop.f32.mrb[0].mxu0
        %v4043 = vadd.f32 %v3770, %v4042
        %v4044 = vpop.f32.mrb[0].mxu0
        %v4045 = vadd.f32 %v3772, %v4044
        %v4046 = vpop.f32.mrb[0].mxu0
        %v4047 = vadd.f32 %v3774, %v4046
        %4048 = vmatprep.mubr.bf16.mxu0 0
        %4049 = vmatmul.mubr.bf16.gmra.mrb[0].mxu0 %v2849
        %v4050 = vpop.f32.mrb[0].mxu0
        %v4051 = vadd.f32 %v3778, %v4050
        %v4052 = vpop.f32.mrb[0].mxu0
        %v4053 = vadd.f32 %v3780, %v4052
        %v4054 = vpop.f32.mrb[0].mxu0
        %v4055 = vadd.f32 %v3782, %v4054
        %v4056 = vpop.f32.mrb[0].mxu0
        %v4057 = vadd.f32 %v3784, %v4056
        %4058 = vmatprep.mubr.bf16.mxu0 0
        %4059 = vmatmul.mubr.bf16.gmra.mrb[0].mxu0 %v2850
        %v4060 = vpop.f32.mrb[0].mxu0
        %v4061 = vadd.f32 %v3788, %v4060
        %v4062 = vpop.f32.mrb[0].mxu0
        %v4063 = vadd.f32 %v3790, %v4062
        %v4064 = vpop.f32.mrb[0].mxu0
        %v4065 = vadd.f32 %v3792, %v4064
        %v4066 = vpop.f32.mrb[0].mxu0
        %v4067 = vadd.f32 %v3794, %v4066
        %4068 = vmatprep.mubr.bf16.mxu0 0
        %4069 = vmatmul.mubr.bf16.gmra.mrb[0].mxu0 %v2851
        %v4070 = vpop.f32.mrb[0].mxu0
        %v4071 = vadd.f32 %v3798, %v4070
        %v4072 = vpop.f32.mrb[0].mxu0
        %v4073 = vadd.f32 %v3800, %v4072
        %v4074 = vpop.f32.mrb[0].mxu0
        %v4075 = vadd.f32 %v3802, %v4074
        %v4076 = vpop.f32.mrb[0].mxu0
        %v4077 = vadd.f32 %v3804, %v4076
        %4078 = vmatprep.mubr.bf16.mxu0 0
        %4079 = vmatmul.mubr.bf16.gmra.mrb[0].mxu0 %v2852
        %v4080 = vpop.f32.mrb[0].mxu0
        %v4081 = vadd.f32 %v3808, %v4080
        %v4082 = vpop.f32.mrb[0].mxu0
        %v4083 = vadd.f32 %v3810, %v4082
        %v4084 = vpop.f32.mrb[0].mxu0
        %v4085 = vadd.f32 %v3812, %v4084
        %v4086 = vpop.f32.mrb[0].mxu0
        %v4087 = vadd.f32 %v3814, %v4086
        %4088 = vmatprep.mubr.bf16.mxu0 0
        %4089 = vmatmul.mubr.bf16.gmra.mrb[0].mxu0 %v2853
        %v4090 = vpop.f32.mrb[0].mxu0
        %v4091 = vadd.f32 %v3818, %v4090
        %v4092 = vpop.f32.mrb[0].mxu0
        %v4093 = vadd.f32 %v3820, %v4092
        %v4094 = vpop.f32.mrb[0].mxu0
        %v4095 = vadd.f32 %v3822, %v4094
        %v4096 = vpop.f32.mrb[0].mxu0
        %v4097 = vadd.f32 %v3824, %v4096
        %4098 = vmatprep.mubr.bf16.mxu0 0
        %4099 = vmatmul.mubr.bf16.gmra.mrb[0].mxu0 %v2854
        %v4100 = vpop.f32.mrb[0].mxu0
        %v4101 = vadd.f32 %v3828, %v4100
        %v4102 = vpop.f32.mrb[0].mxu0
        %v4103 = vadd.f32 %v3830, %v4102
        %v4104 = vpop.f32.mrb[0].mxu0
        %v4105 = vadd.f32 %v3832, %v4104
        %v4106 = vpop.f32.mrb[0].mxu0
        %v4107 = vadd.f32 %v3834, %v4106
        %4108 = vmatprep.mubr.bf16.mxu0 0
        %4109 = vmatmul.mubr.bf16.gmra.mrb[0].mxu0 %v2855
        %v4110 = vpop.f32.mrb[0].mxu0
        %v4111 = vadd.f32 %v3838, %v4110
        %v4112 = vpop.f32.mrb[0].mxu0
        %v4113 = vadd.f32 %v3840, %v4112
        %v4114 = vpop.f32.mrb[0].mxu0
        %v4115 = vadd.f32 %v3842, %v4114
        %v4116 = vpop.f32.mrb[0].mxu0
        %v4117 = vadd.f32 %v3844, %v4116
        %4118 = vmatprep.mubr.bf16.mxu0 0
        %4119 = vmatmul.mubr.bf16.gmra.mrb[0].mxu0 %v2856
        %v4120 = vpop.f32.mrb[0].mxu0
        %v4121 = vadd.f32 %v3848, %v4120
        %v4122 = vpop.f32.mrb[0].mxu0
        %v4123 = vadd.f32 %v3850, %v4122
        %v4124 = vpop.f32.mrb[0].mxu0
        %v4125 = vadd.f32 %v3852, %v4124
        %v4126 = vpop.f32.mrb[0].mxu0
        %v4127 = vadd.f32 %v3854, %v4126
        %4128 = vmatprep.mubr.bf16.mxu0 0
        %4129 = vmatmul.mubr.bf16.gmra.mrb[0].mxu0 %v2857
        %v4130 = vpop.f32.mrb[0].mxu0
        %v4131 = vadd.f32 %v3858, %v4130
        %v4132 = vpop.f32.mrb[0].mxu0
        %v4133 = vadd.f32 %v3860, %v4132
        %v4134 = vpop.f32.mrb[0].mxu0
        %v4135 = vadd.f32 %v3862, %v4134
        %v4136 = vpop.f32.mrb[0].mxu0
        %v4137 = vadd.f32 %v3864, %v4136
        %4138 = vmatprep.mubr.bf16.mxu0 0
        %4139 = vmatmul.mubr.bf16.gmra.mrb[0].mxu0 %v2858
        %v4140 = vpop.f32.mrb[0].mxu0
        %v4141 = vadd.f32 %v3868, %v4140
        %v4142 = vpop.f32.mrb[0].mxu0
        %v4143 = vadd.f32 %v3870, %v4142
        %v4144 = vpop.f32.mrb[0].mxu0
        %v4145 = vadd.f32 %v3872, %v4144
        %v4146 = vpop.f32.mrb[0].mxu0
        %v4147 = vadd.f32 %v3874, %v4146
        %4148 = vmatprep.mubr.bf16.mxu0 0
        %4149 = vmatmul.mubr.bf16.gmra.mrb[0].mxu0 %v2859
        %v4150 = vpop.f32.mrb[0].mxu0
        %v4151 = vadd.f32 %v3878, %v4150
        %v4152 = vpop.f32.mrb[0].mxu0
        %v4153 = vadd.f32 %v3880, %v4152
        %v4154 = vpop.f32.mrb[0].mxu0
        %v4155 = vadd.f32 %v3882, %v4154
        %v4156 = vpop.f32.mrb[0].mxu0
        %v4157 = vadd.f32 %v3884, %v4156
        %4158 = vmatprep.mubr.bf16.mxu0 0
        %4159 = vmatmul.mubr.bf16.gmra.mrb[0].mxu0 %v2860
        %v4160 = vpop.f32.mrb[0].mxu0
        %v4161 = vadd.f32 %v3888, %v4160
        %v4162 = vpop.f32.mrb[0].mxu0
        %v4163 = vadd.f32 %v3890, %v4162
        %v4164 = vpop.f32.mrb[0].mxu0
        %v4165 = vadd.f32 %v3892, %v4164
        %v4166 = vpop.f32.mrb[0].mxu0
        %v4167 = vadd.f32 %v3894, %v4166
        %4168 = vmatprep.mubr.bf16.mxu0 0
        %4169 = vmatmul.mubr.bf16.gmra.mrb[0].mxu0 %v2861
        %v4170 = vpop.f32.mrb[0].mxu0
        %v4171 = vadd.f32 %v3898, %v4170
        %v4172 = vpop.f32.mrb[0].mxu0
        %v4173 = vadd.f32 %v3900, %v4172
        %v4174 = vpop.f32.mrb[0].mxu0
        %v4175 = vadd.f32 %v3902, %v4174
        %v4176 = vpop.f32.mrb[0].mxu0
        %v4177 = vadd.f32 %v3904, %v4176
        %4178 = vmatprep.mubr.bf16.mxu0 0
        %4179 = vmatmul.mubr.bf16.gmra.mrb[0].mxu0 %v2862
        %v4180 = vpop.f32.mrb[0].mxu0
        %v4181 = vadd.f32 %v3908, %v4180
        %v4182 = vpop.f32.mrb[0].mxu0
        %v4183 = vadd.f32 %v3910, %v4182
        %v4184 = vpop.f32.mrb[0].mxu0
        %v4185 = vadd.f32 %v3912, %v4184
        %v4186 = vpop.f32.mrb[0].mxu0
        %v4187 = vadd.f32 %v3914, %v4186
        %4188 = vmatprep.mubr.bf16.mxu0 0
        %4189 = vmatmul.mubr.bf16.gmra.mrb[0].mxu0 %v2863
        %v4190 = vpop.f32.mrb[0].mxu0
        %v4191 = vadd.f32 %v3918, %v4190
        %v4192 = vpop.f32.mrb[0].mxu0
        %v4193 = vadd.f32 %v3920, %v4192
        %v4194 = vpop.f32.mrb[0].mxu0
        %v4195 = vadd.f32 %v3922, %v4194
        %v4196 = vpop.f32.mrb[0].mxu0
        %v4197 = vadd.f32 %v3924, %v4196
        %4198 = vdwg.mxu0
        %v4199 = vlaneseq
        %v4200 = vshrl.u32 %v4199, 7
        %v4201 = vsub.s32 0, %v4200
        %v4202 = vrot.slane %v929, %v4201
        %v4203 = vlaneseq
        %v4204 = vshrl.u32 %v4203, 7
        %v4205 = vsub.s32 0, %v4204
        %v4206 = vrot.slane %v930, %v4205
        %v4207 = vadd.f32 %v4041, %v4202
        %v4208 = vadd.f32 %v4043, %v4206
        %v4209 = vadd.f32 %v4045, %v4202
        %v4210 = vadd.f32 %v4047, %v4206
        %v4211 = vadd.f32 %v4051, %v4202
        %v4212 = vadd.f32 %v4053, %v4206
        %v4213 = vadd.f32 %v4055, %v4202
        %v4214 = vadd.f32 %v4057, %v4206
        %v4215 = vadd.f32 %v4061, %v4202
        %v4216 = vadd.f32 %v4063, %v4206
        %v4217 = vadd.f32 %v4065, %v4202
        %v4218 = vadd.f32 %v4067, %v4206
        %v4219 = vadd.f32 %v4071, %v4202
        %v4220 = vadd.f32 %v4073, %v4206
        %v4221 = vadd.f32 %v4075, %v4202
        %v4222 = vadd.f32 %v4077, %v4206
        %v4223 = vadd.f32 %v4081, %v4202
        %v4224 = vadd.f32 %v4083, %v4206
        %v4225 = vadd.f32 %v4085, %v4202
        %v4226 = vadd.f32 %v4087, %v4206
        %v4227 = vadd.f32 %v4091, %v4202
        %v4228 = vadd.f32 %v4093, %v4206
        %v4229 = vadd.f32 %v4095, %v4202
        %v4230 = vadd.f32 %v4097, %v4206
        %v4231 = vadd.f32 %v4101, %v4202
        %v4232 = vadd.f32 %v4103, %v4206
        %v4233 = vadd.f32 %v4105, %v4202
        %v4234 = vadd.f32 %v4107, %v4206
        %v4235 = vadd.f32 %v4111, %v4202
        %v4236 = vadd.f32 %v4113, %v4206
        %v4237 = vadd.f32 %v4115, %v4202
        %v4238 = vadd.f32 %v4117, %v4206
        %v4239 = vadd.f32 %v4121, %v4202
        %v4240 = vadd.f32 %v4123, %v4206
        %v4241 = vadd.f32 %v4125, %v4202
        %v4242 = vadd.f32 %v4127, %v4206
        %v4243 = vadd.f32 %v4131, %v4202
        %v4244 = vadd.f32 %v4133, %v4206
        %v4245 = vadd.f32 %v4135, %v4202
        %v4246 = vadd.f32 %v4137, %v4206
        %v4247 = vadd.f32 %v4141, %v4202
        %v4248 = vadd.f32 %v4143, %v4206
        %v4249 = vadd.f32 %v4145, %v4202
        %v4250 = vadd.f32 %v4147, %v4206
        %v4251 = vadd.f32 %v4151, %v4202
        %v4252 = vadd.f32 %v4153, %v4206
        %v4253 = vadd.f32 %v4155, %v4202
        %v4254 = vadd.f32 %v4157, %v4206
        %v4255 = vadd.f32 %v4161, %v4202
        %v4256 = vadd.f32 %v4163, %v4206
        %v4257 = vadd.f32 %v4165, %v4202
        %v4258 = vadd.f32 %v4167, %v4206
        %v4259 = vadd.f32 %v4171, %v4202
        %v4260 = vadd.f32 %v4173, %v4206
        %v4261 = vadd.f32 %v4175, %v4202
        %v4262 = vadd.f32 %v4177, %v4206
        %v4263 = vadd.f32 %v4181, %v4202
        %v4264 = vadd.f32 %v4183, %v4206
        %v4265 = vadd.f32 %v4185, %v4202
        %v4266 = vadd.f32 %v4187, %v4206
        %v4267 = vadd.f32 %v4191, %v4202
        %v4268 = vadd.f32 %v4193, %v4206
        %v4269 = vadd.f32 %v4195, %v4202
        %v4270 = vadd.f32 %v4197, %v4206
        %v4271 = vadd.f32 %v4207, %v833
        %v4272 = vadd.f32 %v4208, %v834
        %v4273 = vadd.f32 %v4209, %v835
        %v4274 = vadd.f32 %v4210, %v836
        %v4275 = vadd.f32 %v4211, %v837
        %v4276 = vadd.f32 %v4212, %v838
        %v4277 = vadd.f32 %v4213, %v839
        %v4278 = vadd.f32 %v4214, %v840
        %v4279 = vadd.f32 %v4215, %v841
        %v4280 = vadd.f32 %v4216, %v842
        %v4281 = vadd.f32 %v4217, %v843
        %v4282 = vadd.f32 %v4218, %v844
        %v4283 = vadd.f32 %v4219, %v845
        %v4284 = vadd.f32 %v4220, %v846
        %v4285 = vadd.f32 %v4221, %v847
        %v4286 = vadd.f32 %v4222, %v848
        %v4287 = vadd.f32 %v4223, %v849
        %v4288 = vadd.f32 %v4224, %v850
        %v4289 = vadd.f32 %v4225, %v851
        %v4290 = vadd.f32 %v4226, %v852
        %v4291 = vadd.f32 %v4227, %v853
        %v4292 = vadd.f32 %v4228, %v854
        %v4293 = vadd.f32 %v4229, %v855
        %v4294 = vadd.f32 %v4230, %v856
        %v4295 = vadd.f32 %v4231, %v857
        %v4296 = vadd.f32 %v4232, %v858
        %v4297 = vadd.f32 %v4233, %v859
        %v4298 = vadd.f32 %v4234, %v860
        %v4299 = vadd.f32 %v4235, %v861
        %v4300 = vadd.f32 %v4236, %v862
        %v4301 = vadd.f32 %v4237, %v863
        %v4302 = vadd.f32 %v4238, %v864
        %v4303 = vadd.f32 %v4239, %v865
        %v4304 = vadd.f32 %v4240, %v866
        %v4305 = vadd.f32 %v4241, %v867
        %v4306 = vadd.f32 %v4242, %v868
        %v4307 = vadd.f32 %v4243, %v869
        %v4308 = vadd.f32 %v4244, %v870
        %v4309 = vadd.f32 %v4245, %v871
        %v4310 = vadd.f32 %v4246, %v872
        %v4311 = vadd.f32 %v4247, %v873
        %v4312 = vadd.f32 %v4248, %v874
        %v4313 = vadd.f32 %v4249, %v875
        %v4314 = vadd.f32 %v4250, %v876
        %v4315 = vadd.f32 %v4251, %v877
        %v4316 = vadd.f32 %v4252, %v878
        %v4317 = vadd.f32 %v4253, %v879
        %v4318 = vadd.f32 %v4254, %v880
        %v4319 = vadd.f32 %v4255, %v881
        %v4320 = vadd.f32 %v4256, %v882
        %v4321 = vadd.f32 %v4257, %v883
        %v4322 = vadd.f32 %v4258, %v884
        %v4323 = vadd.f32 %v4259, %v885
        %v4324 = vadd.f32 %v4260, %v886
        %v4325 = vadd.f32 %v4261, %v887
        %v4326 = vadd.f32 %v4262, %v888
        %v4327 = vadd.f32 %v4263, %v889
        %v4328 = vadd.f32 %v4264, %v890
        %v4329 = vadd.f32 %v4265, %v891
        %v4330 = vadd.f32 %v4266, %v892
        %v4331 = vadd.f32 %v4267, %v893
        %v4332 = vadd.f32 %v4268, %v894
        %v4333 = vadd.f32 %v4269, %v895
        %v4334 = vadd.f32 %v4270, %v896
        %v4335 = vadd.f32 %v4271, %v4272
        %4336 = vadd.xlane.f32.xlu0 %v4335
        %v4337 = vpop.xlane.xlu0 %4336
        %v4338 = vadd.f32 %v4273, %v4274
        %4339 = vadd.xlane.f32.xlu0 %v4338
        %v4340 = vpop.xlane.xlu0 %4339
        %v4341 = vadd.f32 %v4275, %v4276
        %4342 = vadd.xlane.f32.xlu0 %v4341
        %v4343 = vpop.xlane.xlu0 %4342
        %v4344 = vadd.f32 %v4277, %v4278
        %4345 = vadd.xlane.f32.xlu0 %v4344
        %v4346 = vpop.xlane.xlu0 %4345
        %v4347 = vadd.f32 %v4279, %v4280
        %4348 = vadd.xlane.f32.xlu0 %v4347
        %v4349 = vpop.xlane.xlu0 %4348
        %v4350 = vadd.f32 %v4281, %v4282
        %4351 = vadd.xlane.f32.xlu0 %v4350
        %v4352 = vpop.xlane.xlu0 %4351
        %v4353 = vadd.f32 %v4283, %v4284
        %4354 = vadd.xlane.f32.xlu0 %v4353
        %v4355 = vpop.xlane.xlu0 %4354
        %v4356 = vadd.f32 %v4285, %v4286
        %4357 = vadd.xlane.f32.xlu0 %v4356
        %v4358 = vpop.xlane.xlu0 %4357
        %v4359 = vadd.f32 %v4287, %v4288
        %4360 = vadd.xlane.f32.xlu0 %v4359
        %v4361 = vpop.xlane.xlu0 %4360
        %v4362 = vadd.f32 %v4289, %v4290
        %4363 = vadd.xlane.f32.xlu0 %v4362
        %v4364 = vpop.xlane.xlu0 %4363
        %v4365 = vadd.f32 %v4291, %v4292
        %4366 = vadd.xlane.f32.xlu0 %v4365
        %v4367 = vpop.xlane.xlu0 %4366
        %v4368 = vadd.f32 %v4293, %v4294
        %4369 = vadd.xlane.f32.xlu0 %v4368
        %v4370 = vpop.xlane.xlu0 %4369
        %v4371 = vadd.f32 %v4295, %v4296
        %4372 = vadd.xlane.f32.xlu0 %v4371
        %v4373 = vpop.xlane.xlu0 %4372
        %v4374 = vadd.f32 %v4297, %v4298
        %4375 = vadd.xlane.f32.xlu0 %v4374
        %v4376 = vpop.xlane.xlu0 %4375
        %v4377 = vadd.f32 %v4299, %v4300
        %4378 = vadd.xlane.f32.xlu0 %v4377
        %v4379 = vpop.xlane.xlu0 %4378
        %v4380 = vadd.f32 %v4301, %v4302
        %4381 = vadd.xlane.f32.xlu0 %v4380
        %v4382 = vpop.xlane.xlu0 %4381
        %v4383 = vadd.f32 %v4303, %v4304
        %4384 = vadd.xlane.f32.xlu0 %v4383
        %v4385 = vpop.xlane.xlu0 %4384
        %v4386 = vadd.f32 %v4305, %v4306
        %4387 = vadd.xlane.f32.xlu0 %v4386
        %v4388 = vpop.xlane.xlu0 %4387
        %v4389 = vadd.f32 %v4307, %v4308
        %4390 = vadd.xlane.f32.xlu0 %v4389
        %v4391 = vpop.xlane.xlu0 %4390
        %v4392 = vadd.f32 %v4309, %v4310
        %4393 = vadd.xlane.f32.xlu0 %v4392
        %v4394 = vpop.xlane.xlu0 %4393
        %v4395 = vadd.f32 %v4311, %v4312
        %4396 = vadd.xlane.f32.xlu0 %v4395
        %v4397 = vpop.xlane.xlu0 %4396
        %v4398 = vadd.f32 %v4313, %v4314
        %4399 = vadd.xlane.f32.xlu0 %v4398
        %v4400 = vpop.xlane.xlu0 %4399
        %v4401 = vadd.f32 %v4315, %v4316
        %4402 = vadd.xlane.f32.xlu0 %v4401
        %v4403 = vpop.xlane.xlu0 %4402
        %v4404 = vadd.f32 %v4317, %v4318
        %4405 = vadd.xlane.f32.xlu0 %v4404
        %v4406 = vpop.xlane.xlu0 %4405
        %v4407 = vadd.f32 %v4319, %v4320
        %4408 = vadd.xlane.f32.xlu0 %v4407
        %v4409 = vpop.xlane.xlu0 %4408
        %v4410 = vadd.f32 %v4321, %v4322
        %4411 = vadd.xlane.f32.xlu0 %v4410
        %v4412 = vpop.xlane.xlu0 %4411
        %v4413 = vadd.f32 %v4323, %v4324
        %4414 = vadd.xlane.f32.xlu0 %v4413
        %v4415 = vpop.xlane.xlu0 %4414
        %v4416 = vadd.f32 %v4325, %v4326
        %4417 = vadd.xlane.f32.xlu0 %v4416
        %v4418 = vpop.xlane.xlu0 %4417
        %v4419 = vadd.f32 %v4327, %v4328
        %4420 = vadd.xlane.f32.xlu0 %v4419
        %v4421 = vpop.xlane.xlu0 %4420
        %v4422 = vadd.f32 %v4329, %v4330
        %4423 = vadd.xlane.f32.xlu0 %v4422
        %v4424 = vpop.xlane.xlu0 %4423
        %v4425 = vadd.f32 %v4331, %v4332
        %4426 = vadd.xlane.f32.xlu0 %v4425
        %v4427 = vpop.xlane.xlu0 %4426
        %v4428 = vadd.f32 %v4333, %v4334
        %4429 = vadd.xlane.f32.xlu0 %v4428
        %v4430 = vpop.xlane.xlu0 %4429
        %v4431 = vrcp.pop 256.0
        %v4432 = vmul.f32 %v4337, %v4431
        %v4433 = vmul.f32 %v4340, %v4431
        %v4434 = vmul.f32 %v4343, %v4431
        %v4435 = vmul.f32 %v4346, %v4431
        %v4436 = vmul.f32 %v4349, %v4431
        %v4437 = vmul.f32 %v4352, %v4431
        %v4438 = vmul.f32 %v4355, %v4431
        %v4439 = vmul.f32 %v4358, %v4431
        %v4440 = vmul.f32 %v4361, %v4431
        %v4441 = vmul.f32 %v4364, %v4431
        %v4442 = vmul.f32 %v4367, %v4431
        %v4443 = vmul.f32 %v4370, %v4431
        %v4444 = vmul.f32 %v4373, %v4431
        %v4445 = vmul.f32 %v4376, %v4431
        %v4446 = vmul.f32 %v4379, %v4431
        %v4447 = vmul.f32 %v4382, %v4431
        %v4448 = vmul.f32 %v4385, %v4431
        %v4449 = vmul.f32 %v4388, %v4431
        %v4450 = vmul.f32 %v4391, %v4431
        %v4451 = vmul.f32 %v4394, %v4431
        %v4452 = vmul.f32 %v4397, %v4431
        %v4453 = vmul.f32 %v4400, %v4431
        %v4454 = vmul.f32 %v4403, %v4431
        %v4455 = vmul.f32 %v4406, %v4431
        %v4456 = vmul.f32 %v4409, %v4431
        %v4457 = vmul.f32 %v4412, %v4431
        %v4458 = vmul.f32 %v4415, %v4431
        %v4459 = vmul.f32 %v4418, %v4431
        %v4460 = vmul.f32 %v4421, %v4431
        %v4461 = vmul.f32 %v4424, %v4431
        %v4462 = vmul.f32 %v4427, %v4431
        %v4463 = vmul.f32 %v4430, %v4431
        %v4464 = vsub.f32 %v4271, %v4432
        %v4465 = vsub.f32 %v4272, %v4432
        %v4466 = vsub.f32 %v4273, %v4433
        %v4467 = vsub.f32 %v4274, %v4433
        %v4468 = vsub.f32 %v4275, %v4434
        %v4469 = vsub.f32 %v4276, %v4434
        %v4470 = vsub.f32 %v4277, %v4435
        %v4471 = vsub.f32 %v4278, %v4435
        %v4472 = vsub.f32 %v4279, %v4436
        %v4473 = vsub.f32 %v4280, %v4436
        %v4474 = vsub.f32 %v4281, %v4437
        %v4475 = vsub.f32 %v4282, %v4437
        %v4476 = vsub.f32 %v4283, %v4438
        %v4477 = vsub.f32 %v4284, %v4438
        %v4478 = vsub.f32 %v4285, %v4439
        %v4479 = vsub.f32 %v4286, %v4439
        %v4480 = vsub.f32 %v4287, %v4440
        %v4481 = vsub.f32 %v4288, %v4440
        %v4482 = vsub.f32 %v4289, %v4441
        %v4483 = vsub.f32 %v4290, %v4441
        %v4484 = vsub.f32 %v4291, %v4442
        %v4485 = vsub.f32 %v4292, %v4442
        %v4486 = vsub.f32 %v4293, %v4443
        %v4487 = vsub.f32 %v4294, %v4443
        %v4488 = vsub.f32 %v4295, %v4444
        %v4489 = vsub.f32 %v4296, %v4444
        %v4490 = vsub.f32 %v4297, %v4445
        %v4491 = vsub.f32 %v4298, %v4445
        %v4492 = vsub.f32 %v4299, %v4446
        %v4493 = vsub.f32 %v4300, %v4446
        %v4494 = vsub.f32 %v4301, %v4447
        %v4495 = vsub.f32 %v4302, %v4447
        %v4496 = vsub.f32 %v4303, %v4448
        %v4497 = vsub.f32 %v4304, %v4448
        %v4498 = vsub.f32 %v4305, %v4449
        %v4499 = vsub.f32 %v4306, %v4449
        %v4500 = vsub.f32 %v4307, %v4450
        %v4501 = vsub.f32 %v4308, %v4450
        %v4502 = vsub.f32 %v4309, %v4451
        %v4503 = vsub.f32 %v4310, %v4451
        %v4504 = vsub.f32 %v4311, %v4452
        %v4505 = vsub.f32 %v4312, %v4452
        %v4506 = vsub.f32 %v4313, %v4453
        %v4507 = vsub.f32 %v4314, %v4453
        %v4508 = vsub.f32 %v4315, %v4454
        %v4509 = vsub.f32 %v4316, %v4454
        %v4510 = vsub.f32 %v4317, %v4455
        %v4511 = vsub.f32 %v4318, %v4455
        %v4512 = vsub.f32 %v4319, %v4456
        %v4513 = vsub.f32 %v4320, %v4456
        %v4514 = vsub.f32 %v4321, %v4457
        %v4515 = vsub.f32 %v4322, %v4457
        %v4516 = vsub.f32 %v4323, %v4458
        %v4517 = vsub.f32 %v4324, %v4458
        %v4518 = vsub.f32 %v4325, %v4459
        %v4519 = vsub.f32 %v4326, %v4459
        %v4520 = vsub.f32 %v4327, %v4460
        %v4521 = vsub.f32 %v4328, %v4460
        %v4522 = vsub.f32 %v4329, %v4461
        %v4523 = vsub.f32 %v4330, %v4461
        %v4524 = vsub.f32 %v4331, %v4462
        %v4525 = vsub.f32 %v4332, %v4462
        %v4526 = vsub.f32 %v4333, %v4463
        %v4527 = vsub.f32 %v4334, %v4463
        %v4528 = vmul.f32 %v4464, %v4464
        %v4529 = vmul.f32 %v4465, %v4465
        %v4530 = vmul.f32 %v4466, %v4466
        %v4531 = vmul.f32 %v4467, %v4467
        %v4532 = vmul.f32 %v4468, %v4468
        %v4533 = vmul.f32 %v4469, %v4469
        %v4534 = vmul.f32 %v4470, %v4470
        %v4535 = vmul.f32 %v4471, %v4471
        %v4536 = vmul.f32 %v4472, %v4472
        %v4537 = vmul.f32 %v4473, %v4473
        %v4538 = vmul.f32 %v4474, %v4474
        %v4539 = vmul.f32 %v4475, %v4475
        %v4540 = vmul.f32 %v4476, %v4476
        %v4541 = vmul.f32 %v4477, %v4477
        %v4542 = vmul.f32 %v4478, %v4478
        %v4543 = vmul.f32 %v4479, %v4479
        %v4544 = vmul.f32 %v4480, %v4480
        %v4545 = vmul.f32 %v4481, %v4481
        %v4546 = vmul.f32 %v4482, %v4482
        %v4547 = vmul.f32 %v4483, %v4483
        %v4548 = vmul.f32 %v4484, %v4484
        %v4549 = vmul.f32 %v4485, %v4485
        %v4550 = vmul.f32 %v4486, %v4486
        %v4551 = vmul.f32 %v4487, %v4487
        %v4552 = vmul.f32 %v4488, %v4488
        %v4553 = vmul.f32 %v4489, %v4489
        %v4554 = vmul.f32 %v4490, %v4490
        %v4555 = vmul.f32 %v4491, %v4491
        %v4556 = vmul.f32 %v4492, %v4492
        %v4557 = vmul.f32 %v4493, %v4493
        %v4558 = vmul.f32 %v4494, %v4494
        %v4559 = vmul.f32 %v4495, %v4495
        %v4560 = vmul.f32 %v4496, %v4496
        %v4561 = vmul.f32 %v4497, %v4497
        %v4562 = vmul.f32 %v4498, %v4498
        %v4563 = vmul.f32 %v4499, %v4499
        %v4564 = vmul.f32 %v4500, %v4500
        %v4565 = vmul.f32 %v4501, %v4501
        %v4566 = vmul.f32 %v4502, %v4502
        %v4567 = vmul.f32 %v4503, %v4503
        %v4568 = vmul.f32 %v4504, %v4504
        %v4569 = vmul.f32 %v4505, %v4505
        %v4570 = vmul.f32 %v4506, %v4506
        %v4571 = vmul.f32 %v4507, %v4507
        %v4572 = vmul.f32 %v4508, %v4508
        %v4573 = vmul.f32 %v4509, %v4509
        %v4574 = vmul.f32 %v4510, %v4510
        %v4575 = vmul.f32 %v4511, %v4511
        %v4576 = vmul.f32 %v4512, %v4512
        %v4577 = vmul.f32 %v4513, %v4513
        %v4578 = vmul.f32 %v4514, %v4514
        %v4579 = vmul.f32 %v4515, %v4515
        %v4580 = vmul.f32 %v4516, %v4516
        %v4581 = vmul.f32 %v4517, %v4517
        %v4582 = vmul.f32 %v4518, %v4518
        %v4583 = vmul.f32 %v4519, %v4519
        %v4584 = vmul.f32 %v4520, %v4520
        %v4585 = vmul.f32 %v4521, %v4521
        %v4586 = vmul.f32 %v4522, %v4522
        %v4587 = vmul.f32 %v4523, %v4523
        %v4588 = vmul.f32 %v4524, %v4524
        %v4589 = vmul.f32 %v4525, %v4525
        %v4590 = vmul.f32 %v4526, %v4526
        %v4591 = vmul.f32 %v4527, %v4527
        %v4592 = vadd.f32 %v4528, %v4529
        %4593 = vadd.xlane.f32.xlu0 %v4592
        %v4594 = vpop.xlane.xlu0 %4593
        %v4595 = vadd.f32 %v4530, %v4531
        %4596 = vadd.xlane.f32.xlu0 %v4595
        %v4597 = vpop.xlane.xlu0 %4596
        %v4598 = vadd.f32 %v4532, %v4533
        %4599 = vadd.xlane.f32.xlu0 %v4598
        %v4600 = vpop.xlane.xlu0 %4599
        %v4601 = vadd.f32 %v4534, %v4535
        %4602 = vadd.xlane.f32.xlu0 %v4601
        %v4603 = vpop.xlane.xlu0 %4602
        %v4604 = vadd.f32 %v4536, %v4537
        %4605 = vadd.xlane.f32.xlu0 %v4604
        %v4606 = vpop.xlane.xlu0 %4605
        %v4607 = vadd.f32 %v4538, %v4539
        %4608 = vadd.xlane.f32.xlu0 %v4607
        %v4609 = vpop.xlane.xlu0 %4608
        %v4610 = vadd.f32 %v4540, %v4541
        %4611 = vadd.xlane.f32.xlu0 %v4610
        %v4612 = vpop.xlane.xlu0 %4611
        %v4613 = vadd.f32 %v4542, %v4543
        %4614 = vadd.xlane.f32.xlu0 %v4613
        %v4615 = vpop.xlane.xlu0 %4614
        %v4616 = vadd.f32 %v4544, %v4545
        %4617 = vadd.xlane.f32.xlu0 %v4616
        %v4618 = vpop.xlane.xlu0 %4617
        %v4619 = vadd.f32 %v4546, %v4547
        %4620 = vadd.xlane.f32.xlu0 %v4619
        %v4621 = vpop.xlane.xlu0 %4620
        %v4622 = vadd.f32 %v4548, %v4549
        %4623 = vadd.xlane.f32.xlu0 %v4622
        %v4624 = vpop.xlane.xlu0 %4623
        %v4625 = vadd.f32 %v4550, %v4551
        %4626 = vadd.xlane.f32.xlu0 %v4625
        %v4627 = vpop.xlane.xlu0 %4626
        %v4628 = vadd.f32 %v4552, %v4553
        %4629 = vadd.xlane.f32.xlu0 %v4628
        %v4630 = vpop.xlane.xlu0 %4629
        %v4631 = vadd.f32 %v4554, %v4555
        %4632 = vadd.xlane.f32.xlu0 %v4631
        %v4633 = vpop.xlane.xlu0 %4632
        %v4634 = vadd.f32 %v4556, %v4557
        %4635 = vadd.xlane.f32.xlu0 %v4634
        %v4636 = vpop.xlane.xlu0 %4635
        %v4637 = vadd.f32 %v4558, %v4559
        %4638 = vadd.xlane.f32.xlu0 %v4637
        %v4639 = vpop.xlane.xlu0 %4638
        %v4640 = vadd.f32 %v4560, %v4561
        %4641 = vadd.xlane.f32.xlu0 %v4640
        %v4642 = vpop.xlane.xlu0 %4641
        %v4643 = vadd.f32 %v4562, %v4563
        %4644 = vadd.xlane.f32.xlu0 %v4643
        %v4645 = vpop.xlane.xlu0 %4644
        %v4646 = vadd.f32 %v4564, %v4565
        %4647 = vadd.xlane.f32.xlu0 %v4646
        %v4648 = vpop.xlane.xlu0 %4647
        %v4649 = vadd.f32 %v4566, %v4567
        %4650 = vadd.xlane.f32.xlu0 %v4649
        %v4651 = vpop.xlane.xlu0 %4650
        %v4652 = vadd.f32 %v4568, %v4569
        %4653 = vadd.xlane.f32.xlu0 %v4652
        %v4654 = vpop.xlane.xlu0 %4653
        %v4655 = vadd.f32 %v4570, %v4571
        %4656 = vadd.xlane.f32.xlu0 %v4655
        %v4657 = vpop.xlane.xlu0 %4656
        %v4658 = vadd.f32 %v4572, %v4573
        %4659 = vadd.xlane.f32.xlu0 %v4658
        %v4660 = vpop.xlane.xlu0 %4659
        %v4661 = vadd.f32 %v4574, %v4575
        %4662 = vadd.xlane.f32.xlu0 %v4661
        %v4663 = vpop.xlane.xlu0 %4662
        %v4664 = vadd.f32 %v4576, %v4577
        %4665 = vadd.xlane.f32.xlu0 %v4664
        %v4666 = vpop.xlane.xlu0 %4665
        %v4667 = vadd.f32 %v4578, %v4579
        %4668 = vadd.xlane.f32.xlu0 %v4667
        %v4669 = vpop.xlane.xlu0 %4668
        %v4670 = vadd.f32 %v4580, %v4581
        %4671 = vadd.xlane.f32.xlu0 %v4670
        %v4672 = vpop.xlane.xlu0 %4671
        %v4673 = vadd.f32 %v4582, %v4583
        %4674 = vadd.xlane.f32.xlu0 %v4673
        %v4675 = vpop.xlane.xlu0 %4674
        %v4676 = vadd.f32 %v4584, %v4585
        %4677 = vadd.xlane.f32.xlu0 %v4676
        %v4678 = vpop.xlane.xlu0 %4677
        %v4679 = vadd.f32 %v4586, %v4587
        %4680 = vadd.xlane.f32.xlu0 %v4679
        %v4681 = vpop.xlane.xlu0 %4680
        %v4682 = vadd.f32 %v4588, %v4589
        %4683 = vadd.xlane.f32.xlu0 %v4682
        %v4684 = vpop.xlane.xlu0 %4683
        %v4685 = vadd.f32 %v4590, %v4591
        %4686 = vadd.xlane.f32.xlu0 %v4685
        %v4687 = vpop.xlane.xlu0 %4686
        %v4688 = vmul.f32 %v4594, %v4431
        %v4689 = vmul.f32 %v4597, %v4431
        %v4690 = vmul.f32 %v4600, %v4431
        %v4691 = vmul.f32 %v4603, %v4431
        %v4692 = vmul.f32 %v4606, %v4431
        %v4693 = vmul.f32 %v4609, %v4431
        %v4694 = vmul.f32 %v4612, %v4431
        %v4695 = vmul.f32 %v4615, %v4431
        %v4696 = vmul.f32 %v4618, %v4431
        %v4697 = vmul.f32 %v4621, %v4431
        %v4698 = vmul.f32 %v4624, %v4431
        %v4699 = vmul.f32 %v4627, %v4431
        %v4700 = vmul.f32 %v4630, %v4431
        %v4701 = vmul.f32 %v4633, %v4431
        %v4702 = vmul.f32 %v4636, %v4431
        %v4703 = vmul.f32 %v4639, %v4431
        %v4704 = vmul.f32 %v4642, %v4431
        %v4705 = vmul.f32 %v4645, %v4431
        %v4706 = vmul.f32 %v4648, %v4431
        %v4707 = vmul.f32 %v4651, %v4431
        %v4708 = vmul.f32 %v4654, %v4431
        %v4709 = vmul.f32 %v4657, %v4431
        %v4710 = vmul.f32 %v4660, %v4431
        %v4711 = vmul.f32 %v4663, %v4431
        %v4712 = vmul.f32 %v4666, %v4431
        %v4713 = vmul.f32 %v4669, %v4431
        %v4714 = vmul.f32 %v4672, %v4431
        %v4715 = vmul.f32 %v4675, %v4431
        %v4716 = vmul.f32 %v4678, %v4431
        %v4717 = vmul.f32 %v4681, %v4431
        %v4718 = vmul.f32 %v4684, %v4431
        %v4719 = vmul.f32 %v4687, %v4431
        %v4720 = vadd.f32 %v4688, 1e-05
        %v4721 = vadd.f32 %v4689, 1e-05
        %v4722 = vadd.f32 %v4690, 1e-05
        %v4723 = vadd.f32 %v4691, 1e-05
        %v4724 = vadd.f32 %v4692, 1e-05
        %v4725 = vadd.f32 %v4693, 1e-05
        %v4726 = vadd.f32 %v4694, 1e-05
        %v4727 = vadd.f32 %v4695, 1e-05
        %v4728 = vadd.f32 %v4696, 1e-05
        %v4729 = vadd.f32 %v4697, 1e-05
        %v4730 = vadd.f32 %v4698, 1e-05
        %v4731 = vadd.f32 %v4699, 1e-05
        %v4732 = vadd.f32 %v4700, 1e-05
        %v4733 = vadd.f32 %v4701, 1e-05
        %v4734 = vadd.f32 %v4702, 1e-05
        %v4735 = vadd.f32 %v4703, 1e-05
        %v4736 = vadd.f32 %v4704, 1e-05
        %v4737 = vadd.f32 %v4705, 1e-05
        %v4738 = vadd.f32 %v4706, 1e-05
        %v4739 = vadd.f32 %v4707, 1e-05
        %v4740 = vadd.f32 %v4708, 1e-05
        %v4741 = vadd.f32 %v4709, 1e-05
        %v4742 = vadd.f32 %v4710, 1e-05
        %v4743 = vadd.f32 %v4711, 1e-05
        %v4744 = vadd.f32 %v4712, 1e-05
        %v4745 = vadd.f32 %v4713, 1e-05
        %v4746 = vadd.f32 %v4714, 1e-05
        %v4747 = vadd.f32 %v4715, 1e-05
        %v4748 = vadd.f32 %v4716, 1e-05
        %v4749 = vadd.f32 %v4717, 1e-05
        %v4750 = vadd.f32 %v4718, 1e-05
        %v4751 = vadd.f32 %v4719, 1e-05
        %v4752 = vrsqrt.pop %v4720
        %v4753 = vrsqrt.pop %v4721
        %v4754 = vrsqrt.pop %v4722
        %v4755 = vrsqrt.pop %v4723
        %v4756 = vrsqrt.pop %v4724
        %v4757 = vrsqrt.pop %v4725
        %v4758 = vrsqrt.pop %v4726
        %v4759 = vrsqrt.pop %v4727
        %v4760 = vrsqrt.pop %v4728
        %v4761 = vrsqrt.pop %v4729
        %v4762 = vrsqrt.pop %v4730
        %v4763 = vrsqrt.pop %v4731
        %v4764 = vrsqrt.pop %v4732
        %v4765 = vrsqrt.pop %v4733
        %v4766 = vrsqrt.pop %v4734
        %v4767 = vrsqrt.pop %v4735
        %v4768 = vrsqrt.pop %v4736
        %v4769 = vrsqrt.pop %v4737
        %v4770 = vrsqrt.pop %v4738
        %v4771 = vrsqrt.pop %v4739
        %v4772 = vrsqrt.pop %v4740
        %v4773 = vrsqrt.pop %v4741
        %v4774 = vrsqrt.pop %v4742
        %v4775 = vrsqrt.pop %v4743
        %v4776 = vrsqrt.pop %v4744
        %v4777 = vrsqrt.pop %v4745
        %v4778 = vrsqrt.pop %v4746
        %v4779 = vrsqrt.pop %v4747
        %v4780 = vrsqrt.pop %v4748
        %v4781 = vrsqrt.pop %v4749
        %v4782 = vrsqrt.pop %v4750
        %v4783 = vrsqrt.pop %v4751
        %v4784 = vmul.f32 %v4464, %v4752
        %v4785 = vmul.f32 %v4465, %v4752
        %v4786 = vmul.f32 %v4466, %v4753
        %v4787 = vmul.f32 %v4467, %v4753
        %v4788 = vmul.f32 %v4468, %v4754
        %v4789 = vmul.f32 %v4469, %v4754
        %v4790 = vmul.f32 %v4470, %v4755
        %v4791 = vmul.f32 %v4471, %v4755
        %v4792 = vmul.f32 %v4472, %v4756
        %v4793 = vmul.f32 %v4473, %v4756
        %v4794 = vmul.f32 %v4474, %v4757
        %v4795 = vmul.f32 %v4475, %v4757
        %v4796 = vmul.f32 %v4476, %v4758
        %v4797 = vmul.f32 %v4477, %v4758
        %v4798 = vmul.f32 %v4478, %v4759
        %v4799 = vmul.f32 %v4479, %v4759
        %v4800 = vmul.f32 %v4480, %v4760
        %v4801 = vmul.f32 %v4481, %v4760
        %v4802 = vmul.f32 %v4482, %v4761
        %v4803 = vmul.f32 %v4483, %v4761
        %v4804 = vmul.f32 %v4484, %v4762
        %v4805 = vmul.f32 %v4485, %v4762
        %v4806 = vmul.f32 %v4486, %v4763
        %v4807 = vmul.f32 %v4487, %v4763
        %v4808 = vmul.f32 %v4488, %v4764
        %v4809 = vmul.f32 %v4489, %v4764
        %v4810 = vmul.f32 %v4490, %v4765
        %v4811 = vmul.f32 %v4491, %v4765
        %v4812 = vmul.f32 %v4492, %v4766
        %v4813 = vmul.f32 %v4493, %v4766
        %v4814 = vmul.f32 %v4494, %v4767
        %v4815 = vmul.f32 %v4495, %v4767
        %v4816 = vmul.f32 %v4496, %v4768
        %v4817 = vmul.f32 %v4497, %v4768
        %v4818 = vmul.f32 %v4498, %v4769
        %v4819 = vmul.f32 %v4499, %v4769
        %v4820 = vmul.f32 %v4500, %v4770
        %v4821 = vmul.f32 %v4501, %v4770
        %v4822 = vmul.f32 %v4502, %v4771
        %v4823 = vmul.f32 %v4503, %v4771
        %v4824 = vmul.f32 %v4504, %v4772
        %v4825 = vmul.f32 %v4505, %v4772
        %v4826 = vmul.f32 %v4506, %v4773
        %v4827 = vmul.f32 %v4507, %v4773
        %v4828 = vmul.f32 %v4508, %v4774
        %v4829 = vmul.f32 %v4509, %v4774
        %v4830 = vmul.f32 %v4510, %v4775
        %v4831 = vmul.f32 %v4511, %v4775
        %v4832 = vmul.f32 %v4512, %v4776
        %v4833 = vmul.f32 %v4513, %v4776
        %v4834 = vmul.f32 %v4514, %v4777
        %v4835 = vmul.f32 %v4515, %v4777
        %v4836 = vmul.f32 %v4516, %v4778
        %v4837 = vmul.f32 %v4517, %v4778
        %v4838 = vmul.f32 %v4518, %v4779
        %v4839 = vmul.f32 %v4519, %v4779
        %v4840 = vmul.f32 %v4520, %v4780
        %v4841 = vmul.f32 %v4521, %v4780
        %v4842 = vmul.f32 %v4522, %v4781
        %v4843 = vmul.f32 %v4523, %v4781
        %v4844 = vmul.f32 %v4524, %v4782
        %v4845 = vmul.f32 %v4525, %v4782
        %v4846 = vmul.f32 %v4526, %v4783
        %v4847 = vmul.f32 %v4527, %v4783
        %v4848 = vlaneseq
        %v4849 = vshrl.u32 %v4848, 7
        %v4850 = vsub.s32 1, %v4849
        %v4851 = vrot.slane %v929, %v4850
        %v4852 = vlaneseq
        %v4853 = vshrl.u32 %v4852, 7
        %v4854 = vsub.s32 1, %v4853
        %v4855 = vrot.slane %v930, %v4854
        %v4856 = vmul.f32 %v4784, %v4851
        %v4857 = vmul.f32 %v4785, %v4855
        %v4858 = vmul.f32 %v4786, %v4851
        %v4859 = vmul.f32 %v4787, %v4855
        %v4860 = vmul.f32 %v4788, %v4851
        %v4861 = vmul.f32 %v4789, %v4855
        %v4862 = vmul.f32 %v4790, %v4851
        %v4863 = vmul.f32 %v4791, %v4855
        %v4864 = vmul.f32 %v4792, %v4851
        %v4865 = vmul.f32 %v4793, %v4855
        %v4866 = vmul.f32 %v4794, %v4851
        %v4867 = vmul.f32 %v4795, %v4855
        %v4868 = vmul.f32 %v4796, %v4851
        %v4869 = vmul.f32 %v4797, %v4855
        %v4870 = vmul.f32 %v4798, %v4851
        %v4871 = vmul.f32 %v4799, %v4855
        %v4872 = vmul.f32 %v4800, %v4851
        %v4873 = vmul.f32 %v4801, %v4855
        %v4874 = vmul.f32 %v4802, %v4851
        %v4875 = vmul.f32 %v4803, %v4855
        %v4876 = vmul.f32 %v4804, %v4851
        %v4877 = vmul.f32 %v4805, %v4855
        %v4878 = vmul.f32 %v4806, %v4851
        %v4879 = vmul.f32 %v4807, %v4855
        %v4880 = vmul.f32 %v4808, %v4851
        %v4881 = vmul.f32 %v4809, %v4855
        %v4882 = vmul.f32 %v4810, %v4851
        %v4883 = vmul.f32 %v4811, %v4855
        %v4884 = vmul.f32 %v4812, %v4851
        %v4885 = vmul.f32 %v4813, %v4855
        %v4886 = vmul.f32 %v4814, %v4851
        %v4887 = vmul.f32 %v4815, %v4855
        %v4888 = vmul.f32 %v4816, %v4851
        %v4889 = vmul.f32 %v4817, %v4855
        %v4890 = vmul.f32 %v4818, %v4851
        %v4891 = vmul.f32 %v4819, %v4855
        %v4892 = vmul.f32 %v4820, %v4851
        %v4893 = vmul.f32 %v4821, %v4855
        %v4894 = vmul.f32 %v4822, %v4851
        %v4895 = vmul.f32 %v4823, %v4855
        %v4896 = vmul.f32 %v4824, %v4851
        %v4897 = vmul.f32 %v4825, %v4855
        %v4898 = vmul.f32 %v4826, %v4851
        %v4899 = vmul.f32 %v4827, %v4855
        %v4900 = vmul.f32 %v4828, %v4851
        %v4901 = vmul.f32 %v4829, %v4855
        %v4902 = vmul.f32 %v4830, %v4851
        %v4903 = vmul.f32 %v4831, %v4855
        %v4904 = vmul.f32 %v4832, %v4851
        %v4905 = vmul.f32 %v4833, %v4855
        %v4906 = vmul.f32 %v4834, %v4851
        %v4907 = vmul.f32 %v4835, %v4855
        %v4908 = vmul.f32 %v4836, %v4851
        %v4909 = vmul.f32 %v4837, %v4855
        %v4910 = vmul.f32 %v4838, %v4851
        %v4911 = vmul.f32 %v4839, %v4855
        %v4912 = vmul.f32 %v4840, %v4851
        %v4913 = vmul.f32 %v4841, %v4855
        %v4914 = vmul.f32 %v4842, %v4851
        %v4915 = vmul.f32 %v4843, %v4855
        %v4916 = vmul.f32 %v4844, %v4851
        %v4917 = vmul.f32 %v4845, %v4855
        %v4918 = vmul.f32 %v4846, %v4851
        %v4919 = vmul.f32 %v4847, %v4855
        %v4920 = vlaneseq
        %v4921 = vshrl.u32 %v4920, 7
        %v4922 = vsub.s32 2, %v4921
        %v4923 = vrot.slane %v929, %v4922
        %v4924 = vlaneseq
        %v4925 = vshrl.u32 %v4924, 7
        %v4926 = vsub.s32 2, %v4925
        %v4927 = vrot.slane %v930, %v4926
        %v4928 = vadd.f32 %v4856, %v4923
        %v4929 = vadd.f32 %v4857, %v4927
        %v4930 = vadd.f32 %v4858, %v4923
        %v4931 = vadd.f32 %v4859, %v4927
        %v4932 = vadd.f32 %v4860, %v4923
        %v4933 = vadd.f32 %v4861, %v4927
        %v4934 = vadd.f32 %v4862, %v4923
        %v4935 = vadd.f32 %v4863, %v4927
        %v4936 = vadd.f32 %v4864, %v4923
        %v4937 = vadd.f32 %v4865, %v4927
        %v4938 = vadd.f32 %v4866, %v4923
        %v4939 = vadd.f32 %v4867, %v4927
        %v4940 = vadd.f32 %v4868, %v4923
        %v4941 = vadd.f32 %v4869, %v4927
        %v4942 = vadd.f32 %v4870, %v4923
        %v4943 = vadd.f32 %v4871, %v4927
        %v4944 = vadd.f32 %v4872, %v4923
        %v4945 = vadd.f32 %v4873, %v4927
        %v4946 = vadd.f32 %v4874, %v4923
        %v4947 = vadd.f32 %v4875, %v4927
        %v4948 = vadd.f32 %v4876, %v4923
        %v4949 = vadd.f32 %v4877, %v4927
        %v4950 = vadd.f32 %v4878, %v4923
        %v4951 = vadd.f32 %v4879, %v4927
        %v4952 = vadd.f32 %v4880, %v4923
        %v4953 = vadd.f32 %v4881, %v4927
        %v4954 = vadd.f32 %v4882, %v4923
        %v4955 = vadd.f32 %v4883, %v4927
        %v4956 = vadd.f32 %v4884, %v4923
        %v4957 = vadd.f32 %v4885, %v4927
        %v4958 = vadd.f32 %v4886, %v4923
        %v4959 = vadd.f32 %v4887, %v4927
        %v4960 = vadd.f32 %v4888, %v4923
        %v4961 = vadd.f32 %v4889, %v4927
        %v4962 = vadd.f32 %v4890, %v4923
        %v4963 = vadd.f32 %v4891, %v4927
        %v4964 = vadd.f32 %v4892, %v4923
        %v4965 = vadd.f32 %v4893, %v4927
        %v4966 = vadd.f32 %v4894, %v4923
        %v4967 = vadd.f32 %v4895, %v4927
        %v4968 = vadd.f32 %v4896, %v4923
        %v4969 = vadd.f32 %v4897, %v4927
        %v4970 = vadd.f32 %v4898, %v4923
        %v4971 = vadd.f32 %v4899, %v4927
        %v4972 = vadd.f32 %v4900, %v4923
        %v4973 = vadd.f32 %v4901, %v4927
        %v4974 = vadd.f32 %v4902, %v4923
        %v4975 = vadd.f32 %v4903, %v4927
        %v4976 = vadd.f32 %v4904, %v4923
        %v4977 = vadd.f32 %v4905, %v4927
        %v4978 = vadd.f32 %v4906, %v4923
        %v4979 = vadd.f32 %v4907, %v4927
        %v4980 = vadd.f32 %v4908, %v4923
        %v4981 = vadd.f32 %v4909, %v4927
        %v4982 = vadd.f32 %v4910, %v4923
        %v4983 = vadd.f32 %v4911, %v4927
        %v4984 = vadd.f32 %v4912, %v4923
        %v4985 = vadd.f32 %v4913, %v4927
        %v4986 = vadd.f32 %v4914, %v4923
        %v4987 = vadd.f32 %v4915, %v4927
        %v4988 = vadd.f32 %v4916, %v4923
        %v4989 = vadd.f32 %v4917, %v4927
        %v4990 = vadd.f32 %v4918, %v4923
        %v4991 = vadd.f32 %v4919, %v4927
        %v4992 = vpack.c.bf16 %v4930, %v4928
        %v4993 = vpack.c.bf16 %v4931, %v4929
        %v4994 = vpack.c.bf16 %v4934, %v4932
        %v4995 = vpack.c.bf16 %v4935, %v4933
        %v4996 = vpack.c.bf16 %v4938, %v4936
        %v4997 = vpack.c.bf16 %v4939, %v4937
        %v4998 = vpack.c.bf16 %v4942, %v4940
        %v4999 = vpack.c.bf16 %v4943, %v4941
        %v5000 = vpack.c.bf16 %v4946, %v4944
        %v5001 = vpack.c.bf16 %v4947, %v4945
        %v5002 = vpack.c.bf16 %v4950, %v4948
        %v5003 = vpack.c.bf16 %v4951, %v4949
        %v5004 = vpack.c.bf16 %v4954, %v4952
        %v5005 = vpack.c.bf16 %v4955, %v4953
        %v5006 = vpack.c.bf16 %v4958, %v4956
        %v5007 = vpack.c.bf16 %v4959, %v4957
        %v5008 = vpack.c.bf16 %v4962, %v4960
        %v5009 = vpack.c.bf16 %v4963, %v4961
        %v5010 = vpack.c.bf16 %v4966, %v4964
        %v5011 = vpack.c.bf16 %v4967, %v4965
        %v5012 = vpack.c.bf16 %v4970, %v4968
        %v5013 = vpack.c.bf16 %v4971, %v4969
        %v5014 = vpack.c.bf16 %v4974, %v4972
        %v5015 = vpack.c.bf16 %v4975, %v4973
        %v5016 = vpack.c.bf16 %v4978, %v4976
        %v5017 = vpack.c.bf16 %v4979, %v4977
        %v5018 = vpack.c.bf16 %v4982, %v4980
        %v5019 = vpack.c.bf16 %v4983, %v4981
        %v5020 = vpack.c.bf16 %v4986, %v4984
        %v5021 = vpack.c.bf16 %v4987, %v4985
        %v5022 = vpack.c.bf16 %v4990, %v4988
        %v5023 = vpack.c.bf16 %v4991, %v4989
        %v5024 = vld [vmem:[%s528] sm:$0xff]
        %v5025 = vld [vmem:[%s528 + $0x8] sm:$0xff]
        %v5026 = vld [vmem:[%s528 + $0x10] sm:$0xff]
        %v5027 = vld [vmem:[%s528 + $0x18] sm:$0xff]
        %v5028 = vld [vmem:[%s528 + $0x20] sm:$0xff]
        %v5029 = vld [vmem:[%s528 + $0x28] sm:$0xff]
        %v5030 = vld [vmem:[%s528 + $0x30] sm:$0xff]
        %v5031 = vld [vmem:[%s528 + $0x38] sm:$0xff]
        %v5032 = vld [vmem:[%s528 + $0x40] sm:$0xff]
        %v5033 = vld [vmem:[%s528 + $0x48] sm:$0xff]
        %v5034 = vld [vmem:[%s528 + $0x50] sm:$0xff]
        %v5035 = vld [vmem:[%s528 + $0x58] sm:$0xff]
        %v5036 = vld [vmem:[%s528 + $0x60] sm:$0xff]
        %v5037 = vld [vmem:[%s528 + $0x68] sm:$0xff]
        %v5038 = vld [vmem:[%s528 + $0x70] sm:$0xff]
        %v5039 = vld [vmem:[%s528 + $0x78] sm:$0xff]
        %v5040 = vld [vmem:[%s528 + $0x80] sm:$0xff]
        %v5041 = vld [vmem:[%s528 + $0x88] sm:$0xff]
        %v5042 = vld [vmem:[%s528 + $0x90] sm:$0xff]
        %v5043 = vld [vmem:[%s528 + $0x98] sm:$0xff]
        %v5044 = vld [vmem:[%s528 + $0xa0] sm:$0xff]
        %v5045 = vld [vmem:[%s528 + $0xa8] sm:$0xff]
        %v5046 = vld [vmem:[%s528 + $0xb0] sm:$0xff]
        %v5047 = vld [vmem:[%s528 + $0xb8] sm:$0xff]
        %v5048 = vld [vmem:[%s528 + $0xc0] sm:$0xff]
        %v5049 = vld [vmem:[%s528 + $0xc8] sm:$0xff]
        %v5050 = vld [vmem:[%s528 + $0xd0] sm:$0xff]
        %v5051 = vld [vmem:[%s528 + $0xd8] sm:$0xff]
        %v5052 = vld [vmem:[%s528 + $0xe0] sm:$0xff]
        %v5053 = vld [vmem:[%s528 + $0xe8] sm:$0xff]
        %v5054 = vld [vmem:[%s528 + $0xf0] sm:$0xff]
        %v5055 = vld [vmem:[%s528 + $0xf8] sm:$0xff]
        %v5056 = vld [vmem:[%s528 + $0x100] sm:$0xff]
        %v5057 = vld [vmem:[%s528 + $0x108] sm:$0xff]
        %v5058 = vld [vmem:[%s528 + $0x110] sm:$0xff]
        %v5059 = vld [vmem:[%s528 + $0x118] sm:$0xff]
        %v5060 = vld [vmem:[%s528 + $0x120] sm:$0xff]
        %v5061 = vld [vmem:[%s528 + $0x128] sm:$0xff]
        %v5062 = vld [vmem:[%s528 + $0x130] sm:$0xff]
        %v5063 = vld [vmem:[%s528 + $0x138] sm:$0xff]
        %v5064 = vld [vmem:[%s528 + $0x140] sm:$0xff]
        %v5065 = vld [vmem:[%s528 + $0x148] sm:$0xff]
        %v5066 = vld [vmem:[%s528 + $0x150] sm:$0xff]
        %v5067 = vld [vmem:[%s528 + $0x158] sm:$0xff]
        %v5068 = vld [vmem:[%s528 + $0x160] sm:$0xff]
        %v5069 = vld [vmem:[%s528 + $0x168] sm:$0xff]
        %v5070 = vld [vmem:[%s528 + $0x170] sm:$0xff]
        %v5071 = vld [vmem:[%s528 + $0x178] sm:$0xff]
        %v5072 = vld [vmem:[%s528 + $0x180] sm:$0xff]
        %v5073 = vld [vmem:[%s528 + $0x188] sm:$0xff]
        %v5074 = vld [vmem:[%s528 + $0x190] sm:$0xff]
        %v5075 = vld [vmem:[%s528 + $0x198] sm:$0xff]
        %v5076 = vld [vmem:[%s528 + $0x1a0] sm:$0xff]
        %v5077 = vld [vmem:[%s528 + $0x1a8] sm:$0xff]
        %v5078 = vld [vmem:[%s528 + $0x1b0] sm:$0xff]
        %v5079 = vld [vmem:[%s528 + $0x1b8] sm:$0xff]
        %v5080 = vld [vmem:[%s528 + $0x1c0] sm:$0xff]
        %v5081 = vld [vmem:[%s528 + $0x1c8] sm:$0xff]
        %v5082 = vld [vmem:[%s528 + $0x1d0] sm:$0xff]
        %v5083 = vld [vmem:[%s528 + $0x1d8] sm:$0xff]
        %v5084 = vld [vmem:[%s528 + $0x1e0] sm:$0xff]
        %v5085 = vld [vmem:[%s528 + $0x1e8] sm:$0xff]
        %v5086 = vld [vmem:[%s528 + $0x1f0] sm:$0xff]
        %v5087 = vld [vmem:[%s528 + $0x1f8] sm:$0xff]
        %v5088 = vld [vmem:[%s528 + $0x200] sm:$0xff]
        %v5089 = vld [vmem:[%s528 + $0x208] sm:$0xff]
        %v5090 = vld [vmem:[%s528 + $0x210] sm:$0xff]
        %v5091 = vld [vmem:[%s528 + $0x218] sm:$0xff]
        %v5092 = vld [vmem:[%s528 + $0x220] sm:$0xff]
        %v5093 = vld [vmem:[%s528 + $0x228] sm:$0xff]
        %v5094 = vld [vmem:[%s528 + $0x230] sm:$0xff]
        %v5095 = vld [vmem:[%s528 + $0x238] sm:$0xff]
        %v5096 = vld [vmem:[%s528 + $0x240] sm:$0xff]
        %v5097 = vld [vmem:[%s528 + $0x248] sm:$0xff]
        %v5098 = vld [vmem:[%s528 + $0x250] sm:$0xff]
        %v5099 = vld [vmem:[%s528 + $0x258] sm:$0xff]
        %v5100 = vld [vmem:[%s528 + $0x260] sm:$0xff]
        %v5101 = vld [vmem:[%s528 + $0x268] sm:$0xff]
        %v5102 = vld [vmem:[%s528 + $0x270] sm:$0xff]
        %v5103 = vld [vmem:[%s528 + $0x278] sm:$0xff]
        %v5104 = vld [vmem:[%s528 + $0x280] sm:$0xff]
        %v5105 = vld [vmem:[%s528 + $0x288] sm:$0xff]
        %v5106 = vld [vmem:[%s528 + $0x290] sm:$0xff]
        %v5107 = vld [vmem:[%s528 + $0x298] sm:$0xff]
        %v5108 = vld [vmem:[%s528 + $0x2a0] sm:$0xff]
        %v5109 = vld [vmem:[%s528 + $0x2a8] sm:$0xff]
        %v5110 = vld [vmem:[%s528 + $0x2b0] sm:$0xff]
        %v5111 = vld [vmem:[%s528 + $0x2b8] sm:$0xff]
        %v5112 = vld [vmem:[%s528 + $0x2c0] sm:$0xff]
        %v5113 = vld [vmem:[%s528 + $0x2c8] sm:$0xff]
        %v5114 = vld [vmem:[%s528 + $0x2d0] sm:$0xff]
        %v5115 = vld [vmem:[%s528 + $0x2d8] sm:$0xff]
        %v5116 = vld [vmem:[%s528 + $0x2e0] sm:$0xff]
        %v5117 = vld [vmem:[%s528 + $0x2e8] sm:$0xff]
        %v5118 = vld [vmem:[%s528 + $0x2f0] sm:$0xff]
        %v5119 = vld [vmem:[%s528 + $0x2f8] sm:$0xff]
        %v5120 = vld [vmem:[%s528 + $0x300] sm:$0xff]
        %v5121 = vld [vmem:[%s528 + $0x308] sm:$0xff]
        %v5122 = vld [vmem:[%s528 + $0x310] sm:$0xff]
        %v5123 = vld [vmem:[%s528 + $0x318] sm:$0xff]
        %v5124 = vld [vmem:[%s528 + $0x320] sm:$0xff]
        %v5125 = vld [vmem:[%s528 + $0x328] sm:$0xff]
        %v5126 = vld [vmem:[%s528 + $0x330] sm:$0xff]
        %v5127 = vld [vmem:[%s528 + $0x338] sm:$0xff]
        %v5128 = vld [vmem:[%s528 + $0x340] sm:$0xff]
        %v5129 = vld [vmem:[%s528 + $0x348] sm:$0xff]
        %v5130 = vld [vmem:[%s528 + $0x350] sm:$0xff]
        %v5131 = vld [vmem:[%s528 + $0x358] sm:$0xff]
        %v5132 = vld [vmem:[%s528 + $0x360] sm:$0xff]
        %v5133 = vld [vmem:[%s528 + $0x368] sm:$0xff]
        %v5134 = vld [vmem:[%s528 + $0x370] sm:$0xff]
        %v5135 = vld [vmem:[%s528 + $0x378] sm:$0xff]
        %v5136 = vld [vmem:[%s528 + $0x380] sm:$0xff]
        %v5137 = vld [vmem:[%s528 + $0x388] sm:$0xff]
        %v5138 = vld [vmem:[%s528 + $0x390] sm:$0xff]
        %v5139 = vld [vmem:[%s528 + $0x398] sm:$0xff]
        %v5140 = vld [vmem:[%s528 + $0x3a0] sm:$0xff]
        %v5141 = vld [vmem:[%s528 + $0x3a8] sm:$0xff]
        %v5142 = vld [vmem:[%s528 + $0x3b0] sm:$0xff]
        %v5143 = vld [vmem:[%s528 + $0x3b8] sm:$0xff]
        %v5144 = vld [vmem:[%s528 + $0x3c0] sm:$0xff]
        %v5145 = vld [vmem:[%s528 + $0x3c8] sm:$0xff]
        %v5146 = vld [vmem:[%s528 + $0x3d0] sm:$0xff]
        %v5147 = vld [vmem:[%s528 + $0x3d8] sm:$0xff]
        %v5148 = vld [vmem:[%s528 + $0x3e0] sm:$0xff]
        %v5149 = vld [vmem:[%s528 + $0x3e8] sm:$0xff]
        %v5150 = vld [vmem:[%s528 + $0x3f0] sm:$0xff]
        %v5151 = vld [vmem:[%s528 + $0x3f8] sm:$0xff]
        %v5152 = vlaneseq
        %v5153 = vshrl.u32 %v5152, 7
        %v5154 = vsub.s32 3, %v5153
        %v5155 = vrot.slane %v929, %v5154
        %v5156 = vlaneseq
        %v5157 = vshrl.u32 %v5156, 7
        %v5158 = vsub.s32 3, %v5157
        %v5159 = vrot.slane %v930, %v5158
        %v5160 = vlaneseq
        %v5161 = vshrl.u32 %v5160, 7
        %v5162 = vsub.s32 3, %v5161
        %v5163 = vrot.slane %v931, %v5162
        %v5164 = vlaneseq
        %v5165 = vshrl.u32 %v5164, 7
        %v5166 = vsub.s32 3, %v5165
        %v5167 = vrot.slane %v932, %v5166
        %v5168 = vlaneseq
        %v5169 = vshrl.u32 %v5168, 7
        %v5170 = vsub.s32 3, %v5169
        %v5171 = vrot.slane %v933, %v5170
        %v5172 = vlaneseq
        %v5173 = vshrl.u32 %v5172, 7
        %v5174 = vsub.s32 3, %v5173
        %v5175 = vrot.slane %v934, %v5174
        %v5176 = vlaneseq
        %v5177 = vshrl.u32 %v5176, 7
        %v5178 = vsub.s32 3, %v5177
        %v5179 = vrot.slane %v935, %v5178
        %v5180 = vlaneseq
        %v5181 = vshrl.u32 %v5180, 7
        %v5182 = vsub.s32 3, %v5181
        %v5183 = vrot.slane %v936, %v5182
        %v5312 = vunpack.c.l.b16 %v5024
        %v5313 = vunpack.c.h.b16 %v5024
        %v5314 = vunpack.c.l.b16 %v5025
        %v5315 = vunpack.c.h.b16 %v5025
        %v5316 = vunpack.c.l.b16 %v5026
        %v5317 = vunpack.c.h.b16 %v5026
        %v5318 = vunpack.c.l.b16 %v5027
        %v5319 = vunpack.c.h.b16 %v5027
        %v5320 = vunpack.c.l.b16 %v5028
        %v5321 = vunpack.c.h.b16 %v5028
        %v5322 = vunpack.c.l.b16 %v5029
        %v5323 = vunpack.c.h.b16 %v5029
        %v5324 = vunpack.c.l.b16 %v5030
        %v5325 = vunpack.c.h.b16 %v5030
        %v5326 = vunpack.c.l.b16 %v5031
        %v5327 = vunpack.c.h.b16 %v5031
        %v5328 = vunpack.c.l.b16 %v5032
        %v5329 = vunpack.c.h.b16 %v5032
        %v5330 = vunpack.c.l.b16 %v5033
        %v5331 = vunpack.c.h.b16 %v5033
        %v5332 = vunpack.c.l.b16 %v5034
        %v5333 = vunpack.c.h.b16 %v5034
        %v5334 = vunpack.c.l.b16 %v5035
        %v5335 = vunpack.c.h.b16 %v5035
        %v5336 = vunpack.c.l.b16 %v5036
        %v5337 = vunpack.c.h.b16 %v5036
        %v5338 = vunpack.c.l.b16 %v5037
        %v5339 = vunpack.c.h.b16 %v5037
        %v5340 = vunpack.c.l.b16 %v5038
        %v5341 = vunpack.c.h.b16 %v5038
        %v5342 = vunpack.c.l.b16 %v5039
        %v5343 = vunpack.c.h.b16 %v5039
        %v5344 = vunpack.c.l.b16 %v5040
        %v5345 = vunpack.c.h.b16 %v5040
        %v5346 = vunpack.c.l.b16 %v5041
        %v5347 = vunpack.c.h.b16 %v5041
        %v5348 = vunpack.c.l.b16 %v5042
        %v5349 = vunpack.c.h.b16 %v5042
        %v5350 = vunpack.c.l.b16 %v5043
        %v5351 = vunpack.c.h.b16 %v5043
        %v5352 = vunpack.c.l.b16 %v5044
        %v5353 = vunpack.c.h.b16 %v5044
        %v5354 = vunpack.c.l.b16 %v5045
        %v5355 = vunpack.c.h.b16 %v5045
        %v5356 = vunpack.c.l.b16 %v5046
        %v5357 = vunpack.c.h.b16 %v5046
        %v5358 = vunpack.c.l.b16 %v5047
        %v5359 = vunpack.c.h.b16 %v5047
        %v5360 = vunpack.c.l.b16 %v5048
        %v5361 = vunpack.c.h.b16 %v5048
        %v5362 = vunpack.c.l.b16 %v5049
        %v5363 = vunpack.c.h.b16 %v5049
        %v5364 = vunpack.c.l.b16 %v5050
        %v5365 = vunpack.c.h.b16 %v5050
        %v5366 = vunpack.c.l.b16 %v5051
        %v5367 = vunpack.c.h.b16 %v5051
        %v5368 = vunpack.c.l.b16 %v5052
        %v5369 = vunpack.c.h.b16 %v5052
        %v5370 = vunpack.c.l.b16 %v5053
        %v5371 = vunpack.c.h.b16 %v5053
        %v5372 = vunpack.c.l.b16 %v5054
        %v5373 = vunpack.c.h.b16 %v5054
        %v5374 = vunpack.c.l.b16 %v5055
        %v5375 = vunpack.c.h.b16 %v5055
        %v5376 = vunpack.c.l.b16 %v5056
        %v5377 = vunpack.c.h.b16 %v5056
        %v5378 = vunpack.c.l.b16 %v5057
        %v5379 = vunpack.c.h.b16 %v5057
        %v5380 = vunpack.c.l.b16 %v5058
        %v5381 = vunpack.c.h.b16 %v5058
        %v5382 = vunpack.c.l.b16 %v5059
        %v5383 = vunpack.c.h.b16 %v5059
        %v5384 = vunpack.c.l.b16 %v5060
        %v5385 = vunpack.c.h.b16 %v5060
        %v5386 = vunpack.c.l.b16 %v5061
        %v5387 = vunpack.c.h.b16 %v5061
        %v5388 = vunpack.c.l.b16 %v5062
        %v5389 = vunpack.c.h.b16 %v5062
        %v5390 = vunpack.c.l.b16 %v5063
        %v5391 = vunpack.c.h.b16 %v5063
        %v5392 = vunpack.c.l.b16 %v5064
        %v5393 = vunpack.c.h.b16 %v5064
        %v5394 = vunpack.c.l.b16 %v5065
        %v5395 = vunpack.c.h.b16 %v5065
        %v5396 = vunpack.c.l.b16 %v5066
        %v5397 = vunpack.c.h.b16 %v5066
        %v5398 = vunpack.c.l.b16 %v5067
        %v5399 = vunpack.c.h.b16 %v5067
        %v5400 = vunpack.c.l.b16 %v5068
        %v5401 = vunpack.c.h.b16 %v5068
        %v5402 = vunpack.c.l.b16 %v5069
        %v5403 = vunpack.c.h.b16 %v5069
        %v5404 = vunpack.c.l.b16 %v5070
        %v5405 = vunpack.c.h.b16 %v5070
        %v5406 = vunpack.c.l.b16 %v5071
        %v5407 = vunpack.c.h.b16 %v5071
        %v5408 = vunpack.c.l.b16 %v5072
        %v5409 = vunpack.c.h.b16 %v5072
        %v5410 = vunpack.c.l.b16 %v5073
        %v5411 = vunpack.c.h.b16 %v5073
        %v5412 = vunpack.c.l.b16 %v5074
        %v5413 = vunpack.c.h.b16 %v5074
        %v5414 = vunpack.c.l.b16 %v5075
        %v5415 = vunpack.c.h.b16 %v5075
        %v5416 = vunpack.c.l.b16 %v5076
        %v5417 = vunpack.c.h.b16 %v5076
        %v5418 = vunpack.c.l.b16 %v5077
        %v5419 = vunpack.c.h.b16 %v5077
        %v5420 = vunpack.c.l.b16 %v5078
        %v5421 = vunpack.c.h.b16 %v5078
        %v5422 = vunpack.c.l.b16 %v5079
        %v5423 = vunpack.c.h.b16 %v5079
        %v5424 = vunpack.c.l.b16 %v5080
        %v5425 = vunpack.c.h.b16 %v5080
        %v5426 = vunpack.c.l.b16 %v5081
        %v5427 = vunpack.c.h.b16 %v5081
        %v5428 = vunpack.c.l.b16 %v5082
        %v5429 = vunpack.c.h.b16 %v5082
        %v5430 = vunpack.c.l.b16 %v5083
        %v5431 = vunpack.c.h.b16 %v5083
        %v5432 = vunpack.c.l.b16 %v5084
        %v5433 = vunpack.c.h.b16 %v5084
        %v5434 = vunpack.c.l.b16 %v5085
        %v5435 = vunpack.c.h.b16 %v5085
        %v5436 = vunpack.c.l.b16 %v5086
        %v5437 = vunpack.c.h.b16 %v5086
        %v5438 = vunpack.c.l.b16 %v5087
        %v5439 = vunpack.c.h.b16 %v5087
        %v5440 = vunpack.c.l.b16 %v5088
        %v5441 = vunpack.c.h.b16 %v5088
        %v5442 = vunpack.c.l.b16 %v5089
        %v5443 = vunpack.c.h.b16 %v5089
        %v5444 = vunpack.c.l.b16 %v5090
        %v5445 = vunpack.c.h.b16 %v5090
        %v5446 = vunpack.c.l.b16 %v5091
        %v5447 = vunpack.c.h.b16 %v5091
        %v5448 = vunpack.c.l.b16 %v5092
        %v5449 = vunpack.c.h.b16 %v5092
        %v5450 = vunpack.c.l.b16 %v5093
        %v5451 = vunpack.c.h.b16 %v5093
        %v5452 = vunpack.c.l.b16 %v5094
        %v5453 = vunpack.c.h.b16 %v5094
        %v5454 = vunpack.c.l.b16 %v5095
        %v5455 = vunpack.c.h.b16 %v5095
        %v5456 = vunpack.c.l.b16 %v5096
        %v5457 = vunpack.c.h.b16 %v5096
        %v5458 = vunpack.c.l.b16 %v5097
        %v5459 = vunpack.c.h.b16 %v5097
        %v5460 = vunpack.c.l.b16 %v5098
        %v5461 = vunpack.c.h.b16 %v5098
        %v5462 = vunpack.c.l.b16 %v5099
        %v5463 = vunpack.c.h.b16 %v5099
        %v5464 = vunpack.c.l.b16 %v5100
        %v5465 = vunpack.c.h.b16 %v5100
        %v5466 = vunpack.c.l.b16 %v5101
        %v5467 = vunpack.c.h.b16 %v5101
        %v5468 = vunpack.c.l.b16 %v5102
        %v5469 = vunpack.c.h.b16 %v5102
        %v5470 = vunpack.c.l.b16 %v5103
        %v5471 = vunpack.c.h.b16 %v5103
        %v5472 = vunpack.c.l.b16 %v5104
        %v5473 = vunpack.c.h.b16 %v5104
        %v5474 = vunpack.c.l.b16 %v5105
        %v5475 = vunpack.c.h.b16 %v5105
        %v5476 = vunpack.c.l.b16 %v5106
        %v5477 = vunpack.c.h.b16 %v5106
        %v5478 = vunpack.c.l.b16 %v5107
        %v5479 = vunpack.c.h.b16 %v5107
        %v5480 = vunpack.c.l.b16 %v5108
        %v5481 = vunpack.c.h.b16 %v5108
        %v5482 = vunpack.c.l.b16 %v5109
        %v5483 = vunpack.c.h.b16 %v5109
        %v5484 = vunpack.c.l.b16 %v5110
        %v5485 = vunpack.c.h.b16 %v5110
        %v5486 = vunpack.c.l.b16 %v5111
        %v5487 = vunpack.c.h.b16 %v5111
        %v5488 = vunpack.c.l.b16 %v5112
        %v5489 = vunpack.c.h.b16 %v5112
        %v5490 = vunpack.c.l.b16 %v5113
        %v5491 = vunpack.c.h.b16 %v5113
        %v5492 = vunpack.c.l.b16 %v5114
        %v5493 = vunpack.c.h.b16 %v5114
        %v5494 = vunpack.c.l.b16 %v5115
        %v5495 = vunpack.c.h.b16 %v5115
        %v5496 = vunpack.c.l.b16 %v5116
        %v5497 = vunpack.c.h.b16 %v5116
        %v5498 = vunpack.c.l.b16 %v5117
        %v5499 = vunpack.c.h.b16 %v5117
        %v5500 = vunpack.c.l.b16 %v5118
        %v5501 = vunpack.c.h.b16 %v5118
        %v5502 = vunpack.c.l.b16 %v5119
        %v5503 = vunpack.c.h.b16 %v5119
        %v5504 = vunpack.c.l.b16 %v5120
        %v5505 = vunpack.c.h.b16 %v5120
        %v5506 = vunpack.c.l.b16 %v5121
        %v5507 = vunpack.c.h.b16 %v5121
        %v5508 = vunpack.c.l.b16 %v5122
        %v5509 = vunpack.c.h.b16 %v5122
        %v5510 = vunpack.c.l.b16 %v5123
        %v5511 = vunpack.c.h.b16 %v5123
        %v5512 = vunpack.c.l.b16 %v5124
        %v5513 = vunpack.c.h.b16 %v5124
        %v5514 = vunpack.c.l.b16 %v5125
        %v5515 = vunpack.c.h.b16 %v5125
        %v5516 = vunpack.c.l.b16 %v5126
        %v5517 = vunpack.c.h.b16 %v5126
        %v5518 = vunpack.c.l.b16 %v5127
        %v5519 = vunpack.c.h.b16 %v5127
        %v5520 = vunpack.c.l.b16 %v5128
        %v5521 = vunpack.c.h.b16 %v5128
        %v5522 = vunpack.c.l.b16 %v5129
        %v5523 = vunpack.c.h.b16 %v5129
        %v5524 = vunpack.c.l.b16 %v5130
        %v5525 = vunpack.c.h.b16 %v5130
        %v5526 = vunpack.c.l.b16 %v5131
        %v5527 = vunpack.c.h.b16 %v5131
        %v5528 = vunpack.c.l.b16 %v5132
        %v5529 = vunpack.c.h.b16 %v5132
        %v5530 = vunpack.c.l.b16 %v5133
        %v5531 = vunpack.c.h.b16 %v5133
        %v5532 = vunpack.c.l.b16 %v5134
        %v5533 = vunpack.c.h.b16 %v5134
        %v5534 = vunpack.c.l.b16 %v5135
        %v5535 = vunpack.c.h.b16 %v5135
        %v5536 = vunpack.c.l.b16 %v5136
        %v5537 = vunpack.c.h.b16 %v5136
        %v5538 = vunpack.c.l.b16 %v5137
        %v5539 = vunpack.c.h.b16 %v5137
        %v5540 = vunpack.c.l.b16 %v5138
        %v5541 = vunpack.c.h.b16 %v5138
        %v5542 = vunpack.c.l.b16 %v5139
        %v5543 = vunpack.c.h.b16 %v5139
        %v5544 = vunpack.c.l.b16 %v5140
        %v5545 = vunpack.c.h.b16 %v5140
        %v5546 = vunpack.c.l.b16 %v5141
        %v5547 = vunpack.c.h.b16 %v5141
        %v5548 = vunpack.c.l.b16 %v5142
        %v5549 = vunpack.c.h.b16 %v5142
        %v5550 = vunpack.c.l.b16 %v5143
        %v5551 = vunpack.c.h.b16 %v5143
        %v5552 = vunpack.c.l.b16 %v5144
        %v5553 = vunpack.c.h.b16 %v5144
        %v5554 = vunpack.c.l.b16 %v5145
        %v5555 = vunpack.c.h.b16 %v5145
        %v5556 = vunpack.c.l.b16 %v5146
        %v5557 = vunpack.c.h.b16 %v5146
        %v5558 = vunpack.c.l.b16 %v5147
        %v5559 = vunpack.c.h.b16 %v5147
        %v5560 = vunpack.c.l.b16 %v5148
        %v5561 = vunpack.c.h.b16 %v5148
        %v5562 = vunpack.c.l.b16 %v5149
        %v5563 = vunpack.c.h.b16 %v5149
        %v5564 = vunpack.c.l.b16 %v5150
        %v5565 = vunpack.c.h.b16 %v5150
        %v5566 = vunpack.c.l.b16 %v5151
        %v5567 = vunpack.c.h.b16 %v5151
        %v5568 = vpack.c.b16 %v5320, %v5312
        %v5569 = vpack.c.b16 %v5321, %v5313
        %v5570 = vpack.c.b16 %v5322, %v5314
        %v5571 = vpack.c.b16 %v5323, %v5315
        %v5572 = vpack.c.b16 %v5324, %v5316
        %v5573 = vpack.c.b16 %v5325, %v5317
        %v5574 = vpack.c.b16 %v5326, %v5318
        %v5575 = vpack.c.b16 %v5327, %v5319
        %v5576 = vpack.c.b16 %v5336, %v5328
        %v5577 = vpack.c.b16 %v5337, %v5329
        %v5578 = vpack.c.b16 %v5338, %v5330
        %v5579 = vpack.c.b16 %v5339, %v5331
        %v5580 = vpack.c.b16 %v5340, %v5332
        %v5581 = vpack.c.b16 %v5341, %v5333
        %v5582 = vpack.c.b16 %v5342, %v5334
        %v5583 = vpack.c.b16 %v5343, %v5335
        %v5584 = vpack.c.b16 %v5352, %v5344
        %v5585 = vpack.c.b16 %v5353, %v5345
        %v5586 = vpack.c.b16 %v5354, %v5346
        %v5587 = vpack.c.b16 %v5355, %v5347
        %v5588 = vpack.c.b16 %v5356, %v5348
        %v5589 = vpack.c.b16 %v5357, %v5349
        %v5590 = vpack.c.b16 %v5358, %v5350
        %v5591 = vpack.c.b16 %v5359, %v5351
        %v5592 = vpack.c.b16 %v5368, %v5360
        %v5593 = vpack.c.b16 %v5369, %v5361
        %v5594 = vpack.c.b16 %v5370, %v5362
        %v5595 = vpack.c.b16 %v5371, %v5363
        %v5596 = vpack.c.b16 %v5372, %v5364
        %v5597 = vpack.c.b16 %v5373, %v5365
        %v5598 = vpack.c.b16 %v5374, %v5366
        %v5599 = vpack.c.b16 %v5375, %v5367
        %v5600 = vpack.c.b16 %v5384, %v5376
        %v5601 = vpack.c.b16 %v5385, %v5377
        %v5602 = vpack.c.b16 %v5386, %v5378
        %v5603 = vpack.c.b16 %v5387, %v5379
        %v5604 = vpack.c.b16 %v5388, %v5380
        %v5605 = vpack.c.b16 %v5389, %v5381
        %v5606 = vpack.c.b16 %v5390, %v5382
        %v5607 = vpack.c.b16 %v5391, %v5383
        %v5608 = vpack.c.b16 %v5400, %v5392
        %v5609 = vpack.c.b16 %v5401, %v5393
        %v5610 = vpack.c.b16 %v5402, %v5394
        %v5611 = vpack.c.b16 %v5403, %v5395
        %v5612 = vpack.c.b16 %v5404, %v5396
        %v5613 = vpack.c.b16 %v5405, %v5397
        %v5614 = vpack.c.b16 %v5406, %v5398
        %v5615 = vpack.c.b16 %v5407, %v5399
        %v5616 = vpack.c.b16 %v5416, %v5408
        %v5617 = vpack.c.b16 %v5417, %v5409
        %v5618 = vpack.c.b16 %v5418, %v5410
        %v5619 = vpack.c.b16 %v5419, %v5411
        %v5620 = vpack.c.b16 %v5420, %v5412
        %v5621 = vpack.c.b16 %v5421, %v5413
        %v5622 = vpack.c.b16 %v5422, %v5414
        %v5623 = vpack.c.b16 %v5423, %v5415
        %v5624 = vpack.c.b16 %v5432, %v5424
        %v5625 = vpack.c.b16 %v5433, %v5425
        %v5626 = vpack.c.b16 %v5434, %v5426
        %v5627 = vpack.c.b16 %v5435, %v5427
        %v5628 = vpack.c.b16 %v5436, %v5428
        %v5629 = vpack.c.b16 %v5437, %v5429
        %v5630 = vpack.c.b16 %v5438, %v5430
        %v5631 = vpack.c.b16 %v5439, %v5431
        %v5632 = vpack.c.b16 %v5448, %v5440
        %v5633 = vpack.c.b16 %v5449, %v5441
        %v5634 = vpack.c.b16 %v5450, %v5442
        %v5635 = vpack.c.b16 %v5451, %v5443
        %v5636 = vpack.c.b16 %v5452, %v5444
        %v5637 = vpack.c.b16 %v5453, %v5445
        %v5638 = vpack.c.b16 %v5454, %v5446
        %v5639 = vpack.c.b16 %v5455, %v5447
        %v5640 = vpack.c.b16 %v5464, %v5456
        %v5641 = vpack.c.b16 %v5465, %v5457
        %v5642 = vpack.c.b16 %v5466, %v5458
        %v5643 = vpack.c.b16 %v5467, %v5459
        %v5644 = vpack.c.b16 %v5468, %v5460
        %v5645 = vpack.c.b16 %v5469, %v5461
        %v5646 = vpack.c.b16 %v5470, %v5462
        %v5647 = vpack.c.b16 %v5471, %v5463
        %v5648 = vpack.c.b16 %v5480, %v5472
        %v5649 = vpack.c.b16 %v5481, %v5473
        %v5650 = vpack.c.b16 %v5482, %v5474
        %v5651 = vpack.c.b16 %v5483, %v5475
        %v5652 = vpack.c.b16 %v5484, %v5476
        %v5653 = vpack.c.b16 %v5485, %v5477
        %v5654 = vpack.c.b16 %v5486, %v5478
        %v5655 = vpack.c.b16 %v5487, %v5479
        %v5656 = vpack.c.b16 %v5496, %v5488
        %v5657 = vpack.c.b16 %v5497, %v5489
        %v5658 = vpack.c.b16 %v5498, %v5490
        %v5659 = vpack.c.b16 %v5499, %v5491
        %v5660 = vpack.c.b16 %v5500, %v5492
        %v5661 = vpack.c.b16 %v5501, %v5493
        %v5662 = vpack.c.b16 %v5502, %v5494
        %v5663 = vpack.c.b16 %v5503, %v5495
        %v5664 = vpack.c.b16 %v5512, %v5504
        %v5665 = vpack.c.b16 %v5513, %v5505
        %v5666 = vpack.c.b16 %v5514, %v5506
        %v5667 = vpack.c.b16 %v5515, %v5507
        %v5668 = vpack.c.b16 %v5516, %v5508
        %v5669 = vpack.c.b16 %v5517, %v5509
        %v5670 = vpack.c.b16 %v5518, %v5510
        %v5671 = vpack.c.b16 %v5519, %v5511
        %v5672 = vpack.c.b16 %v5528, %v5520
        %v5673 = vpack.c.b16 %v5529, %v5521
        %v5674 = vpack.c.b16 %v5530, %v5522
        %v5675 = vpack.c.b16 %v5531, %v5523
        %v5676 = vpack.c.b16 %v5532, %v5524
        %v5677 = vpack.c.b16 %v5533, %v5525
        %v5678 = vpack.c.b16 %v5534, %v5526
        %v5679 = vpack.c.b16 %v5535, %v5527
        %v5680 = vpack.c.b16 %v5544, %v5536
        %v5681 = vpack.c.b16 %v5545, %v5537
        %v5682 = vpack.c.b16 %v5546, %v5538
        %v5683 = vpack.c.b16 %v5547, %v5539
        %v5684 = vpack.c.b16 %v5548, %v5540
        %v5685 = vpack.c.b16 %v5549, %v5541
        %v5686 = vpack.c.b16 %v5550, %v5542
        %v5687 = vpack.c.b16 %v5551, %v5543
        %v5688 = vpack.c.b16 %v5560, %v5552
        %v5689 = vpack.c.b16 %v5561, %v5553
        %v5690 = vpack.c.b16 %v5562, %v5554
        %v5691 = vpack.c.b16 %v5563, %v5555
        %v5692 = vpack.c.b16 %v5564, %v5556
        %v5693 = vpack.c.b16 %v5565, %v5557
        %v5694 = vpack.c.b16 %v5566, %v5558
        %v5695 = vpack.c.b16 %v5567, %v5559
        %5824 = vmatprep.subr.bf16.mxu0 %v5569
        %5825 = vmatpush1.bf16.msra.mxu0 %v5568
        %5826 = vmatprep.subr.bf16.mxu0 %v5577
        %5827 = vmatpush1.bf16.msra.mxu0 %v5576
        %5828 = vmatprep.subr.bf16.mxu0 %v5585
        %5829 = vmatpush1.bf16.msra.mxu0 %v5584
        %5830 = vmatprep.subr.bf16.mxu0 %v5593
        %5831 = vmatpush1.bf16.msra.mxu0 %v5592
        %5832 = vmatprep.subr.bf16.mxu0 %v5601
        %5833 = vmatpush1.bf16.msra.mxu0 %v5600
        %5834 = vmatprep.subr.bf16.mxu0 %v5609
        %5835 = vmatpush1.bf16.msra.mxu0 %v5608
        %5836 = vmatprep.subr.bf16.mxu0 %v5617
        %5837 = vmatpush1.bf16.msra.mxu0 %v5616
        %5838 = vmatprep.subr.bf16.mxu0 %v5625
        %5839 = vmatpush1.bf16.msra.mxu0 %v5624
        %5840 = vmatprep.subr.bf16.mxu0 %v5633
        %5841 = vmatpush1.bf16.msra.mxu0 %v5632
        %5842 = vmatprep.subr.bf16.mxu0 %v5641
        %5843 = vmatpush1.bf16.msra.mxu0 %v5640
        %5844 = vmatprep.subr.bf16.mxu0 %v5649
        %5845 = vmatpush1.bf16.msra.mxu0 %v5648
        %5846 = vmatprep.subr.bf16.mxu0 %v5657
        %5847 = vmatpush1.bf16.msra.mxu0 %v5656
        %5848 = vmatprep.subr.bf16.mxu0 %v5665
        %5849 = vmatpush1.bf16.msra.mxu0 %v5664
        %5850 = vmatprep.subr.bf16.mxu0 %v5673
        %5851 = vmatpush1.bf16.msra.mxu0 %v5672
        %5852 = vmatprep.subr.bf16.mxu0 %v5681
        %5853 = vmatpush1.bf16.msra.mxu0 %v5680
        %5854 = vmatprep.subr.bf16.mxu0 %v5689
        %5855 = vmatpush1.bf16.msra.mxu0 %v5688
        %5856 = vmatprep.mubr.bf16.mxu0 %v4993
        %5857 = vmatmul.mubr.bf16.gmra.mrb[0].mxu0 %v4992
        %v5858 = vpop.f32.mrb[0].mxu0
        %v5859 = vadd.f32 %v5155, %v5858
        %v5860 = vpop.f32.mrb[0].mxu0
        %v5861 = vadd.f32 %v5159, %v5860
        %v5862 = vpop.f32.mrb[0].mxu0
        %v5863 = vadd.f32 %v5155, %v5862
        %v5864 = vpop.f32.mrb[0].mxu0
        %v5865 = vadd.f32 %v5159, %v5864
        %5866 = vmatprep.mubr.bf16.mxu0 %v4995
        %5867 = vmatmul.mubr.bf16.gmra.mrb[0].mxu0 %v4994
        %v5868 = vpop.f32.mrb[0].mxu0
        %v5869 = vadd.f32 %v5155, %v5868
        %v5870 = vpop.f32.mrb[0].mxu0
        %v5871 = vadd.f32 %v5159, %v5870
        %v5872 = vpop.f32.mrb[0].mxu0
        %v5873 = vadd.f32 %v5155, %v5872
        %v5874 = vpop.f32.mrb[0].mxu0
        %v5875 = vadd.f32 %v5159, %v5874
        %5876 = vmatprep.mubr.bf16.mxu0 %v4997
        %5877 = vmatmul.mubr.bf16.gmra.mrb[0].mxu0 %v4996
        %v5878 = vpop.f32.mrb[0].mxu0
        %v5879 = vadd.f32 %v5155, %v5878
        %v5880 = vpop.f32.mrb[0].mxu0
        %v5881 = vadd.f32 %v5159, %v5880
        %v5882 = vpop.f32.mrb[0].mxu0
        %v5883 = vadd.f32 %v5155, %v5882
        %v5884 = vpop.f32.mrb[0].mxu0
        %v5885 = vadd.f32 %v5159, %v5884
        %5886 = vmatprep.mubr.bf16.mxu0 %v4999
        %5887 = vmatmul.mubr.bf16.gmra.mrb[0].mxu0 %v4998
        %v5888 = vpop.f32.mrb[0].mxu0
        %v5889 = vadd.f32 %v5155, %v5888
        %v5890 = vpop.f32.mrb[0].mxu0
        %v5891 = vadd.f32 %v5159, %v5890
        %v5892 = vpop.f32.mrb[0].mxu0
        %v5893 = vadd.f32 %v5155, %v5892
        %v5894 = vpop.f32.mrb[0].mxu0
        %v5895 = vadd.f32 %v5159, %v5894
        %5896 = vmatprep.mubr.bf16.mxu0 %v5001
        %5897 = vmatmul.mubr.bf16.gmra.mrb[0].mxu0 %v5000
        %v5898 = vpop.f32.mrb[0].mxu0
        %v5899 = vadd.f32 %v5155, %v5898
        %v5900 = vpop.f32.mrb[0].mxu0
        %v5901 = vadd.f32 %v5159, %v5900
        %v5902 = vpop.f32.mrb[0].mxu0
        %v5903 = vadd.f32 %v5155, %v5902
        %v5904 = vpop.f32.mrb[0].mxu0
        %v5905 = vadd.f32 %v5159, %v5904
        %5906 = vmatprep.mubr.bf16.mxu0 %v5003
        %5907 = vmatmul.mubr.bf16.gmra.mrb[0].mxu0 %v5002
        %v5908 = vpop.f32.mrb[0].mxu0
        %v5909 = vadd.f32 %v5155, %v5908
        %v5910 = vpop.f32.mrb[0].mxu0
        %v5911 = vadd.f32 %v5159, %v5910
        %v5912 = vpop.f32.mrb[0].mxu0
        %v5913 = vadd.f32 %v5155, %v5912
        %v5914 = vpop.f32.mrb[0].mxu0
        %v5915 = vadd.f32 %v5159, %v5914
        %5916 = vmatprep.mubr.bf16.mxu0 %v5005
        %5917 = vmatmul.mubr.bf16.gmra.mrb[0].mxu0 %v5004
        %v5918 = vpop.f32.mrb[0].mxu0
        %v5919 = vadd.f32 %v5155, %v5918
        %v5920 = vpop.f32.mrb[0].mxu0
        %v5921 = vadd.f32 %v5159, %v5920
        %v5922 = vpop.f32.mrb[0].mxu0
        %v5923 = vadd.f32 %v5155, %v5922
        %v5924 = vpop.f32.mrb[0].mxu0
        %v5925 = vadd.f32 %v5159, %v5924
        %5926 = vmatprep.mubr.bf16.mxu0 %v5007
        %5927 = vmatmul.mubr.bf16.gmra.mrb[0].mxu0 %v5006
        %v5928 = vpop.f32.mrb[0].mxu0
        %v5929 = vadd.f32 %v5155, %v5928
        %v5930 = vpop.f32.mrb[0].mxu0
        %v5931 = vadd.f32 %v5159, %v5930
        %v5932 = vpop.f32.mrb[0].mxu0
        %v5933 = vadd.f32 %v5155, %v5932
        %v5934 = vpop.f32.mrb[0].mxu0
        %v5935 = vadd.f32 %v5159, %v5934
        %5936 = vmatprep.mubr.bf16.mxu0 %v5009
        %5937 = vmatmul.mubr.bf16.gmra.mrb[0].mxu0 %v5008
        %v5938 = vpop.f32.mrb[0].mxu0
        %v5939 = vadd.f32 %v5155, %v5938
        %v5940 = vpop.f32.mrb[0].mxu0
        %v5941 = vadd.f32 %v5159, %v5940
        %v5942 = vpop.f32.mrb[0].mxu0
        %v5943 = vadd.f32 %v5155, %v5942
        %v5944 = vpop.f32.mrb[0].mxu0
        %v5945 = vadd.f32 %v5159, %v5944
        %5946 = vmatprep.mubr.bf16.mxu0 %v5011
        %5947 = vmatmul.mubr.bf16.gmra.mrb[0].mxu0 %v5010
        %v5948 = vpop.f32.mrb[0].mxu0
        %v5949 = vadd.f32 %v5155, %v5948
        %v5950 = vpop.f32.mrb[0].mxu0
        %v5951 = vadd.f32 %v5159, %v5950
        %v5952 = vpop.f32.mrb[0].mxu0
        %v5953 = vadd.f32 %v5155, %v5952
        %v5954 = vpop.f32.mrb[0].mxu0
        %v5955 = vadd.f32 %v5159, %v5954
        %5956 = vmatprep.mubr.bf16.mxu0 %v5013
        %5957 = vmatmul.mubr.bf16.gmra.mrb[0].mxu0 %v5012
        %v5958 = vpop.f32.mrb[0].mxu0
        %v5959 = vadd.f32 %v5155, %v5958
        %v5960 = vpop.f32.mrb[0].mxu0
        %v5961 = vadd.f32 %v5159, %v5960
        %v5962 = vpop.f32.mrb[0].mxu0
        %v5963 = vadd.f32 %v5155, %v5962
        %v5964 = vpop.f32.mrb[0].mxu0
        %v5965 = vadd.f32 %v5159, %v5964
        %5966 = vmatprep.mubr.bf16.mxu0 %v5015
        %5967 = vmatmul.mubr.bf16.gmra.mrb[0].mxu0 %v5014
        %v5968 = vpop.f32.mrb[0].mxu0
        %v5969 = vadd.f32 %v5155, %v5968
        %v5970 = vpop.f32.mrb[0].mxu0
        %v5971 = vadd.f32 %v5159, %v5970
        %v5972 = vpop.f32.mrb[0].mxu0
        %v5973 = vadd.f32 %v5155, %v5972
        %v5974 = vpop.f32.mrb[0].mxu0
        %v5975 = vadd.f32 %v5159, %v5974
        %5976 = vmatprep.mubr.bf16.mxu0 %v5017
        %5977 = vmatmul.mubr.bf16.gmra.mrb[0].mxu0 %v5016
        %v5978 = vpop.f32.mrb[0].mxu0
        %v5979 = vadd.f32 %v5155, %v5978
        %v5980 = vpop.f32.mrb[0].mxu0
        %v5981 = vadd.f32 %v5159, %v5980
        %v5982 = vpop.f32.mrb[0].mxu0
        %v5983 = vadd.f32 %v5155, %v5982
        %v5984 = vpop.f32.mrb[0].mxu0
        %v5985 = vadd.f32 %v5159, %v5984
        %5986 = vmatprep.mubr.bf16.mxu0 %v5019
        %5987 = vmatmul.mubr.bf16.gmra.mrb[0].mxu0 %v5018
        %v5988 = vpop.f32.mrb[0].mxu0
        %v5989 = vadd.f32 %v5155, %v5988
        %v5990 = vpop.f32.mrb[0].mxu0
        %v5991 = vadd.f32 %v5159, %v5990
        %v5992 = vpop.f32.mrb[0].mxu0
        %v5993 = vadd.f32 %v5155, %v5992
        %v5994 = vpop.f32.mrb[0].mxu0
        %v5995 = vadd.f32 %v5159, %v5994
        %5996 = vmatprep.mubr.bf16.mxu0 %v5021
        %5997 = vmatmul.mubr.bf16.gmra.mrb[0].mxu0 %v5020
        %v5998 = vpop.f32.mrb[0].mxu0
        %v5999 = vadd.f32 %v5155, %v5998
        %v6000 = vpop.f32.mrb[0].mxu0
        %v6001 = vadd.f32 %v5159, %v6000
        %v6002 = vpop.f32.mrb[0].mxu0
        %v6003 = vadd.f32 %v5155, %v6002
        %v6004 = vpop.f32.mrb[0].mxu0
        %v6005 = vadd.f32 %v5159, %v6004
        %6006 = vmatprep.mubr.bf16.mxu0 %v5023
        %6007 = vmatmul.mubr.bf16.gmra.mrb[0].mxu0 %v5022
        %v6008 = vpop.f32.mrb[0].mxu0
        %v6009 = vadd.f32 %v5155, %v6008
        %v6010 = vpop.f32.mrb[0].mxu0
        %v6011 = vadd.f32 %v5159, %v6010
        %v6012 = vpop.f32.mrb[0].mxu0
        %v6013 = vadd.f32 %v5155, %v6012
        %v6014 = vpop.f32.mrb[0].mxu0
        %v6015 = vadd.f32 %v5159, %v6014
        %6016 = vdwg.mxu0
        %6017 = vmatprep.subr.bf16.mxu0 %v5571
        %6018 = vmatpush1.bf16.msra.mxu0 %v5570
        %6019 = vmatprep.subr.bf16.mxu0 %v5579
        %6020 = vmatpush1.bf16.msra.mxu0 %v5578
        %6021 = vmatprep.subr.bf16.mxu0 %v5587
        %6022 = vmatpush1.bf16.msra.mxu0 %v5586
        %6023 = vmatprep.subr.bf16.mxu0 %v5595
        %6024 = vmatpush1.bf16.msra.mxu0 %v5594
        %6025 = vmatprep.subr.bf16.mxu0 %v5603
        %6026 = vmatpush1.bf16.msra.mxu0 %v5602
        %6027 = vmatprep.subr.bf16.mxu0 %v5611
        %6028 = vmatpush1.bf16.msra.mxu0 %v5610
        %6029 = vmatprep.subr.bf16.mxu0 %v5619
        %6030 = vmatpush1.bf16.msra.mxu0 %v5618
        %6031 = vmatprep.subr.bf16.mxu0 %v5627
        %6032 = vmatpush1.bf16.msra.mxu0 %v5626
        %6033 = vmatprep.subr.bf16.mxu0 %v5635
        %6034 = vmatpush1.bf16.msra.mxu0 %v5634
        %6035 = vmatprep.subr.bf16.mxu0 %v5643
        %6036 = vmatpush1.bf16.msra.mxu0 %v5642
        %6037 = vmatprep.subr.bf16.mxu0 %v5651
        %6038 = vmatpush1.bf16.msra.mxu0 %v5650
        %6039 = vmatprep.subr.bf16.mxu0 %v5659
        %6040 = vmatpush1.bf16.msra.mxu0 %v5658
        %6041 = vmatprep.subr.bf16.mxu0 %v5667
        %6042 = vmatpush1.bf16.msra.mxu0 %v5666
        %6043 = vmatprep.subr.bf16.mxu0 %v5675
        %6044 = vmatpush1.bf16.msra.mxu0 %v5674
        %6045 = vmatprep.subr.bf16.mxu0 %v5683
        %6046 = vmatpush1.bf16.msra.mxu0 %v5682
        %6047 = vmatprep.subr.bf16.mxu0 %v5691
        %6048 = vmatpush1.bf16.msra.mxu0 %v5690
        %6049 = vmatprep.mubr.bf16.mxu0 %v4993
        %6050 = vmatmul.mubr.bf16.gmra.mrb[0].mxu0 %v4992
        %v6051 = vpop.f32.mrb[0].mxu0
        %v6052 = vadd.f32 %v5163, %v6051
        %v6053 = vpop.f32.mrb[0].mxu0
        %v6054 = vadd.f32 %v5167, %v6053
        %v6055 = vpop.f32.mrb[0].mxu0
        %v6056 = vadd.f32 %v5163, %v6055
        %v6057 = vpop.f32.mrb[0].mxu0
        %v6058 = vadd.f32 %v5167, %v6057
        %6059 = vmatprep.mubr.bf16.mxu0 %v4995
        %6060 = vmatmul.mubr.bf16.gmra.mrb[0].mxu0 %v4994
        %v6061 = vpop.f32.mrb[0].mxu0
        %v6062 = vadd.f32 %v5163, %v6061
        %v6063 = vpop.f32.mrb[0].mxu0
        %v6064 = vadd.f32 %v5167, %v6063
        %v6065 = vpop.f32.mrb[0].mxu0
        %v6066 = vadd.f32 %v5163, %v6065
        %v6067 = vpop.f32.mrb[0].mxu0
        %v6068 = vadd.f32 %v5167, %v6067
        %6069 = vmatprep.mubr.bf16.mxu0 %v4997
        %6070 = vmatmul.mubr.bf16.gmra.mrb[0].mxu0 %v4996
        %v6071 = vpop.f32.mrb[0].mxu0
        %v6072 = vadd.f32 %v5163, %v6071
        %v6073 = vpop.f32.mrb[0].mxu0
        %v6074 = vadd.f32 %v5167, %v6073
        %v6075 = vpop.f32.mrb[0].mxu0
        %v6076 = vadd.f32 %v5163, %v6075
        %v6077 = vpop.f32.mrb[0].mxu0
        %v6078 = vadd.f32 %v5167, %v6077
        %6079 = vmatprep.mubr.bf16.mxu0 %v4999
        %6080 = vmatmul.mubr.bf16.gmra.mrb[0].mxu0 %v4998
        %v6081 = vpop.f32.mrb[0].mxu0
        %v6082 = vadd.f32 %v5163, %v6081
        %v6083 = vpop.f32.mrb[0].mxu0
        %v6084 = vadd.f32 %v5167, %v6083
        %v6085 = vpop.f32.mrb[0].mxu0
        %v6086 = vadd.f32 %v5163, %v6085
        %v6087 = vpop.f32.mrb[0].mxu0
        %v6088 = vadd.f32 %v5167, %v6087
        %6089 = vmatprep.mubr.bf16.mxu0 %v5001
        %6090 = vmatmul.mubr.bf16.gmra.mrb[0].mxu0 %v5000
        %v6091 = vpop.f32.mrb[0].mxu0
        %v6092 = vadd.f32 %v5163, %v6091
        %v6093 = vpop.f32.mrb[0].mxu0
        %v6094 = vadd.f32 %v5167, %v6093
        %v6095 = vpop.f32.mrb[0].mxu0
        %v6096 = vadd.f32 %v5163, %v6095
        %v6097 = vpop.f32.mrb[0].mxu0
        %v6098 = vadd.f32 %v5167, %v6097
        %6099 = vmatprep.mubr.bf16.mxu0 %v5003
        %6100 = vmatmul.mubr.bf16.gmra.mrb[0].mxu0 %v5002
        %v6101 = vpop.f32.mrb[0].mxu0
        %v6102 = vadd.f32 %v5163, %v6101
        %v6103 = vpop.f32.mrb[0].mxu0
        %v6104 = vadd.f32 %v5167, %v6103
        %v6105 = vpop.f32.mrb[0].mxu0
        %v6106 = vadd.f32 %v5163, %v6105
        %v6107 = vpop.f32.mrb[0].mxu0
        %v6108 = vadd.f32 %v5167, %v6107
        %6109 = vmatprep.mubr.bf16.mxu0 %v5005
        %6110 = vmatmul.mubr.bf16.gmra.mrb[0].mxu0 %v5004
        %v6111 = vpop.f32.mrb[0].mxu0
        %v6112 = vadd.f32 %v5163, %v6111
        %v6113 = vpop.f32.mrb[0].mxu0
        %v6114 = vadd.f32 %v5167, %v6113
        %v6115 = vpop.f32.mrb[0].mxu0
        %v6116 = vadd.f32 %v5163, %v6115
        %v6117 = vpop.f32.mrb[0].mxu0
        %v6118 = vadd.f32 %v5167, %v6117
        %6119 = vmatprep.mubr.bf16.mxu0 %v5007
        %6120 = vmatmul.mubr.bf16.gmra.mrb[0].mxu0 %v5006
        %v6121 = vpop.f32.mrb[0].mxu0
        %v6122 = vadd.f32 %v5163, %v6121
        %v6123 = vpop.f32.mrb[0].mxu0
        %v6124 = vadd.f32 %v5167, %v6123
        %v6125 = vpop.f32.mrb[0].mxu0
        %v6126 = vadd.f32 %v5163, %v6125
        %v6127 = vpop.f32.mrb[0].mxu0
        %v6128 = vadd.f32 %v5167, %v6127
        %6129 = vmatprep.mubr.bf16.mxu0 %v5009
        %6130 = vmatmul.mubr.bf16.gmra.mrb[0].mxu0 %v5008
        %v6131 = vpop.f32.mrb[0].mxu0
        %v6132 = vadd.f32 %v5163, %v6131
        %v6133 = vpop.f32.mrb[0].mxu0
        %v6134 = vadd.f32 %v5167, %v6133
        %v6135 = vpop.f32.mrb[0].mxu0
        %v6136 = vadd.f32 %v5163, %v6135
        %v6137 = vpop.f32.mrb[0].mxu0
        %v6138 = vadd.f32 %v5167, %v6137
        %6139 = vmatprep.mubr.bf16.mxu0 %v5011
        %6140 = vmatmul.mubr.bf16.gmra.mrb[0].mxu0 %v5010
        %v6141 = vpop.f32.mrb[0].mxu0
        %v6142 = vadd.f32 %v5163, %v6141
        %v6143 = vpop.f32.mrb[0].mxu0
        %v6144 = vadd.f32 %v5167, %v6143
        %v6145 = vpop.f32.mrb[0].mxu0
        %v6146 = vadd.f32 %v5163, %v6145
        %v6147 = vpop.f32.mrb[0].mxu0
        %v6148 = vadd.f32 %v5167, %v6147
        %6149 = vmatprep.mubr.bf16.mxu0 %v5013
        %6150 = vmatmul.mubr.bf16.gmra.mrb[0].mxu0 %v5012
        %v6151 = vpop.f32.mrb[0].mxu0
        %v6152 = vadd.f32 %v5163, %v6151
        %v6153 = vpop.f32.mrb[0].mxu0
        %v6154 = vadd.f32 %v5167, %v6153
        %v6155 = vpop.f32.mrb[0].mxu0
        %v6156 = vadd.f32 %v5163, %v6155
        %v6157 = vpop.f32.mrb[0].mxu0
        %v6158 = vadd.f32 %v5167, %v6157
        %6159 = vmatprep.mubr.bf16.mxu0 %v5015
        %6160 = vmatmul.mubr.bf16.gmra.mrb[0].mxu0 %v5014
        %v6161 = vpop.f32.mrb[0].mxu0
        %v6162 = vadd.f32 %v5163, %v6161
        %v6163 = vpop.f32.mrb[0].mxu0
        %v6164 = vadd.f32 %v5167, %v6163
        %v6165 = vpop.f32.mrb[0].mxu0
        %v6166 = vadd.f32 %v5163, %v6165
        %v6167 = vpop.f32.mrb[0].mxu0
        %v6168 = vadd.f32 %v5167, %v6167
        %6169 = vmatprep.mubr.bf16.mxu0 %v5017
        %6170 = vmatmul.mubr.bf16.gmra.mrb[0].mxu0 %v5016
        %v6171 = vpop.f32.mrb[0].mxu0
        %v6172 = vadd.f32 %v5163, %v6171
        %v6173 = vpop.f32.mrb[0].mxu0
        %v6174 = vadd.f32 %v5167, %v6173
        %v6175 = vpop.f32.mrb[0].mxu0
        %v6176 = vadd.f32 %v5163, %v6175
        %v6177 = vpop.f32.mrb[0].mxu0
        %v6178 = vadd.f32 %v5167, %v6177
        %6179 = vmatprep.mubr.bf16.mxu0 %v5019
        %6180 = vmatmul.mubr.bf16.gmra.mrb[0].mxu0 %v5018
        %v6181 = vpop.f32.mrb[0].mxu0
        %v6182 = vadd.f32 %v5163, %v6181
        %v6183 = vpop.f32.mrb[0].mxu0
        %v6184 = vadd.f32 %v5167, %v6183
        %v6185 = vpop.f32.mrb[0].mxu0
        %v6186 = vadd.f32 %v5163, %v6185
        %v6187 = vpop.f32.mrb[0].mxu0
        %v6188 = vadd.f32 %v5167, %v6187
        %6189 = vmatprep.mubr.bf16.mxu0 %v5021
        %6190 = vmatmul.mubr.bf16.gmra.mrb[0].mxu0 %v5020
        %v6191 = vpop.f32.mrb[0].mxu0
        %v6192 = vadd.f32 %v5163, %v6191
        %v6193 = vpop.f32.mrb[0].mxu0
        %v6194 = vadd.f32 %v5167, %v6193
        %v6195 = vpop.f32.mrb[0].mxu0
        %v6196 = vadd.f32 %v5163, %v6195
        %v6197 = vpop.f32.mrb[0].mxu0
        %v6198 = vadd.f32 %v5167, %v6197
        %6199 = vmatprep.mubr.bf16.mxu0 %v5023
        %6200 = vmatmul.mubr.bf16.gmra.mrb[0].mxu0 %v5022
        %v6201 = vpop.f32.mrb[0].mxu0
        %v6202 = vadd.f32 %v5163, %v6201
        %v6203 = vpop.f32.mrb[0].mxu0
        %v6204 = vadd.f32 %v5167, %v6203
        %v6205 = vpop.f32.mrb[0].mxu0
        %v6206 = vadd.f32 %v5163, %v6205
        %v6207 = vpop.f32.mrb[0].mxu0
        %v6208 = vadd.f32 %v5167, %v6207
        %6209 = vdwg.mxu0
        %6210 = vmatprep.subr.bf16.mxu0 %v5573
        %6211 = vmatpush1.bf16.msra.mxu0 %v5572
        %6212 = vmatprep.subr.bf16.mxu0 %v5581
        %6213 = vmatpush1.bf16.msra.mxu0 %v5580
        %6214 = vmatprep.subr.bf16.mxu0 %v5589
        %6215 = vmatpush1.bf16.msra.mxu0 %v5588
        %6216 = vmatprep.subr.bf16.mxu0 %v5597
        %6217 = vmatpush1.bf16.msra.mxu0 %v5596
        %6218 = vmatprep.subr.bf16.mxu0 %v5605
        %6219 = vmatpush1.bf16.msra.mxu0 %v5604
        %6220 = vmatprep.subr.bf16.mxu0 %v5613
        %6221 = vmatpush1.bf16.msra.mxu0 %v5612
        %6222 = vmatprep.subr.bf16.mxu0 %v5621
        %6223 = vmatpush1.bf16.msra.mxu0 %v5620
        %6224 = vmatprep.subr.bf16.mxu0 %v5629
        %6225 = vmatpush1.bf16.msra.mxu0 %v5628
        %6226 = vmatprep.subr.bf16.mxu0 %v5637
        %6227 = vmatpush1.bf16.msra.mxu0 %v5636
        %6228 = vmatprep.subr.bf16.mxu0 %v5645
        %6229 = vmatpush1.bf16.msra.mxu0 %v5644
        %6230 = vmatprep.subr.bf16.mxu0 %v5653
        %6231 = vmatpush1.bf16.msra.mxu0 %v5652
        %6232 = vmatprep.subr.bf16.mxu0 %v5661
        %6233 = vmatpush1.bf16.msra.mxu0 %v5660
        %6234 = vmatprep.subr.bf16.mxu0 %v5669
        %6235 = vmatpush1.bf16.msra.mxu0 %v5668
        %6236 = vmatprep.subr.bf16.mxu0 %v5677
        %6237 = vmatpush1.bf16.msra.mxu0 %v5676
        %6238 = vmatprep.subr.bf16.mxu0 %v5685
        %6239 = vmatpush1.bf16.msra.mxu0 %v5684
        %6240 = vmatprep.subr.bf16.mxu0 %v5693
        %6241 = vmatpush1.bf16.msra.mxu0 %v5692
        %6242 = vmatprep.mubr.bf16.mxu0 %v4993
        %6243 = vmatmul.mubr.bf16.gmra.mrb[0].mxu0 %v4992
        %v6244 = vpop.f32.mrb[0].mxu0
        %v6245 = vadd.f32 %v5171, %v6244
        %v6246 = vpop.f32.mrb[0].mxu0
        %v6247 = vadd.f32 %v5175, %v6246
        %v6248 = vpop.f32.mrb[0].mxu0
        %v6249 = vadd.f32 %v5171, %v6248
        %v6250 = vpop.f32.mrb[0].mxu0
        %v6251 = vadd.f32 %v5175, %v6250
        %6252 = vmatprep.mubr.bf16.mxu0 %v4995
        %6253 = vmatmul.mubr.bf16.gmra.mrb[0].mxu0 %v4994
        %v6254 = vpop.f32.mrb[0].mxu0
        %v6255 = vadd.f32 %v5171, %v6254
        %v6256 = vpop.f32.mrb[0].mxu0
        %v6257 = vadd.f32 %v5175, %v6256
        %v6258 = vpop.f32.mrb[0].mxu0
        %v6259 = vadd.f32 %v5171, %v6258
        %v6260 = vpop.f32.mrb[0].mxu0
        %v6261 = vadd.f32 %v5175, %v6260
        %6262 = vmatprep.mubr.bf16.mxu0 %v4997
        %6263 = vmatmul.mubr.bf16.gmra.mrb[0].mxu0 %v4996
        %v6264 = vpop.f32.mrb[0].mxu0
        %v6265 = vadd.f32 %v5171, %v6264
        %v6266 = vpop.f32.mrb[0].mxu0
        %v6267 = vadd.f32 %v5175, %v6266
        %v6268 = vpop.f32.mrb[0].mxu0
        %v6269 = vadd.f32 %v5171, %v6268
        %v6270 = vpop.f32.mrb[0].mxu0
        %v6271 = vadd.f32 %v5175, %v6270
        %6272 = vmatprep.mubr.bf16.mxu0 %v4999
        %6273 = vmatmul.mubr.bf16.gmra.mrb[0].mxu0 %v4998
        %v6274 = vpop.f32.mrb[0].mxu0
        %v6275 = vadd.f32 %v5171, %v6274
        %v6276 = vpop.f32.mrb[0].mxu0
        %v6277 = vadd.f32 %v5175, %v6276
        %v6278 = vpop.f32.mrb[0].mxu0
        %v6279 = vadd.f32 %v5171, %v6278
        %v6280 = vpop.f32.mrb[0].mxu0
        %v6281 = vadd.f32 %v5175, %v6280
        %6282 = vmatprep.mubr.bf16.mxu0 %v5001
        %6283 = vmatmul.mubr.bf16.gmra.mrb[0].mxu0 %v5000
        %v6284 = vpop.f32.mrb[0].mxu0
        %v6285 = vadd.f32 %v5171, %v6284
        %v6286 = vpop.f32.mrb[0].mxu0
        %v6287 = vadd.f32 %v5175, %v6286
        %v6288 = vpop.f32.mrb[0].mxu0
        %v6289 = vadd.f32 %v5171, %v6288
        %v6290 = vpop.f32.mrb[0].mxu0
        %v6291 = vadd.f32 %v5175, %v6290
        %6292 = vmatprep.mubr.bf16.mxu0 %v5003
        %6293 = vmatmul.mubr.bf16.gmra.mrb[0].mxu0 %v5002
        %v6294 = vpop.f32.mrb[0].mxu0
        %v6295 = vadd.f32 %v5171, %v6294
        %v6296 = vpop.f32.mrb[0].mxu0
        %v6297 = vadd.f32 %v5175, %v6296
        %v6298 = vpop.f32.mrb[0].mxu0
        %v6299 = vadd.f32 %v5171, %v6298
        %v6300 = vpop.f32.mrb[0].mxu0
        %v6301 = vadd.f32 %v5175, %v6300
        %6302 = vmatprep.mubr.bf16.mxu0 %v5005
        %6303 = vmatmul.mubr.bf16.gmra.mrb[0].mxu0 %v5004
        %v6304 = vpop.f32.mrb[0].mxu0
        %v6305 = vadd.f32 %v5171, %v6304
        %v6306 = vpop.f32.mrb[0].mxu0
        %v6307 = vadd.f32 %v5175, %v6306
        %v6308 = vpop.f32.mrb[0].mxu0
        %v6309 = vadd.f32 %v5171, %v6308
        %v6310 = vpop.f32.mrb[0].mxu0
        %v6311 = vadd.f32 %v5175, %v6310
        %6312 = vmatprep.mubr.bf16.mxu0 %v5007
        %6313 = vmatmul.mubr.bf16.gmra.mrb[0].mxu0 %v5006
        %v6314 = vpop.f32.mrb[0].mxu0
        %v6315 = vadd.f32 %v5171, %v6314
        %v6316 = vpop.f32.mrb[0].mxu0
        %v6317 = vadd.f32 %v5175, %v6316
        %v6318 = vpop.f32.mrb[0].mxu0
        %v6319 = vadd.f32 %v5171, %v6318
        %v6320 = vpop.f32.mrb[0].mxu0
        %v6321 = vadd.f32 %v5175, %v6320
        %6322 = vmatprep.mubr.bf16.mxu0 %v5009
        %6323 = vmatmul.mubr.bf16.gmra.mrb[0].mxu0 %v5008
        %v6324 = vpop.f32.mrb[0].mxu0
        %v6325 = vadd.f32 %v5171, %v6324
        %v6326 = vpop.f32.mrb[0].mxu0
        %v6327 = vadd.f32 %v5175, %v6326
        %v6328 = vpop.f32.mrb[0].mxu0
        %v6329 = vadd.f32 %v5171, %v6328
        %v6330 = vpop.f32.mrb[0].mxu0
        %v6331 = vadd.f32 %v5175, %v6330
        %6332 = vmatprep.mubr.bf16.mxu0 %v5011
        %6333 = vmatmul.mubr.bf16.gmra.mrb[0].mxu0 %v5010
        %v6334 = vpop.f32.mrb[0].mxu0
        %v6335 = vadd.f32 %v5171, %v6334
        %v6336 = vpop.f32.mrb[0].mxu0
        %v6337 = vadd.f32 %v5175, %v6336
        %v6338 = vpop.f32.mrb[0].mxu0
        %v6339 = vadd.f32 %v5171, %v6338
        %v6340 = vpop.f32.mrb[0].mxu0
        %v6341 = vadd.f32 %v5175, %v6340
        %6342 = vmatprep.mubr.bf16.mxu0 %v5013
        %6343 = vmatmul.mubr.bf16.gmra.mrb[0].mxu0 %v5012
        %v6344 = vpop.f32.mrb[0].mxu0
        %v6345 = vadd.f32 %v5171, %v6344
        %v6346 = vpop.f32.mrb[0].mxu0
        %v6347 = vadd.f32 %v5175, %v6346
        %v6348 = vpop.f32.mrb[0].mxu0
        %v6349 = vadd.f32 %v5171, %v6348
        %v6350 = vpop.f32.mrb[0].mxu0
        %v6351 = vadd.f32 %v5175, %v6350
        %6352 = vmatprep.mubr.bf16.mxu0 %v5015
        %6353 = vmatmul.mubr.bf16.gmra.mrb[0].mxu0 %v5014
        %v6354 = vpop.f32.mrb[0].mxu0
        %v6355 = vadd.f32 %v5171, %v6354
        %v6356 = vpop.f32.mrb[0].mxu0
        %v6357 = vadd.f32 %v5175, %v6356
        %v6358 = vpop.f32.mrb[0].mxu0
        %v6359 = vadd.f32 %v5171, %v6358
        %v6360 = vpop.f32.mrb[0].mxu0
        %v6361 = vadd.f32 %v5175, %v6360
        %6362 = vmatprep.mubr.bf16.mxu0 %v5017
        %6363 = vmatmul.mubr.bf16.gmra.mrb[0].mxu0 %v5016
        %v6364 = vpop.f32.mrb[0].mxu0
        %v6365 = vadd.f32 %v5171, %v6364
        %v6366 = vpop.f32.mrb[0].mxu0
        %v6367 = vadd.f32 %v5175, %v6366
        %v6368 = vpop.f32.mrb[0].mxu0
        %v6369 = vadd.f32 %v5171, %v6368
        %v6370 = vpop.f32.mrb[0].mxu0
        %v6371 = vadd.f32 %v5175, %v6370
        %6372 = vmatprep.mubr.bf16.mxu0 %v5019
        %6373 = vmatmul.mubr.bf16.gmra.mrb[0].mxu0 %v5018
        %v6374 = vpop.f32.mrb[0].mxu0
        %v6375 = vadd.f32 %v5171, %v6374
        %v6376 = vpop.f32.mrb[0].mxu0
        %v6377 = vadd.f32 %v5175, %v6376
        %v6378 = vpop.f32.mrb[0].mxu0
        %v6379 = vadd.f32 %v5171, %v6378
        %v6380 = vpop.f32.mrb[0].mxu0
        %v6381 = vadd.f32 %v5175, %v6380
        %6382 = vmatprep.mubr.bf16.mxu0 %v5021
        %6383 = vmatmul.mubr.bf16.gmra.mrb[0].mxu0 %v5020
        %v6384 = vpop.f32.mrb[0].mxu0
        %v6385 = vadd.f32 %v5171, %v6384
        %v6386 = vpop.f32.mrb[0].mxu0
        %v6387 = vadd.f32 %v5175, %v6386
        %v6388 = vpop.f32.mrb[0].mxu0
        %v6389 = vadd.f32 %v5171, %v6388
        %v6390 = vpop.f32.mrb[0].mxu0
        %v6391 = vadd.f32 %v5175, %v6390
        %6392 = vmatprep.mubr.bf16.mxu0 %v5023
        %6393 = vmatmul.mubr.bf16.gmra.mrb[0].mxu0 %v5022
        %v6394 = vpop.f32.mrb[0].mxu0
        %v6395 = vadd.f32 %v5171, %v6394
        %v6396 = vpop.f32.mrb[0].mxu0
        %v6397 = vadd.f32 %v5175, %v6396
        %v6398 = vpop.f32.mrb[0].mxu0
        %v6399 = vadd.f32 %v5171, %v6398
        %v6400 = vpop.f32.mrb[0].mxu0
        %v6401 = vadd.f32 %v5175, %v6400
        %6402 = vdwg.mxu0
        %6403 = vmatprep.subr.bf16.mxu0 %v5575
        %6404 = vmatpush1.bf16.msra.mxu0 %v5574
        %6405 = vmatprep.subr.bf16.mxu0 %v5583
        %6406 = vmatpush1.bf16.msra.mxu0 %v5582
        %6407 = vmatprep.subr.bf16.mxu0 %v5591
        %6408 = vmatpush1.bf16.msra.mxu0 %v5590
        %6409 = vmatprep.subr.bf16.mxu0 %v5599
        %6410 = vmatpush1.bf16.msra.mxu0 %v5598
        %6411 = vmatprep.subr.bf16.mxu0 %v5607
        %6412 = vmatpush1.bf16.msra.mxu0 %v5606
        %6413 = vmatprep.subr.bf16.mxu0 %v5615
        %6414 = vmatpush1.bf16.msra.mxu0 %v5614
        %6415 = vmatprep.subr.bf16.mxu0 %v5623
        %6416 = vmatpush1.bf16.msra.mxu0 %v5622
        %6417 = vmatprep.subr.bf16.mxu0 %v5631
        %6418 = vmatpush1.bf16.msra.mxu0 %v5630
        %6419 = vmatprep.subr.bf16.mxu0 %v5639
        %6420 = vmatpush1.bf16.msra.mxu0 %v5638
        %6421 = vmatprep.subr.bf16.mxu0 %v5647
        %6422 = vmatpush1.bf16.msra.mxu0 %v5646
        %6423 = vmatprep.subr.bf16.mxu0 %v5655
        %6424 = vmatpush1.bf16.msra.mxu0 %v5654
        %6425 = vmatprep.subr.bf16.mxu0 %v5663
        %6426 = vmatpush1.bf16.msra.mxu0 %v5662
        %6427 = vmatprep.subr.bf16.mxu0 %v5671
        %6428 = vmatpush1.bf16.msra.mxu0 %v5670
        %6429 = vmatprep.subr.bf16.mxu0 %v5679
        %6430 = vmatpush1.bf16.msra.mxu0 %v5678
        %6431 = vmatprep.subr.bf16.mxu0 %v5687
        %6432 = vmatpush1.bf16.msra.mxu0 %v5686
        %6433 = vmatprep.subr.bf16.mxu0 %v5695
        %6434 = vmatpush1.bf16.msra.mxu0 %v5694
        %6435 = vmatprep.mubr.bf16.mxu0 %v4993
        %6436 = vmatmul.mubr.bf16.gmra.mrb[0].mxu0 %v4992
        %v6437 = vpop.f32.mrb[0].mxu0
        %v6438 = vadd.f32 %v5179, %v6437
        %v6439 = vpop.f32.mrb[0].mxu0
        %v6440 = vadd.f32 %v5183, %v6439
        %v6441 = vpop.f32.mrb[0].mxu0
        %v6442 = vadd.f32 %v5179, %v6441
        %v6443 = vpop.f32.mrb[0].mxu0
        %v6444 = vadd.f32 %v5183, %v6443
        %6445 = vmatprep.mubr.bf16.mxu0 %v4995
        %6446 = vmatmul.mubr.bf16.gmra.mrb[0].mxu0 %v4994
        %v6447 = vpop.f32.mrb[0].mxu0
        %v6448 = vadd.f32 %v5179, %v6447
        %v6449 = vpop.f32.mrb[0].mxu0
        %v6450 = vadd.f32 %v5183, %v6449
        %v6451 = vpop.f32.mrb[0].mxu0
        %v6452 = vadd.f32 %v5179, %v6451
        %v6453 = vpop.f32.mrb[0].mxu0
        %v6454 = vadd.f32 %v5183, %v6453
        %6455 = vmatprep.mubr.bf16.mxu0 %v4997
        %6456 = vmatmul.mubr.bf16.gmra.mrb[0].mxu0 %v4996
        %v6457 = vpop.f32.mrb[0].mxu0
        %v6458 = vadd.f32 %v5179, %v6457
        %v6459 = vpop.f32.mrb[0].mxu0
        %v6460 = vadd.f32 %v5183, %v6459
        %v6461 = vpop.f32.mrb[0].mxu0
        %v6462 = vadd.f32 %v5179, %v6461
        %v6463 = vpop.f32.mrb[0].mxu0
        %v6464 = vadd.f32 %v5183, %v6463
        %6465 = vmatprep.mubr.bf16.mxu0 %v4999
        %6466 = vmatmul.mubr.bf16.gmra.mrb[0].mxu0 %v4998
        %v6467 = vpop.f32.mrb[0].mxu0
        %v6468 = vadd.f32 %v5179, %v6467
        %v6469 = vpop.f32.mrb[0].mxu0
        %v6470 = vadd.f32 %v5183, %v6469
        %v6471 = vpop.f32.mrb[0].mxu0
        %v6472 = vadd.f32 %v5179, %v6471
        %v6473 = vpop.f32.mrb[0].mxu0
        %v6474 = vadd.f32 %v5183, %v6473
        %6475 = vmatprep.mubr.bf16.mxu0 %v5001
        %6476 = vmatmul.mubr.bf16.gmra.mrb[0].mxu0 %v5000
        %v6477 = vpop.f32.mrb[0].mxu0
        %v6478 = vadd.f32 %v5179, %v6477
        %v6479 = vpop.f32.mrb[0].mxu0
        %v6480 = vadd.f32 %v5183, %v6479
        %v6481 = vpop.f32.mrb[0].mxu0
        %v6482 = vadd.f32 %v5179, %v6481
        %v6483 = vpop.f32.mrb[0].mxu0
        %v6484 = vadd.f32 %v5183, %v6483
        %6485 = vmatprep.mubr.bf16.mxu0 %v5003
        %6486 = vmatmul.mubr.bf16.gmra.mrb[0].mxu0 %v5002
        %v6487 = vpop.f32.mrb[0].mxu0
        %v6488 = vadd.f32 %v5179, %v6487
        %v6489 = vpop.f32.mrb[0].mxu0
        %v6490 = vadd.f32 %v5183, %v6489
        %v6491 = vpop.f32.mrb[0].mxu0
        %v6492 = vadd.f32 %v5179, %v6491
        %v6493 = vpop.f32.mrb[0].mxu0
        %v6494 = vadd.f32 %v5183, %v6493
        %6495 = vmatprep.mubr.bf16.mxu0 %v5005
        %6496 = vmatmul.mubr.bf16.gmra.mrb[0].mxu0 %v5004
        %v6497 = vpop.f32.mrb[0].mxu0
        %v6498 = vadd.f32 %v5179, %v6497
        %v6499 = vpop.f32.mrb[0].mxu0
        %v6500 = vadd.f32 %v5183, %v6499
        %v6501 = vpop.f32.mrb[0].mxu0
        %v6502 = vadd.f32 %v5179, %v6501
        %v6503 = vpop.f32.mrb[0].mxu0
        %v6504 = vadd.f32 %v5183, %v6503
        %6505 = vmatprep.mubr.bf16.mxu0 %v5007
        %6506 = vmatmul.mubr.bf16.gmra.mrb[0].mxu0 %v5006
        %v6507 = vpop.f32.mrb[0].mxu0
        %v6508 = vadd.f32 %v5179, %v6507
        %v6509 = vpop.f32.mrb[0].mxu0
        %v6510 = vadd.f32 %v5183, %v6509
        %v6511 = vpop.f32.mrb[0].mxu0
        %v6512 = vadd.f32 %v5179, %v6511
        %v6513 = vpop.f32.mrb[0].mxu0
        %v6514 = vadd.f32 %v5183, %v6513
        %6515 = vmatprep.mubr.bf16.mxu0 %v5009
        %6516 = vmatmul.mubr.bf16.gmra.mrb[0].mxu0 %v5008
        %v6517 = vpop.f32.mrb[0].mxu0
        %v6518 = vadd.f32 %v5179, %v6517
        %v6519 = vpop.f32.mrb[0].mxu0
        %v6520 = vadd.f32 %v5183, %v6519
        %v6521 = vpop.f32.mrb[0].mxu0
        %v6522 = vadd.f32 %v5179, %v6521
        %v6523 = vpop.f32.mrb[0].mxu0
        %v6524 = vadd.f32 %v5183, %v6523
        %6525 = vmatprep.mubr.bf16.mxu0 %v5011
        %6526 = vmatmul.mubr.bf16.gmra.mrb[0].mxu0 %v5010
        %v6527 = vpop.f32.mrb[0].mxu0
        %v6528 = vadd.f32 %v5179, %v6527
        %v6529 = vpop.f32.mrb[0].mxu0
        %v6530 = vadd.f32 %v5183, %v6529
        %v6531 = vpop.f32.mrb[0].mxu0
        %v6532 = vadd.f32 %v5179, %v6531
        %v6533 = vpop.f32.mrb[0].mxu0
        %v6534 = vadd.f32 %v5183, %v6533
        %6535 = vmatprep.mubr.bf16.mxu0 %v5013
        %6536 = vmatmul.mubr.bf16.gmra.mrb[0].mxu0 %v5012
        %v6537 = vpop.f32.mrb[0].mxu0
        %v6538 = vadd.f32 %v5179, %v6537
        %v6539 = vpop.f32.mrb[0].mxu0
        %v6540 = vadd.f32 %v5183, %v6539
        %v6541 = vpop.f32.mrb[0].mxu0
        %v6542 = vadd.f32 %v5179, %v6541
        %v6543 = vpop.f32.mrb[0].mxu0
        %v6544 = vadd.f32 %v5183, %v6543
        %6545 = vmatprep.mubr.bf16.mxu0 %v5015
        %6546 = vmatmul.mubr.bf16.gmra.mrb[0].mxu0 %v5014
        %v6547 = vpop.f32.mrb[0].mxu0
        %v6548 = vadd.f32 %v5179, %v6547
        %v6549 = vpop.f32.mrb[0].mxu0
        %v6550 = vadd.f32 %v5183, %v6549
        %v6551 = vpop.f32.mrb[0].mxu0
        %v6552 = vadd.f32 %v5179, %v6551
        %v6553 = vpop.f32.mrb[0].mxu0
        %v6554 = vadd.f32 %v5183, %v6553
        %6555 = vmatprep.mubr.bf16.mxu0 %v5017
        %6556 = vmatmul.mubr.bf16.gmra.mrb[0].mxu0 %v5016
        %v6557 = vpop.f32.mrb[0].mxu0
        %v6558 = vadd.f32 %v5179, %v6557
        %v6559 = vpop.f32.mrb[0].mxu0
        %v6560 = vadd.f32 %v5183, %v6559
        %v6561 = vpop.f32.mrb[0].mxu0
        %v6562 = vadd.f32 %v5179, %v6561
        %v6563 = vpop.f32.mrb[0].mxu0
        %v6564 = vadd.f32 %v5183, %v6563
        %6565 = vmatprep.mubr.bf16.mxu0 %v5019
        %6566 = vmatmul.mubr.bf16.gmra.mrb[0].mxu0 %v5018
        %v6567 = vpop.f32.mrb[0].mxu0
        %v6568 = vadd.f32 %v5179, %v6567
        %v6569 = vpop.f32.mrb[0].mxu0
        %v6570 = vadd.f32 %v5183, %v6569
        %v6571 = vpop.f32.mrb[0].mxu0
        %v6572 = vadd.f32 %v5179, %v6571
        %v6573 = vpop.f32.mrb[0].mxu0
        %v6574 = vadd.f32 %v5183, %v6573
        %6575 = vmatprep.mubr.bf16.mxu0 %v5021
        %6576 = vmatmul.mubr.bf16.gmra.mrb[0].mxu0 %v5020
        %v6577 = vpop.f32.mrb[0].mxu0
        %v6578 = vadd.f32 %v5179, %v6577
        %v6579 = vpop.f32.mrb[0].mxu0
        %v6580 = vadd.f32 %v5183, %v6579
        %v6581 = vpop.f32.mrb[0].mxu0
        %v6582 = vadd.f32 %v5179, %v6581
        %v6583 = vpop.f32.mrb[0].mxu0
        %v6584 = vadd.f32 %v5183, %v6583
        %6585 = vmatprep.mubr.bf16.mxu0 %v5023
        %6586 = vmatmul.mubr.bf16.gmra.mrb[0].mxu0 %v5022
        %v6587 = vpop.f32.mrb[0].mxu0
        %v6588 = vadd.f32 %v5179, %v6587
        %v6589 = vpop.f32.mrb[0].mxu0
        %v6590 = vadd.f32 %v5183, %v6589
        %v6591 = vpop.f32.mrb[0].mxu0
        %v6592 = vadd.f32 %v5179, %v6591
        %v6593 = vpop.f32.mrb[0].mxu0
        %v6594 = vadd.f32 %v5183, %v6593
        %6595 = vdwg.mxu0
        %v6596 = vmax.f32 %v5859, 0.0
        %v6597 = vmax.f32 %v5861, 0.0
        %v6598 = vmax.f32 %v6052, 0.0
        %v6599 = vmax.f32 %v6054, 0.0
        %v6600 = vmax.f32 %v6245, 0.0
        %v6601 = vmax.f32 %v6247, 0.0
        %v6602 = vmax.f32 %v6438, 0.0
        %v6603 = vmax.f32 %v6440, 0.0
        %v6604 = vmax.f32 %v5863, 0.0
        %v6605 = vmax.f32 %v5865, 0.0
        %v6606 = vmax.f32 %v6056, 0.0
        %v6607 = vmax.f32 %v6058, 0.0
        %v6608 = vmax.f32 %v6249, 0.0
        %v6609 = vmax.f32 %v6251, 0.0
        %v6610 = vmax.f32 %v6442, 0.0
        %v6611 = vmax.f32 %v6444, 0.0
        %v6612 = vmax.f32 %v5869, 0.0
        %v6613 = vmax.f32 %v5871, 0.0
        %v6614 = vmax.f32 %v6062, 0.0
        %v6615 = vmax.f32 %v6064, 0.0
        %v6616 = vmax.f32 %v6255, 0.0
        %v6617 = vmax.f32 %v6257, 0.0
        %v6618 = vmax.f32 %v6448, 0.0
        %v6619 = vmax.f32 %v6450, 0.0
        %v6620 = vmax.f32 %v5873, 0.0
        %v6621 = vmax.f32 %v5875, 0.0
        %v6622 = vmax.f32 %v6066, 0.0
        %v6623 = vmax.f32 %v6068, 0.0
        %v6624 = vmax.f32 %v6259, 0.0
        %v6625 = vmax.f32 %v6261, 0.0
        %v6626 = vmax.f32 %v6452, 0.0
        %v6627 = vmax.f32 %v6454, 0.0
        %v6628 = vmax.f32 %v5879, 0.0
        %v6629 = vmax.f32 %v5881, 0.0
        %v6630 = vmax.f32 %v6072, 0.0
        %v6631 = vmax.f32 %v6074, 0.0
        %v6632 = vmax.f32 %v6265, 0.0
        %v6633 = vmax.f32 %v6267, 0.0
        %v6634 = vmax.f32 %v6458, 0.0
        %v6635 = vmax.f32 %v6460, 0.0
        %v6636 = vmax.f32 %v5883, 0.0
        %v6637 = vmax.f32 %v5885, 0.0
        %v6638 = vmax.f32 %v6076, 0.0
        %v6639 = vmax.f32 %v6078, 0.0
        %v6640 = vmax.f32 %v6269, 0.0
        %v6641 = vmax.f32 %v6271, 0.0
        %v6642 = vmax.f32 %v6462, 0.0
        %v6643 = vmax.f32 %v6464, 0.0
        %v6644 = vmax.f32 %v5889, 0.0
        %v6645 = vmax.f32 %v5891, 0.0
        %v6646 = vmax.f32 %v6082, 0.0
        %v6647 = vmax.f32 %v6084, 0.0
        %v6648 = vmax.f32 %v6275, 0.0
        %v6649 = vmax.f32 %v6277, 0.0
        %v6650 = vmax.f32 %v6468, 0.0
        %v6651 = vmax.f32 %v6470, 0.0
        %v6652 = vmax.f32 %v5893, 0.0
        %v6653 = vmax.f32 %v5895, 0.0
        %v6654 = vmax.f32 %v6086, 0.0
        %v6655 = vmax.f32 %v6088, 0.0
        %v6656 = vmax.f32 %v6279, 0.0
        %v6657 = vmax.f32 %v6281, 0.0
        %v6658 = vmax.f32 %v6472, 0.0
        %v6659 = vmax.f32 %v6474, 0.0
        %v6660 = vmax.f32 %v5899, 0.0
        %v6661 = vmax.f32 %v5901, 0.0
        %v6662 = vmax.f32 %v6092, 0.0
        %v6663 = vmax.f32 %v6094, 0.0
        %v6664 = vmax.f32 %v6285, 0.0
        %v6665 = vmax.f32 %v6287, 0.0
        %v6666 = vmax.f32 %v6478, 0.0
        %v6667 = vmax.f32 %v6480, 0.0
        %v6668 = vmax.f32 %v5903, 0.0
        %v6669 = vmax.f32 %v5905, 0.0
        %v6670 = vmax.f32 %v6096, 0.0
        %v6671 = vmax.f32 %v6098, 0.0
        %v6672 = vmax.f32 %v6289, 0.0
        %v6673 = vmax.f32 %v6291, 0.0
        %v6674 = vmax.f32 %v6482, 0.0
        %v6675 = vmax.f32 %v6484, 0.0
        %v6676 = vmax.f32 %v5909, 0.0
        %v6677 = vmax.f32 %v5911, 0.0
        %v6678 = vmax.f32 %v6102, 0.0
        %v6679 = vmax.f32 %v6104, 0.0
        %v6680 = vmax.f32 %v6295, 0.0
        %v6681 = vmax.f32 %v6297, 0.0
        %v6682 = vmax.f32 %v6488, 0.0
        %v6683 = vmax.f32 %v6490, 0.0
        %v6684 = vmax.f32 %v5913, 0.0
        %v6685 = vmax.f32 %v5915, 0.0
        %v6686 = vmax.f32 %v6106, 0.0
        %v6687 = vmax.f32 %v6108, 0.0
        %v6688 = vmax.f32 %v6299, 0.0
        %v6689 = vmax.f32 %v6301, 0.0
        %v6690 = vmax.f32 %v6492, 0.0
        %v6691 = vmax.f32 %v6494, 0.0
        %v6692 = vmax.f32 %v5919, 0.0
        %v6693 = vmax.f32 %v5921, 0.0
        %v6694 = vmax.f32 %v6112, 0.0
        %v6695 = vmax.f32 %v6114, 0.0
        %v6696 = vmax.f32 %v6305, 0.0
        %v6697 = vmax.f32 %v6307, 0.0
        %v6698 = vmax.f32 %v6498, 0.0
        %v6699 = vmax.f32 %v6500, 0.0
        %v6700 = vmax.f32 %v5923, 0.0
        %v6701 = vmax.f32 %v5925, 0.0
        %v6702 = vmax.f32 %v6116, 0.0
        %v6703 = vmax.f32 %v6118, 0.0
        %v6704 = vmax.f32 %v6309, 0.0
        %v6705 = vmax.f32 %v6311, 0.0
        %v6706 = vmax.f32 %v6502, 0.0
        %v6707 = vmax.f32 %v6504, 0.0
        %v6708 = vmax.f32 %v5929, 0.0
        %v6709 = vmax.f32 %v5931, 0.0
        %v6710 = vmax.f32 %v6122, 0.0
        %v6711 = vmax.f32 %v6124, 0.0
        %v6712 = vmax.f32 %v6315, 0.0
        %v6713 = vmax.f32 %v6317, 0.0
        %v6714 = vmax.f32 %v6508, 0.0
        %v6715 = vmax.f32 %v6510, 0.0
        %v6716 = vmax.f32 %v5933, 0.0
        %v6717 = vmax.f32 %v5935, 0.0
        %v6718 = vmax.f32 %v6126, 0.0
        %v6719 = vmax.f32 %v6128, 0.0
        %v6720 = vmax.f32 %v6319, 0.0
        %v6721 = vmax.f32 %v6321, 0.0
        %v6722 = vmax.f32 %v6512, 0.0
        %v6723 = vmax.f32 %v6514, 0.0
        %v6724 = vmax.f32 %v5939, 0.0
        %v6725 = vmax.f32 %v5941, 0.0
        %v6726 = vmax.f32 %v6132, 0.0
        %v6727 = vmax.f32 %v6134, 0.0
        %v6728 = vmax.f32 %v6325, 0.0
        %v6729 = vmax.f32 %v6327, 0.0
        %v6730 = vmax.f32 %v6518, 0.0
        %v6731 = vmax.f32 %v6520, 0.0
        %v6732 = vmax.f32 %v5943, 0.0
        %v6733 = vmax.f32 %v5945, 0.0
        %v6734 = vmax.f32 %v6136, 0.0
        %v6735 = vmax.f32 %v6138, 0.0
        %v6736 = vmax.f32 %v6329, 0.0
        %v6737 = vmax.f32 %v6331, 0.0
        %v6738 = vmax.f32 %v6522, 0.0
        %v6739 = vmax.f32 %v6524, 0.0
        %v6740 = vmax.f32 %v5949, 0.0
        %v6741 = vmax.f32 %v5951, 0.0
        %v6742 = vmax.f32 %v6142, 0.0
        %v6743 = vmax.f32 %v6144, 0.0
        %v6744 = vmax.f32 %v6335, 0.0
        %v6745 = vmax.f32 %v6337, 0.0
        %v6746 = vmax.f32 %v6528, 0.0
        %v6747 = vmax.f32 %v6530, 0.0
        %v6748 = vmax.f32 %v5953, 0.0
        %v6749 = vmax.f32 %v5955, 0.0
        %v6750 = vmax.f32 %v6146, 0.0
        %v6751 = vmax.f32 %v6148, 0.0
        %v6752 = vmax.f32 %v6339, 0.0
        %v6753 = vmax.f32 %v6341, 0.0
        %v6754 = vmax.f32 %v6532, 0.0
        %v6755 = vmax.f32 %v6534, 0.0
        %v6756 = vmax.f32 %v5959, 0.0
        %v6757 = vmax.f32 %v5961, 0.0
        %v6758 = vmax.f32 %v6152, 0.0
        %v6759 = vmax.f32 %v6154, 0.0
        %v6760 = vmax.f32 %v6345, 0.0
        %v6761 = vmax.f32 %v6347, 0.0
        %v6762 = vmax.f32 %v6538, 0.0
        %v6763 = vmax.f32 %v6540, 0.0
        %v6764 = vmax.f32 %v5963, 0.0
        %v6765 = vmax.f32 %v5965, 0.0
        %v6766 = vmax.f32 %v6156, 0.0
        %v6767 = vmax.f32 %v6158, 0.0
        %v6768 = vmax.f32 %v6349, 0.0
        %v6769 = vmax.f32 %v6351, 0.0
        %v6770 = vmax.f32 %v6542, 0.0
        %v6771 = vmax.f32 %v6544, 0.0
        %v6772 = vmax.f32 %v5969, 0.0
        %v6773 = vmax.f32 %v5971, 0.0
        %v6774 = vmax.f32 %v6162, 0.0
        %v6775 = vmax.f32 %v6164, 0.0
        %v6776 = vmax.f32 %v6355, 0.0
        %v6777 = vmax.f32 %v6357, 0.0
        %v6778 = vmax.f32 %v6548, 0.0
        %v6779 = vmax.f32 %v6550, 0.0
        %v6780 = vmax.f32 %v5973, 0.0
        %v6781 = vmax.f32 %v5975, 0.0
        %v6782 = vmax.f32 %v6166, 0.0
        %v6783 = vmax.f32 %v6168, 0.0
        %v6784 = vmax.f32 %v6359, 0.0
        %v6785 = vmax.f32 %v6361, 0.0
        %v6786 = vmax.f32 %v6552, 0.0
        %v6787 = vmax.f32 %v6554, 0.0
        %v6788 = vmax.f32 %v5979, 0.0
        %v6789 = vmax.f32 %v5981, 0.0
        %v6790 = vmax.f32 %v6172, 0.0
        %v6791 = vmax.f32 %v6174, 0.0
        %v6792 = vmax.f32 %v6365, 0.0
        %v6793 = vmax.f32 %v6367, 0.0
        %v6794 = vmax.f32 %v6558, 0.0
        %v6795 = vmax.f32 %v6560, 0.0
        %v6796 = vmax.f32 %v5983, 0.0
        %v6797 = vmax.f32 %v5985, 0.0
        %v6798 = vmax.f32 %v6176, 0.0
        %v6799 = vmax.f32 %v6178, 0.0
        %v6800 = vmax.f32 %v6369, 0.0
        %v6801 = vmax.f32 %v6371, 0.0
        %v6802 = vmax.f32 %v6562, 0.0
        %v6803 = vmax.f32 %v6564, 0.0
        %v6804 = vmax.f32 %v5989, 0.0
        %v6805 = vmax.f32 %v5991, 0.0
        %v6806 = vmax.f32 %v6182, 0.0
        %v6807 = vmax.f32 %v6184, 0.0
        %v6808 = vmax.f32 %v6375, 0.0
        %v6809 = vmax.f32 %v6377, 0.0
        %v6810 = vmax.f32 %v6568, 0.0
        %v6811 = vmax.f32 %v6570, 0.0
        %v6812 = vmax.f32 %v5993, 0.0
        %v6813 = vmax.f32 %v5995, 0.0
        %v6814 = vmax.f32 %v6186, 0.0
        %v6815 = vmax.f32 %v6188, 0.0
        %v6816 = vmax.f32 %v6379, 0.0
        %v6817 = vmax.f32 %v6381, 0.0
        %v6818 = vmax.f32 %v6572, 0.0
        %v6819 = vmax.f32 %v6574, 0.0
        %v6820 = vmax.f32 %v5999, 0.0
        %v6821 = vmax.f32 %v6001, 0.0
        %v6822 = vmax.f32 %v6192, 0.0
        %v6823 = vmax.f32 %v6194, 0.0
        %v6824 = vmax.f32 %v6385, 0.0
        %v6825 = vmax.f32 %v6387, 0.0
        %v6826 = vmax.f32 %v6578, 0.0
        %v6827 = vmax.f32 %v6580, 0.0
        %v6828 = vmax.f32 %v6003, 0.0
        %v6829 = vmax.f32 %v6005, 0.0
        %v6830 = vmax.f32 %v6196, 0.0
        %v6831 = vmax.f32 %v6198, 0.0
        %v6832 = vmax.f32 %v6389, 0.0
        %v6833 = vmax.f32 %v6391, 0.0
        %v6834 = vmax.f32 %v6582, 0.0
        %v6835 = vmax.f32 %v6584, 0.0
        %v6836 = vmax.f32 %v6009, 0.0
        %v6837 = vmax.f32 %v6011, 0.0
        %v6838 = vmax.f32 %v6202, 0.0
        %v6839 = vmax.f32 %v6204, 0.0
        %v6840 = vmax.f32 %v6395, 0.0
        %v6841 = vmax.f32 %v6397, 0.0
        %v6842 = vmax.f32 %v6588, 0.0
        %v6843 = vmax.f32 %v6590, 0.0
        %v6844 = vmax.f32 %v6013, 0.0
        %v6845 = vmax.f32 %v6015, 0.0
        %v6846 = vmax.f32 %v6206, 0.0
        %v6847 = vmax.f32 %v6208, 0.0
        %v6848 = vmax.f32 %v6399, 0.0
        %v6849 = vmax.f32 %v6401, 0.0
        %v6850 = vmax.f32 %v6592, 0.0
        %v6851 = vmax.f32 %v6594, 0.0
        %v6852 = vpack.c.bf16 %v6604, %v6596
        %v6853 = vpack.c.bf16 %v6605, %v6597
        %v6854 = vpack.c.bf16 %v6606, %v6598
        %v6855 = vpack.c.bf16 %v6607, %v6599
        %v6856 = vpack.c.bf16 %v6608, %v6600
        %v6857 = vpack.c.bf16 %v6609, %v6601
        %v6858 = vpack.c.bf16 %v6610, %v6602
        %v6859 = vpack.c.bf16 %v6611, %v6603
        %v6860 = vpack.c.bf16 %v6620, %v6612
        %v6861 = vpack.c.bf16 %v6621, %v6613
        %v6862 = vpack.c.bf16 %v6622, %v6614
        %v6863 = vpack.c.bf16 %v6623, %v6615
        %v6864 = vpack.c.bf16 %v6624, %v6616
        %v6865 = vpack.c.bf16 %v6625, %v6617
        %v6866 = vpack.c.bf16 %v6626, %v6618
        %v6867 = vpack.c.bf16 %v6627, %v6619
        %v6868 = vpack.c.bf16 %v6636, %v6628
        %v6869 = vpack.c.bf16 %v6637, %v6629
        %v6870 = vpack.c.bf16 %v6638, %v6630
        %v6871 = vpack.c.bf16 %v6639, %v6631
        %v6872 = vpack.c.bf16 %v6640, %v6632
        %v6873 = vpack.c.bf16 %v6641, %v6633
        %v6874 = vpack.c.bf16 %v6642, %v6634
        %v6875 = vpack.c.bf16 %v6643, %v6635
        %v6876 = vpack.c.bf16 %v6652, %v6644
        %v6877 = vpack.c.bf16 %v6653, %v6645
        %v6878 = vpack.c.bf16 %v6654, %v6646
        %v6879 = vpack.c.bf16 %v6655, %v6647
        %v6880 = vpack.c.bf16 %v6656, %v6648
        %v6881 = vpack.c.bf16 %v6657, %v6649
        %v6882 = vpack.c.bf16 %v6658, %v6650
        %v6883 = vpack.c.bf16 %v6659, %v6651
        %v6884 = vpack.c.bf16 %v6668, %v6660
        %v6885 = vpack.c.bf16 %v6669, %v6661
        %v6886 = vpack.c.bf16 %v6670, %v6662
        %v6887 = vpack.c.bf16 %v6671, %v6663
        %v6888 = vpack.c.bf16 %v6672, %v6664
        %v6889 = vpack.c.bf16 %v6673, %v6665
        %v6890 = vpack.c.bf16 %v6674, %v6666
        %v6891 = vpack.c.bf16 %v6675, %v6667
        %v6892 = vpack.c.bf16 %v6684, %v6676
        %v6893 = vpack.c.bf16 %v6685, %v6677
        %v6894 = vpack.c.bf16 %v6686, %v6678
        %v6895 = vpack.c.bf16 %v6687, %v6679
        %v6896 = vpack.c.bf16 %v6688, %v6680
        %v6897 = vpack.c.bf16 %v6689, %v6681
        %v6898 = vpack.c.bf16 %v6690, %v6682
        %v6899 = vpack.c.bf16 %v6691, %v6683
        %v6900 = vpack.c.bf16 %v6700, %v6692
        %v6901 = vpack.c.bf16 %v6701, %v6693
        %v6902 = vpack.c.bf16 %v6702, %v6694
        %v6903 = vpack.c.bf16 %v6703, %v6695
        %v6904 = vpack.c.bf16 %v6704, %v6696
        %v6905 = vpack.c.bf16 %v6705, %v6697
        %v6906 = vpack.c.bf16 %v6706, %v6698
        %v6907 = vpack.c.bf16 %v6707, %v6699
        %v6908 = vpack.c.bf16 %v6716, %v6708
        %v6909 = vpack.c.bf16 %v6717, %v6709
        %v6910 = vpack.c.bf16 %v6718, %v6710
        %v6911 = vpack.c.bf16 %v6719, %v6711
        %v6912 = vpack.c.bf16 %v6720, %v6712
        %v6913 = vpack.c.bf16 %v6721, %v6713
        %v6914 = vpack.c.bf16 %v6722, %v6714
        %v6915 = vpack.c.bf16 %v6723, %v6715
        %v6916 = vpack.c.bf16 %v6732, %v6724
        %v6917 = vpack.c.bf16 %v6733, %v6725
        %v6918 = vpack.c.bf16 %v6734, %v6726
        %v6919 = vpack.c.bf16 %v6735, %v6727
        %v6920 = vpack.c.bf16 %v6736, %v6728
        %v6921 = vpack.c.bf16 %v6737, %v6729
        %v6922 = vpack.c.bf16 %v6738, %v6730
        %v6923 = vpack.c.bf16 %v6739, %v6731
        %v6924 = vpack.c.bf16 %v6748, %v6740
        %v6925 = vpack.c.bf16 %v6749, %v6741
        %v6926 = vpack.c.bf16 %v6750, %v6742
        %v6927 = vpack.c.bf16 %v6751, %v6743
        %v6928 = vpack.c.bf16 %v6752, %v6744
        %v6929 = vpack.c.bf16 %v6753, %v6745
        %v6930 = vpack.c.bf16 %v6754, %v6746
        %v6931 = vpack.c.bf16 %v6755, %v6747
        %v6932 = vpack.c.bf16 %v6764, %v6756
        %v6933 = vpack.c.bf16 %v6765, %v6757
        %v6934 = vpack.c.bf16 %v6766, %v6758
        %v6935 = vpack.c.bf16 %v6767, %v6759
        %v6936 = vpack.c.bf16 %v6768, %v6760
        %v6937 = vpack.c.bf16 %v6769, %v6761
        %v6938 = vpack.c.bf16 %v6770, %v6762
        %v6939 = vpack.c.bf16 %v6771, %v6763
        %v6940 = vpack.c.bf16 %v6780, %v6772
        %v6941 = vpack.c.bf16 %v6781, %v6773
        %v6942 = vpack.c.bf16 %v6782, %v6774
        %v6943 = vpack.c.bf16 %v6783, %v6775
        %v6944 = vpack.c.bf16 %v6784, %v6776
        %v6945 = vpack.c.bf16 %v6785, %v6777
        %v6946 = vpack.c.bf16 %v6786, %v6778
        %v6947 = vpack.c.bf16 %v6787, %v6779
        %v6948 = vpack.c.bf16 %v6796, %v6788
        %v6949 = vpack.c.bf16 %v6797, %v6789
        %v6950 = vpack.c.bf16 %v6798, %v6790
        %v6951 = vpack.c.bf16 %v6799, %v6791
        %v6952 = vpack.c.bf16 %v6800, %v6792
        %v6953 = vpack.c.bf16 %v6801, %v6793
        %v6954 = vpack.c.bf16 %v6802, %v6794
        %v6955 = vpack.c.bf16 %v6803, %v6795
        %v6956 = vpack.c.bf16 %v6812, %v6804
        %v6957 = vpack.c.bf16 %v6813, %v6805
        %v6958 = vpack.c.bf16 %v6814, %v6806
        %v6959 = vpack.c.bf16 %v6815, %v6807
        %v6960 = vpack.c.bf16 %v6816, %v6808
        %v6961 = vpack.c.bf16 %v6817, %v6809
        %v6962 = vpack.c.bf16 %v6818, %v6810
        %v6963 = vpack.c.bf16 %v6819, %v6811
        %v6964 = vpack.c.bf16 %v6828, %v6820
        %v6965 = vpack.c.bf16 %v6829, %v6821
        %v6966 = vpack.c.bf16 %v6830, %v6822
        %v6967 = vpack.c.bf16 %v6831, %v6823
        %v6968 = vpack.c.bf16 %v6832, %v6824
        %v6969 = vpack.c.bf16 %v6833, %v6825
        %v6970 = vpack.c.bf16 %v6834, %v6826
        %v6971 = vpack.c.bf16 %v6835, %v6827
        %v6972 = vpack.c.bf16 %v6844, %v6836
        %v6973 = vpack.c.bf16 %v6845, %v6837
        %v6974 = vpack.c.bf16 %v6846, %v6838
        %v6975 = vpack.c.bf16 %v6847, %v6839
        %v6976 = vpack.c.bf16 %v6848, %v6840
        %v6977 = vpack.c.bf16 %v6849, %v6841
        %v6978 = vpack.c.bf16 %v6850, %v6842
        %v6979 = vpack.c.bf16 %v6851, %v6843
        %v6980 = vld [vmem:[%s537] sm:$0xff]
        %v6981 = vld [vmem:[%s537 + $0x8] sm:$0xff]
        %v6982 = vld [vmem:[%s537 + $0x10] sm:$0xff]
        %v6983 = vld [vmem:[%s537 + $0x18] sm:$0xff]
        %v6984 = vld [vmem:[%s537 + $0x20] sm:$0xff]
        %v6985 = vld [vmem:[%s537 + $0x28] sm:$0xff]
        %v6986 = vld [vmem:[%s537 + $0x30] sm:$0xff]
        %v6987 = vld [vmem:[%s537 + $0x38] sm:$0xff]
        %v6988 = vld [vmem:[%s537 + $0x40] sm:$0xff]
        %v6989 = vld [vmem:[%s537 + $0x48] sm:$0xff]
        %v6990 = vld [vmem:[%s537 + $0x50] sm:$0xff]
        %v6991 = vld [vmem:[%s537 + $0x58] sm:$0xff]
        %v6992 = vld [vmem:[%s537 + $0x60] sm:$0xff]
        %v6993 = vld [vmem:[%s537 + $0x68] sm:$0xff]
        %v6994 = vld [vmem:[%s537 + $0x70] sm:$0xff]
        %v6995 = vld [vmem:[%s537 + $0x78] sm:$0xff]
        %v6996 = vld [vmem:[%s537 + $0x80] sm:$0xff]
        %v6997 = vld [vmem:[%s537 + $0x88] sm:$0xff]
        %v6998 = vld [vmem:[%s537 + $0x90] sm:$0xff]
        %v6999 = vld [vmem:[%s537 + $0x98] sm:$0xff]
        %v7000 = vld [vmem:[%s537 + $0xa0] sm:$0xff]
        %v7001 = vld [vmem:[%s537 + $0xa8] sm:$0xff]
        %v7002 = vld [vmem:[%s537 + $0xb0] sm:$0xff]
        %v7003 = vld [vmem:[%s537 + $0xb8] sm:$0xff]
        %v7004 = vld [vmem:[%s537 + $0xc0] sm:$0xff]
        %v7005 = vld [vmem:[%s537 + $0xc8] sm:$0xff]
        %v7006 = vld [vmem:[%s537 + $0xd0] sm:$0xff]
        %v7007 = vld [vmem:[%s537 + $0xd8] sm:$0xff]
        %v7008 = vld [vmem:[%s537 + $0xe0] sm:$0xff]
        %v7009 = vld [vmem:[%s537 + $0xe8] sm:$0xff]
        %v7010 = vld [vmem:[%s537 + $0xf0] sm:$0xff]
        %v7011 = vld [vmem:[%s537 + $0xf8] sm:$0xff]
        %v7012 = vld [vmem:[%s537 + $0x100] sm:$0xff]
        %v7013 = vld [vmem:[%s537 + $0x108] sm:$0xff]
        %v7014 = vld [vmem:[%s537 + $0x110] sm:$0xff]
        %v7015 = vld [vmem:[%s537 + $0x118] sm:$0xff]
        %v7016 = vld [vmem:[%s537 + $0x120] sm:$0xff]
        %v7017 = vld [vmem:[%s537 + $0x128] sm:$0xff]
        %v7018 = vld [vmem:[%s537 + $0x130] sm:$0xff]
        %v7019 = vld [vmem:[%s537 + $0x138] sm:$0xff]
        %v7020 = vld [vmem:[%s537 + $0x140] sm:$0xff]
        %v7021 = vld [vmem:[%s537 + $0x148] sm:$0xff]
        %v7022 = vld [vmem:[%s537 + $0x150] sm:$0xff]
        %v7023 = vld [vmem:[%s537 + $0x158] sm:$0xff]
        %v7024 = vld [vmem:[%s537 + $0x160] sm:$0xff]
        %v7025 = vld [vmem:[%s537 + $0x168] sm:$0xff]
        %v7026 = vld [vmem:[%s537 + $0x170] sm:$0xff]
        %v7027 = vld [vmem:[%s537 + $0x178] sm:$0xff]
        %v7028 = vld [vmem:[%s537 + $0x180] sm:$0xff]
        %v7029 = vld [vmem:[%s537 + $0x188] sm:$0xff]
        %v7030 = vld [vmem:[%s537 + $0x190] sm:$0xff]
        %v7031 = vld [vmem:[%s537 + $0x198] sm:$0xff]
        %v7032 = vld [vmem:[%s537 + $0x1a0] sm:$0xff]
        %v7033 = vld [vmem:[%s537 + $0x1a8] sm:$0xff]
        %v7034 = vld [vmem:[%s537 + $0x1b0] sm:$0xff]
        %v7035 = vld [vmem:[%s537 + $0x1b8] sm:$0xff]
        %v7036 = vld [vmem:[%s537 + $0x1c0] sm:$0xff]
        %v7037 = vld [vmem:[%s537 + $0x1c8] sm:$0xff]
        %v7038 = vld [vmem:[%s537 + $0x1d0] sm:$0xff]
        %v7039 = vld [vmem:[%s537 + $0x1d8] sm:$0xff]
        %v7040 = vld [vmem:[%s537 + $0x1e0] sm:$0xff]
        %v7041 = vld [vmem:[%s537 + $0x1e8] sm:$0xff]
        %v7042 = vld [vmem:[%s537 + $0x1f0] sm:$0xff]
        %v7043 = vld [vmem:[%s537 + $0x1f8] sm:$0xff]
        %v7044 = vld [vmem:[%s537 + $0x200] sm:$0xff]
        %v7045 = vld [vmem:[%s537 + $0x208] sm:$0xff]
        %v7046 = vld [vmem:[%s537 + $0x210] sm:$0xff]
        %v7047 = vld [vmem:[%s537 + $0x218] sm:$0xff]
        %v7048 = vld [vmem:[%s537 + $0x220] sm:$0xff]
        %v7049 = vld [vmem:[%s537 + $0x228] sm:$0xff]
        %v7050 = vld [vmem:[%s537 + $0x230] sm:$0xff]
        %v7051 = vld [vmem:[%s537 + $0x238] sm:$0xff]
        %v7052 = vld [vmem:[%s537 + $0x240] sm:$0xff]
        %v7053 = vld [vmem:[%s537 + $0x248] sm:$0xff]
        %v7054 = vld [vmem:[%s537 + $0x250] sm:$0xff]
        %v7055 = vld [vmem:[%s537 + $0x258] sm:$0xff]
        %v7056 = vld [vmem:[%s537 + $0x260] sm:$0xff]
        %v7057 = vld [vmem:[%s537 + $0x268] sm:$0xff]
        %v7058 = vld [vmem:[%s537 + $0x270] sm:$0xff]
        %v7059 = vld [vmem:[%s537 + $0x278] sm:$0xff]
        %v7060 = vld [vmem:[%s537 + $0x280] sm:$0xff]
        %v7061 = vld [vmem:[%s537 + $0x288] sm:$0xff]
        %v7062 = vld [vmem:[%s537 + $0x290] sm:$0xff]
        %v7063 = vld [vmem:[%s537 + $0x298] sm:$0xff]
        %v7064 = vld [vmem:[%s537 + $0x2a0] sm:$0xff]
        %v7065 = vld [vmem:[%s537 + $0x2a8] sm:$0xff]
        %v7066 = vld [vmem:[%s537 + $0x2b0] sm:$0xff]
        %v7067 = vld [vmem:[%s537 + $0x2b8] sm:$0xff]
        %v7068 = vld [vmem:[%s537 + $0x2c0] sm:$0xff]
        %v7069 = vld [vmem:[%s537 + $0x2c8] sm:$0xff]
        %v7070 = vld [vmem:[%s537 + $0x2d0] sm:$0xff]
        %v7071 = vld [vmem:[%s537 + $0x2d8] sm:$0xff]
        %v7072 = vld [vmem:[%s537 + $0x2e0] sm:$0xff]
        %v7073 = vld [vmem:[%s537 + $0x2e8] sm:$0xff]
        %v7074 = vld [vmem:[%s537 + $0x2f0] sm:$0xff]
        %v7075 = vld [vmem:[%s537 + $0x2f8] sm:$0xff]
        %v7076 = vld [vmem:[%s537 + $0x300] sm:$0xff]
        %v7077 = vld [vmem:[%s537 + $0x308] sm:$0xff]
        %v7078 = vld [vmem:[%s537 + $0x310] sm:$0xff]
        %v7079 = vld [vmem:[%s537 + $0x318] sm:$0xff]
        %v7080 = vld [vmem:[%s537 + $0x320] sm:$0xff]
        %v7081 = vld [vmem:[%s537 + $0x328] sm:$0xff]
        %v7082 = vld [vmem:[%s537 + $0x330] sm:$0xff]
        %v7083 = vld [vmem:[%s537 + $0x338] sm:$0xff]
        %v7084 = vld [vmem:[%s537 + $0x340] sm:$0xff]
        %v7085 = vld [vmem:[%s537 + $0x348] sm:$0xff]
        %v7086 = vld [vmem:[%s537 + $0x350] sm:$0xff]
        %v7087 = vld [vmem:[%s537 + $0x358] sm:$0xff]
        %v7088 = vld [vmem:[%s537 + $0x360] sm:$0xff]
        %v7089 = vld [vmem:[%s537 + $0x368] sm:$0xff]
        %v7090 = vld [vmem:[%s537 + $0x370] sm:$0xff]
        %v7091 = vld [vmem:[%s537 + $0x378] sm:$0xff]
        %v7092 = vld [vmem:[%s537 + $0x380] sm:$0xff]
        %v7093 = vld [vmem:[%s537 + $0x388] sm:$0xff]
        %v7094 = vld [vmem:[%s537 + $0x390] sm:$0xff]
        %v7095 = vld [vmem:[%s537 + $0x398] sm:$0xff]
        %v7096 = vld [vmem:[%s537 + $0x3a0] sm:$0xff]
        %v7097 = vld [vmem:[%s537 + $0x3a8] sm:$0xff]
        %v7098 = vld [vmem:[%s537 + $0x3b0] sm:$0xff]
        %v7099 = vld [vmem:[%s537 + $0x3b8] sm:$0xff]
        %v7100 = vld [vmem:[%s537 + $0x3c0] sm:$0xff]
        %v7101 = vld [vmem:[%s537 + $0x3c8] sm:$0xff]
        %v7102 = vld [vmem:[%s537 + $0x3d0] sm:$0xff]
        %v7103 = vld [vmem:[%s537 + $0x3d8] sm:$0xff]
        %v7104 = vld [vmem:[%s537 + $0x3e0] sm:$0xff]
        %v7105 = vld [vmem:[%s537 + $0x3e8] sm:$0xff]
        %v7106 = vld [vmem:[%s537 + $0x3f0] sm:$0xff]
        %v7107 = vld [vmem:[%s537 + $0x3f8] sm:$0xff]
        %v7108 = vlaneseq
        %v7109 = vshrl.u32 %v7108, 7
        %v7110 = vsub.s32 4, %v7109
        %v7111 = vrot.slane %v929, %v7110
        %v7112 = vlaneseq
        %v7113 = vshrl.u32 %v7112, 7
        %v7114 = vsub.s32 4, %v7113
        %v7115 = vrot.slane %v930, %v7114
        %v7244 = vunpack.c.l.b16 %v6980
        %v7245 = vunpack.c.h.b16 %v6980
        %v7246 = vunpack.c.l.b16 %v6981
        %v7247 = vunpack.c.h.b16 %v6981
        %v7248 = vunpack.c.l.b16 %v6982
        %v7249 = vunpack.c.h.b16 %v6982
        %v7250 = vunpack.c.l.b16 %v6983
        %v7251 = vunpack.c.h.b16 %v6983
        %v7252 = vunpack.c.l.b16 %v6984
        %v7253 = vunpack.c.h.b16 %v6984
        %v7254 = vunpack.c.l.b16 %v6985
        %v7255 = vunpack.c.h.b16 %v6985
        %v7256 = vunpack.c.l.b16 %v6986
        %v7257 = vunpack.c.h.b16 %v6986
        %v7258 = vunpack.c.l.b16 %v6987
        %v7259 = vunpack.c.h.b16 %v6987
        %v7260 = vunpack.c.l.b16 %v6988
        %v7261 = vunpack.c.h.b16 %v6988
        %v7262 = vunpack.c.l.b16 %v6989
        %v7263 = vunpack.c.h.b16 %v6989
        %v7264 = vunpack.c.l.b16 %v6990
        %v7265 = vunpack.c.h.b16 %v6990
        %v7266 = vunpack.c.l.b16 %v6991
        %v7267 = vunpack.c.h.b16 %v6991
        %v7268 = vunpack.c.l.b16 %v6992
        %v7269 = vunpack.c.h.b16 %v6992
        %v7270 = vunpack.c.l.b16 %v6993
        %v7271 = vunpack.c.h.b16 %v6993
        %v7272 = vunpack.c.l.b16 %v6994
        %v7273 = vunpack.c.h.b16 %v6994
        %v7274 = vunpack.c.l.b16 %v6995
        %v7275 = vunpack.c.h.b16 %v6995
        %v7276 = vunpack.c.l.b16 %v6996
        %v7277 = vunpack.c.h.b16 %v6996
        %v7278 = vunpack.c.l.b16 %v6997
        %v7279 = vunpack.c.h.b16 %v6997
        %v7280 = vunpack.c.l.b16 %v6998
        %v7281 = vunpack.c.h.b16 %v6998
        %v7282 = vunpack.c.l.b16 %v6999
        %v7283 = vunpack.c.h.b16 %v6999
        %v7284 = vunpack.c.l.b16 %v7000
        %v7285 = vunpack.c.h.b16 %v7000
        %v7286 = vunpack.c.l.b16 %v7001
        %v7287 = vunpack.c.h.b16 %v7001
        %v7288 = vunpack.c.l.b16 %v7002
        %v7289 = vunpack.c.h.b16 %v7002
        %v7290 = vunpack.c.l.b16 %v7003
        %v7291 = vunpack.c.h.b16 %v7003
        %v7292 = vunpack.c.l.b16 %v7004
        %v7293 = vunpack.c.h.b16 %v7004
        %v7294 = vunpack.c.l.b16 %v7005
        %v7295 = vunpack.c.h.b16 %v7005
        %v7296 = vunpack.c.l.b16 %v7006
        %v7297 = vunpack.c.h.b16 %v7006
        %v7298 = vunpack.c.l.b16 %v7007
        %v7299 = vunpack.c.h.b16 %v7007
        %v7300 = vunpack.c.l.b16 %v7008
        %v7301 = vunpack.c.h.b16 %v7008
        %v7302 = vunpack.c.l.b16 %v7009
        %v7303 = vunpack.c.h.b16 %v7009
        %v7304 = vunpack.c.l.b16 %v7010
        %v7305 = vunpack.c.h.b16 %v7010
        %v7306 = vunpack.c.l.b16 %v7011
        %v7307 = vunpack.c.h.b16 %v7011
        %v7308 = vunpack.c.l.b16 %v7012
        %v7309 = vunpack.c.h.b16 %v7012
        %v7310 = vunpack.c.l.b16 %v7013
        %v7311 = vunpack.c.h.b16 %v7013
        %v7312 = vunpack.c.l.b16 %v7014
        %v7313 = vunpack.c.h.b16 %v7014
        %v7314 = vunpack.c.l.b16 %v7015
        %v7315 = vunpack.c.h.b16 %v7015
        %v7316 = vunpack.c.l.b16 %v7016
        %v7317 = vunpack.c.h.b16 %v7016
        %v7318 = vunpack.c.l.b16 %v7017
        %v7319 = vunpack.c.h.b16 %v7017
        %v7320 = vunpack.c.l.b16 %v7018
        %v7321 = vunpack.c.h.b16 %v7018
        %v7322 = vunpack.c.l.b16 %v7019
        %v7323 = vunpack.c.h.b16 %v7019
        %v7324 = vunpack.c.l.b16 %v7020
        %v7325 = vunpack.c.h.b16 %v7020
        %v7326 = vunpack.c.l.b16 %v7021
        %v7327 = vunpack.c.h.b16 %v7021
        %v7328 = vunpack.c.l.b16 %v7022
        %v7329 = vunpack.c.h.b16 %v7022
        %v7330 = vunpack.c.l.b16 %v7023
        %v7331 = vunpack.c.h.b16 %v7023
        %v7332 = vunpack.c.l.b16 %v7024
        %v7333 = vunpack.c.h.b16 %v7024
        %v7334 = vunpack.c.l.b16 %v7025
        %v7335 = vunpack.c.h.b16 %v7025
        %v7336 = vunpack.c.l.b16 %v7026
        %v7337 = vunpack.c.h.b16 %v7026
        %v7338 = vunpack.c.l.b16 %v7027
        %v7339 = vunpack.c.h.b16 %v7027
        %v7340 = vunpack.c.l.b16 %v7028
        %v7341 = vunpack.c.h.b16 %v7028
        %v7342 = vunpack.c.l.b16 %v7029
        %v7343 = vunpack.c.h.b16 %v7029
        %v7344 = vunpack.c.l.b16 %v7030
        %v7345 = vunpack.c.h.b16 %v7030
        %v7346 = vunpack.c.l.b16 %v7031
        %v7347 = vunpack.c.h.b16 %v7031
        %v7348 = vunpack.c.l.b16 %v7032
        %v7349 = vunpack.c.h.b16 %v7032
        %v7350 = vunpack.c.l.b16 %v7033
        %v7351 = vunpack.c.h.b16 %v7033
        %v7352 = vunpack.c.l.b16 %v7034
        %v7353 = vunpack.c.h.b16 %v7034
        %v7354 = vunpack.c.l.b16 %v7035
        %v7355 = vunpack.c.h.b16 %v7035
        %v7356 = vunpack.c.l.b16 %v7036
        %v7357 = vunpack.c.h.b16 %v7036
        %v7358 = vunpack.c.l.b16 %v7037
        %v7359 = vunpack.c.h.b16 %v7037
        %v7360 = vunpack.c.l.b16 %v7038
        %v7361 = vunpack.c.h.b16 %v7038
        %v7362 = vunpack.c.l.b16 %v7039
        %v7363 = vunpack.c.h.b16 %v7039
        %v7364 = vunpack.c.l.b16 %v7040
        %v7365 = vunpack.c.h.b16 %v7040
        %v7366 = vunpack.c.l.b16 %v7041
        %v7367 = vunpack.c.h.b16 %v7041
        %v7368 = vunpack.c.l.b16 %v7042
        %v7369 = vunpack.c.h.b16 %v7042
        %v7370 = vunpack.c.l.b16 %v7043
        %v7371 = vunpack.c.h.b16 %v7043
        %v7372 = vunpack.c.l.b16 %v7044
        %v7373 = vunpack.c.h.b16 %v7044
        %v7374 = vunpack.c.l.b16 %v7045
        %v7375 = vunpack.c.h.b16 %v7045
        %v7376 = vunpack.c.l.b16 %v7046
        %v7377 = vunpack.c.h.b16 %v7046
        %v7378 = vunpack.c.l.b16 %v7047
        %v7379 = vunpack.c.h.b16 %v7047
        %v7380 = vunpack.c.l.b16 %v7048
        %v7381 = vunpack.c.h.b16 %v7048
        %v7382 = vunpack.c.l.b16 %v7049
        %v7383 = vunpack.c.h.b16 %v7049
        %v7384 = vunpack.c.l.b16 %v7050
        %v7385 = vunpack.c.h.b16 %v7050
        %v7386 = vunpack.c.l.b16 %v7051
        %v7387 = vunpack.c.h.b16 %v7051
        %v7388 = vunpack.c.l.b16 %v7052
        %v7389 = vunpack.c.h.b16 %v7052
        %v7390 = vunpack.c.l.b16 %v7053
        %v7391 = vunpack.c.h.b16 %v7053
        %v7392 = vunpack.c.l.b16 %v7054
        %v7393 = vunpack.c.h.b16 %v7054
        %v7394 = vunpack.c.l.b16 %v7055
        %v7395 = vunpack.c.h.b16 %v7055
        %v7396 = vunpack.c.l.b16 %v7056
        %v7397 = vunpack.c.h.b16 %v7056
        %v7398 = vunpack.c.l.b16 %v7057
        %v7399 = vunpack.c.h.b16 %v7057
        %v7400 = vunpack.c.l.b16 %v7058
        %v7401 = vunpack.c.h.b16 %v7058
        %v7402 = vunpack.c.l.b16 %v7059
        %v7403 = vunpack.c.h.b16 %v7059
        %v7404 = vunpack.c.l.b16 %v7060
        %v7405 = vunpack.c.h.b16 %v7060
        %v7406 = vunpack.c.l.b16 %v7061
        %v7407 = vunpack.c.h.b16 %v7061
        %v7408 = vunpack.c.l.b16 %v7062
        %v7409 = vunpack.c.h.b16 %v7062
        %v7410 = vunpack.c.l.b16 %v7063
        %v7411 = vunpack.c.h.b16 %v7063
        %v7412 = vunpack.c.l.b16 %v7064
        %v7413 = vunpack.c.h.b16 %v7064
        %v7414 = vunpack.c.l.b16 %v7065
        %v7415 = vunpack.c.h.b16 %v7065
        %v7416 = vunpack.c.l.b16 %v7066
        %v7417 = vunpack.c.h.b16 %v7066
        %v7418 = vunpack.c.l.b16 %v7067
        %v7419 = vunpack.c.h.b16 %v7067
        %v7420 = vunpack.c.l.b16 %v7068
        %v7421 = vunpack.c.h.b16 %v7068
        %v7422 = vunpack.c.l.b16 %v7069
        %v7423 = vunpack.c.h.b16 %v7069
        %v7424 = vunpack.c.l.b16 %v7070
        %v7425 = vunpack.c.h.b16 %v7070
        %v7426 = vunpack.c.l.b16 %v7071
        %v7427 = vunpack.c.h.b16 %v7071
        %v7428 = vunpack.c.l.b16 %v7072
        %v7429 = vunpack.c.h.b16 %v7072
        %v7430 = vunpack.c.l.b16 %v7073
        %v7431 = vunpack.c.h.b16 %v7073
        %v7432 = vunpack.c.l.b16 %v7074
        %v7433 = vunpack.c.h.b16 %v7074
        %v7434 = vunpack.c.l.b16 %v7075
        %v7435 = vunpack.c.h.b16 %v7075
        %v7436 = vunpack.c.l.b16 %v7076
        %v7437 = vunpack.c.h.b16 %v7076
        %v7438 = vunpack.c.l.b16 %v7077
        %v7439 = vunpack.c.h.b16 %v7077
        %v7440 = vunpack.c.l.b16 %v7078
        %v7441 = vunpack.c.h.b16 %v7078
        %v7442 = vunpack.c.l.b16 %v7079
        %v7443 = vunpack.c.h.b16 %v7079
        %v7444 = vunpack.c.l.b16 %v7080
        %v7445 = vunpack.c.h.b16 %v7080
        %v7446 = vunpack.c.l.b16 %v7081
        %v7447 = vunpack.c.h.b16 %v7081
        %v7448 = vunpack.c.l.b16 %v7082
        %v7449 = vunpack.c.h.b16 %v7082
        %v7450 = vunpack.c.l.b16 %v7083
        %v7451 = vunpack.c.h.b16 %v7083
        %v7452 = vunpack.c.l.b16 %v7084
        %v7453 = vunpack.c.h.b16 %v7084
        %v7454 = vunpack.c.l.b16 %v7085
        %v7455 = vunpack.c.h.b16 %v7085
        %v7456 = vunpack.c.l.b16 %v7086
        %v7457 = vunpack.c.h.b16 %v7086
        %v7458 = vunpack.c.l.b16 %v7087
        %v7459 = vunpack.c.h.b16 %v7087
        %v7460 = vunpack.c.l.b16 %v7088
        %v7461 = vunpack.c.h.b16 %v7088
        %v7462 = vunpack.c.l.b16 %v7089
        %v7463 = vunpack.c.h.b16 %v7089
        %v7464 = vunpack.c.l.b16 %v7090
        %v7465 = vunpack.c.h.b16 %v7090
        %v7466 = vunpack.c.l.b16 %v7091
        %v7467 = vunpack.c.h.b16 %v7091
        %v7468 = vunpack.c.l.b16 %v7092
        %v7469 = vunpack.c.h.b16 %v7092
        %v7470 = vunpack.c.l.b16 %v7093
        %v7471 = vunpack.c.h.b16 %v7093
        %v7472 = vunpack.c.l.b16 %v7094
        %v7473 = vunpack.c.h.b16 %v7094
        %v7474 = vunpack.c.l.b16 %v7095
        %v7475 = vunpack.c.h.b16 %v7095
        %v7476 = vunpack.c.l.b16 %v7096
        %v7477 = vunpack.c.h.b16 %v7096
        %v7478 = vunpack.c.l.b16 %v7097
        %v7479 = vunpack.c.h.b16 %v7097
        %v7480 = vunpack.c.l.b16 %v7098
        %v7481 = vunpack.c.h.b16 %v7098
        %v7482 = vunpack.c.l.b16 %v7099
        %v7483 = vunpack.c.h.b16 %v7099
        %v7484 = vunpack.c.l.b16 %v7100
        %v7485 = vunpack.c.h.b16 %v7100
        %v7486 = vunpack.c.l.b16 %v7101
        %v7487 = vunpack.c.h.b16 %v7101
        %v7488 = vunpack.c.l.b16 %v7102
        %v7489 = vunpack.c.h.b16 %v7102
        %v7490 = vunpack.c.l.b16 %v7103
        %v7491 = vunpack.c.h.b16 %v7103
        %v7492 = vunpack.c.l.b16 %v7104
        %v7493 = vunpack.c.h.b16 %v7104
        %v7494 = vunpack.c.l.b16 %v7105
        %v7495 = vunpack.c.h.b16 %v7105
        %v7496 = vunpack.c.l.b16 %v7106
        %v7497 = vunpack.c.h.b16 %v7106
        %v7498 = vunpack.c.l.b16 %v7107
        %v7499 = vunpack.c.h.b16 %v7107
        %v7500 = vpack.c.b16 %v7246, %v7244
        %v7501 = vpack.c.b16 %v7247, %v7245
        %v7502 = vpack.c.b16 %v7250, %v7248
        %v7503 = vpack.c.b16 %v7251, %v7249
        %v7504 = vpack.c.b16 %v7254, %v7252
        %v7505 = vpack.c.b16 %v7255, %v7253
        %v7506 = vpack.c.b16 %v7258, %v7256
        %v7507 = vpack.c.b16 %v7259, %v7257
        %v7508 = vpack.c.b16 %v7262, %v7260
        %v7509 = vpack.c.b16 %v7263, %v7261
        %v7510 = vpack.c.b16 %v7266, %v7264
        %v7511 = vpack.c.b16 %v7267, %v7265
        %v7512 = vpack.c.b16 %v7270, %v7268
        %v7513 = vpack.c.b16 %v7271, %v7269
        %v7514 = vpack.c.b16 %v7274, %v7272
        %v7515 = vpack.c.b16 %v7275, %v7273
        %v7516 = vpack.c.b16 %v7278, %v7276
        %v7517 = vpack.c.b16 %v7279, %v7277
        %v7518 = vpack.c.b16 %v7282, %v7280
        %v7519 = vpack.c.b16 %v7283, %v7281
        %v7520 = vpack.c.b16 %v7286, %v7284
        %v7521 = vpack.c.b16 %v7287, %v7285
        %v7522 = vpack.c.b16 %v7290, %v7288
        %v7523 = vpack.c.b16 %v7291, %v7289
        %v7524 = vpack.c.b16 %v7294, %v7292
        %v7525 = vpack.c.b16 %v7295, %v7293
        %v7526 = vpack.c.b16 %v7298, %v7296
        %v7527 = vpack.c.b16 %v7299, %v7297
        %v7528 = vpack.c.b16 %v7302, %v7300
        %v7529 = vpack.c.b16 %v7303, %v7301
        %v7530 = vpack.c.b16 %v7306, %v7304
        %v7531 = vpack.c.b16 %v7307, %v7305
        %v7532 = vpack.c.b16 %v7310, %v7308
        %v7533 = vpack.c.b16 %v7311, %v7309
        %v7534 = vpack.c.b16 %v7314, %v7312
        %v7535 = vpack.c.b16 %v7315, %v7313
        %v7536 = vpack.c.b16 %v7318, %v7316
        %v7537 = vpack.c.b16 %v7319, %v7317
        %v7538 = vpack.c.b16 %v7322, %v7320
        %v7539 = vpack.c.b16 %v7323, %v7321
        %v7540 = vpack.c.b16 %v7326, %v7324
        %v7541 = vpack.c.b16 %v7327, %v7325
        %v7542 = vpack.c.b16 %v7330, %v7328
        %v7543 = vpack.c.b16 %v7331, %v7329
        %v7544 = vpack.c.b16 %v7334, %v7332
        %v7545 = vpack.c.b16 %v7335, %v7333
        %v7546 = vpack.c.b16 %v7338, %v7336
        %v7547 = vpack.c.b16 %v7339, %v7337
        %v7548 = vpack.c.b16 %v7342, %v7340
        %v7549 = vpack.c.b16 %v7343, %v7341
        %v7550 = vpack.c.b16 %v7346, %v7344
        %v7551 = vpack.c.b16 %v7347, %v7345
        %v7552 = vpack.c.b16 %v7350, %v7348
        %v7553 = vpack.c.b16 %v7351, %v7349
        %v7554 = vpack.c.b16 %v7354, %v7352
        %v7555 = vpack.c.b16 %v7355, %v7353
        %v7556 = vpack.c.b16 %v7358, %v7356
        %v7557 = vpack.c.b16 %v7359, %v7357
        %v7558 = vpack.c.b16 %v7362, %v7360
        %v7559 = vpack.c.b16 %v7363, %v7361
        %v7560 = vpack.c.b16 %v7366, %v7364
        %v7561 = vpack.c.b16 %v7367, %v7365
        %v7562 = vpack.c.b16 %v7370, %v7368
        %v7563 = vpack.c.b16 %v7371, %v7369
        %v7564 = vpack.c.b16 %v7374, %v7372
        %v7565 = vpack.c.b16 %v7375, %v7373
        %v7566 = vpack.c.b16 %v7378, %v7376
        %v7567 = vpack.c.b16 %v7379, %v7377
        %v7568 = vpack.c.b16 %v7382, %v7380
        %v7569 = vpack.c.b16 %v7383, %v7381
        %v7570 = vpack.c.b16 %v7386, %v7384
        %v7571 = vpack.c.b16 %v7387, %v7385
        %v7572 = vpack.c.b16 %v7390, %v7388
        %v7573 = vpack.c.b16 %v7391, %v7389
        %v7574 = vpack.c.b16 %v7394, %v7392
        %v7575 = vpack.c.b16 %v7395, %v7393
        %v7576 = vpack.c.b16 %v7398, %v7396
        %v7577 = vpack.c.b16 %v7399, %v7397
        %v7578 = vpack.c.b16 %v7402, %v7400
        %v7579 = vpack.c.b16 %v7403, %v7401
        %v7580 = vpack.c.b16 %v7406, %v7404
        %v7581 = vpack.c.b16 %v7407, %v7405
        %v7582 = vpack.c.b16 %v7410, %v7408
        %v7583 = vpack.c.b16 %v7411, %v7409
        %v7584 = vpack.c.b16 %v7414, %v7412
        %v7585 = vpack.c.b16 %v7415, %v7413
        %v7586 = vpack.c.b16 %v7418, %v7416
        %v7587 = vpack.c.b16 %v7419, %v7417
        %v7588 = vpack.c.b16 %v7422, %v7420
        %v7589 = vpack.c.b16 %v7423, %v7421
        %v7590 = vpack.c.b16 %v7426, %v7424
        %v7591 = vpack.c.b16 %v7427, %v7425
        %v7592 = vpack.c.b16 %v7430, %v7428
        %v7593 = vpack.c.b16 %v7431, %v7429
        %v7594 = vpack.c.b16 %v7434, %v7432
        %v7595 = vpack.c.b16 %v7435, %v7433
        %v7596 = vpack.c.b16 %v7438, %v7436
        %v7597 = vpack.c.b16 %v7439, %v7437
        %v7598 = vpack.c.b16 %v7442, %v7440
        %v7599 = vpack.c.b16 %v7443, %v7441
        %v7600 = vpack.c.b16 %v7446, %v7444
        %v7601 = vpack.c.b16 %v7447, %v7445
        %v7602 = vpack.c.b16 %v7450, %v7448
        %v7603 = vpack.c.b16 %v7451, %v7449
        %v7604 = vpack.c.b16 %v7454, %v7452
        %v7605 = vpack.c.b16 %v7455, %v7453
        %v7606 = vpack.c.b16 %v7458, %v7456
        %v7607 = vpack.c.b16 %v7459, %v7457
        %v7608 = vpack.c.b16 %v7462, %v7460
        %v7609 = vpack.c.b16 %v7463, %v7461
        %v7610 = vpack.c.b16 %v7466, %v7464
        %v7611 = vpack.c.b16 %v7467, %v7465
        %v7612 = vpack.c.b16 %v7470, %v7468
        %v7613 = vpack.c.b16 %v7471, %v7469
        %v7614 = vpack.c.b16 %v7474, %v7472
        %v7615 = vpack.c.b16 %v7475, %v7473
        %v7616 = vpack.c.b16 %v7478, %v7476
        %v7617 = vpack.c.b16 %v7479, %v7477
        %v7618 = vpack.c.b16 %v7482, %v7480
        %v7619 = vpack.c.b16 %v7483, %v7481
        %v7620 = vpack.c.b16 %v7486, %v7484
        %v7621 = vpack.c.b16 %v7487, %v7485
        %v7622 = vpack.c.b16 %v7490, %v7488
        %v7623 = vpack.c.b16 %v7491, %v7489
        %v7624 = vpack.c.b16 %v7494, %v7492
        %v7625 = vpack.c.b16 %v7495, %v7493
        %v7626 = vpack.c.b16 %v7498, %v7496
        %v7627 = vpack.c.b16 %v7499, %v7497
        %7756 = vmatprep.subr.bf16.mxu0 %v7501
        %7757 = vmatpush1.bf16.msra.mxu0 %v7500
        %7758 = vmatprep.subr.bf16.mxu0 %v7503
        %7759 = vmatpush1.bf16.msra.mxu0 %v7502
        %7760 = vmatprep.subr.bf16.mxu0 %v7505
        %7761 = vmatpush1.bf16.msra.mxu0 %v7504
        %7762 = vmatprep.subr.bf16.mxu0 %v7507
        %7763 = vmatpush1.bf16.msra.mxu0 %v7506
        %7764 = vmatprep.subr.bf16.mxu0 %v7509
        %7765 = vmatpush1.bf16.msra.mxu0 %v7508
        %7766 = vmatprep.subr.bf16.mxu0 %v7511
        %7767 = vmatpush1.bf16.msra.mxu0 %v7510
        %7768 = vmatprep.subr.bf16.mxu0 %v7513
        %7769 = vmatpush1.bf16.msra.mxu0 %v7512
        %7770 = vmatprep.subr.bf16.mxu0 %v7515
        %7771 = vmatpush1.bf16.msra.mxu0 %v7514
        %7772 = vmatprep.subr.bf16.mxu0 %v7517
        %7773 = vmatpush1.bf16.msra.mxu0 %v7516
        %7774 = vmatprep.subr.bf16.mxu0 %v7519
        %7775 = vmatpush1.bf16.msra.mxu0 %v7518
        %7776 = vmatprep.subr.bf16.mxu0 %v7521
        %7777 = vmatpush1.bf16.msra.mxu0 %v7520
        %7778 = vmatprep.subr.bf16.mxu0 %v7523
        %7779 = vmatpush1.bf16.msra.mxu0 %v7522
        %7780 = vmatprep.subr.bf16.mxu0 %v7525
        %7781 = vmatpush1.bf16.msra.mxu0 %v7524
        %7782 = vmatprep.subr.bf16.mxu0 %v7527
        %7783 = vmatpush1.bf16.msra.mxu0 %v7526
        %7784 = vmatprep.subr.bf16.mxu0 %v7529
        %7785 = vmatpush1.bf16.msra.mxu0 %v7528
        %7786 = vmatprep.subr.bf16.mxu0 %v7531
        %7787 = vmatpush1.bf16.msra.mxu0 %v7530
        %7788 = vmatprep.mubr.bf16.mxu0 %v6853
        %7789 = vmatmul.mubr.bf16.gmra.mrb[0].mxu0 %v6852
        %v7790 = vpop.f32.mrb[0].mxu0
        %v7791 = vadd.f32 %v7111, %v7790
        %v7792 = vpop.f32.mrb[0].mxu0
        %v7793 = vadd.f32 %v7115, %v7792
        %v7794 = vpop.f32.mrb[0].mxu0
        %v7795 = vadd.f32 %v7111, %v7794
        %v7796 = vpop.f32.mrb[0].mxu0
        %v7797 = vadd.f32 %v7115, %v7796
        %7798 = vmatprep.mubr.bf16.mxu0 %v6861
        %7799 = vmatmul.mubr.bf16.gmra.mrb[0].mxu0 %v6860
        %v7800 = vpop.f32.mrb[0].mxu0
        %v7801 = vadd.f32 %v7111, %v7800
        %v7802 = vpop.f32.mrb[0].mxu0
        %v7803 = vadd.f32 %v7115, %v7802
        %v7804 = vpop.f32.mrb[0].mxu0
        %v7805 = vadd.f32 %v7111, %v7804
        %v7806 = vpop.f32.mrb[0].mxu0
        %v7807 = vadd.f32 %v7115, %v7806
        %7808 = vmatprep.mubr.bf16.mxu0 %v6869
        %7809 = vmatmul.mubr.bf16.gmra.mrb[0].mxu0 %v6868
        %v7810 = vpop.f32.mrb[0].mxu0
        %v7811 = vadd.f32 %v7111, %v7810
        %v7812 = vpop.f32.mrb[0].mxu0
        %v7813 = vadd.f32 %v7115, %v7812
        %v7814 = vpop.f32.mrb[0].mxu0
        %v7815 = vadd.f32 %v7111, %v7814
        %v7816 = vpop.f32.mrb[0].mxu0
        %v7817 = vadd.f32 %v7115, %v7816
        %7818 = vmatprep.mubr.bf16.mxu0 %v6877
        %7819 = vmatmul.mubr.bf16.gmra.mrb[0].mxu0 %v6876
        %v7820 = vpop.f32.mrb[0].mxu0
        %v7821 = vadd.f32 %v7111, %v7820
        %v7822 = vpop.f32.mrb[0].mxu0
        %v7823 = vadd.f32 %v7115, %v7822
        %v7824 = vpop.f32.mrb[0].mxu0
        %v7825 = vadd.f32 %v7111, %v7824
        %v7826 = vpop.f32.mrb[0].mxu0
        %v7827 = vadd.f32 %v7115, %v7826
        %7828 = vmatprep.mubr.bf16.mxu0 %v6885
        %7829 = vmatmul.mubr.bf16.gmra.mrb[0].mxu0 %v6884
        %v7830 = vpop.f32.mrb[0].mxu0
        %v7831 = vadd.f32 %v7111, %v7830
        %v7832 = vpop.f32.mrb[0].mxu0
        %v7833 = vadd.f32 %v7115, %v7832
        %v7834 = vpop.f32.mrb[0].mxu0
        %v7835 = vadd.f32 %v7111, %v7834
        %v7836 = vpop.f32.mrb[0].mxu0
        %v7837 = vadd.f32 %v7115, %v7836
        %7838 = vmatprep.mubr.bf16.mxu0 %v6893
        %7839 = vmatmul.mubr.bf16.gmra.mrb[0].mxu0 %v6892
        %v7840 = vpop.f32.mrb[0].mxu0
        %v7841 = vadd.f32 %v7111, %v7840
        %v7842 = vpop.f32.mrb[0].mxu0
        %v7843 = vadd.f32 %v7115, %v7842
        %v7844 = vpop.f32.mrb[0].mxu0
        %v7845 = vadd.f32 %v7111, %v7844
        %v7846 = vpop.f32.mrb[0].mxu0
        %v7847 = vadd.f32 %v7115, %v7846
        %7848 = vmatprep.mubr.bf16.mxu0 %v6901
        %7849 = vmatmul.mubr.bf16.gmra.mrb[0].mxu0 %v6900
        %v7850 = vpop.f32.mrb[0].mxu0
        %v7851 = vadd.f32 %v7111, %v7850
        %v7852 = vpop.f32.mrb[0].mxu0
        %v7853 = vadd.f32 %v7115, %v7852
        %v7854 = vpop.f32.mrb[0].mxu0
        %v7855 = vadd.f32 %v7111, %v7854
        %v7856 = vpop.f32.mrb[0].mxu0
        %v7857 = vadd.f32 %v7115, %v7856
        %7858 = vmatprep.mubr.bf16.mxu0 %v6909
        %7859 = vmatmul.mubr.bf16.gmra.mrb[0].mxu0 %v6908
        %v7860 = vpop.f32.mrb[0].mxu0
        %v7861 = vadd.f32 %v7111, %v7860
        %v7862 = vpop.f32.mrb[0].mxu0
        %v7863 = vadd.f32 %v7115, %v7862
        %v7864 = vpop.f32.mrb[0].mxu0
        %v7865 = vadd.f32 %v7111, %v7864
        %v7866 = vpop.f32.mrb[0].mxu0
        %v7867 = vadd.f32 %v7115, %v7866
        %7868 = vmatprep.mubr.bf16.mxu0 %v6917
        %7869 = vmatmul.mubr.bf16.gmra.mrb[0].mxu0 %v6916
        %v7870 = vpop.f32.mrb[0].mxu0
        %v7871 = vadd.f32 %v7111, %v7870
        %v7872 = vpop.f32.mrb[0].mxu0
        %v7873 = vadd.f32 %v7115, %v7872
        %v7874 = vpop.f32.mrb[0].mxu0
        %v7875 = vadd.f32 %v7111, %v7874
        %v7876 = vpop.f32.mrb[0].mxu0
        %v7877 = vadd.f32 %v7115, %v7876
        %7878 = vmatprep.mubr.bf16.mxu0 %v6925
        %7879 = vmatmul.mubr.bf16.gmra.mrb[0].mxu0 %v6924
        %v7880 = vpop.f32.mrb[0].mxu0
        %v7881 = vadd.f32 %v7111, %v7880
        %v7882 = vpop.f32.mrb[0].mxu0
        %v7883 = vadd.f32 %v7115, %v7882
        %v7884 = vpop.f32.mrb[0].mxu0
        %v7885 = vadd.f32 %v7111, %v7884
        %v7886 = vpop.f32.mrb[0].mxu0
        %v7887 = vadd.f32 %v7115, %v7886
        %7888 = vmatprep.mubr.bf16.mxu0 %v6933
        %7889 = vmatmul.mubr.bf16.gmra.mrb[0].mxu0 %v6932
        %v7890 = vpop.f32.mrb[0].mxu0
        %v7891 = vadd.f32 %v7111, %v7890
        %v7892 = vpop.f32.mrb[0].mxu0
        %v7893 = vadd.f32 %v7115, %v7892
        %v7894 = vpop.f32.mrb[0].mxu0
        %v7895 = vadd.f32 %v7111, %v7894
        %v7896 = vpop.f32.mrb[0].mxu0
        %v7897 = vadd.f32 %v7115, %v7896
        %7898 = vmatprep.mubr.bf16.mxu0 %v6941
        %7899 = vmatmul.mubr.bf16.gmra.mrb[0].mxu0 %v6940
        %v7900 = vpop.f32.mrb[0].mxu0
        %v7901 = vadd.f32 %v7111, %v7900
        %v7902 = vpop.f32.mrb[0].mxu0
        %v7903 = vadd.f32 %v7115, %v7902
        %v7904 = vpop.f32.mrb[0].mxu0
        %v7905 = vadd.f32 %v7111, %v7904
        %v7906 = vpop.f32.mrb[0].mxu0
        %v7907 = vadd.f32 %v7115, %v7906
        %7908 = vmatprep.mubr.bf16.mxu0 %v6949
        %7909 = vmatmul.mubr.bf16.gmra.mrb[0].mxu0 %v6948
        %v7910 = vpop.f32.mrb[0].mxu0
        %v7911 = vadd.f32 %v7111, %v7910
        %v7912 = vpop.f32.mrb[0].mxu0
        %v7913 = vadd.f32 %v7115, %v7912
        %v7914 = vpop.f32.mrb[0].mxu0
        %v7915 = vadd.f32 %v7111, %v7914
        %v7916 = vpop.f32.mrb[0].mxu0
        %v7917 = vadd.f32 %v7115, %v7916
        %7918 = vmatprep.mubr.bf16.mxu0 %v6957
        %7919 = vmatmul.mubr.bf16.gmra.mrb[0].mxu0 %v6956
        %v7920 = vpop.f32.mrb[0].mxu0
        %v7921 = vadd.f32 %v7111, %v7920
        %v7922 = vpop.f32.mrb[0].mxu0
        %v7923 = vadd.f32 %v7115, %v7922
        %v7924 = vpop.f32.mrb[0].mxu0
        %v7925 = vadd.f32 %v7111, %v7924
        %v7926 = vpop.f32.mrb[0].mxu0
        %v7927 = vadd.f32 %v7115, %v7926
        %7928 = vmatprep.mubr.bf16.mxu0 %v6965
        %7929 = vmatmul.mubr.bf16.gmra.mrb[0].mxu0 %v6964
        %v7930 = vpop.f32.mrb[0].mxu0
        %v7931 = vadd.f32 %v7111, %v7930
        %v7932 = vpop.f32.mrb[0].mxu0
        %v7933 = vadd.f32 %v7115, %v7932
        %v7934 = vpop.f32.mrb[0].mxu0
        %v7935 = vadd.f32 %v7111, %v7934
        %v7936 = vpop.f32.mrb[0].mxu0
        %v7937 = vadd.f32 %v7115, %v7936
        %7938 = vmatprep.mubr.bf16.mxu0 %v6973
        %7939 = vmatmul.mubr.bf16.gmra.mrb[0].mxu0 %v6972
        %v7940 = vpop.f32.mrb[0].mxu0
        %v7941 = vadd.f32 %v7111, %v7940
        %v7942 = vpop.f32.mrb[0].mxu0
        %v7943 = vadd.f32 %v7115, %v7942
        %v7944 = vpop.f32.mrb[0].mxu0
        %v7945 = vadd.f32 %v7111, %v7944
        %v7946 = vpop.f32.mrb[0].mxu0
        %v7947 = vadd.f32 %v7115, %v7946
        %7948 = vdwg.mxu0
        %7949 = vmatprep.subr.bf16.mxu0 %v7533
        %7950 = vmatpush1.bf16.msra.mxu0 %v7532
        %7951 = vmatprep.subr.bf16.mxu0 %v7535
        %7952 = vmatpush1.bf16.msra.mxu0 %v7534
        %7953 = vmatprep.subr.bf16.mxu0 %v7537
        %7954 = vmatpush1.bf16.msra.mxu0 %v7536
        %7955 = vmatprep.subr.bf16.mxu0 %v7539
        %7956 = vmatpush1.bf16.msra.mxu0 %v7538
        %7957 = vmatprep.subr.bf16.mxu0 %v7541
        %7958 = vmatpush1.bf16.msra.mxu0 %v7540
        %7959 = vmatprep.subr.bf16.mxu0 %v7543
        %7960 = vmatpush1.bf16.msra.mxu0 %v7542
        %7961 = vmatprep.subr.bf16.mxu0 %v7545
        %7962 = vmatpush1.bf16.msra.mxu0 %v7544
        %7963 = vmatprep.subr.bf16.mxu0 %v7547
        %7964 = vmatpush1.bf16.msra.mxu0 %v7546
        %7965 = vmatprep.subr.bf16.mxu0 %v7549
        %7966 = vmatpush1.bf16.msra.mxu0 %v7548
        %7967 = vmatprep.subr.bf16.mxu0 %v7551
        %7968 = vmatpush1.bf16.msra.mxu0 %v7550
        %7969 = vmatprep.subr.bf16.mxu0 %v7553
        %7970 = vmatpush1.bf16.msra.mxu0 %v7552
        %7971 = vmatprep.subr.bf16.mxu0 %v7555
        %7972 = vmatpush1.bf16.msra.mxu0 %v7554
        %7973 = vmatprep.subr.bf16.mxu0 %v7557
        %7974 = vmatpush1.bf16.msra.mxu0 %v7556
        %7975 = vmatprep.subr.bf16.mxu0 %v7559
        %7976 = vmatpush1.bf16.msra.mxu0 %v7558
        %7977 = vmatprep.subr.bf16.mxu0 %v7561
        %7978 = vmatpush1.bf16.msra.mxu0 %v7560
        %7979 = vmatprep.subr.bf16.mxu0 %v7563
        %7980 = vmatpush1.bf16.msra.mxu0 %v7562
        %7981 = vmatprep.mubr.bf16.mxu0 %v6855
        %7982 = vmatmul.mubr.bf16.gmra.mrb[0].mxu0 %v6854
        %v7983 = vpop.f32.mrb[0].mxu0
        %v7984 = vadd.f32 %v7791, %v7983
        %v7985 = vpop.f32.mrb[0].mxu0
        %v7986 = vadd.f32 %v7793, %v7985
        %v7987 = vpop.f32.mrb[0].mxu0
        %v7988 = vadd.f32 %v7795, %v7987
        %v7989 = vpop.f32.mrb[0].mxu0
        %v7990 = vadd.f32 %v7797, %v7989
        %7991 = vmatprep.mubr.bf16.mxu0 %v6863
        %7992 = vmatmul.mubr.bf16.gmra.mrb[0].mxu0 %v6862
        %v7993 = vpop.f32.mrb[0].mxu0
        %v7994 = vadd.f32 %v7801, %v7993
        %v7995 = vpop.f32.mrb[0].mxu0
        %v7996 = vadd.f32 %v7803, %v7995
        %v7997 = vpop.f32.mrb[0].mxu0
        %v7998 = vadd.f32 %v7805, %v7997
        %v7999 = vpop.f32.mrb[0].mxu0
        %v8000 = vadd.f32 %v7807, %v7999
        %8001 = vmatprep.mubr.bf16.mxu0 %v6871
        %8002 = vmatmul.mubr.bf16.gmra.mrb[0].mxu0 %v6870
        %v8003 = vpop.f32.mrb[0].mxu0
        %v8004 = vadd.f32 %v7811, %v8003
        %v8005 = vpop.f32.mrb[0].mxu0
        %v8006 = vadd.f32 %v7813, %v8005
        %v8007 = vpop.f32.mrb[0].mxu0
        %v8008 = vadd.f32 %v7815, %v8007
        %v8009 = vpop.f32.mrb[0].mxu0
        %v8010 = vadd.f32 %v7817, %v8009
        %8011 = vmatprep.mubr.bf16.mxu0 %v6879
        %8012 = vmatmul.mubr.bf16.gmra.mrb[0].mxu0 %v6878
        %v8013 = vpop.f32.mrb[0].mxu0
        %v8014 = vadd.f32 %v7821, %v8013
        %v8015 = vpop.f32.mrb[0].mxu0
        %v8016 = vadd.f32 %v7823, %v8015
        %v8017 = vpop.f32.mrb[0].mxu0
        %v8018 = vadd.f32 %v7825, %v8017
        %v8019 = vpop.f32.mrb[0].mxu0
        %v8020 = vadd.f32 %v7827, %v8019
        %8021 = vmatprep.mubr.bf16.mxu0 %v6887
        %8022 = vmatmul.mubr.bf16.gmra.mrb[0].mxu0 %v6886
        %v8023 = vpop.f32.mrb[0].mxu0
        %v8024 = vadd.f32 %v7831, %v8023
        %v8025 = vpop.f32.mrb[0].mxu0
        %v8026 = vadd.f32 %v7833, %v8025
        %v8027 = vpop.f32.mrb[0].mxu0
        %v8028 = vadd.f32 %v7835, %v8027
        %v8029 = vpop.f32.mrb[0].mxu0
        %v8030 = vadd.f32 %v7837, %v8029
        %8031 = vmatprep.mubr.bf16.mxu0 %v6895
        %8032 = vmatmul.mubr.bf16.gmra.mrb[0].mxu0 %v6894
        %v8033 = vpop.f32.mrb[0].mxu0
        %v8034 = vadd.f32 %v7841, %v8033
        %v8035 = vpop.f32.mrb[0].mxu0
        %v8036 = vadd.f32 %v7843, %v8035
        %v8037 = vpop.f32.mrb[0].mxu0
        %v8038 = vadd.f32 %v7845, %v8037
        %v8039 = vpop.f32.mrb[0].mxu0
        %v8040 = vadd.f32 %v7847, %v8039
        %8041 = vmatprep.mubr.bf16.mxu0 %v6903
        %8042 = vmatmul.mubr.bf16.gmra.mrb[0].mxu0 %v6902
        %v8043 = vpop.f32.mrb[0].mxu0
        %v8044 = vadd.f32 %v7851, %v8043
        %v8045 = vpop.f32.mrb[0].mxu0
        %v8046 = vadd.f32 %v7853, %v8045
        %v8047 = vpop.f32.mrb[0].mxu0
        %v8048 = vadd.f32 %v7855, %v8047
        %v8049 = vpop.f32.mrb[0].mxu0
        %v8050 = vadd.f32 %v7857, %v8049
        %8051 = vmatprep.mubr.bf16.mxu0 %v6911
        %8052 = vmatmul.mubr.bf16.gmra.mrb[0].mxu0 %v6910
        %v8053 = vpop.f32.mrb[0].mxu0
        %v8054 = vadd.f32 %v7861, %v8053
        %v8055 = vpop.f32.mrb[0].mxu0
        %v8056 = vadd.f32 %v7863, %v8055
        %v8057 = vpop.f32.mrb[0].mxu0
        %v8058 = vadd.f32 %v7865, %v8057
        %v8059 = vpop.f32.mrb[0].mxu0
        %v8060 = vadd.f32 %v7867, %v8059
        %8061 = vmatprep.mubr.bf16.mxu0 %v6919
        %8062 = vmatmul.mubr.bf16.gmra.mrb[0].mxu0 %v6918
        %v8063 = vpop.f32.mrb[0].mxu0
        %v8064 = vadd.f32 %v7871, %v8063
        %v8065 = vpop.f32.mrb[0].mxu0
        %v8066 = vadd.f32 %v7873, %v8065
        %v8067 = vpop.f32.mrb[0].mxu0
        %v8068 = vadd.f32 %v7875, %v8067
        %v8069 = vpop.f32.mrb[0].mxu0
        %v8070 = vadd.f32 %v7877, %v8069
        %8071 = vmatprep.mubr.bf16.mxu0 %v6927
        %8072 = vmatmul.mubr.bf16.gmra.mrb[0].mxu0 %v6926
        %v8073 = vpop.f32.mrb[0].mxu0
        %v8074 = vadd.f32 %v7881, %v8073
        %v8075 = vpop.f32.mrb[0].mxu0
        %v8076 = vadd.f32 %v7883, %v8075
        %v8077 = vpop.f32.mrb[0].mxu0
        %v8078 = vadd.f32 %v7885, %v8077
        %v8079 = vpop.f32.mrb[0].mxu0
        %v8080 = vadd.f32 %v7887, %v8079
        %8081 = vmatprep.mubr.bf16.mxu0 %v6935
        %8082 = vmatmul.mubr.bf16.gmra.mrb[0].mxu0 %v6934
        %v8083 = vpop.f32.mrb[0].mxu0
        %v8084 = vadd.f32 %v7891, %v8083
        %v8085 = vpop.f32.mrb[0].mxu0
        %v8086 = vadd.f32 %v7893, %v8085
        %v8087 = vpop.f32.mrb[0].mxu0
        %v8088 = vadd.f32 %v7895, %v8087
        %v8089 = vpop.f32.mrb[0].mxu0
        %v8090 = vadd.f32 %v7897, %v8089
        %8091 = vmatprep.mubr.bf16.mxu0 %v6943
        %8092 = vmatmul.mubr.bf16.gmra.mrb[0].mxu0 %v6942
        %v8093 = vpop.f32.mrb[0].mxu0
        %v8094 = vadd.f32 %v7901, %v8093
        %v8095 = vpop.f32.mrb[0].mxu0
        %v8096 = vadd.f32 %v7903, %v8095
        %v8097 = vpop.f32.mrb[0].mxu0
        %v8098 = vadd.f32 %v7905, %v8097
        %v8099 = vpop.f32.mrb[0].mxu0
        %v8100 = vadd.f32 %v7907, %v8099
        %8101 = vmatprep.mubr.bf16.mxu0 %v6951
        %8102 = vmatmul.mubr.bf16.gmra.mrb[0].mxu0 %v6950
        %v8103 = vpop.f32.mrb[0].mxu0
        %v8104 = vadd.f32 %v7911, %v8103
        %v8105 = vpop.f32.mrb[0].mxu0
        %v8106 = vadd.f32 %v7913, %v8105
        %v8107 = vpop.f32.mrb[0].mxu0
        %v8108 = vadd.f32 %v7915, %v8107
        %v8109 = vpop.f32.mrb[0].mxu0
        %v8110 = vadd.f32 %v7917, %v8109
        %8111 = vmatprep.mubr.bf16.mxu0 %v6959
        %8112 = vmatmul.mubr.bf16.gmra.mrb[0].mxu0 %v6958
        %v8113 = vpop.f32.mrb[0].mxu0
        %v8114 = vadd.f32 %v7921, %v8113
        %v8115 = vpop.f32.mrb[0].mxu0
        %v8116 = vadd.f32 %v7923, %v8115
        %v8117 = vpop.f32.mrb[0].mxu0
        %v8118 = vadd.f32 %v7925, %v8117
        %v8119 = vpop.f32.mrb[0].mxu0
        %v8120 = vadd.f32 %v7927, %v8119
        %8121 = vmatprep.mubr.bf16.mxu0 %v6967
        %8122 = vmatmul.mubr.bf16.gmra.mrb[0].mxu0 %v6966
        %v8123 = vpop.f32.mrb[0].mxu0
        %v8124 = vadd.f32 %v7931, %v8123
        %v8125 = vpop.f32.mrb[0].mxu0
        %v8126 = vadd.f32 %v7933, %v8125
        %v8127 = vpop.f32.mrb[0].mxu0
        %v8128 = vadd.f32 %v7935, %v8127
        %v8129 = vpop.f32.mrb[0].mxu0
        %v8130 = vadd.f32 %v7937, %v8129
        %8131 = vmatprep.mubr.bf16.mxu0 %v6975
        %8132 = vmatmul.mubr.bf16.gmra.mrb[0].mxu0 %v6974
        %v8133 = vpop.f32.mrb[0].mxu0
        %v8134 = vadd.f32 %v7941, %v8133
        %v8135 = vpop.f32.mrb[0].mxu0
        %v8136 = vadd.f32 %v7943, %v8135
        %v8137 = vpop.f32.mrb[0].mxu0
        %v8138 = vadd.f32 %v7945, %v8137
        %v8139 = vpop.f32.mrb[0].mxu0
        %v8140 = vadd.f32 %v7947, %v8139
        %8141 = vdwg.mxu0
        %8142 = vmatprep.subr.bf16.mxu0 %v7565
        %8143 = vmatpush1.bf16.msra.mxu0 %v7564
        %8144 = vmatprep.subr.bf16.mxu0 %v7567
        %8145 = vmatpush1.bf16.msra.mxu0 %v7566
        %8146 = vmatprep.subr.bf16.mxu0 %v7569
        %8147 = vmatpush1.bf16.msra.mxu0 %v7568
        %8148 = vmatprep.subr.bf16.mxu0 %v7571
        %8149 = vmatpush1.bf16.msra.mxu0 %v7570
        %8150 = vmatprep.subr.bf16.mxu0 %v7573
        %8151 = vmatpush1.bf16.msra.mxu0 %v7572
        %8152 = vmatprep.subr.bf16.mxu0 %v7575
        %8153 = vmatpush1.bf16.msra.mxu0 %v7574
        %8154 = vmatprep.subr.bf16.mxu0 %v7577
        %8155 = vmatpush1.bf16.msra.mxu0 %v7576
        %8156 = vmatprep.subr.bf16.mxu0 %v7579
        %8157 = vmatpush1.bf16.msra.mxu0 %v7578
        %8158 = vmatprep.subr.bf16.mxu0 %v7581
        %8159 = vmatpush1.bf16.msra.mxu0 %v7580
        %8160 = vmatprep.subr.bf16.mxu0 %v7583
        %8161 = vmatpush1.bf16.msra.mxu0 %v7582
        %8162 = vmatprep.subr.bf16.mxu0 %v7585
        %8163 = vmatpush1.bf16.msra.mxu0 %v7584
        %8164 = vmatprep.subr.bf16.mxu0 %v7587
        %8165 = vmatpush1.bf16.msra.mxu0 %v7586
        %8166 = vmatprep.subr.bf16.mxu0 %v7589
        %8167 = vmatpush1.bf16.msra.mxu0 %v7588
        %8168 = vmatprep.subr.bf16.mxu0 %v7591
        %8169 = vmatpush1.bf16.msra.mxu0 %v7590
        %8170 = vmatprep.subr.bf16.mxu0 %v7593
        %8171 = vmatpush1.bf16.msra.mxu0 %v7592
        %8172 = vmatprep.subr.bf16.mxu0 %v7595
        %8173 = vmatpush1.bf16.msra.mxu0 %v7594
        %8174 = vmatprep.mubr.bf16.mxu0 %v6857
        %8175 = vmatmul.mubr.bf16.gmra.mrb[0].mxu0 %v6856
        %v8176 = vpop.f32.mrb[0].mxu0
        %v8177 = vadd.f32 %v7984, %v8176
        %v8178 = vpop.f32.mrb[0].mxu0
        %v8179 = vadd.f32 %v7986, %v8178
        %v8180 = vpop.f32.mrb[0].mxu0
        %v8181 = vadd.f32 %v7988, %v8180
        %v8182 = vpop.f32.mrb[0].mxu0
        %v8183 = vadd.f32 %v7990, %v8182
        %8184 = vmatprep.mubr.bf16.mxu0 %v6865
        %8185 = vmatmul.mubr.bf16.gmra.mrb[0].mxu0 %v6864
        %v8186 = vpop.f32.mrb[0].mxu0
        %v8187 = vadd.f32 %v7994, %v8186
        %v8188 = vpop.f32.mrb[0].mxu0
        %v8189 = vadd.f32 %v7996, %v8188
        %v8190 = vpop.f32.mrb[0].mxu0
        %v8191 = vadd.f32 %v7998, %v8190
        %v8192 = vpop.f32.mrb[0].mxu0
        %v8193 = vadd.f32 %v8000, %v8192
        %8194 = vmatprep.mubr.bf16.mxu0 %v6873
        %8195 = vmatmul.mubr.bf16.gmra.mrb[0].mxu0 %v6872
        %v8196 = vpop.f32.mrb[0].mxu0
        %v8197 = vadd.f32 %v8004, %v8196
        %v8198 = vpop.f32.mrb[0].mxu0
        %v8199 = vadd.f32 %v8006, %v8198
        %v8200 = vpop.f32.mrb[0].mxu0
        %v8201 = vadd.f32 %v8008, %v8200
        %v8202 = vpop.f32.mrb[0].mxu0
        %v8203 = vadd.f32 %v8010, %v8202
        %8204 = vmatprep.mubr.bf16.mxu0 %v6881
        %8205 = vmatmul.mubr.bf16.gmra.mrb[0].mxu0 %v6880
        %v8206 = vpop.f32.mrb[0].mxu0
        %v8207 = vadd.f32 %v8014, %v8206
        %v8208 = vpop.f32.mrb[0].mxu0
        %v8209 = vadd.f32 %v8016, %v8208
        %v8210 = vpop.f32.mrb[0].mxu0
        %v8211 = vadd.f32 %v8018, %v8210
        %v8212 = vpop.f32.mrb[0].mxu0
        %v8213 = vadd.f32 %v8020, %v8212
        %8214 = vmatprep.mubr.bf16.mxu0 %v6889
        %8215 = vmatmul.mubr.bf16.gmra.mrb[0].mxu0 %v6888
        %v8216 = vpop.f32.mrb[0].mxu0
        %v8217 = vadd.f32 %v8024, %v8216
        %v8218 = vpop.f32.mrb[0].mxu0
        %v8219 = vadd.f32 %v8026, %v8218
        %v8220 = vpop.f32.mrb[0].mxu0
        %v8221 = vadd.f32 %v8028, %v8220
        %v8222 = vpop.f32.mrb[0].mxu0
        %v8223 = vadd.f32 %v8030, %v8222
        %8224 = vmatprep.mubr.bf16.mxu0 %v6897
        %8225 = vmatmul.mubr.bf16.gmra.mrb[0].mxu0 %v6896
        %v8226 = vpop.f32.mrb[0].mxu0
        %v8227 = vadd.f32 %v8034, %v8226
        %v8228 = vpop.f32.mrb[0].mxu0
        %v8229 = vadd.f32 %v8036, %v8228
        %v8230 = vpop.f32.mrb[0].mxu0
        %v8231 = vadd.f32 %v8038, %v8230
        %v8232 = vpop.f32.mrb[0].mxu0
        %v8233 = vadd.f32 %v8040, %v8232
        %8234 = vmatprep.mubr.bf16.mxu0 %v6905
        %8235 = vmatmul.mubr.bf16.gmra.mrb[0].mxu0 %v6904
        %v8236 = vpop.f32.mrb[0].mxu0
        %v8237 = vadd.f32 %v8044, %v8236
        %v8238 = vpop.f32.mrb[0].mxu0
        %v8239 = vadd.f32 %v8046, %v8238
        %v8240 = vpop.f32.mrb[0].mxu0
        %v8241 = vadd.f32 %v8048, %v8240
        %v8242 = vpop.f32.mrb[0].mxu0
        %v8243 = vadd.f32 %v8050, %v8242
        %8244 = vmatprep.mubr.bf16.mxu0 %v6913
        %8245 = vmatmul.mubr.bf16.gmra.mrb[0].mxu0 %v6912
        %v8246 = vpop.f32.mrb[0].mxu0
        %v8247 = vadd.f32 %v8054, %v8246
        %v8248 = vpop.f32.mrb[0].mxu0
        %v8249 = vadd.f32 %v8056, %v8248
        %v8250 = vpop.f32.mrb[0].mxu0
        %v8251 = vadd.f32 %v8058, %v8250
        %v8252 = vpop.f32.mrb[0].mxu0
        %v8253 = vadd.f32 %v8060, %v8252
        %8254 = vmatprep.mubr.bf16.mxu0 %v6921
        %8255 = vmatmul.mubr.bf16.gmra.mrb[0].mxu0 %v6920
        %v8256 = vpop.f32.mrb[0].mxu0
        %v8257 = vadd.f32 %v8064, %v8256
        %v8258 = vpop.f32.mrb[0].mxu0
        %v8259 = vadd.f32 %v8066, %v8258
        %v8260 = vpop.f32.mrb[0].mxu0
        %v8261 = vadd.f32 %v8068, %v8260
        %v8262 = vpop.f32.mrb[0].mxu0
        %v8263 = vadd.f32 %v8070, %v8262
        %8264 = vmatprep.mubr.bf16.mxu0 %v6929
        %8265 = vmatmul.mubr.bf16.gmra.mrb[0].mxu0 %v6928
        %v8266 = vpop.f32.mrb[0].mxu0
        %v8267 = vadd.f32 %v8074, %v8266
        %v8268 = vpop.f32.mrb[0].mxu0
        %v8269 = vadd.f32 %v8076, %v8268
        %v8270 = vpop.f32.mrb[0].mxu0
        %v8271 = vadd.f32 %v8078, %v8270
        %v8272 = vpop.f32.mrb[0].mxu0
        %v8273 = vadd.f32 %v8080, %v8272
        %8274 = vmatprep.mubr.bf16.mxu0 %v6937
        %8275 = vmatmul.mubr.bf16.gmra.mrb[0].mxu0 %v6936
        %v8276 = vpop.f32.mrb[0].mxu0
        %v8277 = vadd.f32 %v8084, %v8276
        %v8278 = vpop.f32.mrb[0].mxu0
        %v8279 = vadd.f32 %v8086, %v8278
        %v8280 = vpop.f32.mrb[0].mxu0
        %v8281 = vadd.f32 %v8088, %v8280
        %v8282 = vpop.f32.mrb[0].mxu0
        %v8283 = vadd.f32 %v8090, %v8282
        %8284 = vmatprep.mubr.bf16.mxu0 %v6945
        %8285 = vmatmul.mubr.bf16.gmra.mrb[0].mxu0 %v6944
        %v8286 = vpop.f32.mrb[0].mxu0
        %v8287 = vadd.f32 %v8094, %v8286
        %v8288 = vpop.f32.mrb[0].mxu0
        %v8289 = vadd.f32 %v8096, %v8288
        %v8290 = vpop.f32.mrb[0].mxu0
        %v8291 = vadd.f32 %v8098, %v8290
        %v8292 = vpop.f32.mrb[0].mxu0
        %v8293 = vadd.f32 %v8100, %v8292
        %8294 = vmatprep.mubr.bf16.mxu0 %v6953
        %8295 = vmatmul.mubr.bf16.gmra.mrb[0].mxu0 %v6952
        %v8296 = vpop.f32.mrb[0].mxu0
        %v8297 = vadd.f32 %v8104, %v8296
        %v8298 = vpop.f32.mrb[0].mxu0
        %v8299 = vadd.f32 %v8106, %v8298
        %v8300 = vpop.f32.mrb[0].mxu0
        %v8301 = vadd.f32 %v8108, %v8300
        %v8302 = vpop.f32.mrb[0].mxu0
        %v8303 = vadd.f32 %v8110, %v8302
        %8304 = vmatprep.mubr.bf16.mxu0 %v6961
        %8305 = vmatmul.mubr.bf16.gmra.mrb[0].mxu0 %v6960
        %v8306 = vpop.f32.mrb[0].mxu0
        %v8307 = vadd.f32 %v8114, %v8306
        %v8308 = vpop.f32.mrb[0].mxu0
        %v8309 = vadd.f32 %v8116, %v8308
        %v8310 = vpop.f32.mrb[0].mxu0
        %v8311 = vadd.f32 %v8118, %v8310
        %v8312 = vpop.f32.mrb[0].mxu0
        %v8313 = vadd.f32 %v8120, %v8312
        %8314 = vmatprep.mubr.bf16.mxu0 %v6969
        %8315 = vmatmul.mubr.bf16.gmra.mrb[0].mxu0 %v6968
        %v8316 = vpop.f32.mrb[0].mxu0
        %v8317 = vadd.f32 %v8124, %v8316
        %v8318 = vpop.f32.mrb[0].mxu0
        %v8319 = vadd.f32 %v8126, %v8318
        %v8320 = vpop.f32.mrb[0].mxu0
        %v8321 = vadd.f32 %v8128, %v8320
        %v8322 = vpop.f32.mrb[0].mxu0
        %v8323 = vadd.f32 %v8130, %v8322
        %8324 = vmatprep.mubr.bf16.mxu0 %v6977
        %8325 = vmatmul.mubr.bf16.gmra.mrb[0].mxu0 %v6976
        %v8326 = vpop.f32.mrb[0].mxu0
        %v8327 = vadd.f32 %v8134, %v8326
        %v8328 = vpop.f32.mrb[0].mxu0
        %v8329 = vadd.f32 %v8136, %v8328
        %v8330 = vpop.f32.mrb[0].mxu0
        %v8331 = vadd.f32 %v8138, %v8330
        %v8332 = vpop.f32.mrb[0].mxu0
        %v8333 = vadd.f32 %v8140, %v8332
        %8334 = vdwg.mxu0
        %8335 = vmatprep.subr.bf16.mxu0 %v7597
        %8336 = vmatpush1.bf16.msra.mxu0 %v7596
        %8337 = vmatprep.subr.bf16.mxu0 %v7599
        %8338 = vmatpush1.bf16.msra.mxu0 %v7598
        %8339 = vmatprep.subr.bf16.mxu0 %v7601
        %8340 = vmatpush1.bf16.msra.mxu0 %v7600
        %8341 = vmatprep.subr.bf16.mxu0 %v7603
        %8342 = vmatpush1.bf16.msra.mxu0 %v7602
        %8343 = vmatprep.subr.bf16.mxu0 %v7605
        %8344 = vmatpush1.bf16.msra.mxu0 %v7604
        %8345 = vmatprep.subr.bf16.mxu0 %v7607
        %8346 = vmatpush1.bf16.msra.mxu0 %v7606
        %8347 = vmatprep.subr.bf16.mxu0 %v7609
        %8348 = vmatpush1.bf16.msra.mxu0 %v7608
        %8349 = vmatprep.subr.bf16.mxu0 %v7611
        %8350 = vmatpush1.bf16.msra.mxu0 %v7610
        %8351 = vmatprep.subr.bf16.mxu0 %v7613
        %8352 = vmatpush1.bf16.msra.mxu0 %v7612
        %8353 = vmatprep.subr.bf16.mxu0 %v7615
        %8354 = vmatpush1.bf16.msra.mxu0 %v7614
        %8355 = vmatprep.subr.bf16.mxu0 %v7617
        %8356 = vmatpush1.bf16.msra.mxu0 %v7616
        %8357 = vmatprep.subr.bf16.mxu0 %v7619
        %8358 = vmatpush1.bf16.msra.mxu0 %v7618
        %8359 = vmatprep.subr.bf16.mxu0 %v7621
        %8360 = vmatpush1.bf16.msra.mxu0 %v7620
        %8361 = vmatprep.subr.bf16.mxu0 %v7623
        %8362 = vmatpush1.bf16.msra.mxu0 %v7622
        %8363 = vmatprep.subr.bf16.mxu0 %v7625
        %8364 = vmatpush1.bf16.msra.mxu0 %v7624
        %8365 = vmatprep.subr.bf16.mxu0 %v7627
        %8366 = vmatpush1.bf16.msra.mxu0 %v7626
        %8367 = vmatprep.mubr.bf16.mxu0 %v6859
        %8368 = vmatmul.mubr.bf16.gmra.mrb[0].mxu0 %v6858
        %v8369 = vpop.f32.mrb[0].mxu0
        %v8370 = vadd.f32 %v8177, %v8369
        %v8371 = vpop.f32.mrb[0].mxu0
        %v8372 = vadd.f32 %v8179, %v8371
        %v8373 = vpop.f32.mrb[0].mxu0
        %v8374 = vadd.f32 %v8181, %v8373
        %v8375 = vpop.f32.mrb[0].mxu0
        %v8376 = vadd.f32 %v8183, %v8375
        %8377 = vmatprep.mubr.bf16.mxu0 %v6867
        %8378 = vmatmul.mubr.bf16.gmra.mrb[0].mxu0 %v6866
        %v8379 = vpop.f32.mrb[0].mxu0
        %v8380 = vadd.f32 %v8187, %v8379
        %v8381 = vpop.f32.mrb[0].mxu0
        %v8382 = vadd.f32 %v8189, %v8381
        %v8383 = vpop.f32.mrb[0].mxu0
        %v8384 = vadd.f32 %v8191, %v8383
        %v8385 = vpop.f32.mrb[0].mxu0
        %v8386 = vadd.f32 %v8193, %v8385
        %8387 = vmatprep.mubr.bf16.mxu0 %v6875
        %8388 = vmatmul.mubr.bf16.gmra.mrb[0].mxu0 %v6874
        %v8389 = vpop.f32.mrb[0].mxu0
        %v8390 = vadd.f32 %v8197, %v8389
        %v8391 = vpop.f32.mrb[0].mxu0
        %v8392 = vadd.f32 %v8199, %v8391
        %v8393 = vpop.f32.mrb[0].mxu0
        %v8394 = vadd.f32 %v8201, %v8393
        %v8395 = vpop.f32.mrb[0].mxu0
        %v8396 = vadd.f32 %v8203, %v8395
        %8397 = vmatprep.mubr.bf16.mxu0 %v6883
        %8398 = vmatmul.mubr.bf16.gmra.mrb[0].mxu0 %v6882
        %v8399 = vpop.f32.mrb[0].mxu0
        %v8400 = vadd.f32 %v8207, %v8399
        %v8401 = vpop.f32.mrb[0].mxu0
        %v8402 = vadd.f32 %v8209, %v8401
        %v8403 = vpop.f32.mrb[0].mxu0
        %v8404 = vadd.f32 %v8211, %v8403
        %v8405 = vpop.f32.mrb[0].mxu0
        %v8406 = vadd.f32 %v8213, %v8405
        %8407 = vmatprep.mubr.bf16.mxu0 %v6891
        %8408 = vmatmul.mubr.bf16.gmra.mrb[0].mxu0 %v6890
        %v8409 = vpop.f32.mrb[0].mxu0
        %v8410 = vadd.f32 %v8217, %v8409
        %v8411 = vpop.f32.mrb[0].mxu0
        %v8412 = vadd.f32 %v8219, %v8411
        %v8413 = vpop.f32.mrb[0].mxu0
        %v8414 = vadd.f32 %v8221, %v8413
        %v8415 = vpop.f32.mrb[0].mxu0
        %v8416 = vadd.f32 %v8223, %v8415
        %8417 = vmatprep.mubr.bf16.mxu0 %v6899
        %8418 = vmatmul.mubr.bf16.gmra.mrb[0].mxu0 %v6898
        %v8419 = vpop.f32.mrb[0].mxu0
        %v8420 = vadd.f32 %v8227, %v8419
        %v8421 = vpop.f32.mrb[0].mxu0
        %v8422 = vadd.f32 %v8229, %v8421
        %v8423 = vpop.f32.mrb[0].mxu0
        %v8424 = vadd.f32 %v8231, %v8423
        %v8425 = vpop.f32.mrb[0].mxu0
        %v8426 = vadd.f32 %v8233, %v8425
        %8427 = vmatprep.mubr.bf16.mxu0 %v6907
        %8428 = vmatmul.mubr.bf16.gmra.mrb[0].mxu0 %v6906
        %v8429 = vpop.f32.mrb[0].mxu0
        %v8430 = vadd.f32 %v8237, %v8429
        %v8431 = vpop.f32.mrb[0].mxu0
        %v8432 = vadd.f32 %v8239, %v8431
        %v8433 = vpop.f32.mrb[0].mxu0
        %v8434 = vadd.f32 %v8241, %v8433
        %v8435 = vpop.f32.mrb[0].mxu0
        %v8436 = vadd.f32 %v8243, %v8435
        %8437 = vmatprep.mubr.bf16.mxu0 %v6915
        %8438 = vmatmul.mubr.bf16.gmra.mrb[0].mxu0 %v6914
        %v8439 = vpop.f32.mrb[0].mxu0
        %v8440 = vadd.f32 %v8247, %v8439
        %v8441 = vpop.f32.mrb[0].mxu0
        %v8442 = vadd.f32 %v8249, %v8441
        %v8443 = vpop.f32.mrb[0].mxu0
        %v8444 = vadd.f32 %v8251, %v8443
        %v8445 = vpop.f32.mrb[0].mxu0
        %v8446 = vadd.f32 %v8253, %v8445
        %8447 = vmatprep.mubr.bf16.mxu0 %v6923
        %8448 = vmatmul.mubr.bf16.gmra.mrb[0].mxu0 %v6922
        %v8449 = vpop.f32.mrb[0].mxu0
        %v8450 = vadd.f32 %v8257, %v8449
        %v8451 = vpop.f32.mrb[0].mxu0
        %v8452 = vadd.f32 %v8259, %v8451
        %v8453 = vpop.f32.mrb[0].mxu0
        %v8454 = vadd.f32 %v8261, %v8453
        %v8455 = vpop.f32.mrb[0].mxu0
        %v8456 = vadd.f32 %v8263, %v8455
        %8457 = vmatprep.mubr.bf16.mxu0 %v6931
        %8458 = vmatmul.mubr.bf16.gmra.mrb[0].mxu0 %v6930
        %v8459 = vpop.f32.mrb[0].mxu0
        %v8460 = vadd.f32 %v8267, %v8459
        %v8461 = vpop.f32.mrb[0].mxu0
        %v8462 = vadd.f32 %v8269, %v8461
        %v8463 = vpop.f32.mrb[0].mxu0
        %v8464 = vadd.f32 %v8271, %v8463
        %v8465 = vpop.f32.mrb[0].mxu0
        %v8466 = vadd.f32 %v8273, %v8465
        %8467 = vmatprep.mubr.bf16.mxu0 %v6939
        %8468 = vmatmul.mubr.bf16.gmra.mrb[0].mxu0 %v6938
        %v8469 = vpop.f32.mrb[0].mxu0
        %v8470 = vadd.f32 %v8277, %v8469
        %v8471 = vpop.f32.mrb[0].mxu0
        %v8472 = vadd.f32 %v8279, %v8471
        %v8473 = vpop.f32.mrb[0].mxu0
        %v8474 = vadd.f32 %v8281, %v8473
        %v8475 = vpop.f32.mrb[0].mxu0
        %v8476 = vadd.f32 %v8283, %v8475
        %8477 = vmatprep.mubr.bf16.mxu0 %v6947
        %8478 = vmatmul.mubr.bf16.gmra.mrb[0].mxu0 %v6946
        %v8479 = vpop.f32.mrb[0].mxu0
        %v8480 = vadd.f32 %v8287, %v8479
        %v8481 = vpop.f32.mrb[0].mxu0
        %v8482 = vadd.f32 %v8289, %v8481
        %v8483 = vpop.f32.mrb[0].mxu0
        %v8484 = vadd.f32 %v8291, %v8483
        %v8485 = vpop.f32.mrb[0].mxu0
        %v8486 = vadd.f32 %v8293, %v8485
        %8487 = vmatprep.mubr.bf16.mxu0 %v6955
        %8488 = vmatmul.mubr.bf16.gmra.mrb[0].mxu0 %v6954
        %v8489 = vpop.f32.mrb[0].mxu0
        %v8490 = vadd.f32 %v8297, %v8489
        %v8491 = vpop.f32.mrb[0].mxu0
        %v8492 = vadd.f32 %v8299, %v8491
        %v8493 = vpop.f32.mrb[0].mxu0
        %v8494 = vadd.f32 %v8301, %v8493
        %v8495 = vpop.f32.mrb[0].mxu0
        %v8496 = vadd.f32 %v8303, %v8495
        %8497 = vmatprep.mubr.bf16.mxu0 %v6963
        %8498 = vmatmul.mubr.bf16.gmra.mrb[0].mxu0 %v6962
        %v8499 = vpop.f32.mrb[0].mxu0
        %v8500 = vadd.f32 %v8307, %v8499
        %v8501 = vpop.f32.mrb[0].mxu0
        %v8502 = vadd.f32 %v8309, %v8501
        %v8503 = vpop.f32.mrb[0].mxu0
        %v8504 = vadd.f32 %v8311, %v8503
        %v8505 = vpop.f32.mrb[0].mxu0
        %v8506 = vadd.f32 %v8313, %v8505
        %8507 = vmatprep.mubr.bf16.mxu0 %v6971
        %8508 = vmatmul.mubr.bf16.gmra.mrb[0].mxu0 %v6970
        %v8509 = vpop.f32.mrb[0].mxu0
        %v8510 = vadd.f32 %v8317, %v8509
        %v8511 = vpop.f32.mrb[0].mxu0
        %v8512 = vadd.f32 %v8319, %v8511
        %v8513 = vpop.f32.mrb[0].mxu0
        %v8514 = vadd.f32 %v8321, %v8513
        %v8515 = vpop.f32.mrb[0].mxu0
        %v8516 = vadd.f32 %v8323, %v8515
        %8517 = vmatprep.mubr.bf16.mxu0 %v6979
        %8518 = vmatmul.mubr.bf16.gmra.mrb[0].mxu0 %v6978
        %v8519 = vpop.f32.mrb[0].mxu0
        %v8520 = vadd.f32 %v8327, %v8519
        %v8521 = vpop.f32.mrb[0].mxu0
        %v8522 = vadd.f32 %v8329, %v8521
        %v8523 = vpop.f32.mrb[0].mxu0
        %v8524 = vadd.f32 %v8331, %v8523
        %v8525 = vpop.f32.mrb[0].mxu0
        %v8526 = vadd.f32 %v8333, %v8525
        %8527 = vdwg.mxu0
        %v8528 = vadd.f32 %v8370, %v4928
        %v8529 = vadd.f32 %v8372, %v4929
        %v8530 = vadd.f32 %v8374, %v4930
        %v8531 = vadd.f32 %v8376, %v4931
        %v8532 = vadd.f32 %v8380, %v4932
        %v8533 = vadd.f32 %v8382, %v4933
        %v8534 = vadd.f32 %v8384, %v4934
        %v8535 = vadd.f32 %v8386, %v4935
        %v8536 = vadd.f32 %v8390, %v4936
        %v8537 = vadd.f32 %v8392, %v4937
        %v8538 = vadd.f32 %v8394, %v4938
        %v8539 = vadd.f32 %v8396, %v4939
        %v8540 = vadd.f32 %v8400, %v4940
        %v8541 = vadd.f32 %v8402, %v4941
        %v8542 = vadd.f32 %v8404, %v4942
        %v8543 = vadd.f32 %v8406, %v4943
        %v8544 = vadd.f32 %v8410, %v4944
        %v8545 = vadd.f32 %v8412, %v4945
        %v8546 = vadd.f32 %v8414, %v4946
        %v8547 = vadd.f32 %v8416, %v4947
        %v8548 = vadd.f32 %v8420, %v4948
        %v8549 = vadd.f32 %v8422, %v4949
        %v8550 = vadd.f32 %v8424, %v4950
        %v8551 = vadd.f32 %v8426, %v4951
        %v8552 = vadd.f32 %v8430, %v4952
        %v8553 = vadd.f32 %v8432, %v4953
        %v8554 = vadd.f32 %v8434, %v4954
        %v8555 = vadd.f32 %v8436, %v4955
        %v8556 = vadd.f32 %v8440, %v4956
        %v8557 = vadd.f32 %v8442, %v4957
        %v8558 = vadd.f32 %v8444, %v4958
        %v8559 = vadd.f32 %v8446, %v4959
        %v8560 = vadd.f32 %v8450, %v4960
        %v8561 = vadd.f32 %v8452, %v4961
        %v8562 = vadd.f32 %v8454, %v4962
        %v8563 = vadd.f32 %v8456, %v4963
        %v8564 = vadd.f32 %v8460, %v4964
        %v8565 = vadd.f32 %v8462, %v4965
        %v8566 = vadd.f32 %v8464, %v4966
        %v8567 = vadd.f32 %v8466, %v4967
        %v8568 = vadd.f32 %v8470, %v4968
        %v8569 = vadd.f32 %v8472, %v4969
        %v8570 = vadd.f32 %v8474, %v4970
        %v8571 = vadd.f32 %v8476, %v4971
        %v8572 = vadd.f32 %v8480, %v4972
        %v8573 = vadd.f32 %v8482, %v4973
        %v8574 = vadd.f32 %v8484, %v4974
        %v8575 = vadd.f32 %v8486, %v4975
        %v8576 = vadd.f32 %v8490, %v4976
        %v8577 = vadd.f32 %v8492, %v4977
        %v8578 = vadd.f32 %v8494, %v4978
        %v8579 = vadd.f32 %v8496, %v4979
        %v8580 = vadd.f32 %v8500, %v4980
        %v8581 = vadd.f32 %v8502, %v4981
        %v8582 = vadd.f32 %v8504, %v4982
        %v8583 = vadd.f32 %v8506, %v4983
        %v8584 = vadd.f32 %v8510, %v4984
        %v8585 = vadd.f32 %v8512, %v4985
        %v8586 = vadd.f32 %v8514, %v4986
        %v8587 = vadd.f32 %v8516, %v4987
        %v8588 = vadd.f32 %v8520, %v4988
        %v8589 = vadd.f32 %v8522, %v4989
        %v8590 = vadd.f32 %v8524, %v4990
        %v8591 = vadd.f32 %v8526, %v4991
        %v8592 = vadd.f32 %v8528, %v8529
        %8593 = vadd.xlane.f32.xlu0 %v8592
        %v8594 = vpop.xlane.xlu0 %8593
        %v8595 = vadd.f32 %v8530, %v8531
        %8596 = vadd.xlane.f32.xlu0 %v8595
        %v8597 = vpop.xlane.xlu0 %8596
        %v8598 = vadd.f32 %v8532, %v8533
        %8599 = vadd.xlane.f32.xlu0 %v8598
        %v8600 = vpop.xlane.xlu0 %8599
        %v8601 = vadd.f32 %v8534, %v8535
        %8602 = vadd.xlane.f32.xlu0 %v8601
        %v8603 = vpop.xlane.xlu0 %8602
        %v8604 = vadd.f32 %v8536, %v8537
        %8605 = vadd.xlane.f32.xlu0 %v8604
        %v8606 = vpop.xlane.xlu0 %8605
        %v8607 = vadd.f32 %v8538, %v8539
        %8608 = vadd.xlane.f32.xlu0 %v8607
        %v8609 = vpop.xlane.xlu0 %8608
        %v8610 = vadd.f32 %v8540, %v8541
        %8611 = vadd.xlane.f32.xlu0 %v8610
        %v8612 = vpop.xlane.xlu0 %8611
        %v8613 = vadd.f32 %v8542, %v8543
        %8614 = vadd.xlane.f32.xlu0 %v8613
        %v8615 = vpop.xlane.xlu0 %8614
        %v8616 = vadd.f32 %v8544, %v8545
        %8617 = vadd.xlane.f32.xlu0 %v8616
        %v8618 = vpop.xlane.xlu0 %8617
        %v8619 = vadd.f32 %v8546, %v8547
        %8620 = vadd.xlane.f32.xlu0 %v8619
        %v8621 = vpop.xlane.xlu0 %8620
        %v8622 = vadd.f32 %v8548, %v8549
        %8623 = vadd.xlane.f32.xlu0 %v8622
        %v8624 = vpop.xlane.xlu0 %8623
        %v8625 = vadd.f32 %v8550, %v8551
        %8626 = vadd.xlane.f32.xlu0 %v8625
        %v8627 = vpop.xlane.xlu0 %8626
        %v8628 = vadd.f32 %v8552, %v8553
        %8629 = vadd.xlane.f32.xlu0 %v8628
        %v8630 = vpop.xlane.xlu0 %8629
        %v8631 = vadd.f32 %v8554, %v8555
        %8632 = vadd.xlane.f32.xlu0 %v8631
        %v8633 = vpop.xlane.xlu0 %8632
        %v8634 = vadd.f32 %v8556, %v8557
        %8635 = vadd.xlane.f32.xlu0 %v8634
        %v8636 = vpop.xlane.xlu0 %8635
        %v8637 = vadd.f32 %v8558, %v8559
        %8638 = vadd.xlane.f32.xlu0 %v8637
        %v8639 = vpop.xlane.xlu0 %8638
        %v8640 = vadd.f32 %v8560, %v8561
        %8641 = vadd.xlane.f32.xlu0 %v8640
        %v8642 = vpop.xlane.xlu0 %8641
        %v8643 = vadd.f32 %v8562, %v8563
        %8644 = vadd.xlane.f32.xlu0 %v8643
        %v8645 = vpop.xlane.xlu0 %8644
        %v8646 = vadd.f32 %v8564, %v8565
        %8647 = vadd.xlane.f32.xlu0 %v8646
        %v8648 = vpop.xlane.xlu0 %8647
        %v8649 = vadd.f32 %v8566, %v8567
        %8650 = vadd.xlane.f32.xlu0 %v8649
        %v8651 = vpop.xlane.xlu0 %8650
        %v8652 = vadd.f32 %v8568, %v8569
        %8653 = vadd.xlane.f32.xlu0 %v8652
        %v8654 = vpop.xlane.xlu0 %8653
        %v8655 = vadd.f32 %v8570, %v8571
        %8656 = vadd.xlane.f32.xlu0 %v8655
        %v8657 = vpop.xlane.xlu0 %8656
        %v8658 = vadd.f32 %v8572, %v8573
        %8659 = vadd.xlane.f32.xlu0 %v8658
        %v8660 = vpop.xlane.xlu0 %8659
        %v8661 = vadd.f32 %v8574, %v8575
        %8662 = vadd.xlane.f32.xlu0 %v8661
        %v8663 = vpop.xlane.xlu0 %8662
        %v8664 = vadd.f32 %v8576, %v8577
        %8665 = vadd.xlane.f32.xlu0 %v8664
        %v8666 = vpop.xlane.xlu0 %8665
        %v8667 = vadd.f32 %v8578, %v8579
        %8668 = vadd.xlane.f32.xlu0 %v8667
        %v8669 = vpop.xlane.xlu0 %8668
        %v8670 = vadd.f32 %v8580, %v8581
        %8671 = vadd.xlane.f32.xlu0 %v8670
        %v8672 = vpop.xlane.xlu0 %8671
        %v8673 = vadd.f32 %v8582, %v8583
        %8674 = vadd.xlane.f32.xlu0 %v8673
        %v8675 = vpop.xlane.xlu0 %8674
        %v8676 = vadd.f32 %v8584, %v8585
        %8677 = vadd.xlane.f32.xlu0 %v8676
        %v8678 = vpop.xlane.xlu0 %8677
        %v8679 = vadd.f32 %v8586, %v8587
        %8680 = vadd.xlane.f32.xlu0 %v8679
        %v8681 = vpop.xlane.xlu0 %8680
        %v8682 = vadd.f32 %v8588, %v8589
        %8683 = vadd.xlane.f32.xlu0 %v8682
        %v8684 = vpop.xlane.xlu0 %8683
        %v8685 = vadd.f32 %v8590, %v8591
        %8686 = vadd.xlane.f32.xlu0 %v8685
        %v8687 = vpop.xlane.xlu0 %8686
        %v8688 = vmul.f32 %v8594, %v4431
        %v8689 = vmul.f32 %v8597, %v4431
        %v8690 = vmul.f32 %v8600, %v4431
        %v8691 = vmul.f32 %v8603, %v4431
        %v8692 = vmul.f32 %v8606, %v4431
        %v8693 = vmul.f32 %v8609, %v4431
        %v8694 = vmul.f32 %v8612, %v4431
        %v8695 = vmul.f32 %v8615, %v4431
        %v8696 = vmul.f32 %v8618, %v4431
        %v8697 = vmul.f32 %v8621, %v4431
        %v8698 = vmul.f32 %v8624, %v4431
        %v8699 = vmul.f32 %v8627, %v4431
        %v8700 = vmul.f32 %v8630, %v4431
        %v8701 = vmul.f32 %v8633, %v4431
        %v8702 = vmul.f32 %v8636, %v4431
        %v8703 = vmul.f32 %v8639, %v4431
        %v8704 = vmul.f32 %v8642, %v4431
        %v8705 = vmul.f32 %v8645, %v4431
        %v8706 = vmul.f32 %v8648, %v4431
        %v8707 = vmul.f32 %v8651, %v4431
        %v8708 = vmul.f32 %v8654, %v4431
        %v8709 = vmul.f32 %v8657, %v4431
        %v8710 = vmul.f32 %v8660, %v4431
        %v8711 = vmul.f32 %v8663, %v4431
        %v8712 = vmul.f32 %v8666, %v4431
        %v8713 = vmul.f32 %v8669, %v4431
        %v8714 = vmul.f32 %v8672, %v4431
        %v8715 = vmul.f32 %v8675, %v4431
        %v8716 = vmul.f32 %v8678, %v4431
        %v8717 = vmul.f32 %v8681, %v4431
        %v8718 = vmul.f32 %v8684, %v4431
        %v8719 = vmul.f32 %v8687, %v4431
        %v8720 = vsub.f32 %v8528, %v8688
        %v8721 = vsub.f32 %v8529, %v8688
        %v8722 = vsub.f32 %v8530, %v8689
        %v8723 = vsub.f32 %v8531, %v8689
        %v8724 = vsub.f32 %v8532, %v8690
        %v8725 = vsub.f32 %v8533, %v8690
        %v8726 = vsub.f32 %v8534, %v8691
        %v8727 = vsub.f32 %v8535, %v8691
        %v8728 = vsub.f32 %v8536, %v8692
        %v8729 = vsub.f32 %v8537, %v8692
        %v8730 = vsub.f32 %v8538, %v8693
        %v8731 = vsub.f32 %v8539, %v8693
        %v8732 = vsub.f32 %v8540, %v8694
        %v8733 = vsub.f32 %v8541, %v8694
        %v8734 = vsub.f32 %v8542, %v8695
        %v8735 = vsub.f32 %v8543, %v8695
        %v8736 = vsub.f32 %v8544, %v8696
        %v8737 = vsub.f32 %v8545, %v8696
        %v8738 = vsub.f32 %v8546, %v8697
        %v8739 = vsub.f32 %v8547, %v8697
        %v8740 = vsub.f32 %v8548, %v8698
        %v8741 = vsub.f32 %v8549, %v8698
        %v8742 = vsub.f32 %v8550, %v8699
        %v8743 = vsub.f32 %v8551, %v8699
        %v8744 = vsub.f32 %v8552, %v8700
        %v8745 = vsub.f32 %v8553, %v8700
        %v8746 = vsub.f32 %v8554, %v8701
        %v8747 = vsub.f32 %v8555, %v8701
        %v8748 = vsub.f32 %v8556, %v8702
        %v8749 = vsub.f32 %v8557, %v8702
        %v8750 = vsub.f32 %v8558, %v8703
        %v8751 = vsub.f32 %v8559, %v8703
        %v8752 = vsub.f32 %v8560, %v8704
        %v8753 = vsub.f32 %v8561, %v8704
        %v8754 = vsub.f32 %v8562, %v8705
        %v8755 = vsub.f32 %v8563, %v8705
        %v8756 = vsub.f32 %v8564, %v8706
        %v8757 = vsub.f32 %v8565, %v8706
        %v8758 = vsub.f32 %v8566, %v8707
        %v8759 = vsub.f32 %v8567, %v8707
        %v8760 = vsub.f32 %v8568, %v8708
        %v8761 = vsub.f32 %v8569, %v8708
        %v8762 = vsub.f32 %v8570, %v8709
        %v8763 = vsub.f32 %v8571, %v8709
        %v8764 = vsub.f32 %v8572, %v8710
        %v8765 = vsub.f32 %v8573, %v8710
        %v8766 = vsub.f32 %v8574, %v8711
        %v8767 = vsub.f32 %v8575, %v8711
        %v8768 = vsub.f32 %v8576, %v8712
        %v8769 = vsub.f32 %v8577, %v8712
        %v8770 = vsub.f32 %v8578, %v8713
        %v8771 = vsub.f32 %v8579, %v8713
        %v8772 = vsub.f32 %v8580, %v8714
        %v8773 = vsub.f32 %v8581, %v8714
        %v8774 = vsub.f32 %v8582, %v8715
        %v8775 = vsub.f32 %v8583, %v8715
        %v8776 = vsub.f32 %v8584, %v8716
        %v8777 = vsub.f32 %v8585, %v8716
        %v8778 = vsub.f32 %v8586, %v8717
        %v8779 = vsub.f32 %v8587, %v8717
        %v8780 = vsub.f32 %v8588, %v8718
        %v8781 = vsub.f32 %v8589, %v8718
        %v8782 = vsub.f32 %v8590, %v8719
        %v8783 = vsub.f32 %v8591, %v8719
        %v8784 = vmul.f32 %v8720, %v8720
        %v8785 = vmul.f32 %v8721, %v8721
        %v8786 = vmul.f32 %v8722, %v8722
        %v8787 = vmul.f32 %v8723, %v8723
        %v8788 = vmul.f32 %v8724, %v8724
        %v8789 = vmul.f32 %v8725, %v8725
        %v8790 = vmul.f32 %v8726, %v8726
        %v8791 = vmul.f32 %v8727, %v8727
        %v8792 = vmul.f32 %v8728, %v8728
        %v8793 = vmul.f32 %v8729, %v8729
        %v8794 = vmul.f32 %v8730, %v8730
        %v8795 = vmul.f32 %v8731, %v8731
        %v8796 = vmul.f32 %v8732, %v8732
        %v8797 = vmul.f32 %v8733, %v8733
        %v8798 = vmul.f32 %v8734, %v8734
        %v8799 = vmul.f32 %v8735, %v8735
        %v8800 = vmul.f32 %v8736, %v8736
        %v8801 = vmul.f32 %v8737, %v8737
        %v8802 = vmul.f32 %v8738, %v8738
        %v8803 = vmul.f32 %v8739, %v8739
        %v8804 = vmul.f32 %v8740, %v8740
        %v8805 = vmul.f32 %v8741, %v8741
        %v8806 = vmul.f32 %v8742, %v8742
        %v8807 = vmul.f32 %v8743, %v8743
        %v8808 = vmul.f32 %v8744, %v8744
        %v8809 = vmul.f32 %v8745, %v8745
        %v8810 = vmul.f32 %v8746, %v8746
        %v8811 = vmul.f32 %v8747, %v8747
        %v8812 = vmul.f32 %v8748, %v8748
        %v8813 = vmul.f32 %v8749, %v8749
        %v8814 = vmul.f32 %v8750, %v8750
        %v8815 = vmul.f32 %v8751, %v8751
        %v8816 = vmul.f32 %v8752, %v8752
        %v8817 = vmul.f32 %v8753, %v8753
        %v8818 = vmul.f32 %v8754, %v8754
        %v8819 = vmul.f32 %v8755, %v8755
        %v8820 = vmul.f32 %v8756, %v8756
        %v8821 = vmul.f32 %v8757, %v8757
        %v8822 = vmul.f32 %v8758, %v8758
        %v8823 = vmul.f32 %v8759, %v8759
        %v8824 = vmul.f32 %v8760, %v8760
        %v8825 = vmul.f32 %v8761, %v8761
        %v8826 = vmul.f32 %v8762, %v8762
        %v8827 = vmul.f32 %v8763, %v8763
        %v8828 = vmul.f32 %v8764, %v8764
        %v8829 = vmul.f32 %v8765, %v8765
        %v8830 = vmul.f32 %v8766, %v8766
        %v8831 = vmul.f32 %v8767, %v8767
        %v8832 = vmul.f32 %v8768, %v8768
        %v8833 = vmul.f32 %v8769, %v8769
        %v8834 = vmul.f32 %v8770, %v8770
        %v8835 = vmul.f32 %v8771, %v8771
        %v8836 = vmul.f32 %v8772, %v8772
        %v8837 = vmul.f32 %v8773, %v8773
        %v8838 = vmul.f32 %v8774, %v8774
        %v8839 = vmul.f32 %v8775, %v8775
        %v8840 = vmul.f32 %v8776, %v8776
        %v8841 = vmul.f32 %v8777, %v8777
        %v8842 = vmul.f32 %v8778, %v8778
        %v8843 = vmul.f32 %v8779, %v8779
        %v8844 = vmul.f32 %v8780, %v8780
        %v8845 = vmul.f32 %v8781, %v8781
        %v8846 = vmul.f32 %v8782, %v8782
        %v8847 = vmul.f32 %v8783, %v8783
        %v8848 = vadd.f32 %v8784, %v8785
        %8849 = vadd.xlane.f32.xlu0 %v8848
        %v8850 = vpop.xlane.xlu0 %8849
        %v8851 = vadd.f32 %v8786, %v8787
        %8852 = vadd.xlane.f32.xlu0 %v8851
        %v8853 = vpop.xlane.xlu0 %8852
        %v8854 = vadd.f32 %v8788, %v8789
        %8855 = vadd.xlane.f32.xlu0 %v8854
        %v8856 = vpop.xlane.xlu0 %8855
        %v8857 = vadd.f32 %v8790, %v8791
        %8858 = vadd.xlane.f32.xlu0 %v8857
        %v8859 = vpop.xlane.xlu0 %8858
        %v8860 = vadd.f32 %v8792, %v8793
        %8861 = vadd.xlane.f32.xlu0 %v8860
        %v8862 = vpop.xlane.xlu0 %8861
        %v8863 = vadd.f32 %v8794, %v8795
        %8864 = vadd.xlane.f32.xlu0 %v8863
        %v8865 = vpop.xlane.xlu0 %8864
        %v8866 = vadd.f32 %v8796, %v8797
        %8867 = vadd.xlane.f32.xlu0 %v8866
        %v8868 = vpop.xlane.xlu0 %8867
        %v8869 = vadd.f32 %v8798, %v8799
        %8870 = vadd.xlane.f32.xlu0 %v8869
        %v8871 = vpop.xlane.xlu0 %8870
        %v8872 = vadd.f32 %v8800, %v8801
        %8873 = vadd.xlane.f32.xlu0 %v8872
        %v8874 = vpop.xlane.xlu0 %8873
        %v8875 = vadd.f32 %v8802, %v8803
        %8876 = vadd.xlane.f32.xlu0 %v8875
        %v8877 = vpop.xlane.xlu0 %8876
        %v8878 = vadd.f32 %v8804, %v8805
        %8879 = vadd.xlane.f32.xlu0 %v8878
        %v8880 = vpop.xlane.xlu0 %8879
        %v8881 = vadd.f32 %v8806, %v8807
        %8882 = vadd.xlane.f32.xlu0 %v8881
        %v8883 = vpop.xlane.xlu0 %8882
        %v8884 = vadd.f32 %v8808, %v8809
        %8885 = vadd.xlane.f32.xlu0 %v8884
        %v8886 = vpop.xlane.xlu0 %8885
        %v8887 = vadd.f32 %v8810, %v8811
        %8888 = vadd.xlane.f32.xlu0 %v8887
        %v8889 = vpop.xlane.xlu0 %8888
        %v8890 = vadd.f32 %v8812, %v8813
        %8891 = vadd.xlane.f32.xlu0 %v8890
        %v8892 = vpop.xlane.xlu0 %8891
        %v8893 = vadd.f32 %v8814, %v8815
        %8894 = vadd.xlane.f32.xlu0 %v8893
        %v8895 = vpop.xlane.xlu0 %8894
        %v8896 = vadd.f32 %v8816, %v8817
        %8897 = vadd.xlane.f32.xlu0 %v8896
        %v8898 = vpop.xlane.xlu0 %8897
        %v8899 = vadd.f32 %v8818, %v8819
        %8900 = vadd.xlane.f32.xlu0 %v8899
        %v8901 = vpop.xlane.xlu0 %8900
        %v8902 = vadd.f32 %v8820, %v8821
        %8903 = vadd.xlane.f32.xlu0 %v8902
        %v8904 = vpop.xlane.xlu0 %8903
        %v8905 = vadd.f32 %v8822, %v8823
        %8906 = vadd.xlane.f32.xlu0 %v8905
        %v8907 = vpop.xlane.xlu0 %8906
        %v8908 = vadd.f32 %v8824, %v8825
        %8909 = vadd.xlane.f32.xlu0 %v8908
        %v8910 = vpop.xlane.xlu0 %8909
        %v8911 = vadd.f32 %v8826, %v8827
        %8912 = vadd.xlane.f32.xlu0 %v8911
        %v8913 = vpop.xlane.xlu0 %8912
        %v8914 = vadd.f32 %v8828, %v8829
        %8915 = vadd.xlane.f32.xlu0 %v8914
        %v8916 = vpop.xlane.xlu0 %8915
        %v8917 = vadd.f32 %v8830, %v8831
        %8918 = vadd.xlane.f32.xlu0 %v8917
        %v8919 = vpop.xlane.xlu0 %8918
        %v8920 = vadd.f32 %v8832, %v8833
        %8921 = vadd.xlane.f32.xlu0 %v8920
        %v8922 = vpop.xlane.xlu0 %8921
        %v8923 = vadd.f32 %v8834, %v8835
        %8924 = vadd.xlane.f32.xlu0 %v8923
        %v8925 = vpop.xlane.xlu0 %8924
        %v8926 = vadd.f32 %v8836, %v8837
        %8927 = vadd.xlane.f32.xlu0 %v8926
        %v8928 = vpop.xlane.xlu0 %8927
        %v8929 = vadd.f32 %v8838, %v8839
        %8930 = vadd.xlane.f32.xlu0 %v8929
        %v8931 = vpop.xlane.xlu0 %8930
        %v8932 = vadd.f32 %v8840, %v8841
        %8933 = vadd.xlane.f32.xlu0 %v8932
        %v8934 = vpop.xlane.xlu0 %8933
        %v8935 = vadd.f32 %v8842, %v8843
        %8936 = vadd.xlane.f32.xlu0 %v8935
        %v8937 = vpop.xlane.xlu0 %8936
        %v8938 = vadd.f32 %v8844, %v8845
        %8939 = vadd.xlane.f32.xlu0 %v8938
        %v8940 = vpop.xlane.xlu0 %8939
        %v8941 = vadd.f32 %v8846, %v8847
        %8942 = vadd.xlane.f32.xlu0 %v8941
        %v8943 = vpop.xlane.xlu0 %8942
        %v8944 = vmul.f32 %v8850, %v4431
        %v8945 = vmul.f32 %v8853, %v4431
        %v8946 = vmul.f32 %v8856, %v4431
        %v8947 = vmul.f32 %v8859, %v4431
        %v8948 = vmul.f32 %v8862, %v4431
        %v8949 = vmul.f32 %v8865, %v4431
        %v8950 = vmul.f32 %v8868, %v4431
        %v8951 = vmul.f32 %v8871, %v4431
        %v8952 = vmul.f32 %v8874, %v4431
        %v8953 = vmul.f32 %v8877, %v4431
        %v8954 = vmul.f32 %v8880, %v4431
        %v8955 = vmul.f32 %v8883, %v4431
        %v8956 = vmul.f32 %v8886, %v4431
        %v8957 = vmul.f32 %v8889, %v4431
        %v8958 = vmul.f32 %v8892, %v4431
        %v8959 = vmul.f32 %v8895, %v4431
        %v8960 = vmul.f32 %v8898, %v4431
        %v8961 = vmul.f32 %v8901, %v4431
        %v8962 = vmul.f32 %v8904, %v4431
        %v8963 = vmul.f32 %v8907, %v4431
        %v8964 = vmul.f32 %v8910, %v4431
        %v8965 = vmul.f32 %v8913, %v4431
        %v8966 = vmul.f32 %v8916, %v4431
        %v8967 = vmul.f32 %v8919, %v4431
        %v8968 = vmul.f32 %v8922, %v4431
        %v8969 = vmul.f32 %v8925, %v4431
        %v8970 = vmul.f32 %v8928, %v4431
        %v8971 = vmul.f32 %v8931, %v4431
        %v8972 = vmul.f32 %v8934, %v4431
        %v8973 = vmul.f32 %v8937, %v4431
        %v8974 = vmul.f32 %v8940, %v4431
        %v8975 = vmul.f32 %v8943, %v4431
        %v8976 = vadd.f32 %v8944, 1e-05
        %v8977 = vadd.f32 %v8945, 1e-05
        %v8978 = vadd.f32 %v8946, 1e-05
        %v8979 = vadd.f32 %v8947, 1e-05
        %v8980 = vadd.f32 %v8948, 1e-05
        %v8981 = vadd.f32 %v8949, 1e-05
        %v8982 = vadd.f32 %v8950, 1e-05
        %v8983 = vadd.f32 %v8951, 1e-05
        %v8984 = vadd.f32 %v8952, 1e-05
        %v8985 = vadd.f32 %v8953, 1e-05
        %v8986 = vadd.f32 %v8954, 1e-05
        %v8987 = vadd.f32 %v8955, 1e-05
        %v8988 = vadd.f32 %v8956, 1e-05
        %v8989 = vadd.f32 %v8957, 1e-05
        %v8990 = vadd.f32 %v8958, 1e-05
        %v8991 = vadd.f32 %v8959, 1e-05
        %v8992 = vadd.f32 %v8960, 1e-05
        %v8993 = vadd.f32 %v8961, 1e-05
        %v8994 = vadd.f32 %v8962, 1e-05
        %v8995 = vadd.f32 %v8963, 1e-05
        %v8996 = vadd.f32 %v8964, 1e-05
        %v8997 = vadd.f32 %v8965, 1e-05
        %v8998 = vadd.f32 %v8966, 1e-05
        %v8999 = vadd.f32 %v8967, 1e-05
        %v9000 = vadd.f32 %v8968, 1e-05
        %v9001 = vadd.f32 %v8969, 1e-05
        %v9002 = vadd.f32 %v8970, 1e-05
        %v9003 = vadd.f32 %v8971, 1e-05
        %v9004 = vadd.f32 %v8972, 1e-05
        %v9005 = vadd.f32 %v8973, 1e-05
        %v9006 = vadd.f32 %v8974, 1e-05
        %v9007 = vadd.f32 %v8975, 1e-05
        %v9008 = vrsqrt.pop %v8976
        %v9009 = vrsqrt.pop %v8977
        %v9010 = vrsqrt.pop %v8978
        %v9011 = vrsqrt.pop %v8979
        %v9012 = vrsqrt.pop %v8980
        %v9013 = vrsqrt.pop %v8981
        %v9014 = vrsqrt.pop %v8982
        %v9015 = vrsqrt.pop %v8983
        %v9016 = vrsqrt.pop %v8984
        %v9017 = vrsqrt.pop %v8985
        %v9018 = vrsqrt.pop %v8986
        %v9019 = vrsqrt.pop %v8987
        %v9020 = vrsqrt.pop %v8988
        %v9021 = vrsqrt.pop %v8989
        %v9022 = vrsqrt.pop %v8990
        %v9023 = vrsqrt.pop %v8991
        %v9024 = vrsqrt.pop %v8992
        %v9025 = vrsqrt.pop %v8993
        %v9026 = vrsqrt.pop %v8994
        %v9027 = vrsqrt.pop %v8995
        %v9028 = vrsqrt.pop %v8996
        %v9029 = vrsqrt.pop %v8997
        %v9030 = vrsqrt.pop %v8998
        %v9031 = vrsqrt.pop %v8999
        %v9032 = vrsqrt.pop %v9000
        %v9033 = vrsqrt.pop %v9001
        %v9034 = vrsqrt.pop %v9002
        %v9035 = vrsqrt.pop %v9003
        %v9036 = vrsqrt.pop %v9004
        %v9037 = vrsqrt.pop %v9005
        %v9038 = vrsqrt.pop %v9006
        %v9039 = vrsqrt.pop %v9007
        %v9040 = vmul.f32 %v8720, %v9008
        %v9041 = vmul.f32 %v8721, %v9008
        %v9042 = vmul.f32 %v8722, %v9009
        %v9043 = vmul.f32 %v8723, %v9009
        %v9044 = vmul.f32 %v8724, %v9010
        %v9045 = vmul.f32 %v8725, %v9010
        %v9046 = vmul.f32 %v8726, %v9011
        %v9047 = vmul.f32 %v8727, %v9011
        %v9048 = vmul.f32 %v8728, %v9012
        %v9049 = vmul.f32 %v8729, %v9012
        %v9050 = vmul.f32 %v8730, %v9013
        %v9051 = vmul.f32 %v8731, %v9013
        %v9052 = vmul.f32 %v8732, %v9014
        %v9053 = vmul.f32 %v8733, %v9014
        %v9054 = vmul.f32 %v8734, %v9015
        %v9055 = vmul.f32 %v8735, %v9015
        %v9056 = vmul.f32 %v8736, %v9016
        %v9057 = vmul.f32 %v8737, %v9016
        %v9058 = vmul.f32 %v8738, %v9017
        %v9059 = vmul.f32 %v8739, %v9017
        %v9060 = vmul.f32 %v8740, %v9018
        %v9061 = vmul.f32 %v8741, %v9018
        %v9062 = vmul.f32 %v8742, %v9019
        %v9063 = vmul.f32 %v8743, %v9019
        %v9064 = vmul.f32 %v8744, %v9020
        %v9065 = vmul.f32 %v8745, %v9020
        %v9066 = vmul.f32 %v8746, %v9021
        %v9067 = vmul.f32 %v8747, %v9021
        %v9068 = vmul.f32 %v8748, %v9022
        %v9069 = vmul.f32 %v8749, %v9022
        %v9070 = vmul.f32 %v8750, %v9023
        %v9071 = vmul.f32 %v8751, %v9023
        %v9072 = vmul.f32 %v8752, %v9024
        %v9073 = vmul.f32 %v8753, %v9024
        %v9074 = vmul.f32 %v8754, %v9025
        %v9075 = vmul.f32 %v8755, %v9025
        %v9076 = vmul.f32 %v8756, %v9026
        %v9077 = vmul.f32 %v8757, %v9026
        %v9078 = vmul.f32 %v8758, %v9027
        %v9079 = vmul.f32 %v8759, %v9027
        %v9080 = vmul.f32 %v8760, %v9028
        %v9081 = vmul.f32 %v8761, %v9028
        %v9082 = vmul.f32 %v8762, %v9029
        %v9083 = vmul.f32 %v8763, %v9029
        %v9084 = vmul.f32 %v8764, %v9030
        %v9085 = vmul.f32 %v8765, %v9030
        %v9086 = vmul.f32 %v8766, %v9031
        %v9087 = vmul.f32 %v8767, %v9031
        %v9088 = vmul.f32 %v8768, %v9032
        %v9089 = vmul.f32 %v8769, %v9032
        %v9090 = vmul.f32 %v8770, %v9033
        %v9091 = vmul.f32 %v8771, %v9033
        %v9092 = vmul.f32 %v8772, %v9034
        %v9093 = vmul.f32 %v8773, %v9034
        %v9094 = vmul.f32 %v8774, %v9035
        %v9095 = vmul.f32 %v8775, %v9035
        %v9096 = vmul.f32 %v8776, %v9036
        %v9097 = vmul.f32 %v8777, %v9036
        %v9098 = vmul.f32 %v8778, %v9037
        %v9099 = vmul.f32 %v8779, %v9037
        %v9100 = vmul.f32 %v8780, %v9038
        %v9101 = vmul.f32 %v8781, %v9038
        %v9102 = vmul.f32 %v8782, %v9039
        %v9103 = vmul.f32 %v8783, %v9039
        %v9104 = vlaneseq
        %v9105 = vshrl.u32 %v9104, 7
        %v9106 = vsub.s32 5, %v9105
        %v9107 = vrot.slane %v929, %v9106
        %v9108 = vlaneseq
        %v9109 = vshrl.u32 %v9108, 7
        %v9110 = vsub.s32 5, %v9109
        %v9111 = vrot.slane %v930, %v9110
        %v9112 = vmul.f32 %v9040, %v9107
        %v9113 = vmul.f32 %v9041, %v9111
        %v9114 = vmul.f32 %v9042, %v9107
        %v9115 = vmul.f32 %v9043, %v9111
        %v9116 = vmul.f32 %v9044, %v9107
        %v9117 = vmul.f32 %v9045, %v9111
        %v9118 = vmul.f32 %v9046, %v9107
        %v9119 = vmul.f32 %v9047, %v9111
        %v9120 = vmul.f32 %v9048, %v9107
        %v9121 = vmul.f32 %v9049, %v9111
        %v9122 = vmul.f32 %v9050, %v9107
        %v9123 = vmul.f32 %v9051, %v9111
        %v9124 = vmul.f32 %v9052, %v9107
        %v9125 = vmul.f32 %v9053, %v9111
        %v9126 = vmul.f32 %v9054, %v9107
        %v9127 = vmul.f32 %v9055, %v9111
        %v9128 = vmul.f32 %v9056, %v9107
        %v9129 = vmul.f32 %v9057, %v9111
        %v9130 = vmul.f32 %v9058, %v9107
        %v9131 = vmul.f32 %v9059, %v9111
        %v9132 = vmul.f32 %v9060, %v9107
        %v9133 = vmul.f32 %v9061, %v9111
        %v9134 = vmul.f32 %v9062, %v9107
        %v9135 = vmul.f32 %v9063, %v9111
        %v9136 = vmul.f32 %v9064, %v9107
        %v9137 = vmul.f32 %v9065, %v9111
        %v9138 = vmul.f32 %v9066, %v9107
        %v9139 = vmul.f32 %v9067, %v9111
        %v9140 = vmul.f32 %v9068, %v9107
        %v9141 = vmul.f32 %v9069, %v9111
        %v9142 = vmul.f32 %v9070, %v9107
        %v9143 = vmul.f32 %v9071, %v9111
        %v9144 = vmul.f32 %v9072, %v9107
        %v9145 = vmul.f32 %v9073, %v9111
        %v9146 = vmul.f32 %v9074, %v9107
        %v9147 = vmul.f32 %v9075, %v9111
        %v9148 = vmul.f32 %v9076, %v9107
        %v9149 = vmul.f32 %v9077, %v9111
        %v9150 = vmul.f32 %v9078, %v9107
        %v9151 = vmul.f32 %v9079, %v9111
        %v9152 = vmul.f32 %v9080, %v9107
        %v9153 = vmul.f32 %v9081, %v9111
        %v9154 = vmul.f32 %v9082, %v9107
        %v9155 = vmul.f32 %v9083, %v9111
        %v9156 = vmul.f32 %v9084, %v9107
        %v9157 = vmul.f32 %v9085, %v9111
        %v9158 = vmul.f32 %v9086, %v9107
        %v9159 = vmul.f32 %v9087, %v9111
        %v9160 = vmul.f32 %v9088, %v9107
        %v9161 = vmul.f32 %v9089, %v9111
        %v9162 = vmul.f32 %v9090, %v9107
        %v9163 = vmul.f32 %v9091, %v9111
        %v9164 = vmul.f32 %v9092, %v9107
        %v9165 = vmul.f32 %v9093, %v9111
        %v9166 = vmul.f32 %v9094, %v9107
        %v9167 = vmul.f32 %v9095, %v9111
        %v9168 = vmul.f32 %v9096, %v9107
        %v9169 = vmul.f32 %v9097, %v9111
        %v9170 = vmul.f32 %v9098, %v9107
        %v9171 = vmul.f32 %v9099, %v9111
        %v9172 = vmul.f32 %v9100, %v9107
        %v9173 = vmul.f32 %v9101, %v9111
        %v9174 = vmul.f32 %v9102, %v9107
        %v9175 = vmul.f32 %v9103, %v9111
        %v9176 = vlaneseq
        %v9177 = vshrl.u32 %v9176, 7
        %v9178 = vsub.s32 6, %v9177
        %v9179 = vrot.slane %v929, %v9178
        %v9180 = vlaneseq
        %v9181 = vshrl.u32 %v9180, 7
        %v9182 = vsub.s32 6, %v9181
        %v9183 = vrot.slane %v930, %v9182
        %v9184 = vadd.f32 %v9112, %v9179
        %v9185 = vadd.f32 %v9113, %v9183
        %v9186 = vadd.f32 %v9114, %v9179
        %v9187 = vadd.f32 %v9115, %v9183
        %v9188 = vadd.f32 %v9116, %v9179
        %v9189 = vadd.f32 %v9117, %v9183
        %v9190 = vadd.f32 %v9118, %v9179
        %v9191 = vadd.f32 %v9119, %v9183
        %v9192 = vadd.f32 %v9120, %v9179
        %v9193 = vadd.f32 %v9121, %v9183
        %v9194 = vadd.f32 %v9122, %v9179
        %v9195 = vadd.f32 %v9123, %v9183
        %v9196 = vadd.f32 %v9124, %v9179
        %v9197 = vadd.f32 %v9125, %v9183
        %v9198 = vadd.f32 %v9126, %v9179
        %v9199 = vadd.f32 %v9127, %v9183
        %v9200 = vadd.f32 %v9128, %v9179
        %v9201 = vadd.f32 %v9129, %v9183
        %v9202 = vadd.f32 %v9130, %v9179
        %v9203 = vadd.f32 %v9131, %v9183
        %v9204 = vadd.f32 %v9132, %v9179
        %v9205 = vadd.f32 %v9133, %v9183
        %v9206 = vadd.f32 %v9134, %v9179
        %v9207 = vadd.f32 %v9135, %v9183
        %v9208 = vadd.f32 %v9136, %v9179
        %v9209 = vadd.f32 %v9137, %v9183
        %v9210 = vadd.f32 %v9138, %v9179
        %v9211 = vadd.f32 %v9139, %v9183
        %v9212 = vadd.f32 %v9140, %v9179
        %v9213 = vadd.f32 %v9141, %v9183
        %v9214 = vadd.f32 %v9142, %v9179
        %v9215 = vadd.f32 %v9143, %v9183
        %v9216 = vadd.f32 %v9144, %v9179
        %v9217 = vadd.f32 %v9145, %v9183
        %v9218 = vadd.f32 %v9146, %v9179
        %v9219 = vadd.f32 %v9147, %v9183
        %v9220 = vadd.f32 %v9148, %v9179
        %v9221 = vadd.f32 %v9149, %v9183
        %v9222 = vadd.f32 %v9150, %v9179
        %v9223 = vadd.f32 %v9151, %v9183
        %v9224 = vadd.f32 %v9152, %v9179
        %v9225 = vadd.f32 %v9153, %v9183
        %v9226 = vadd.f32 %v9154, %v9179
        %v9227 = vadd.f32 %v9155, %v9183
        %v9228 = vadd.f32 %v9156, %v9179
        %v9229 = vadd.f32 %v9157, %v9183
        %v9230 = vadd.f32 %v9158, %v9179
        %v9231 = vadd.f32 %v9159, %v9183
        %v9232 = vadd.f32 %v9160, %v9179
        %v9233 = vadd.f32 %v9161, %v9183
        %v9234 = vadd.f32 %v9162, %v9179
        %v9235 = vadd.f32 %v9163, %v9183
        %v9236 = vadd.f32 %v9164, %v9179
        %v9237 = vadd.f32 %v9165, %v9183
        %v9238 = vadd.f32 %v9166, %v9179
        %v9239 = vadd.f32 %v9167, %v9183
        %v9240 = vadd.f32 %v9168, %v9179
        %v9241 = vadd.f32 %v9169, %v9183
        %v9242 = vadd.f32 %v9170, %v9179
        %v9243 = vadd.f32 %v9171, %v9183
        %v9244 = vadd.f32 %v9172, %v9179
        %v9245 = vadd.f32 %v9173, %v9183
        %v9246 = vadd.f32 %v9174, %v9179
        %v9247 = vadd.f32 %v9175, %v9183
        %9248 = vst [vmem:[#allocation2] sm:$0xff] %v9184
        %9249 = vst [vmem:[#allocation2 + $0x8] sm:$0xff] %v9185
        %9250 = vst [vmem:[#allocation2 + $0x10] sm:$0xff] %v9186
        %9251 = vst [vmem:[#allocation2 + $0x18] sm:$0xff] %v9187
        %9252 = vst [vmem:[#allocation2 + $0x20] sm:$0xff] %v9188
        %9253 = vst [vmem:[#allocation2 + $0x28] sm:$0xff] %v9189
        %9254 = vst [vmem:[#allocation2 + $0x30] sm:$0xff] %v9190
        %9255 = vst [vmem:[#allocation2 + $0x38] sm:$0xff] %v9191
        %9256 = vst [vmem:[#allocation2 + $0x40] sm:$0xff] %v9192
        %9257 = vst [vmem:[#allocation2 + $0x48] sm:$0xff] %v9193
        %9258 = vst [vmem:[#allocation2 + $0x50] sm:$0xff] %v9194
        %9259 = vst [vmem:[#allocation2 + $0x58] sm:$0xff] %v9195
        %9260 = vst [vmem:[#allocation2 + $0x60] sm:$0xff] %v9196
        %9261 = vst [vmem:[#allocation2 + $0x68] sm:$0xff] %v9197
        %9262 = vst [vmem:[#allocation2 + $0x70] sm:$0xff] %v9198
        %9263 = vst [vmem:[#allocation2 + $0x78] sm:$0xff] %v9199
        %9264 = vst [vmem:[#allocation2 + $0x80] sm:$0xff] %v9200
        %9265 = vst [vmem:[#allocation2 + $0x88] sm:$0xff] %v9201
        %9266 = vst [vmem:[#allocation2 + $0x90] sm:$0xff] %v9202
        %9267 = vst [vmem:[#allocation2 + $0x98] sm:$0xff] %v9203
        %9268 = vst [vmem:[#allocation2 + $0xa0] sm:$0xff] %v9204
        %9269 = vst [vmem:[#allocation2 + $0xa8] sm:$0xff] %v9205
        %9270 = vst [vmem:[#allocation2 + $0xb0] sm:$0xff] %v9206
        %9271 = vst [vmem:[#allocation2 + $0xb8] sm:$0xff] %v9207
        %9272 = vst [vmem:[#allocation2 + $0xc0] sm:$0xff] %v9208
        %9273 = vst [vmem:[#allocation2 + $0xc8] sm:$0xff] %v9209
        %9274 = vst [vmem:[#allocation2 + $0xd0] sm:$0xff] %v9210
        %9275 = vst [vmem:[#allocation2 + $0xd8] sm:$0xff] %v9211
        %9276 = vst [vmem:[#allocation2 + $0xe0] sm:$0xff] %v9212
        %9277 = vst [vmem:[#allocation2 + $0xe8] sm:$0xff] %v9213
        %9278 = vst [vmem:[#allocation2 + $0xf0] sm:$0xff] %v9214
        %9279 = vst [vmem:[#allocation2 + $0xf8] sm:$0xff] %v9215
        %9280 = vst [vmem:[#allocation2 + $0x100] sm:$0xff] %v9216
        %9281 = vst [vmem:[#allocation2 + $0x108] sm:$0xff] %v9217
        %9282 = vst [vmem:[#allocation2 + $0x110] sm:$0xff] %v9218
        %9283 = vst [vmem:[#allocation2 + $0x118] sm:$0xff] %v9219
        %9284 = vst [vmem:[#allocation2 + $0x120] sm:$0xff] %v9220
        %9285 = vst [vmem:[#allocation2 + $0x128] sm:$0xff] %v9221
        %9286 = vst [vmem:[#allocation2 + $0x130] sm:$0xff] %v9222
        %9287 = vst [vmem:[#allocation2 + $0x138] sm:$0xff] %v9223
        %9288 = vst [vmem:[#allocation2 + $0x140] sm:$0xff] %v9224
        %9289 = vst [vmem:[#allocation2 + $0x148] sm:$0xff] %v9225
        %9290 = vst [vmem:[#allocation2 + $0x150] sm:$0xff] %v9226
        %9291 = vst [vmem:[#allocation2 + $0x158] sm:$0xff] %v9227
        %9292 = vst [vmem:[#allocation2 + $0x160] sm:$0xff] %v9228
        %9293 = vst [vmem:[#allocation2 + $0x168] sm:$0xff] %v9229
        %9294 = vst [vmem:[#allocation2 + $0x170] sm:$0xff] %v9230
        %9295 = vst [vmem:[#allocation2 + $0x178] sm:$0xff] %v9231
        %9296 = vst [vmem:[#allocation2 + $0x180] sm:$0xff] %v9232
        %9297 = vst [vmem:[#allocation2 + $0x188] sm:$0xff] %v9233
        %9298 = vst [vmem:[#allocation2 + $0x190] sm:$0xff] %v9234
        %9299 = vst [vmem:[#allocation2 + $0x198] sm:$0xff] %v9235
        %9300 = vst [vmem:[#allocation2 + $0x1a0] sm:$0xff] %v9236
        %9301 = vst [vmem:[#allocation2 + $0x1a8] sm:$0xff] %v9237
        %9302 = vst [vmem:[#allocation2 + $0x1b0] sm:$0xff] %v9238
        %9303 = vst [vmem:[#allocation2 + $0x1b8] sm:$0xff] %v9239
        %9304 = vst [vmem:[#allocation2 + $0x1c0] sm:$0xff] %v9240
        %9305 = vst [vmem:[#allocation2 + $0x1c8] sm:$0xff] %v9241
        %9306 = vst [vmem:[#allocation2 + $0x1d0] sm:$0xff] %v9242
        %9307 = vst [vmem:[#allocation2 + $0x1d8] sm:$0xff] %v9243
        %9308 = vst [vmem:[#allocation2 + $0x1e0] sm:$0xff] %v9244
        %9309 = vst [vmem:[#allocation2 + $0x1e8] sm:$0xff] %v9245
        %9310 = vst [vmem:[#allocation2 + $0x1f0] sm:$0xff] %v9246
        %9311 = vst [vmem:[#allocation2 + $0x1f8] sm:$0xff] %v9247
        %p9312 = scmp.eq.s32.totalorder %s38, 1
        // Predicated region
        $region101: #{tpu_custom_call.1} parent=59 // pred_check
          %p9313 = pneg %p9312
        $region102: #{tpu_custom_call.1} parent=59 // pred_check_branch
          %9315 = sbr.rel (%p9313) target = $region104
        $region103: #{tpu_custom_call.1} parent=59 // pred_region
          %v9316 = vpack.c.bf16 %v9186, %v9184
          %v9317 = vpack.c.bf16 %v9187, %v9185
          %v9318 = vpack.c.bf16 %v9190, %v9188
          %v9319 = vpack.c.bf16 %v9191, %v9189
          %v9320 = vpack.c.bf16 %v9194, %v9192
          %v9321 = vpack.c.bf16 %v9195, %v9193
          %v9322 = vpack.c.bf16 %v9198, %v9196
          %v9323 = vpack.c.bf16 %v9199, %v9197
          %v9324 = vpack.c.bf16 %v9202, %v9200
          %v9325 = vpack.c.bf16 %v9203, %v9201
          %v9326 = vpack.c.bf16 %v9206, %v9204
          %v9327 = vpack.c.bf16 %v9207, %v9205
          %v9328 = vpack.c.bf16 %v9210, %v9208
          %v9329 = vpack.c.bf16 %v9211, %v9209
          %v9330 = vpack.c.bf16 %v9214, %v9212
          %v9331 = vpack.c.bf16 %v9215, %v9213
          %v9332 = vpack.c.bf16 %v9218, %v9216
          %v9333 = vpack.c.bf16 %v9219, %v9217
          %v9334 = vpack.c.bf16 %v9222, %v9220
          %v9335 = vpack.c.bf16 %v9223, %v9221
          %v9336 = vpack.c.bf16 %v9226, %v9224
          %v9337 = vpack.c.bf16 %v9227, %v9225
          %v9338 = vpack.c.bf16 %v9230, %v9228
          %v9339 = vpack.c.bf16 %v9231, %v9229
          %v9340 = vpack.c.bf16 %v9234, %v9232
          %v9341 = vpack.c.bf16 %v9235, %v9233
          %v9342 = vpack.c.bf16 %v9238, %v9236
          %v9343 = vpack.c.bf16 %v9239, %v9237
          %v9344 = vpack.c.bf16 %v9242, %v9240
          %v9345 = vpack.c.bf16 %v9243, %v9241
          %v9346 = vpack.c.bf16 %v9246, %v9244
          %v9347 = vpack.c.bf16 %v9247, %v9245
          %v9348 = vld [vmem:[#allocation17] sm:$0xf]
          %v9349 = vld [vmem:[#allocation17 + $0x4] sm:$0xf]
          %v9350 = vld [vmem:[#allocation17 + $0x8] sm:$0xf]
          %v9351 = vld [vmem:[#allocation17 + $0xc] sm:$0xf]
          %v9352 = vld [vmem:[#allocation17 + $0x10] sm:$0xf]
          %v9353 = vld [vmem:[#allocation17 + $0x14] sm:$0xf]
          %v9354 = vld [vmem:[#allocation17 + $0x18] sm:$0xf]
          %v9355 = vld [vmem:[#allocation17 + $0x1c] sm:$0xf]
          %v9356 = vld [vmem:[#allocation17 + $0x20] sm:$0xf]
          %v9357 = vld [vmem:[#allocation17 + $0x24] sm:$0xf]
          %v9358 = vld [vmem:[#allocation17 + $0x28] sm:$0xf]
          %v9359 = vld [vmem:[#allocation17 + $0x2c] sm:$0xf]
          %v9360 = vld [vmem:[#allocation17 + $0x30] sm:$0xf]
          %v9361 = vld [vmem:[#allocation17 + $0x34] sm:$0xf]
          %v9362 = vld [vmem:[#allocation17 + $0x38] sm:$0xf]
          %v9363 = vld [vmem:[#allocation17 + $0x3c] sm:$0xf]
          %v9364 = vld [vmem:[#allocation17 + $0x40] sm:$0xf]
          %v9365 = vld [vmem:[#allocation17 + $0x44] sm:$0xf]
          %v9366 = vld [vmem:[#allocation17 + $0x48] sm:$0xf]
          %v9367 = vld [vmem:[#allocation17 + $0x4c] sm:$0xf]
          %v9368 = vld [vmem:[#allocation17 + $0x50] sm:$0xf]
          %v9369 = vld [vmem:[#allocation17 + $0x54] sm:$0xf]
          %v9370 = vld [vmem:[#allocation17 + $0x58] sm:$0xf]
          %v9371 = vld [vmem:[#allocation17 + $0x5c] sm:$0xf]
          %v9372 = vld [vmem:[#allocation17 + $0x60] sm:$0xf]
          %v9373 = vld [vmem:[#allocation17 + $0x64] sm:$0xf]
          %v9374 = vld [vmem:[#allocation17 + $0x68] sm:$0xf]
          %v9375 = vld [vmem:[#allocation17 + $0x6c] sm:$0xf]
          %v9376 = vld [vmem:[#allocation17 + $0x70] sm:$0xf]
          %v9377 = vld [vmem:[#allocation17 + $0x74] sm:$0xf]
          %v9378 = vld [vmem:[#allocation17 + $0x78] sm:$0xf]
          %v9379 = vld [vmem:[#allocation17 + $0x7c] sm:$0xf]
          %v9380 = vld [vmem:[%s9] sm:$0x1]
          %v9382 = vlaneseq
          %v9383 = vshrl.u32 %v9382, 7
          %v9384 = vsub.s32 0, %v9383
          %v9385 = vrot.slane %v9380, %v9384
          %v9419 = vunpack.c.l.b16 %v9348
          %v9420 = vunpack.c.l.b16 %v9349
          %v9421 = vunpack.c.l.b16 %v9350
          %v9422 = vunpack.c.l.b16 %v9351
          %v9423 = vunpack.c.l.b16 %v9352
          %v9424 = vunpack.c.l.b16 %v9353
          %v9425 = vunpack.c.l.b16 %v9354
          %v9426 = vunpack.c.l.b16 %v9355
          %v9427 = vunpack.c.l.b16 %v9356
          %v9428 = vunpack.c.l.b16 %v9357
          %v9429 = vunpack.c.l.b16 %v9358
          %v9430 = vunpack.c.l.b16 %v9359
          %v9431 = vunpack.c.l.b16 %v9360
          %v9432 = vunpack.c.l.b16 %v9361
          %v9433 = vunpack.c.l.b16 %v9362
          %v9434 = vunpack.c.l.b16 %v9363
          %v9435 = vunpack.c.l.b16 %v9364
          %v9436 = vunpack.c.l.b16 %v9365
          %v9437 = vunpack.c.l.b16 %v9366
          %v9438 = vunpack.c.l.b16 %v9367
          %v9439 = vunpack.c.l.b16 %v9368
          %v9440 = vunpack.c.l.b16 %v9369
          %v9441 = vunpack.c.l.b16 %v9370
          %v9442 = vunpack.c.l.b16 %v9371
          %v9443 = vunpack.c.l.b16 %v9372
          %v9444 = vunpack.c.l.b16 %v9373
          %v9445 = vunpack.c.l.b16 %v9374
          %v9446 = vunpack.c.l.b16 %v9375
          %v9447 = vunpack.c.l.b16 %v9376
          %v9448 = vunpack.c.l.b16 %v9377
          %v9449 = vunpack.c.l.b16 %v9378
          %v9450 = vunpack.c.l.b16 %v9379
          %v9451 = vpack.c.b16 %v9420, %v9419
          %v9452 = vpack.c.b16 %v9422, %v9421
          %v9453 = vpack.c.b16 %v9424, %v9423
          %v9454 = vpack.c.b16 %v9426, %v9425
          %v9455 = vpack.c.b16 %v9428, %v9427
          %v9456 = vpack.c.b16 %v9430, %v9429
          %v9457 = vpack.c.b16 %v9432, %v9431
          %v9458 = vpack.c.b16 %v9434, %v9433
          %v9459 = vpack.c.b16 %v9436, %v9435
          %v9460 = vpack.c.b16 %v9438, %v9437
          %v9461 = vpack.c.b16 %v9440, %v9439
          %v9462 = vpack.c.b16 %v9442, %v9441
          %v9463 = vpack.c.b16 %v9444, %v9443
          %v9464 = vpack.c.b16 %v9446, %v9445
          %v9465 = vpack.c.b16 %v9448, %v9447
          %v9466 = vpack.c.b16 %v9450, %v9449
          %9483 = vmatprep.subr.bf16.mxu0 0
          %9484 = vmatpush1.bf16.msra.mxu0 %v9451
          %9485 = vmatprep.subr.bf16.mxu0 0
          %9486 = vmatpush1.bf16.msra.mxu0 %v9452
          %9487 = vmatprep.subr.bf16.mxu0 0
          %9488 = vmatpush1.bf16.msra.mxu0 %v9453
          %9489 = vmatprep.subr.bf16.mxu0 0
          %9490 = vmatpush1.bf16.msra.mxu0 %v9454
          %9491 = vmatprep.subr.bf16.mxu0 0
          %9492 = vmatpush1.bf16.msra.mxu0 %v9455
          %9493 = vmatprep.subr.bf16.mxu0 0
          %9494 = vmatpush1.bf16.msra.mxu0 %v9456
          %9495 = vmatprep.subr.bf16.mxu0 0
          %9496 = vmatpush1.bf16.msra.mxu0 %v9457
          %9497 = vmatprep.subr.bf16.mxu0 0
          %9498 = vmatpush1.bf16.msra.mxu0 %v9458
          %9499 = vmatprep.subr.bf16.mxu0 0
          %9500 = vmatpush1.bf16.msra.mxu0 %v9459
          %9501 = vmatprep.subr.bf16.mxu0 0
          %9502 = vmatpush1.bf16.msra.mxu0 %v9460
          %9503 = vmatprep.subr.bf16.mxu0 0
          %9504 = vmatpush1.bf16.msra.mxu0 %v9461
          %9505 = vmatprep.subr.bf16.mxu0 0
          %9506 = vmatpush1.bf16.msra.mxu0 %v9462
          %9507 = vmatprep.subr.bf16.mxu0 0
          %9508 = vmatpush1.bf16.msra.mxu0 %v9463
          %9509 = vmatprep.subr.bf16.mxu0 0
          %9510 = vmatpush1.bf16.msra.mxu0 %v9464
          %9511 = vmatprep.subr.bf16.mxu0 0
          %9512 = vmatpush1.bf16.msra.mxu0 %v9465
          %9513 = vmatprep.subr.bf16.mxu0 0
          %9514 = vmatpush1.bf16.msra.mxu0 %v9466
          %9515 = vmatprep.mubr.bf16.mxu0 %v9317
          %9516 = vmatmul.mubr.bf16.gmra.mrb[0].mxu0 %v9316
          %v9517 = vpop.f32.mrb[0].mxu0
          %v9518 = vadd.f32 %v9385, %v9517
          %v9519 = vpop.f32.mrb[0].mxu0
          %v9520 = vpop.f32.mrb[0].mxu0
          %v9521 = vadd.f32 %v9385, %v9520
          %v9522 = vpop.f32.mrb[0].mxu0
          %9523 = vmatprep.mubr.bf16.mxu0 %v9319
          %9524 = vmatmul.mubr.bf16.gmra.mrb[0].mxu0 %v9318
          %v9525 = vpop.f32.mrb[0].mxu0
          %v9526 = vadd.f32 %v9385, %v9525
          %v9527 = vpop.f32.mrb[0].mxu0
          %v9528 = vpop.f32.mrb[0].mxu0
          %v9529 = vadd.f32 %v9385, %v9528
          %v9530 = vpop.f32.mrb[0].mxu0
          %9531 = vmatprep.mubr.bf16.mxu0 %v9321
          %9532 = vmatmul.mubr.bf16.gmra.mrb[0].mxu0 %v9320
          %v9533 = vpop.f32.mrb[0].mxu0
          %v9534 = vadd.f32 %v9385, %v9533
          %v9535 = vpop.f32.mrb[0].mxu0
          %v9536 = vpop.f32.mrb[0].mxu0
          %v9537 = vadd.f32 %v9385, %v9536
          %v9538 = vpop.f32.mrb[0].mxu0
          %9539 = vmatprep.mubr.bf16.mxu0 %v9323
          %9540 = vmatmul.mubr.bf16.gmra.mrb[0].mxu0 %v9322
          %v9541 = vpop.f32.mrb[0].mxu0
          %v9542 = vadd.f32 %v9385, %v9541
          %v9543 = vpop.f32.mrb[0].mxu0
          %v9544 = vpop.f32.mrb[0].mxu0
          %v9545 = vadd.f32 %v9385, %v9544
          %v9546 = vpop.f32.mrb[0].mxu0
          %9547 = vmatprep.mubr.bf16.mxu0 %v9325
          %9548 = vmatmul.mubr.bf16.gmra.mrb[0].mxu0 %v9324
          %v9549 = vpop.f32.mrb[0].mxu0
          %v9550 = vadd.f32 %v9385, %v9549
          %v9551 = vpop.f32.mrb[0].mxu0
          %v9552 = vpop.f32.mrb[0].mxu0
          %v9553 = vadd.f32 %v9385, %v9552
          %v9554 = vpop.f32.mrb[0].mxu0
          %9555 = vmatprep.mubr.bf16.mxu0 %v9327
          %9556 = vmatmul.mubr.bf16.gmra.mrb[0].mxu0 %v9326
          %v9557 = vpop.f32.mrb[0].mxu0
          %v9558 = vadd.f32 %v9385, %v9557
          %v9559 = vpop.f32.mrb[0].mxu0
          %v9560 = vpop.f32.mrb[0].mxu0
          %v9561 = vadd.f32 %v9385, %v9560
          %v9562 = vpop.f32.mrb[0].mxu0
          %9563 = vmatprep.mubr.bf16.mxu0 %v9329
          %9564 = vmatmul.mubr.bf16.gmra.mrb[0].mxu0 %v9328
          %v9565 = vpop.f32.mrb[0].mxu0
          %v9566 = vadd.f32 %v9385, %v9565
          %v9567 = vpop.f32.mrb[0].mxu0
          %v9568 = vpop.f32.mrb[0].mxu0
          %v9569 = vadd.f32 %v9385, %v9568
          %v9570 = vpop.f32.mrb[0].mxu0
          %9571 = vmatprep.mubr.bf16.mxu0 %v9331
          %9572 = vmatmul.mubr.bf16.gmra.mrb[0].mxu0 %v9330
          %v9573 = vpop.f32.mrb[0].mxu0
          %v9574 = vadd.f32 %v9385, %v9573
          %v9575 = vpop.f32.mrb[0].mxu0
          %v9576 = vpop.f32.mrb[0].mxu0
          %v9577 = vadd.f32 %v9385, %v9576
          %v9578 = vpop.f32.mrb[0].mxu0
          %9579 = vmatprep.mubr.bf16.mxu0 %v9333
          %9580 = vmatmul.mubr.bf16.gmra.mrb[0].mxu0 %v9332
          %v9581 = vpop.f32.mrb[0].mxu0
          %v9582 = vadd.f32 %v9385, %v9581
          %v9583 = vpop.f32.mrb[0].mxu0
          %v9584 = vpop.f32.mrb[0].mxu0
          %v9585 = vadd.f32 %v9385, %v9584
          %v9586 = vpop.f32.mrb[0].mxu0
          %9587 = vmatprep.mubr.bf16.mxu0 %v9335
          %9588 = vmatmul.mubr.bf16.gmra.mrb[0].mxu0 %v9334
          %v9589 = vpop.f32.mrb[0].mxu0
          %v9590 = vadd.f32 %v9385, %v9589
          %v9591 = vpop.f32.mrb[0].mxu0
          %v9592 = vpop.f32.mrb[0].mxu0
          %v9593 = vadd.f32 %v9385, %v9592
          %v9594 = vpop.f32.mrb[0].mxu0
          %9595 = vmatprep.mubr.bf16.mxu0 %v9337
          %9596 = vmatmul.mubr.bf16.gmra.mrb[0].mxu0 %v9336
          %v9597 = vpop.f32.mrb[0].mxu0
          %v9598 = vadd.f32 %v9385, %v9597
          %v9599 = vpop.f32.mrb[0].mxu0
          %v9600 = vpop.f32.mrb[0].mxu0
          %v9601 = vadd.f32 %v9385, %v9600
          %v9602 = vpop.f32.mrb[0].mxu0
          %9603 = vmatprep.mubr.bf16.mxu0 %v9339
          %9604 = vmatmul.mubr.bf16.gmra.mrb[0].mxu0 %v9338
          %v9605 = vpop.f32.mrb[0].mxu0
          %v9606 = vadd.f32 %v9385, %v9605
          %v9607 = vpop.f32.mrb[0].mxu0
          %v9608 = vpop.f32.mrb[0].mxu0
          %v9609 = vadd.f32 %v9385, %v9608
          %v9610 = vpop.f32.mrb[0].mxu0
          %9611 = vmatprep.mubr.bf16.mxu0 %v9341
          %9612 = vmatmul.mubr.bf16.gmra.mrb[0].mxu0 %v9340
          %v9613 = vpop.f32.mrb[0].mxu0
          %v9614 = vadd.f32 %v9385, %v9613
          %v9615 = vpop.f32.mrb[0].mxu0
          %v9616 = vpop.f32.mrb[0].mxu0
          %v9617 = vadd.f32 %v9385, %v9616
          %v9618 = vpop.f32.mrb[0].mxu0
          %9619 = vmatprep.mubr.bf16.mxu0 %v9343
          %9620 = vmatmul.mubr.bf16.gmra.mrb[0].mxu0 %v9342
          %v9621 = vpop.f32.mrb[0].mxu0
          %v9622 = vadd.f32 %v9385, %v9621
          %v9623 = vpop.f32.mrb[0].mxu0
          %v9624 = vpop.f32.mrb[0].mxu0
          %v9625 = vadd.f32 %v9385, %v9624
          %v9626 = vpop.f32.mrb[0].mxu0
          %9627 = vmatprep.mubr.bf16.mxu0 %v9345
          %9628 = vmatmul.mubr.bf16.gmra.mrb[0].mxu0 %v9344
          %v9629 = vpop.f32.mrb[0].mxu0
          %v9630 = vadd.f32 %v9385, %v9629
          %v9631 = vpop.f32.mrb[0].mxu0
          %v9632 = vpop.f32.mrb[0].mxu0
          %v9633 = vadd.f32 %v9385, %v9632
          %v9634 = vpop.f32.mrb[0].mxu0
          %9635 = vmatprep.mubr.bf16.mxu0 %v9347
          %9636 = vmatmul.mubr.bf16.gmra.mrb[0].mxu0 %v9346
          %v9637 = vpop.f32.mrb[0].mxu0
          %v9638 = vadd.f32 %v9385, %v9637
          %v9639 = vpop.f32.mrb[0].mxu0
          %v9640 = vpop.f32.mrb[0].mxu0
          %v9641 = vadd.f32 %v9385, %v9640
          %v9642 = vpop.f32.mrb[0].mxu0
          %9643 = vdwg.mxu0
          %9644 = vmax.xlane.f32.xlu0 %v9518
          %v9645 = vpop.xlane.xlu0 %9644
          %9646 = vmax.xlane.f32.xlu0 %v9521
          %v9647 = vpop.xlane.xlu0 %9646
          %9648 = vmax.xlane.f32.xlu0 %v9526
          %v9649 = vpop.xlane.xlu0 %9648
          %9650 = vmax.xlane.f32.xlu0 %v9529
          %v9651 = vpop.xlane.xlu0 %9650
          %9652 = vmax.xlane.f32.xlu0 %v9534
          %v9653 = vpop.xlane.xlu0 %9652
          %9654 = vmax.xlane.f32.xlu0 %v9537
          %v9655 = vpop.xlane.xlu0 %9654
          %9656 = vmax.xlane.f32.xlu0 %v9542
          %v9657 = vpop.xlane.xlu0 %9656
          %9658 = vmax.xlane.f32.xlu0 %v9545
          %v9659 = vpop.xlane.xlu0 %9658
          %9660 = vmax.xlane.f32.xlu0 %v9550
          %v9661 = vpop.xlane.xlu0 %9660
          %9662 = vmax.xlane.f32.xlu0 %v9553
          %v9663 = vpop.xlane.xlu0 %9662
          %9664 = vmax.xlane.f32.xlu0 %v9558
          %v9665 = vpop.xlane.xlu0 %9664
          %9666 = vmax.xlane.f32.xlu0 %v9561
          %v9667 = vpop.xlane.xlu0 %9666
          %9668 = vmax.xlane.f32.xlu0 %v9566
          %v9669 = vpop.xlane.xlu0 %9668
          %9670 = vmax.xlane.f32.xlu0 %v9569
          %v9671 = vpop.xlane.xlu0 %9670
          %9672 = vmax.xlane.f32.xlu0 %v9574
          %v9673 = vpop.xlane.xlu0 %9672
          %9674 = vmax.xlane.f32.xlu0 %v9577
          %v9675 = vpop.xlane.xlu0 %9674
          %9676 = vmax.xlane.f32.xlu0 %v9582
          %v9677 = vpop.xlane.xlu0 %9676
          %9678 = vmax.xlane.f32.xlu0 %v9585
          %v9679 = vpop.xlane.xlu0 %9678
          %9680 = vmax.xlane.f32.xlu0 %v9590
          %v9681 = vpop.xlane.xlu0 %9680
          %9682 = vmax.xlane.f32.xlu0 %v9593
          %v9683 = vpop.xlane.xlu0 %9682
          %9684 = vmax.xlane.f32.xlu0 %v9598
          %v9685 = vpop.xlane.xlu0 %9684
          %9686 = vmax.xlane.f32.xlu0 %v9601
          %v9687 = vpop.xlane.xlu0 %9686
          %9688 = vmax.xlane.f32.xlu0 %v9606
          %v9689 = vpop.xlane.xlu0 %9688
          %9690 = vmax.xlane.f32.xlu0 %v9609
          %v9691 = vpop.xlane.xlu0 %9690
          %9692 = vmax.xlane.f32.xlu0 %v9614
          %v9693 = vpop.xlane.xlu0 %9692
          %9694 = vmax.xlane.f32.xlu0 %v9617
          %v9695 = vpop.xlane.xlu0 %9694
          %9696 = vmax.xlane.f32.xlu0 %v9622
          %v9697 = vpop.xlane.xlu0 %9696
          %9698 = vmax.xlane.f32.xlu0 %v9625
          %v9699 = vpop.xlane.xlu0 %9698
          %9700 = vmax.xlane.f32.xlu0 %v9630
          %v9701 = vpop.xlane.xlu0 %9700
          %9702 = vmax.xlane.f32.xlu0 %v9633
          %v9703 = vpop.xlane.xlu0 %9702
          %9704 = vmax.xlane.f32.xlu0 %v9638
          %v9705 = vpop.xlane.xlu0 %9704
          %9706 = vmax.xlane.f32.xlu0 %v9641
          %v9707 = vpop.xlane.xlu0 %9706
          %v9708 = vsub.f32 %v9518, %v9645
          %v9709 = vsub.f32 %v9521, %v9647
          %v9710 = vsub.f32 %v9526, %v9649
          %v9711 = vsub.f32 %v9529, %v9651
          %v9712 = vsub.f32 %v9534, %v9653
          %v9713 = vsub.f32 %v9537, %v9655
          %v9714 = vsub.f32 %v9542, %v9657
          %v9715 = vsub.f32 %v9545, %v9659
          %v9716 = vsub.f32 %v9550, %v9661
          %v9717 = vsub.f32 %v9553, %v9663
          %v9718 = vsub.f32 %v9558, %v9665
          %v9719 = vsub.f32 %v9561, %v9667
          %v9720 = vsub.f32 %v9566, %v9669
          %v9721 = vsub.f32 %v9569, %v9671
          %v9722 = vsub.f32 %v9574, %v9673
          %v9723 = vsub.f32 %v9577, %v9675
          %v9724 = vsub.f32 %v9582, %v9677
          %v9725 = vsub.f32 %v9585, %v9679
          %v9726 = vsub.f32 %v9590, %v9681
          %v9727 = vsub.f32 %v9593, %v9683
          %v9728 = vsub.f32 %v9598, %v9685
          %v9729 = vsub.f32 %v9601, %v9687
          %v9730 = vsub.f32 %v9606, %v9689
          %v9731 = vsub.f32 %v9609, %v9691
          %v9732 = vsub.f32 %v9614, %v9693
          %v9733 = vsub.f32 %v9617, %v9695
          %v9734 = vsub.f32 %v9622, %v9697
          %v9735 = vsub.f32 %v9625, %v9699
          %v9736 = vsub.f32 %v9630, %v9701
          %v9737 = vsub.f32 %v9633, %v9703
          %v9738 = vsub.f32 %v9638, %v9705
          %v9739 = vsub.f32 %v9641, %v9707
          %v9740 = vmul.f32 %v9708, 1.442695
          %v9741 = vpow.pop %v9740
          %v9742 = vmul.f32 %v9709, 1.442695
          %v9743 = vpow.pop %v9742
          %v9744 = vmul.f32 %v9710, 1.442695
          %v9745 = vpow.pop %v9744
          %v9746 = vmul.f32 %v9711, 1.442695
          %v9747 = vpow.pop %v9746
          %v9748 = vmul.f32 %v9712, 1.442695
          %v9749 = vpow.pop %v9748
          %v9750 = vmul.f32 %v9713, 1.442695
          %v9751 = vpow.pop %v9750
          %v9752 = vmul.f32 %v9714, 1.442695
          %v9753 = vpow.pop %v9752
          %v9754 = vmul.f32 %v9715, 1.442695
          %v9755 = vpow.pop %v9754
          %v9756 = vmul.f32 %v9716, 1.442695
          %v9757 = vpow.pop %v9756
          %v9758 = vmul.f32 %v9717, 1.442695
          %v9759 = vpow.pop %v9758
          %v9760 = vmul.f32 %v9718, 1.442695
          %v9761 = vpow.pop %v9760
          %v9762 = vmul.f32 %v9719, 1.442695
          %v9763 = vpow.pop %v9762
          %v9764 = vmul.f32 %v9720, 1.442695
          %v9765 = vpow.pop %v9764
          %v9766 = vmul.f32 %v9721, 1.442695
          %v9767 = vpow.pop %v9766
          %v9768 = vmul.f32 %v9722, 1.442695
          %v9769 = vpow.pop %v9768
          %v9770 = vmul.f32 %v9723, 1.442695
          %v9771 = vpow.pop %v9770
          %v9772 = vmul.f32 %v9724, 1.442695
          %v9773 = vpow.pop %v9772
          %v9774 = vmul.f32 %v9725, 1.442695
          %v9775 = vpow.pop %v9774
          %v9776 = vmul.f32 %v9726, 1.442695
          %v9777 = vpow.pop %v9776
          %v9778 = vmul.f32 %v9727, 1.442695
          %v9779 = vpow.pop %v9778
          %v9780 = vmul.f32 %v9728, 1.442695
          %v9781 = vpow.pop %v9780
          %v9782 = vmul.f32 %v9729, 1.442695
          %v9783 = vpow.pop %v9782
          %v9784 = vmul.f32 %v9730, 1.442695
          %v9785 = vpow.pop %v9784
          %v9786 = vmul.f32 %v9731, 1.442695
          %v9787 = vpow.pop %v9786
          %v9788 = vmul.f32 %v9732, 1.442695
          %v9789 = vpow.pop %v9788
          %v9790 = vmul.f32 %v9733, 1.442695
          %v9791 = vpow.pop %v9790
          %v9792 = vmul.f32 %v9734, 1.442695
          %v9793 = vpow.pop %v9792
          %v9794 = vmul.f32 %v9735, 1.442695
          %v9795 = vpow.pop %v9794
          %v9796 = vmul.f32 %v9736, 1.442695
          %v9797 = vpow.pop %v9796
          %v9798 = vmul.f32 %v9737, 1.442695
          %v9799 = vpow.pop %v9798
          %v9800 = vmul.f32 %v9738, 1.442695
          %v9801 = vpow.pop %v9800
          %v9802 = vmul.f32 %v9739, 1.442695
          %v9803 = vpow.pop %v9802
          %9804 = vadd.xlane.f32.xlu0 %v9741
          %v9805 = vpop.xlane.xlu0 %9804
          %9806 = vadd.xlane.f32.xlu0 %v9743
          %v9807 = vpop.xlane.xlu0 %9806
          %9808 = vadd.xlane.f32.xlu0 %v9745
          %v9809 = vpop.xlane.xlu0 %9808
          %9810 = vadd.xlane.f32.xlu0 %v9747
          %v9811 = vpop.xlane.xlu0 %9810
          %9812 = vadd.xlane.f32.xlu0 %v9749
          %v9813 = vpop.xlane.xlu0 %9812
          %9814 = vadd.xlane.f32.xlu0 %v9751
          %v9815 = vpop.xlane.xlu0 %9814
          %9816 = vadd.xlane.f32.xlu0 %v9753
          %v9817 = vpop.xlane.xlu0 %9816
          %9818 = vadd.xlane.f32.xlu0 %v9755
          %v9819 = vpop.xlane.xlu0 %9818
          %9820 = vadd.xlane.f32.xlu0 %v9757
          %v9821 = vpop.xlane.xlu0 %9820
          %9822 = vadd.xlane.f32.xlu0 %v9759
          %v9823 = vpop.xlane.xlu0 %9822
          %9824 = vadd.xlane.f32.xlu0 %v9761
          %v9825 = vpop.xlane.xlu0 %9824
          %9826 = vadd.xlane.f32.xlu0 %v9763
          %v9827 = vpop.xlane.xlu0 %9826
          %9828 = vadd.xlane.f32.xlu0 %v9765
          %v9829 = vpop.xlane.xlu0 %9828
          %9830 = vadd.xlane.f32.xlu0 %v9767
          %v9831 = vpop.xlane.xlu0 %9830
          %9832 = vadd.xlane.f32.xlu0 %v9769
          %v9833 = vpop.xlane.xlu0 %9832
          %9834 = vadd.xlane.f32.xlu0 %v9771
          %v9835 = vpop.xlane.xlu0 %9834
          %9836 = vadd.xlane.f32.xlu0 %v9773
          %v9837 = vpop.xlane.xlu0 %9836
          %9838 = vadd.xlane.f32.xlu0 %v9775
          %v9839 = vpop.xlane.xlu0 %9838
          %9840 = vadd.xlane.f32.xlu0 %v9777
          %v9841 = vpop.xlane.xlu0 %9840
          %9842 = vadd.xlane.f32.xlu0 %v9779
          %v9843 = vpop.xlane.xlu0 %9842
          %9844 = vadd.xlane.f32.xlu0 %v9781
          %v9845 = vpop.xlane.xlu0 %9844
          %9846 = vadd.xlane.f32.xlu0 %v9783
          %v9847 = vpop.xlane.xlu0 %9846
          %9848 = vadd.xlane.f32.xlu0 %v9785
          %v9849 = vpop.xlane.xlu0 %9848
          %9850 = vadd.xlane.f32.xlu0 %v9787
          %v9851 = vpop.xlane.xlu0 %9850
          %9852 = vadd.xlane.f32.xlu0 %v9789
          %v9853 = vpop.xlane.xlu0 %9852
          %9854 = vadd.xlane.f32.xlu0 %v9791
          %v9855 = vpop.xlane.xlu0 %9854
          %9856 = vadd.xlane.f32.xlu0 %v9793
          %v9857 = vpop.xlane.xlu0 %9856
          %9858 = vadd.xlane.f32.xlu0 %v9795
          %v9859 = vpop.xlane.xlu0 %9858
          %9860 = vadd.xlane.f32.xlu0 %v9797
          %v9861 = vpop.xlane.xlu0 %9860
          %9862 = vadd.xlane.f32.xlu0 %v9799
          %v9863 = vpop.xlane.xlu0 %9862
          %9864 = vadd.xlane.f32.xlu0 %v9801
          %v9865 = vpop.xlane.xlu0 %9864
          %9866 = vadd.xlane.f32.xlu0 %v9803
          %v9867 = vpop.xlane.xlu0 %9866
          %v9868 = vlog2.pop %v9805
          %v9869 = vmul.f32 %v9868, 0.6931472
          %v9870 = vlog2.pop %v9807
          %v9871 = vmul.f32 %v9870, 0.6931472
          %v9872 = vlog2.pop %v9809
          %v9873 = vmul.f32 %v9872, 0.6931472
          %v9874 = vlog2.pop %v9811
          %v9875 = vmul.f32 %v9874, 0.6931472
          %v9876 = vlog2.pop %v9813
          %v9877 = vmul.f32 %v9876, 0.6931472
          %v9878 = vlog2.pop %v9815
          %v9879 = vmul.f32 %v9878, 0.6931472
          %v9880 = vlog2.pop %v9817
          %v9881 = vmul.f32 %v9880, 0.6931472
          %v9882 = vlog2.pop %v9819
          %v9883 = vmul.f32 %v9882, 0.6931472
          %v9884 = vlog2.pop %v9821
          %v9885 = vmul.f32 %v9884, 0.6931472
          %v9886 = vlog2.pop %v9823
          %v9887 = vmul.f32 %v9886, 0.6931472
          %v9888 = vlog2.pop %v9825
          %v9889 = vmul.f32 %v9888, 0.6931472
          %v9890 = vlog2.pop %v9827
          %v9891 = vmul.f32 %v9890, 0.6931472
          %v9892 = vlog2.pop %v9829
          %v9893 = vmul.f32 %v9892, 0.6931472
          %v9894 = vlog2.pop %v9831
          %v9895 = vmul.f32 %v9894, 0.6931472
          %v9896 = vlog2.pop %v9833
          %v9897 = vmul.f32 %v9896, 0.6931472
          %v9898 = vlog2.pop %v9835
          %v9899 = vmul.f32 %v9898, 0.6931472
          %v9900 = vlog2.pop %v9837
          %v9901 = vmul.f32 %v9900, 0.6931472
          %v9902 = vlog2.pop %v9839
          %v9903 = vmul.f32 %v9902, 0.6931472
          %v9904 = vlog2.pop %v9841
          %v9905 = vmul.f32 %v9904, 0.6931472
          %v9906 = vlog2.pop %v9843
          %v9907 = vmul.f32 %v9906, 0.6931472
          %v9908 = vlog2.pop %v9845
          %v9909 = vmul.f32 %v9908, 0.6931472
          %v9910 = vlog2.pop %v9847
          %v9911 = vmul.f32 %v9910, 0.6931472
          %v9912 = vlog2.pop %v9849
          %v9913 = vmul.f32 %v9912, 0.6931472
          %v9914 = vlog2.pop %v9851
          %v9915 = vmul.f32 %v9914, 0.6931472
          %v9916 = vlog2.pop %v9853
          %v9917 = vmul.f32 %v9916, 0.6931472
          %v9918 = vlog2.pop %v9855
          %v9919 = vmul.f32 %v9918, 0.6931472
          %v9920 = vlog2.pop %v9857
          %v9921 = vmul.f32 %v9920, 0.6931472
          %v9922 = vlog2.pop %v9859
          %v9923 = vmul.f32 %v9922, 0.6931472
          %v9924 = vlog2.pop %v9861
          %v9925 = vmul.f32 %v9924, 0.6931472
          %v9926 = vlog2.pop %v9863
          %v9927 = vmul.f32 %v9926, 0.6931472
          %v9928 = vlog2.pop %v9865
          %v9929 = vmul.f32 %v9928, 0.6931472
          %v9930 = vlog2.pop %v9867
          %v9931 = vmul.f32 %v9930, 0.6931472
          %v9932 = vadd.f32 %v9645, %v9869
          %v9933 = vadd.f32 %v9647, %v9871
          %v9934 = vadd.f32 %v9649, %v9873
          %v9935 = vadd.f32 %v9651, %v9875
          %v9936 = vadd.f32 %v9653, %v9877
          %v9937 = vadd.f32 %v9655, %v9879
          %v9938 = vadd.f32 %v9657, %v9881
          %v9939 = vadd.f32 %v9659, %v9883
          %v9940 = vadd.f32 %v9661, %v9885
          %v9941 = vadd.f32 %v9663, %v9887
          %v9942 = vadd.f32 %v9665, %v9889
          %v9943 = vadd.f32 %v9667, %v9891
          %v9944 = vadd.f32 %v9669, %v9893
          %v9945 = vadd.f32 %v9671, %v9895
          %v9946 = vadd.f32 %v9673, %v9897
          %v9947 = vadd.f32 %v9675, %v9899
          %v9948 = vadd.f32 %v9677, %v9901
          %v9949 = vadd.f32 %v9679, %v9903
          %v9950 = vadd.f32 %v9681, %v9905
          %v9951 = vadd.f32 %v9683, %v9907
          %v9952 = vadd.f32 %v9685, %v9909
          %v9953 = vadd.f32 %v9687, %v9911
          %v9954 = vadd.f32 %v9689, %v9913
          %v9955 = vadd.f32 %v9691, %v9915
          %v9956 = vadd.f32 %v9693, %v9917
          %v9957 = vadd.f32 %v9695, %v9919
          %v9958 = vadd.f32 %v9697, %v9921
          %v9959 = vadd.f32 %v9699, %v9923
          %v9960 = vadd.f32 %v9701, %v9925
          %v9961 = vadd.f32 %v9703, %v9927
          %v9962 = vadd.f32 %v9705, %v9929
          %v9963 = vadd.f32 %v9707, %v9931
          %v9964 = vsub.f32 %v9518, %v9932
          %v9965 = vsub.f32 %v9521, %v9933
          %v9966 = vsub.f32 %v9526, %v9934
          %v9967 = vsub.f32 %v9529, %v9935
          %v9968 = vsub.f32 %v9534, %v9936
          %v9969 = vsub.f32 %v9537, %v9937
          %v9970 = vsub.f32 %v9542, %v9938
          %v9971 = vsub.f32 %v9545, %v9939
          %v9972 = vsub.f32 %v9550, %v9940
          %v9973 = vsub.f32 %v9553, %v9941
          %v9974 = vsub.f32 %v9558, %v9942
          %v9975 = vsub.f32 %v9561, %v9943
          %v9976 = vsub.f32 %v9566, %v9944
          %v9977 = vsub.f32 %v9569, %v9945
          %v9978 = vsub.f32 %v9574, %v9946
          %v9979 = vsub.f32 %v9577, %v9947
          %v9980 = vsub.f32 %v9582, %v9948
          %v9981 = vsub.f32 %v9585, %v9949
          %v9982 = vsub.f32 %v9590, %v9950
          %v9983 = vsub.f32 %v9593, %v9951
          %v9984 = vsub.f32 %v9598, %v9952
          %v9985 = vsub.f32 %v9601, %v9953
          %v9986 = vsub.f32 %v9606, %v9954
          %v9987 = vsub.f32 %v9609, %v9955
          %v9988 = vsub.f32 %v9614, %v9956
          %v9989 = vsub.f32 %v9617, %v9957
          %v9990 = vsub.f32 %v9622, %v9958
          %v9991 = vsub.f32 %v9625, %v9959
          %v9992 = vsub.f32 %v9630, %v9960
          %v9993 = vsub.f32 %v9633, %v9961
          %v9994 = vsub.f32 %v9638, %v9962
          %v9995 = vsub.f32 %v9641, %v9963
          %9996 = vst [vmem:[#allocation18] sm:$0xff] %v9964
          %9997 = vst [vmem:[#allocation18 + $0x8] sm:$0xff] %v9965
          %9998 = vst [vmem:[#allocation18 + $0x10] sm:$0xff] %v9966
          %9999 = vst [vmem:[#allocation18 + $0x18] sm:$0xff] %v9967
          %10000 = vst [vmem:[#allocation18 + $0x20] sm:$0xff] %v9968
          %10001 = vst [vmem:[#allocation18 + $0x28] sm:$0xff] %v9969
          %10002 = vst [vmem:[#allocation18 + $0x30] sm:$0xff] %v9970
          %10003 = vst [vmem:[#allocation18 + $0x38] sm:$0xff] %v9971
          %10004 = vst [vmem:[#allocation18 + $0x40] sm:$0xff] %v9972
          %10005 = vst [vmem:[#allocation18 + $0x48] sm:$0xff] %v9973
          %10006 = vst [vmem:[#allocation18 + $0x50] sm:$0xff] %v9974
          %10007 = vst [vmem:[#allocation18 + $0x58] sm:$0xff] %v9975
          %10008 = vst [vmem:[#allocation18 + $0x60] sm:$0xff] %v9976
          %10009 = vst [vmem:[#allocation18 + $0x68] sm:$0xff] %v9977
          %10010 = vst [vmem:[#allocation18 + $0x70] sm:$0xff] %v9978
          %10011 = vst [vmem:[#allocation18 + $0x78] sm:$0xff] %v9979
          %10012 = vst [vmem:[#allocation18 + $0x80] sm:$0xff] %v9980
          %10013 = vst [vmem:[#allocation18 + $0x88] sm:$0xff] %v9981
          %10014 = vst [vmem:[#allocation18 + $0x90] sm:$0xff] %v9982
          %10015 = vst [vmem:[#allocation18 + $0x98] sm:$0xff] %v9983
          %10016 = vst [vmem:[#allocation18 + $0xa0] sm:$0xff] %v9984
          %10017 = vst [vmem:[#allocation18 + $0xa8] sm:$0xff] %v9985
          %10018 = vst [vmem:[#allocation18 + $0xb0] sm:$0xff] %v9986
          %10019 = vst [vmem:[#allocation18 + $0xb8] sm:$0xff] %v9987
          %10020 = vst [vmem:[#allocation18 + $0xc0] sm:$0xff] %v9988
          %10021 = vst [vmem:[#allocation18 + $0xc8] sm:$0xff] %v9989
          %10022 = vst [vmem:[#allocation18 + $0xd0] sm:$0xff] %v9990
          %10023 = vst [vmem:[#allocation18 + $0xd8] sm:$0xff] %v9991
          %10024 = vst [vmem:[#allocation18 + $0xe0] sm:$0xff] %v9992
          %10025 = vst [vmem:[#allocation18 + $0xe8] sm:$0xff] %v9993
          %10026 = vst [vmem:[#allocation18 + $0xf0] sm:$0xff] %v9994
          %10027 = vst [vmem:[#allocation18 + $0xf8] sm:$0xff] %v9995
        $region104: #{tpu_custom_call.1} parent=59 // pred_fallthru
          _
        // Predicated region
        $region105: #{tpu_custom_call.1} parent=59 // pred_check
          %p10028 = pneg %p303
        $region106: #{tpu_custom_call.1} parent=59 // pred_check_branch
          %10030 = sbr.rel (%p10028) target = $region108
        $region107: #{tpu_custom_call.1} parent=59 // pred_region
          %s10031 = smul.u32 2, %s37
          %s10033 = ssub.s32 4096, 4096
          %10034 = vsyncadd [#allocation5], %s10033
          %s10035 = smul.addr %s10031, 16
          %s10036 = smul.addr %s10035, 128
          %s10037 = scalar_lea.hbm %s10, %s10036
          %s10038 = sshll.u32 [#allocation18], 4
          %s10039 = int_to_ptr.vmem [resolvable:$true] %s10038
          %10044 = dma.vmem_to_hbm [thread:$0]  %s10039, 4096, %s10037, [#allocation5], 128, 128, 8
        $region108: #{tpu_custom_call.1} parent=59 // pred_fallthru
          _
        // Predicated region
        $region109: #{tpu_custom_call.1} parent=59 // pred_check
          %p10045 = pneg %p303
        $region110: #{tpu_custom_call.1} parent=59 // pred_check_branch
          %10047 = sbr.rel (%p10045) target = $region112
        $region111: #{tpu_custom_call.1} parent=59 // pred_region
          %10048 = dma.done [#allocation5], 4096
        $region112: #{tpu_custom_call.1} parent=59 // pred_fallthru
          _
      $region60: #{tpu_custom_call.1} parent=5 // pred_fallthru
        _
      %p10049 = scmp.le.s32.totalorder 2, %s28
      // Predicated region
      $region113: #{tpu_custom_call.1} parent=5 // pred_check
        %p10050 = pneg %p10049
      $region114: #{tpu_custom_call.1} parent=5 // pred_check_branch
        %10052 = sbr.rel (%p10050) target = $region116
      $region115: #{tpu_custom_call.1} parent=5 // pred_region
        %s10053 = ssub.s32 %s28, 2
      $region116: #{tpu_custom_call.1} parent=5 // pred_fallthru
        _
    $region6: #{tpu_custom_call.1} parent=1 // loop_footer
      %s32 = sadd.s32 1, %s28
    $region7: #{tpu_custom_call.1} parent=1 // loop_footer_branch
      %27 = sbr.rel target = $region3
    $region8: #{tpu_custom_call.1} parent=1 // loop_exit
      _
    %10054 = vsyncpa [#allocation4], 1
    %s10055 = scalar_lea.sflag [#allocation4], 1
    %10056 = vsyncpa %s10055, 1
    %10057 = vsyncpa [#allocation7], 1
    %10058 = vsyncpa [#allocation10], 1
    %s10059 = scalar_lea.sflag [#allocation10], 1
    %10060 = vsyncpa %s10059, 1
    %10061 = vsyncpa [#allocation13], 1
    %s10062 = scalar_lea.sflag [#allocation13], 1
    %10063 = vsyncpa %s10062, 1
    %10064 = vsyncpa [#allocation16], 1
    %s10065 = scalar_lea.sflag [#allocation16], 1
    %10066 = vsyncpa %s10065, 1
    %10067 = vsyncpa [#allocation5], 1
    %s10068 = scalar_lea.sflag [#allocation5], 1
    %10069 = vsyncpa %s10068, 1

</llo_original>
